<compile_context>
chip_gen: v7x
topology: tpu7x:2x2x1
jax: 0.10.0
libtpu: 0.0.40
codegen_flags: <defaults>
</compile_context>

<pallas_src>
import jax
import jax.numpy as jnp
from jax.experimental import pallas as pl
from jax.experimental.pallas import tpu as pltpu


def _round_up(v, m):
    return (v + m - 1) // m * m


# ----------------------------- Pallas kernel ------------------------------- #

def _conv3x3_taps(x_f32, w_ref, taps):
    """3x3 SAME conv (stride 1) as 9 per-tap channel-contraction matmuls.

    x_f32: (HW, Cp) f32 activation — flattened spatial on sublanes, channels on lanes.
    w_ref: (9, Cp, Cp) bf16 per-tap weights, tap k = (dh+1)*3 + (dw+1).
    taps:  list of (static_roll_shift, halo_mask_or_None), built once per call.

    Each tap: shift the INPUT rows on the XLU (circular pltpu.roll), zero the rows
    whose source pixel falls in the SAME zero-padding halo, cast to bf16 and
    accumulate one (HW, Cin)@(Cin, Cout) MXU matmul into a single f32 accumulator.
    """
    acc = None
    for k, (shift, mask) in enumerate(taps):
        xs = x_f32 if shift == 0 else pltpu.roll(x_f32, shift, 0)
        if mask is not None:
            xs = jnp.where(mask, xs, 0.0)
        y = jnp.dot(xs.astype(jnp.bfloat16), w_ref[k],
                    preferred_element_type=jnp.float32)
        acc = y if acc is None else acc + y
    return acc


def _make_basic_block_kernel(H, W):
    HW = H * W

    def kernel(x_ref, w1_ref, w2_ref, sb_ref, o_ref):
        """Fused BasicBlock body for one batch element.

        x_ref:  (1, HW, Cp)  f32 activation (also the residual)
        w1/w2:  (9, Cp, Cp)  bf16 per-tap conv weights
        sb_ref: (4, Cp)      f32 [scale1, bias1, scale2, bias2] (BN folded)
        o_ref:  (1, HW, Cp)  output tile
        """
        x = x_ref[0].astype(jnp.float32)            # (HW, Cp) lane-dense tile

        # Halo masks: built ONCE, reused by both convs (JAX does not CSE iota).
        p = jax.lax.broadcasted_iota(jnp.int32, (HW, x.shape[1]), 0)
        pm = p % W
        row_lo = p >= W                 # source row h-1 is valid
        row_hi = p < (H - 1) * W        # source row h+1 is valid
        col_lo = pm >= 1                # source col w-1 is valid
        col_hi = pm < (W - 1)           # source col w+1 is valid

        taps = []
        for dh in (-1, 0, 1):
            for dw in (-1, 0, 1):
                mask = row_lo if dh == -1 else (row_hi if dh == 1 else None)
                cmask = col_lo if dw == -1 else (col_hi if dw == 1 else None)
                if cmask is not None:
                    mask = cmask if mask is None else jnp.logical_and(mask, cmask)
                taps.append(((-(dh * W + dw)) % HW, mask))

        sb = sb_ref[...]                             # (4, Cp) folded BN params

        # conv1 + bn1 + relu  (intermediate stays on chip)
        mid = jnp.maximum(_conv3x3_taps(x, w1_ref, taps) * sb[0:1] + sb[1:2], 0.0)
        # conv2 + bn2 + residual add + relu  (x re-used from the same load)
        out = jnp.maximum(_conv3x3_taps(mid, w2_ref, taps) * sb[2:3] + sb[3:4] + x,
                          0.0)

        o_ref[0] = out.astype(o_ref.dtype)

    return kernel


# ------------------------------ JAX wrapper -------------------------------- #

def _prep_tap_weights(w_hwio, Cp):
    """(3, 3, Cin, Cout) HWIO conv weight -> (9, Cp, Cp) bf16 per-tap matrices."""
    KH, KW, Cin, Cout = w_hwio.shape
    w = jnp.zeros((KH, KW, Cp, Cp), w_hwio.dtype)
    w = w.at[:, :, :Cin, :Cout].set(w_hwio)
    return w.reshape(KH * KW, Cp, Cp).astype(jnp.bfloat16)


def basic_block_forward_nhwc(x_nhwc, params):
    """Fused BasicBlock forward on NHWC input (stride=1, dilation=1, no downsample)."""
    N, H, W, C = x_nhwc.shape
    kh, kw, cin, cout = params["w1"].shape
    assert (kh, kw) == (3, 3) and cin == C and cout == C \
        and params["w2"].shape == (3, 3, C, C), \
        "only the default BasicBlock config (stride=1, dilation=1, no downsample)"

    HW = H * W
    Cp = _round_up(max(C, 128), 128)    # lane-dense channels, MXU-aligned K/N

    x = x_nhwc.reshape(N, HW, C)
    if Cp != C:
        # TODO(synk): zero-padding channels is only sensible for toy widths; real
        # ResNet stages (C >= 64) should use a channel-tiled path instead.
        x = jnp.pad(x, ((0, 0), (0, 0), (0, Cp - C)))

    # One-time weight/BN prep (would be cached offline in practice).
    w1 = _prep_tap_weights(params["w1"], Cp)
    w2 = _prep_tap_weights(params["w2"], Cp)

    def padc(v):
        return jnp.pad(v, (0, Cp - C)) if Cp != C else v

    sb = jnp.stack([padc(params["scale1"]), padc(params["bias1"]),
                    padc(params["scale2"]), padc(params["bias2"])]
                   ).astype(jnp.float32)             # (4, Cp)

    kernel = _make_basic_block_kernel(H, W)

    # Actual executed MXU work: 2 convs x 9 taps x (HW,Cp)@(Cp,Cp), 2 flops/MAC.
    flops = 2 * 2 * 9 * N * HW * Cp * Cp
    bytes_accessed = (2 * N * HW * Cp * 4        # activation in + out (f32)
                      + 2 * 9 * Cp * Cp * 2      # bf16 weights
                      + 4 * Cp * 4)              # folded BN params

    out = pl.pallas_call(
        kernel,
        out_shape=jax.ShapeDtypeStruct((N, HW, Cp), x_nhwc.dtype),
        grid=(N,),
        in_specs=[
            pl.BlockSpec((1, HW, Cp), lambda n: (n, 0, 0)),
            pl.BlockSpec((9, Cp, Cp), lambda n: (0, 0, 0)),
            pl.BlockSpec((9, Cp, Cp), lambda n: (0, 0, 0)),
            pl.BlockSpec((4, Cp), lambda n: (0, 0)),
        ],
        out_specs=pl.BlockSpec((1, HW, Cp), lambda n: (n, 0, 0)),
        compiler_params=pltpu.CompilerParams(
            dimension_semantics=("parallel",),       # batch across TCs (megacore)
            vmem_limit_bytes=32 * 1024 * 1024),
        cost_estimate=pl.CostEstimate(flops=flops, transcendentals=0,
                                      bytes_accessed=bytes_accessed),
    )(x, w1, w2, sb)

    if Cp != C:
        out = out[..., :C]
    return out.reshape(N, H, W, C)


def basic_block_forward(x_nchw, params):
    """NCHW-compatible entry point matching the PyTorch module's layout."""
    # TODO(synk): in an NHWC end-to-end pipeline these transposes disappear.
    x = jnp.transpose(x_nchw, (0, 2, 3, 1))
    y = basic_block_forward_nhwc(x, params)
    return jnp.transpose(y, (0, 3, 1, 2))


# ----------------------------- parameter setup ------------------------------ #

def make_params(key, inplanes, planes, eps=1e-5):
    k1, k2, k3, k4, k5, k6 = jax.random.split(key, 6)
    # conv weights, HWIO layout, bias=False (as in the module).
    # Pre-round to bf16-representable values: the kernel runs its matmuls with
    # bf16 operands, so storing bf16-exact weights keeps the reference comparable.
    w1 = (0.1 * jax.random.normal(k1, (3, 3, inplanes, planes), jnp.float32)
          ).astype(jnp.bfloat16).astype(jnp.float32)
    w2 = (0.1 * jax.random.normal(k2, (3, 3, planes, planes), jnp.float32)
          ).astype(jnp.bfloat16).astype(jnp.float32)
    # BatchNorm (eval semantics) parameters, deterministic.
    gamma1 = 1.0 + 0.1 * jax.random.normal(k3, (planes,), jnp.float32)
    beta1 = 0.05 * jax.random.normal(k4, (planes,), jnp.float32)
    mean1 = 0.02 * jnp.arange(planes, dtype=jnp.float32)
    var1 = 1.0 + 0.01 * jnp.arange(planes, dtype=jnp.float32)
    gamma2 = 1.0 + 0.1 * jax.random.normal(k5, (planes,), jnp.float32)
    beta2 = 0.05 * jax.random.normal(k6, (planes,), jnp.float32)
    mean2 = -0.03 * jnp.arange(planes, dtype=jnp.float32)
    var2 = 1.0 + 0.02 * jnp.arange(planes, dtype=jnp.float32)

    scale1 = gamma1 / jnp.sqrt(var1 + eps)
    bias1 = beta1 - mean1 * scale1
    scale2 = gamma2 / jnp.sqrt(var2 + eps)
    bias2 = beta2 - mean2 * scale2
    return dict(w1=w1, w2=w2, scale1=scale1, bias1=bias1,
                scale2=scale2, bias2=bias2)


# ------------------------------- reference ---------------------------------- #

def _reference(x_nchw, p):
    x = jnp.transpose(x_nchw, (0, 2, 3, 1))
    dn = ("NHWC", "HWIO", "NHWC")
    c1 = jax.lax.conv_general_dilated(x, p["w1"], (1, 1), "SAME",
                                      dimension_numbers=dn)
    o1 = jnp.maximum(c1 * p["scale1"] + p["bias1"], 0.0)
    c2 = jax.lax.conv_general_dilated(o1, p["w2"], (1, 1), "SAME",
                                      dimension_numbers=dn)
    o2 = jnp.maximum(c2 * p["scale2"] + p["bias2"] + x, 0.0)
    return jnp.transpose(o2, (0, 3, 1, 2))


# --------------------------------- main -------------------------------------- #

if __name__ == "__main__":
    key = jax.random.PRNGKey(0)
    kx, kp = jax.random.split(key)

    N, C, H, W = 2, 4, 16, 16          # inplanes = planes = 4
    x = jax.random.normal(kx, (N, C, H, W), jnp.float32)
    params = make_params(kp, inplanes=C, planes=C)

    fwd = jax.jit(basic_block_forward)
    out = jax.block_until_ready(fwd(x, params))
    ref = jax.block_until_ready(_reference(x, params))

    assert out.shape == (N, C, H, W)
    max_err = float(jnp.max(jnp.abs(out - ref)))
    # Tolerance reflects bf16 MXU operands (activations rounded to bf16 in-kernel)
    # vs. the pure-f32 lax.conv reference.
    assert jnp.allclose(out, ref, rtol=5e-2, atol=5e-2), f"max err {max_err}"
    print("KERNEL_OK")
</pallas_src>

<mosaic_0001>
module attributes {stable_mosaic.version = 11 : i64} {
  func.func @kernel(%arg0: i32, %arg1: memref<1x256x128xf32, #tpu.memory_space<vmem>>, %arg2: memref<9x128x128xbf16, #tpu.memory_space<vmem>>, %arg3: memref<9x128x128xbf16, #tpu.memory_space<vmem>>, %arg4: memref<4x128xf32, #tpu.memory_space<vmem>>, %arg5: memref<1x256x128xf32, #tpu.memory_space<vmem>>) attributes {dimension_semantics = [#tpu.dimension_semantics<parallel>], iteration_bounds = array<i64: 2>, scalar_prefetch = 0 : i64, scratch_operands = 0 : i64, tpu.core_type = #tpu.core_type<tc>, window_params = [{transform_indices = @transform_0, window_bounds = array<i64: 1, 256, 128>}, {pipeline_mode = #tpu.pipeline_mode<synchronous>, transform_indices = @transform_1, window_bounds = array<i64: 9, 128, 128>}, {pipeline_mode = #tpu.pipeline_mode<synchronous>, transform_indices = @transform_2, window_bounds = array<i64: 9, 128, 128>}, {pipeline_mode = #tpu.pipeline_mode<synchronous>, transform_indices = @transform_3, window_bounds = array<i64: 4, 128>}, {transform_indices = @transform_4, window_bounds = array<i64: 1, 256, 128>}]} {
    %c0 = arith.constant 0 : index
    %c0_0 = arith.constant 0 : index
    %c0_1 = arith.constant 0 : index
    %0 = vector.load %arg1[%c0, %c0_0, %c0_1] : memref<1x256x128xf32, #tpu.memory_space<vmem>>, vector<1x256x128xf32>
    %1 = vector.shape_cast %0 : vector<1x256x128xf32> to vector<256x128xf32>
    %2 = tpu.iota {dimensions = array<i32: 0>} : vector<256x128xi32>
    %c16_i32 = arith.constant 16 : i32
    %c0_i32 = arith.constant 0 : i32
    %3 = arith.cmpi eq, %c16_i32, %c0_i32 : i32
    %c1_i32 = arith.constant 1 : i32
    %4 = arith.select %3, %c1_i32, %c16_i32 : i32
    %5 = vector.broadcast %4 : i32 to vector<256x128xi32>
    %6 = arith.remsi %2, %5 : vector<256x128xi32>
    %c0_i32_2 = arith.constant 0 : i32
    %7 = vector.broadcast %c0_i32_2 : i32 to vector<256x128xi32>
    %8 = arith.cmpi ne, %6, %7 : vector<256x128xi32>
    %c0_i32_3 = arith.constant 0 : i32
    %9 = vector.broadcast %c0_i32_3 : i32 to vector<256x128xi32>
    %10 = arith.cmpi slt, %6, %9 : vector<256x128xi32>
    %c0_i32_4 = arith.constant 0 : i32
    %11 = arith.cmpi slt, %4, %c0_i32_4 : i32
    %12 = vector.broadcast %11 : i1 to vector<256x128xi1>
    %13 = vector.broadcast %12 : vector<256x128xi1> to vector<256x128xi1>
    %14 = arith.xori %10, %13 : vector<256x128xi1>
    %15 = arith.andi %14, %8 : vector<256x128xi1>
    %16 = vector.broadcast %4 : i32 to vector<256x128xi32>
    %17 = arith.addi %6, %16 : vector<256x128xi32>
    %18 = arith.select %15, %17, %6 : vector<256x128xi1>, vector<256x128xi32>
    %c16_i32_5 = arith.constant 16 : i32
    %19 = vector.broadcast %c16_i32_5 : i32 to vector<256x128xi32>
    %20 = arith.cmpi sge, %2, %19 : vector<256x128xi32>
    %c240_i32 = arith.constant 240 : i32
    %21 = vector.broadcast %c240_i32 : i32 to vector<256x128xi32>
    %22 = arith.cmpi slt, %2, %21 : vector<256x128xi32>
    %c1_i32_6 = arith.constant 1 : i32
    %23 = vector.broadcast %c1_i32_6 : i32 to vector<256x128xi32>
    %24 = arith.cmpi sge, %18, %23 : vector<256x128xi32>
    %c15_i32 = arith.constant 15 : i32
    %25 = vector.broadcast %c15_i32 : i32 to vector<256x128xi32>
    %26 = arith.cmpi slt, %18, %25 : vector<256x128xi32>
    %27 = arith.andi %20, %24 : vector<256x128xi1>
    %28 = arith.andi %20, %26 : vector<256x128xi1>
    %29 = arith.andi %22, %24 : vector<256x128xi1>
    %30 = arith.andi %22, %26 : vector<256x128xi1>
    %c0_7 = arith.constant 0 : index
    %c0_8 = arith.constant 0 : index
    %31 = vector.load %arg4[%c0_7, %c0_8] : memref<4x128xf32, #tpu.memory_space<vmem>>, vector<4x128xf32>
    %c17_i32 = arith.constant 17 : i32
    %32 = tpu.dynamic_rotate %1 by %c17_i32 dim 0 : vector<256x128xf32>, i32 -> vector<256x128xf32>
    %cst = arith.constant 0.000000e+00 : f32
    %33 = vector.broadcast %cst : f32 to vector<256x128xf32>
    %34 = arith.select %27, %32, %33 : vector<256x128xi1>, vector<256x128xf32>
    %35 = arith.truncf %34 : vector<256x128xf32> to vector<256x128xbf16>
    %c0_9 = arith.constant 0 : index
    %c0_10 = arith.constant 0 : index
    %c0_11 = arith.constant 0 : index
    %36 = vector.load %arg2[%c0_9, %c0_10, %c0_11] : memref<9x128x128xbf16, #tpu.memory_space<vmem>>, vector<1x128x128xbf16>
    %37 = vector.shape_cast %36 : vector<1x128x128xbf16> to vector<128x128xbf16>
    %cst_12 = arith.constant dense<0.000000e+00> : vector<256x128xf32>
    %38 = tpu.matmul %35, %37, %cst_12 {dimension_numbers = #tpu.dot_dimension_numbers<[1], [0], [0], [1], [0, 0, 1, 1], [], []>} : vector<256x128xbf16>, vector<128x128xbf16>, vector<256x128xf32> -> vector<256x128xf32>
    %c16_i32_13 = arith.constant 16 : i32
    %39 = tpu.dynamic_rotate %1 by %c16_i32_13 dim 0 : vector<256x128xf32>, i32 -> vector<256x128xf32>
    %cst_14 = arith.constant 0.000000e+00 : f32
    %40 = vector.broadcast %cst_14 : f32 to vector<256x128xf32>
    %41 = arith.select %20, %39, %40 : vector<256x128xi1>, vector<256x128xf32>
    %42 = arith.truncf %41 : vector<256x128xf32> to vector<256x128xbf16>
    %c1 = arith.constant 1 : index
    %c0_15 = arith.constant 0 : index
    %c0_16 = arith.constant 0 : index
    %43 = vector.load %arg2[%c1, %c0_15, %c0_16] : memref<9x128x128xbf16, #tpu.memory_space<vmem>>, vector<1x128x128xbf16>
    %44 = vector.shape_cast %43 : vector<1x128x128xbf16> to vector<128x128xbf16>
    %cst_17 = arith.constant dense<0.000000e+00> : vector<256x128xf32>
    %45 = tpu.matmul %42, %44, %cst_17 {dimension_numbers = #tpu.dot_dimension_numbers<[1], [0], [0], [1], [0, 0, 1, 1], [], []>} : vector<256x128xbf16>, vector<128x128xbf16>, vector<256x128xf32> -> vector<256x128xf32>
    %46 = arith.addf %38, %45 : vector<256x128xf32>
    %c15_i32_18 = arith.constant 15 : i32
    %47 = tpu.dynamic_rotate %1 by %c15_i32_18 dim 0 : vector<256x128xf32>, i32 -> vector<256x128xf32>
    %cst_19 = arith.constant 0.000000e+00 : f32
    %48 = vector.broadcast %cst_19 : f32 to vector<256x128xf32>
    %49 = arith.select %28, %47, %48 : vector<256x128xi1>, vector<256x128xf32>
    %50 = arith.truncf %49 : vector<256x128xf32> to vector<256x128xbf16>
    %c2 = arith.constant 2 : index
    %c0_20 = arith.constant 0 : index
    %c0_21 = arith.constant 0 : index
    %51 = vector.load %arg2[%c2, %c0_20, %c0_21] : memref<9x128x128xbf16, #tpu.memory_space<vmem>>, vector<1x128x128xbf16>
    %52 = vector.shape_cast %51 : vector<1x128x128xbf16> to vector<128x128xbf16>
    %cst_22 = arith.constant dense<0.000000e+00> : vector<256x128xf32>
    %53 = tpu.matmul %50, %52, %cst_22 {dimension_numbers = #tpu.dot_dimension_numbers<[1], [0], [0], [1], [0, 0, 1, 1], [], []>} : vector<256x128xbf16>, vector<128x128xbf16>, vector<256x128xf32> -> vector<256x128xf32>
    %54 = arith.addf %46, %53 : vector<256x128xf32>
    %c1_i32_23 = arith.constant 1 : i32
    %55 = tpu.dynamic_rotate %1 by %c1_i32_23 dim 0 : vector<256x128xf32>, i32 -> vector<256x128xf32>
    %cst_24 = arith.constant 0.000000e+00 : f32
    %56 = vector.broadcast %cst_24 : f32 to vector<256x128xf32>
    %57 = arith.select %24, %55, %56 : vector<256x128xi1>, vector<256x128xf32>
    %58 = arith.truncf %57 : vector<256x128xf32> to vector<256x128xbf16>
    %c3 = arith.constant 3 : index
    %c0_25 = arith.constant 0 : index
    %c0_26 = arith.constant 0 : index
    %59 = vector.load %arg2[%c3, %c0_25, %c0_26] : memref<9x128x128xbf16, #tpu.memory_space<vmem>>, vector<1x128x128xbf16>
    %60 = vector.shape_cast %59 : vector<1x128x128xbf16> to vector<128x128xbf16>
    %cst_27 = arith.constant dense<0.000000e+00> : vector<256x128xf32>
    %61 = tpu.matmul %58, %60, %cst_27 {dimension_numbers = #tpu.dot_dimension_numbers<[1], [0], [0], [1], [0, 0, 1, 1], [], []>} : vector<256x128xbf16>, vector<128x128xbf16>, vector<256x128xf32> -> vector<256x128xf32>
    %62 = arith.addf %54, %61 : vector<256x128xf32>
    %63 = arith.truncf %1 : vector<256x128xf32> to vector<256x128xbf16>
    %c4 = arith.constant 4 : index
    %c0_28 = arith.constant 0 : index
    %c0_29 = arith.constant 0 : index
    %64 = vector.load %arg2[%c4, %c0_28, %c0_29] : memref<9x128x128xbf16, #tpu.memory_space<vmem>>, vector<1x128x128xbf16>
    %65 = vector.shape_cast %64 : vector<1x128x128xbf16> to vector<128x128xbf16>
    %cst_30 = arith.constant dense<0.000000e+00> : vector<256x128xf32>
    %66 = tpu.matmul %63, %65, %cst_30 {dimension_numbers = #tpu.dot_dimension_numbers<[1], [0], [0], [1], [0, 0, 1, 1], [], []>} : vector<256x128xbf16>, vector<128x128xbf16>, vector<256x128xf32> -> vector<256x128xf32>
    %67 = arith.addf %62, %66 : vector<256x128xf32>
    %c255_i32 = arith.constant 255 : i32
    %68 = tpu.dynamic_rotate %1 by %c255_i32 dim 0 : vector<256x128xf32>, i32 -> vector<256x128xf32>
    %cst_31 = arith.constant 0.000000e+00 : f32
    %69 = vector.broadcast %cst_31 : f32 to vector<256x128xf32>
    %70 = arith.select %26, %68, %69 : vector<256x128xi1>, vector<256x128xf32>
    %71 = arith.truncf %70 : vector<256x128xf32> to vector<256x128xbf16>
    %c5 = arith.constant 5 : index
    %c0_32 = arith.constant 0 : index
    %c0_33 = arith.constant 0 : index
    %72 = vector.load %arg2[%c5, %c0_32, %c0_33] : memref<9x128x128xbf16, #tpu.memory_space<vmem>>, vector<1x128x128xbf16>
    %73 = vector.shape_cast %72 : vector<1x128x128xbf16> to vector<128x128xbf16>
    %cst_34 = arith.constant dense<0.000000e+00> : vector<256x128xf32>
    %74 = tpu.matmul %71, %73, %cst_34 {dimension_numbers = #tpu.dot_dimension_numbers<[1], [0], [0], [1], [0, 0, 1, 1], [], []>} : vector<256x128xbf16>, vector<128x128xbf16>, vector<256x128xf32> -> vector<256x128xf32>
    %75 = arith.addf %67, %74 : vector<256x128xf32>
    %c241_i32 = arith.constant 241 : i32
    %76 = tpu.dynamic_rotate %1 by %c241_i32 dim 0 : vector<256x128xf32>, i32 -> vector<256x128xf32>
    %cst_35 = arith.constant 0.000000e+00 : f32
    %77 = vector.broadcast %cst_35 : f32 to vector<256x128xf32>
    %78 = arith.select %29, %76, %77 : vector<256x128xi1>, vector<256x128xf32>
    %79 = arith.truncf %78 : vector<256x128xf32> to vector<256x128xbf16>
    %c6 = arith.constant 6 : index
    %c0_36 = arith.constant 0 : index
    %c0_37 = arith.constant 0 : index
    %80 = vector.load %arg2[%c6, %c0_36, %c0_37] : memref<9x128x128xbf16, #tpu.memory_space<vmem>>, vector<1x128x128xbf16>
    %81 = vector.shape_cast %80 : vector<1x128x128xbf16> to vector<128x128xbf16>
    %cst_38 = arith.constant dense<0.000000e+00> : vector<256x128xf32>
    %82 = tpu.matmul %79, %81, %cst_38 {dimension_numbers = #tpu.dot_dimension_numbers<[1], [0], [0], [1], [0, 0, 1, 1], [], []>} : vector<256x128xbf16>, vector<128x128xbf16>, vector<256x128xf32> -> vector<256x128xf32>
    %83 = arith.addf %75, %82 : vector<256x128xf32>
    %c240_i32_39 = arith.constant 240 : i32
    %84 = tpu.dynamic_rotate %1 by %c240_i32_39 dim 0 : vector<256x128xf32>, i32 -> vector<256x128xf32>
    %cst_40 = arith.constant 0.000000e+00 : f32
    %85 = vector.broadcast %cst_40 : f32 to vector<256x128xf32>
    %86 = arith.select %22, %84, %85 : vector<256x128xi1>, vector<256x128xf32>
    %87 = arith.truncf %86 : vector<256x128xf32> to vector<256x128xbf16>
    %c7 = arith.constant 7 : index
    %c0_41 = arith.constant 0 : index
    %c0_42 = arith.constant 0 : index
    %88 = vector.load %arg2[%c7, %c0_41, %c0_42] : memref<9x128x128xbf16, #tpu.memory_space<vmem>>, vector<1x128x128xbf16>
    %89 = vector.shape_cast %88 : vector<1x128x128xbf16> to vector<128x128xbf16>
    %cst_43 = arith.constant dense<0.000000e+00> : vector<256x128xf32>
    %90 = tpu.matmul %87, %89, %cst_43 {dimension_numbers = #tpu.dot_dimension_numbers<[1], [0], [0], [1], [0, 0, 1, 1], [], []>} : vector<256x128xbf16>, vector<128x128xbf16>, vector<256x128xf32> -> vector<256x128xf32>
    %91 = arith.addf %83, %90 : vector<256x128xf32>
    %c239_i32 = arith.constant 239 : i32
    %92 = tpu.dynamic_rotate %1 by %c239_i32 dim 0 : vector<256x128xf32>, i32 -> vector<256x128xf32>
    %cst_44 = arith.constant 0.000000e+00 : f32
    %93 = vector.broadcast %cst_44 : f32 to vector<256x128xf32>
    %94 = arith.select %30, %92, %93 : vector<256x128xi1>, vector<256x128xf32>
    %95 = arith.truncf %94 : vector<256x128xf32> to vector<256x128xbf16>
    %c8 = arith.constant 8 : index
    %c0_45 = arith.constant 0 : index
    %c0_46 = arith.constant 0 : index
    %96 = vector.load %arg2[%c8, %c0_45, %c0_46] : memref<9x128x128xbf16, #tpu.memory_space<vmem>>, vector<1x128x128xbf16>
    %97 = vector.shape_cast %96 : vector<1x128x128xbf16> to vector<128x128xbf16>
    %cst_47 = arith.constant dense<0.000000e+00> : vector<256x128xf32>
    %98 = tpu.matmul %95, %97, %cst_47 {dimension_numbers = #tpu.dot_dimension_numbers<[1], [0], [0], [1], [0, 0, 1, 1], [], []>} : vector<256x128xbf16>, vector<128x128xbf16>, vector<256x128xf32> -> vector<256x128xf32>
    %99 = arith.addf %91, %98 : vector<256x128xf32>
    %100 = vector.extract_strided_slice %31 {offsets = [0, 0], sizes = [1, 128], strides = [1, 1]} : vector<4x128xf32> to vector<1x128xf32>
    %101 = vector.broadcast %100 : vector<1x128xf32> to vector<256x128xf32>
    %102 = arith.mulf %99, %101 : vector<256x128xf32>
    %103 = vector.extract_strided_slice %31 {offsets = [1, 0], sizes = [1, 128], strides = [1, 1]} : vector<4x128xf32> to vector<1x128xf32>
    %104 = vector.broadcast %103 : vector<1x128xf32> to vector<256x128xf32>
    %105 = arith.addf %102, %104 : vector<256x128xf32>
    %cst_48 = arith.constant 0.000000e+00 : f32
    %106 = vector.broadcast %cst_48 : f32 to vector<256x128xf32>
    %107 = arith.maximumf %105, %106 : vector<256x128xf32>
    %c17_i32_49 = arith.constant 17 : i32
    %108 = tpu.dynamic_rotate %107 by %c17_i32_49 dim 0 : vector<256x128xf32>, i32 -> vector<256x128xf32>
    %cst_50 = arith.constant 0.000000e+00 : f32
    %109 = vector.broadcast %cst_50 : f32 to vector<256x128xf32>
    %110 = arith.select %27, %108, %109 : vector<256x128xi1>, vector<256x128xf32>
    %111 = arith.truncf %110 : vector<256x128xf32> to vector<256x128xbf16>
    %c0_51 = arith.constant 0 : index
    %c0_52 = arith.constant 0 : index
    %c0_53 = arith.constant 0 : index
    %112 = vector.load %arg3[%c0_51, %c0_52, %c0_53] : memref<9x128x128xbf16, #tpu.memory_space<vmem>>, vector<1x128x128xbf16>
    %113 = vector.shape_cast %112 : vector<1x128x128xbf16> to vector<128x128xbf16>
    %cst_54 = arith.constant dense<0.000000e+00> : vector<256x128xf32>
    %114 = tpu.matmul %111, %113, %cst_54 {dimension_numbers = #tpu.dot_dimension_numbers<[1], [0], [0], [1], [0, 0, 1, 1], [], []>} : vector<256x128xbf16>, vector<128x128xbf16>, vector<256x128xf32> -> vector<256x128xf32>
    %c16_i32_55 = arith.constant 16 : i32
    %115 = tpu.dynamic_rotate %107 by %c16_i32_55 dim 0 : vector<256x128xf32>, i32 -> vector<256x128xf32>
    %cst_56 = arith.constant 0.000000e+00 : f32
    %116 = vector.broadcast %cst_56 : f32 to vector<256x128xf32>
    %117 = arith.select %20, %115, %116 : vector<256x128xi1>, vector<256x128xf32>
    %118 = arith.truncf %117 : vector<256x128xf32> to vector<256x128xbf16>
    %c1_57 = arith.constant 1 : index
    %c0_58 = arith.constant 0 : index
    %c0_59 = arith.constant 0 : index
    %119 = vector.load %arg3[%c1_57, %c0_58, %c0_59] : memref<9x128x128xbf16, #tpu.memory_space<vmem>>, vector<1x128x128xbf16>
    %120 = vector.shape_cast %119 : vector<1x128x128xbf16> to vector<128x128xbf16>
    %cst_60 = arith.constant dense<0.000000e+00> : vector<256x128xf32>
    %121 = tpu.matmul %118, %120, %cst_60 {dimension_numbers = #tpu.dot_dimension_numbers<[1], [0], [0], [1], [0, 0, 1, 1], [], []>} : vector<256x128xbf16>, vector<128x128xbf16>, vector<256x128xf32> -> vector<256x128xf32>
    %122 = arith.addf %114, %121 : vector<256x128xf32>
    %c15_i32_61 = arith.constant 15 : i32
    %123 = tpu.dynamic_rotate %107 by %c15_i32_61 dim 0 : vector<256x128xf32>, i32 -> vector<256x128xf32>
    %cst_62 = arith.constant 0.000000e+00 : f32
    %124 = vector.broadcast %cst_62 : f32 to vector<256x128xf32>
    %125 = arith.select %28, %123, %124 : vector<256x128xi1>, vector<256x128xf32>
    %126 = arith.truncf %125 : vector<256x128xf32> to vector<256x128xbf16>
    %c2_63 = arith.constant 2 : index
    %c0_64 = arith.constant 0 : index
    %c0_65 = arith.constant 0 : index
    %127 = vector.load %arg3[%c2_63, %c0_64, %c0_65] : memref<9x128x128xbf16, #tpu.memory_space<vmem>>, vector<1x128x128xbf16>
    %128 = vector.shape_cast %127 : vector<1x128x128xbf16> to vector<128x128xbf16>
    %cst_66 = arith.constant dense<0.000000e+00> : vector<256x128xf32>
    %129 = tpu.matmul %126, %128, %cst_66 {dimension_numbers = #tpu.dot_dimension_numbers<[1], [0], [0], [1], [0, 0, 1, 1], [], []>} : vector<256x128xbf16>, vector<128x128xbf16>, vector<256x128xf32> -> vector<256x128xf32>
    %130 = arith.addf %122, %129 : vector<256x128xf32>
    %c1_i32_67 = arith.constant 1 : i32
    %131 = tpu.dynamic_rotate %107 by %c1_i32_67 dim 0 : vector<256x128xf32>, i32 -> vector<256x128xf32>
    %cst_68 = arith.constant 0.000000e+00 : f32
    %132 = vector.broadcast %cst_68 : f32 to vector<256x128xf32>
    %133 = arith.select %24, %131, %132 : vector<256x128xi1>, vector<256x128xf32>
    %134 = arith.truncf %133 : vector<256x128xf32> to vector<256x128xbf16>
    %c3_69 = arith.constant 3 : index
    %c0_70 = arith.constant 0 : index
    %c0_71 = arith.constant 0 : index
    %135 = vector.load %arg3[%c3_69, %c0_70, %c0_71] : memref<9x128x128xbf16, #tpu.memory_space<vmem>>, vector<1x128x128xbf16>
    %136 = vector.shape_cast %135 : vector<1x128x128xbf16> to vector<128x128xbf16>
    %cst_72 = arith.constant dense<0.000000e+00> : vector<256x128xf32>
    %137 = tpu.matmul %134, %136, %cst_72 {dimension_numbers = #tpu.dot_dimension_numbers<[1], [0], [0], [1], [0, 0, 1, 1], [], []>} : vector<256x128xbf16>, vector<128x128xbf16>, vector<256x128xf32> -> vector<256x128xf32>
    %138 = arith.addf %130, %137 : vector<256x128xf32>
    %139 = arith.truncf %107 : vector<256x128xf32> to vector<256x128xbf16>
    %c4_73 = arith.constant 4 : index
    %c0_74 = arith.constant 0 : index
    %c0_75 = arith.constant 0 : index
    %140 = vector.load %arg3[%c4_73, %c0_74, %c0_75] : memref<9x128x128xbf16, #tpu.memory_space<vmem>>, vector<1x128x128xbf16>
    %141 = vector.shape_cast %140 : vector<1x128x128xbf16> to vector<128x128xbf16>
    %cst_76 = arith.constant dense<0.000000e+00> : vector<256x128xf32>
    %142 = tpu.matmul %139, %141, %cst_76 {dimension_numbers = #tpu.dot_dimension_numbers<[1], [0], [0], [1], [0, 0, 1, 1], [], []>} : vector<256x128xbf16>, vector<128x128xbf16>, vector<256x128xf32> -> vector<256x128xf32>
    %143 = arith.addf %138, %142 : vector<256x128xf32>
    %c255_i32_77 = arith.constant 255 : i32
    %144 = tpu.dynamic_rotate %107 by %c255_i32_77 dim 0 : vector<256x128xf32>, i32 -> vector<256x128xf32>
    %cst_78 = arith.constant 0.000000e+00 : f32
    %145 = vector.broadcast %cst_78 : f32 to vector<256x128xf32>
    %146 = arith.select %26, %144, %145 : vector<256x128xi1>, vector<256x128xf32>
    %147 = arith.truncf %146 : vector<256x128xf32> to vector<256x128xbf16>
    %c5_79 = arith.constant 5 : index
    %c0_80 = arith.constant 0 : index
    %c0_81 = arith.constant 0 : index
    %148 = vector.load %arg3[%c5_79, %c0_80, %c0_81] : memref<9x128x128xbf16, #tpu.memory_space<vmem>>, vector<1x128x128xbf16>
    %149 = vector.shape_cast %148 : vector<1x128x128xbf16> to vector<128x128xbf16>
    %cst_82 = arith.constant dense<0.000000e+00> : vector<256x128xf32>
    %150 = tpu.matmul %147, %149, %cst_82 {dimension_numbers = #tpu.dot_dimension_numbers<[1], [0], [0], [1], [0, 0, 1, 1], [], []>} : vector<256x128xbf16>, vector<128x128xbf16>, vector<256x128xf32> -> vector<256x128xf32>
    %151 = arith.addf %143, %150 : vector<256x128xf32>
    %c241_i32_83 = arith.constant 241 : i32
    %152 = tpu.dynamic_rotate %107 by %c241_i32_83 dim 0 : vector<256x128xf32>, i32 -> vector<256x128xf32>
    %cst_84 = arith.constant 0.000000e+00 : f32
    %153 = vector.broadcast %cst_84 : f32 to vector<256x128xf32>
    %154 = arith.select %29, %152, %153 : vector<256x128xi1>, vector<256x128xf32>
    %155 = arith.truncf %154 : vector<256x128xf32> to vector<256x128xbf16>
    %c6_85 = arith.constant 6 : index
    %c0_86 = arith.constant 0 : index
    %c0_87 = arith.constant 0 : index
    %156 = vector.load %arg3[%c6_85, %c0_86, %c0_87] : memref<9x128x128xbf16, #tpu.memory_space<vmem>>, vector<1x128x128xbf16>
    %157 = vector.shape_cast %156 : vector<1x128x128xbf16> to vector<128x128xbf16>
    %cst_88 = arith.constant dense<0.000000e+00> : vector<256x128xf32>
    %158 = tpu.matmul %155, %157, %cst_88 {dimension_numbers = #tpu.dot_dimension_numbers<[1], [0], [0], [1], [0, 0, 1, 1], [], []>} : vector<256x128xbf16>, vector<128x128xbf16>, vector<256x128xf32> -> vector<256x128xf32>
    %159 = arith.addf %151, %158 : vector<256x128xf32>
    %c240_i32_89 = arith.constant 240 : i32
    %160 = tpu.dynamic_rotate %107 by %c240_i32_89 dim 0 : vector<256x128xf32>, i32 -> vector<256x128xf32>
    %cst_90 = arith.constant 0.000000e+00 : f32
    %161 = vector.broadcast %cst_90 : f32 to vector<256x128xf32>
    %162 = arith.select %22, %160, %161 : vector<256x128xi1>, vector<256x128xf32>
    %163 = arith.truncf %162 : vector<256x128xf32> to vector<256x128xbf16>
    %c7_91 = arith.constant 7 : index
    %c0_92 = arith.constant 0 : index
    %c0_93 = arith.constant 0 : index
    %164 = vector.load %arg3[%c7_91, %c0_92, %c0_93] : memref<9x128x128xbf16, #tpu.memory_space<vmem>>, vector<1x128x128xbf16>
    %165 = vector.shape_cast %164 : vector<1x128x128xbf16> to vector<128x128xbf16>
    %cst_94 = arith.constant dense<0.000000e+00> : vector<256x128xf32>
    %166 = tpu.matmul %163, %165, %cst_94 {dimension_numbers = #tpu.dot_dimension_numbers<[1], [0], [0], [1], [0, 0, 1, 1], [], []>} : vector<256x128xbf16>, vector<128x128xbf16>, vector<256x128xf32> -> vector<256x128xf32>
    %167 = arith.addf %159, %166 : vector<256x128xf32>
    %c239_i32_95 = arith.constant 239 : i32
    %168 = tpu.dynamic_rotate %107 by %c239_i32_95 dim 0 : vector<256x128xf32>, i32 -> vector<256x128xf32>
    %cst_96 = arith.constant 0.000000e+00 : f32
    %169 = vector.broadcast %cst_96 : f32 to vector<256x128xf32>
    %170 = arith.select %30, %168, %169 : vector<256x128xi1>, vector<256x128xf32>
    %171 = arith.truncf %170 : vector<256x128xf32> to vector<256x128xbf16>
    %c8_97 = arith.constant 8 : index
    %c0_98 = arith.constant 0 : index
    %c0_99 = arith.constant 0 : index
    %172 = vector.load %arg3[%c8_97, %c0_98, %c0_99] : memref<9x128x128xbf16, #tpu.memory_space<vmem>>, vector<1x128x128xbf16>
    %173 = vector.shape_cast %172 : vector<1x128x128xbf16> to vector<128x128xbf16>
    %cst_100 = arith.constant dense<0.000000e+00> : vector<256x128xf32>
    %174 = tpu.matmul %171, %173, %cst_100 {dimension_numbers = #tpu.dot_dimension_numbers<[1], [0], [0], [1], [0, 0, 1, 1], [], []>} : vector<256x128xbf16>, vector<128x128xbf16>, vector<256x128xf32> -> vector<256x128xf32>
    %175 = arith.addf %167, %174 : vector<256x128xf32>
    %176 = vector.extract_strided_slice %31 {offsets = [2, 0], sizes = [1, 128], strides = [1, 1]} : vector<4x128xf32> to vector<1x128xf32>
    %177 = vector.broadcast %176 : vector<1x128xf32> to vector<256x128xf32>
    %178 = arith.mulf %175, %177 : vector<256x128xf32>
    %179 = vector.extract_strided_slice %31 {offsets = [3, 0], sizes = [1, 128], strides = [1, 1]} : vector<4x128xf32> to vector<1x128xf32>
    %180 = vector.broadcast %179 : vector<1x128xf32> to vector<256x128xf32>
    %181 = arith.addf %178, %180 : vector<256x128xf32>
    %182 = arith.addf %181, %1 : vector<256x128xf32>
    %cst_101 = arith.constant 0.000000e+00 : f32
    %183 = vector.broadcast %cst_101 : f32 to vector<256x128xf32>
    %184 = arith.maximumf %182, %183 : vector<256x128xf32>
    %c0_102 = arith.constant 0 : index
    %c0_103 = arith.constant 0 : index
    %c0_104 = arith.constant 0 : index
    %185 = vector.load %arg5[%c0_102, %c0_103, %c0_104] : memref<1x256x128xf32, #tpu.memory_space<vmem>>, vector<1x256x128xf32>
    %186 = vector.shape_cast %185 : vector<1x256x128xf32> to vector<256x128xf32>
    %187 = vector.shape_cast %184 : vector<256x128xf32> to vector<1x256x128xf32>
    tpu.vector_store %arg5[%c0_102, %c0_103, %c0_104], %187 {strides = array<i32>} : memref<1x256x128xf32, #tpu.memory_space<vmem>>, vector<1x256x128xf32>,
    return
  }
  func.func @transform_0(%arg0: i32) -> (i32, i32, i32) {
    %c0_i32 = arith.constant 0 : i32
    %c0_i32_0 = arith.constant 0 : i32
    %c0_i32_1 = arith.constant 0 : i32
    return %arg0, %c0_i32, %c0_i32_0 : i32, i32, i32
  }
  func.func @transform_1(%arg0: i32) -> (i32, i32, i32) {
    %c0_i32 = arith.constant 0 : i32
    %c0_i32_0 = arith.constant 0 : i32
    %c0_i32_1 = arith.constant 0 : i32
    %c0_i32_2 = arith.constant 0 : i32
    return %c0_i32, %c0_i32_0, %c0_i32_1 : i32, i32, i32
  }
  func.func @transform_2(%arg0: i32) -> (i32, i32, i32) {
    %c0_i32 = arith.constant 0 : i32
    %c0_i32_0 = arith.constant 0 : i32
    %c0_i32_1 = arith.constant 0 : i32
    %c0_i32_2 = arith.constant 0 : i32
    return %c0_i32, %c0_i32_0, %c0_i32_1 : i32, i32, i32
  }
  func.func @transform_3(%arg0: i32) -> (i32, i32) {
    %c0_i32 = arith.constant 0 : i32
    %c0_i32_0 = arith.constant 0 : i32
    %c0_i32_1 = arith.constant 0 : i32
    return %c0_i32, %c0_i32_0 : i32, i32
  }
  func.func @transform_4(%arg0: i32) -> (i32, i32, i32) {
    %c0_i32 = arith.constant 0 : i32
    %c0_i32_0 = arith.constant 0 : i32
    %c0_i32_1 = arith.constant 0 : i32
    return %arg0, %c0_i32, %c0_i32_0 : i32, i32, i32
  }
}

</mosaic_0001>

<llo_original>
// kernel: basic_block_forward.1
$region0: #{basic_block_forward.1}
  #allocation0 [shape = 'u32[]', space=smem, size = 0x4, offset = 0x4, fixed_abs, tag = 'smem constant byte address 0x4 - core index']
  #allocation1 [shape = 'u32[144,128]{1,0:T(1,128)}', space=vmem, size = 0x12000, scoped, tag = 'internal scratch']
  %s0 = inlined_call_operand.vmem [shape: f32[2,256,128], index: 0, kind: input, shape index: {}]
  %s1 = inlined_call_operand.vmem [shape: bf16[9,128,128], index: 1, kind: input, shape index: {}]
  %s2 = inlined_call_operand.vmem [shape: bf16[9,128,128], index: 2, kind: input, shape index: {}]
  %s3 = inlined_call_operand.vmem [shape: f32[4,128], index: 3, kind: input, shape index: {}]
  %s4 = inlined_call_operand.vmem [shape: f32[2,256,128], index: 4, kind: output, shape index: {}]
  %s5 = sld [smem:[#allocation0]]
  $region49: #{basic_block_forward.1} parent=0
    _
  %s7 = ssub.s32 1, %s5
  %s8 = scalar_select 0, %s7, %s5
  loop: start=0, step=1, limit=4
  $region2: #{basic_block_forward.1} parent=0 // loop_pre_header
    _
  $region3: #{basic_block_forward.1} parent=0 // loop_header
    %s10 = sphi 0, %s14
    %p11 = scmp.ge.s32.totalorder %s10, 4
    %s20 = sphi 0, %s22
    %s23 = sphi 0, %s20
    %s24 = sphi 0, %s23
    %s40 = sphi 0, %s24
    %s44 = sphi 0, %s44
    %s46 = sphi 0, %s44
    %s47 = sphi 0, %s46
    %s61 = sphi 0, %s47
    %s65 = sphi 0, %s65
    %s67 = sphi 0, %s65
    %s68 = sphi 0, %s67
    %s82 = sphi 0, %s68
    %s86 = sphi 0, %s86
    %s88 = sphi 0, %s86
    %s89 = sphi 0, %s88
    %s103 = sphi 0, %s89
    %s109 = sphi 0, %s111
    %s112 = sphi 0, %s109
    %s113 = sphi 0, %s112
    %s129 = sphi 0, %s113
  $region4: #{basic_block_forward.1} parent=0 // loop_header_branch
    %13 = sbr.rel (%p11) target = $region8
  $region5: #{basic_block_forward.1} parent=0 // loop_body
    %s15 = ssub.s32 %s10, 1
    %s16 = ssub.s32 %s10, 2
    %s17 = sadd.s32 %s10, 1
    %s18 = ssub.s32 %s10, %s17
    %p19 = scmp.eq.s32.totalorder %s18, 0
    %s21 = sadd.s32 %s20, 1
    %s22 = scalar_select %p19, %s20, %s21
    %p25 = pneg %p19
    %p26 = scmp.eq.s32.totalorder %s10, 1
    %p27 = por %p25, %p26
    %p28 = scmp.ne.s32.totalorder %s20, %s23
    %p29 = scmp.eq.s32.totalorder %s10, 0
    %p30 = por %p28, %p29
    %p31 = scmp.ne.s32.totalorder %s20, %s23
    %p32 = scmp.eq.s32.totalorder %s15, 1
    %p33 = por %p31, %p32
    %p34 = scmp.ne.s32.totalorder %s23, %s24
    %p35 = scmp.eq.s32.totalorder %s15, 0
    %p36 = por %p34, %p35
    %p37 = scmp.ne.s32.totalorder %s23, %s24
    %p38 = scmp.eq.s32.totalorder %s16, 1
    %p39 = por %p37, %p38
    %p41 = scmp.ne.s32.totalorder %s24, %s40
    %p42 = scmp.eq.s32.totalorder %s16, 0
    %p43 = por %p41, %p42
    %s45 = sadd.s32 %s44, 1
    %p48 = scmp.eq.s32.totalorder %s10, 1
    %p49 = scmp.ne.s32.totalorder %s44, %s46
    %p50 = scmp.eq.s32.totalorder %s10, 0
    %p51 = por %p49, %p50
    %p52 = scmp.ne.s32.totalorder %s44, %s46
    %p53 = scmp.eq.s32.totalorder %s15, 1
    %p54 = por %p52, %p53
    %p55 = scmp.ne.s32.totalorder %s46, %s47
    %p56 = scmp.eq.s32.totalorder %s15, 0
    %p57 = por %p55, %p56
    %p58 = scmp.ne.s32.totalorder %s46, %s47
    %p59 = scmp.eq.s32.totalorder %s16, 1
    %p60 = por %p58, %p59
    %p62 = scmp.ne.s32.totalorder %s47, %s61
    %p63 = scmp.eq.s32.totalorder %s16, 0
    %p64 = por %p62, %p63
    %s66 = sadd.s32 %s65, 1
    %p69 = scmp.eq.s32.totalorder %s10, 1
    %p70 = scmp.ne.s32.totalorder %s65, %s67
    %p71 = scmp.eq.s32.totalorder %s10, 0
    %p72 = por %p70, %p71
    %p73 = scmp.ne.s32.totalorder %s65, %s67
    %p74 = scmp.eq.s32.totalorder %s15, 1
    %p75 = por %p73, %p74
    %p76 = scmp.ne.s32.totalorder %s67, %s68
    %p77 = scmp.eq.s32.totalorder %s15, 0
    %p78 = por %p76, %p77
    %p79 = scmp.ne.s32.totalorder %s67, %s68
    %p80 = scmp.eq.s32.totalorder %s16, 1
    %p81 = por %p79, %p80
    %p83 = scmp.ne.s32.totalorder %s68, %s82
    %p84 = scmp.eq.s32.totalorder %s16, 0
    %p85 = por %p83, %p84
    %s87 = sadd.s32 %s86, 1
    %p90 = scmp.eq.s32.totalorder %s10, 1
    %p91 = scmp.ne.s32.totalorder %s86, %s88
    %p92 = scmp.eq.s32.totalorder %s10, 0
    %p93 = por %p91, %p92
    %p94 = scmp.ne.s32.totalorder %s86, %s88
    %p95 = scmp.eq.s32.totalorder %s15, 1
    %p96 = por %p94, %p95
    %p97 = scmp.ne.s32.totalorder %s88, %s89
    %p98 = scmp.eq.s32.totalorder %s15, 0
    %p99 = por %p97, %p98
    %p100 = scmp.ne.s32.totalorder %s88, %s89
    %p101 = scmp.eq.s32.totalorder %s16, 1
    %p102 = por %p100, %p101
    %p104 = scmp.ne.s32.totalorder %s89, %s103
    %p105 = scmp.eq.s32.totalorder %s16, 0
    %p106 = por %p104, %p105
    %s107 = ssub.s32 %s10, %s17
    %p108 = scmp.eq.s32.totalorder %s107, 0
    %s110 = sadd.s32 %s109, 1
    %s111 = scalar_select %p108, %s109, %s110
    %p114 = pneg %p108
    %p115 = scmp.eq.s32.totalorder %s10, 1
    %p116 = por %p114, %p115
    %p117 = scmp.ne.s32.totalorder %s109, %s112
    %p118 = scmp.eq.s32.totalorder %s10, 0
    %p119 = por %p117, %p118
    %p120 = scmp.ne.s32.totalorder %s109, %s112
    %p121 = scmp.eq.s32.totalorder %s15, 1
    %p122 = por %p120, %p121
    %p123 = scmp.ne.s32.totalorder %s112, %s113
    %p124 = scmp.eq.s32.totalorder %s15, 0
    %p125 = por %p123, %p124
    %p126 = scmp.ne.s32.totalorder %s112, %s113
    %p127 = scmp.eq.s32.totalorder %s16, 1
    %p128 = por %p126, %p127
    %p130 = scmp.ne.s32.totalorder %s113, %s129
    %p131 = scmp.eq.s32.totalorder %s16, 0
    %p132 = por %p130, %p131
    %p133 = scmp.le.s32.totalorder 1, %s10
    %p134 = scmp.lt.s32.totalorder %s10, 3
    %p135 = pnand %p133, %p134
    %p136 = pneg %p135
    // Predicated region
    $region9: #{basic_block_forward.1} parent=5 // pred_check
      _
    $region10: #{basic_block_forward.1} parent=5 // pred_check_branch
      %138 = sbr.rel (%p135) target = $region12
    $region11: #{basic_block_forward.1} parent=5 // pred_region
      %s139 = ssub.s32 %s10, 1
      // Predicated region
      $region13: #{basic_block_forward.1} parent=11 // pred_check
        %p140 = pneg %p57
      $region14: #{basic_block_forward.1} parent=11 // pred_check_branch
        %142 = sbr.rel (%p140) target = $region16
      $region15: #{basic_block_forward.1} parent=11 // pred_region
        _
      $region16: #{basic_block_forward.1} parent=11 // pred_fallthru
        _
      // Predicated region
      $region17: #{basic_block_forward.1} parent=11 // pred_check
        %p143 = pneg %p78
      $region18: #{basic_block_forward.1} parent=11 // pred_check_branch
        %145 = sbr.rel (%p143) target = $region20
      $region19: #{basic_block_forward.1} parent=11 // pred_region
        _
      $region20: #{basic_block_forward.1} parent=11 // pred_fallthru
        _
      // Predicated region
      $region21: #{basic_block_forward.1} parent=11 // pred_check
        %p146 = pneg %p99
      $region22: #{basic_block_forward.1} parent=11 // pred_check_branch
        %148 = sbr.rel (%p146) target = $region24
      $region23: #{basic_block_forward.1} parent=11 // pred_region
        _
      $region24: #{basic_block_forward.1} parent=11 // pred_fallthru
        _
    $region12: #{basic_block_forward.1} parent=5 // pred_fallthru
      _
    %p149 = scmp.lt.s32.totalorder %s10, 2
    // Predicated region
    $region25: #{basic_block_forward.1} parent=5 // pred_check
      %p150 = pneg %p149
    $region26: #{basic_block_forward.1} parent=5 // pred_check_branch
      %152 = sbr.rel (%p150) target = $region28
    $region27: #{basic_block_forward.1} parent=5 // pred_region
      // Predicated region
      $region29: #{basic_block_forward.1} parent=27 // pred_check
        %p153 = pneg %p30
      $region30: #{basic_block_forward.1} parent=27 // pred_check_branch
        %155 = sbr.rel (%p153) target = $region32
      $region31: #{basic_block_forward.1} parent=27 // pred_region
        %p156 = scmp.lt.s32.totalorder %s10, 1
        %s157 = scalar_select %p156, %s10, 1
        %s158 = smul.addr %s157, 32
        %s159 = smul.addr %s158, 8
        %s160 = scalar_lea.vmem %s0, %s159
      $region32: #{basic_block_forward.1} parent=27 // pred_fallthru
        _
    $region28: #{basic_block_forward.1} parent=5 // pred_fallthru
      _
    %p161 = scmp.le.s32.totalorder 1, %s10
    %p162 = scmp.lt.s32.totalorder %s10, 3
    %p163 = pnand %p161, %p162
    %p164 = pneg %p163
    // Predicated region
    $region33: #{basic_block_forward.1} parent=5 // pred_check
      _
    $region34: #{basic_block_forward.1} parent=5 // pred_check_branch
      %166 = sbr.rel (%p163) target = $region36
    $region35: #{basic_block_forward.1} parent=5 // pred_region
      %s167 = ssub.s32 %s10, 1
      %p168 = scmp.lt.s32.totalorder %s15, 1
      %s169 = scalar_select %p168, %s15, 1
      %s170 = smul.addr %s169, 32
      %s171 = smul.addr %s170, 8
      %s172 = scalar_lea.vmem %s0, %s171
      %p173 = pneg %p36
      %p174 = pneg %p33
      %p175 = pneg %p57
      %p176 = pneg %p54
      %p177 = pneg %p78
      %p178 = pneg %p75
      %p179 = pneg %p99
      %p180 = pneg %p96
      %p181 = pneg %p125
      %p182 = pneg %p122
      %p183 = scmp.lt.s32.totalorder %s15, 1
      %s184 = scalar_select %p183, %s15, 1
      %s185 = smul.addr %s184, 32
      %s186 = smul.addr %s185, 8
      %s187 = scalar_lea.vmem %s4, %s186
      %p188 = scmp.lt.s32.totalorder %s15, 1
      %s189 = scalar_select %p188, %s15, 1
      %s190 = smul.addr %s189, 32
      %s191 = smul.addr %s190, 8
      %s192 = scalar_lea.vmem %s0, %s191
      %p193 = scmp.lt.s32.totalorder %s15, 1
      %s194 = scalar_select %p193, %s15, 1
      %s195 = smul.addr %s194, 32
      %s196 = smul.addr %s195, 8
      %s197 = scalar_lea.vmem %s4, %s196
      %v199 = vld [vmem:[%s192] sm:$0xff]
      %v200 = vld [vmem:[%s192 + $0x8] sm:$0xff]
      %v201 = vld [vmem:[%s192 + $0x10] sm:$0xff]
      %v202 = vld [vmem:[%s192 + $0x18] sm:$0xff]
      %v203 = vld [vmem:[%s192 + $0x20] sm:$0xff]
      %v204 = vld [vmem:[%s192 + $0x28] sm:$0xff]
      %v205 = vld [vmem:[%s192 + $0x30] sm:$0xff]
      %v206 = vld [vmem:[%s192 + $0x38] sm:$0xff]
      %v207 = vld [vmem:[%s192 + $0x40] sm:$0xff]
      %v208 = vld [vmem:[%s192 + $0x48] sm:$0xff]
      %v209 = vld [vmem:[%s192 + $0x50] sm:$0xff]
      %v210 = vld [vmem:[%s192 + $0x58] sm:$0xff]
      %v211 = vld [vmem:[%s192 + $0x60] sm:$0xff]
      %v212 = vld [vmem:[%s192 + $0x68] sm:$0xff]
      %v213 = vld [vmem:[%s192 + $0x70] sm:$0xff]
      %v214 = vld [vmem:[%s192 + $0x78] sm:$0xff]
      %v215 = vld [vmem:[%s192 + $0x80] sm:$0xff]
      %v216 = vld [vmem:[%s192 + $0x88] sm:$0xff]
      %v217 = vld [vmem:[%s192 + $0x90] sm:$0xff]
      %v218 = vld [vmem:[%s192 + $0x98] sm:$0xff]
      %v219 = vld [vmem:[%s192 + $0xa0] sm:$0xff]
      %v220 = vld [vmem:[%s192 + $0xa8] sm:$0xff]
      %v221 = vld [vmem:[%s192 + $0xb0] sm:$0xff]
      %v222 = vld [vmem:[%s192 + $0xb8] sm:$0xff]
      %v223 = vld [vmem:[%s192 + $0xc0] sm:$0xff]
      %v224 = vld [vmem:[%s192 + $0xc8] sm:$0xff]
      %v225 = vld [vmem:[%s192 + $0xd0] sm:$0xff]
      %v226 = vld [vmem:[%s192 + $0xd8] sm:$0xff]
      %v227 = vld [vmem:[%s192 + $0xe0] sm:$0xff]
      %v228 = vld [vmem:[%s192 + $0xe8] sm:$0xff]
      %v229 = vld [vmem:[%s192 + $0xf0] sm:$0xff]
      %v230 = vld [vmem:[%s192 + $0xf8] sm:$0xff]
      %v231 = vlaneseq
      %v232 = vshrl.u32 %v231, 7
      %v233 = vadd.s32 %v232, 8
      %v234 = vadd.s32 %v232, 16
      %v235 = vadd.s32 %v232, 24
      %v236 = vadd.s32 %v232, 32
      %v237 = vadd.s32 %v232, 40
      %v238 = vadd.s32 %v232, 48
      %v239 = vadd.s32 %v232, 56
      %v240 = vadd.s32 %v232, 64
      %v241 = vadd.s32 %v232, 72
      %v242 = vadd.s32 %v232, 80
      %v243 = vadd.s32 %v232, 88
      %v244 = vadd.s32 %v232, 96
      %v245 = vadd.s32 %v232, 104
      %v246 = vadd.s32 %v232, 112
      %v247 = vadd.s32 %v232, 120
      %v248 = vadd.s32 %v232, 128
      %v249 = vadd.s32 %v232, 136
      %v250 = vadd.s32 %v232, 144
      %v251 = vadd.s32 %v232, 152
      %v252 = vadd.s32 %v232, 160
      %v253 = vadd.s32 %v232, 168
      %v254 = vadd.s32 %v232, 176
      %v255 = vadd.s32 %v232, 184
      %v256 = vadd.s32 %v232, 192
      %v257 = vadd.s32 %v232, 200
      %v258 = vadd.s32 %v232, 208
      %v259 = vadd.s32 %v232, 216
      %v260 = vadd.s32 %v232, 224
      %v261 = vadd.s32 %v232, 232
      %v262 = vadd.s32 %v232, 240
      %v263 = vadd.s32 %v232, 248
      %vm264 = vcmp.lt.s32.totalorder %v232, 0
      %v265 = vsub.s32 0, %v232
      %v266 = vsel %vm264, %v265, %v232
      %v267 = vshrl.u32 %v266, 4
      %v268 = vand.u32 %v266, 15
      %v269 = vsub.s32 0, %v268
      %v270 = vsel %vm264, %v269, %v268
      %vm271 = vcmp.lt.s32.totalorder %v233, 0
      %v272 = vsub.s32 0, %v233
      %v273 = vsel %vm271, %v272, %v233
      %v274 = vshrl.u32 %v273, 4
      %v275 = vand.u32 %v273, 15
      %v276 = vsub.s32 0, %v275
      %v277 = vsel %vm271, %v276, %v275
      %vm278 = vcmp.lt.s32.totalorder %v234, 0
      %v279 = vsub.s32 0, %v234
      %v280 = vsel %vm278, %v279, %v234
      %v281 = vshrl.u32 %v280, 4
      %v282 = vand.u32 %v280, 15
      %v283 = vsub.s32 0, %v282
      %v284 = vsel %vm278, %v283, %v282
      %vm285 = vcmp.lt.s32.totalorder %v235, 0
      %v286 = vsub.s32 0, %v235
      %v287 = vsel %vm285, %v286, %v235
      %v288 = vshrl.u32 %v287, 4
      %v289 = vand.u32 %v287, 15
      %v290 = vsub.s32 0, %v289
      %v291 = vsel %vm285, %v290, %v289
      %vm292 = vcmp.lt.s32.totalorder %v236, 0
      %v293 = vsub.s32 0, %v236
      %v294 = vsel %vm292, %v293, %v236
      %v295 = vshrl.u32 %v294, 4
      %v296 = vand.u32 %v294, 15
      %v297 = vsub.s32 0, %v296
      %v298 = vsel %vm292, %v297, %v296
      %vm299 = vcmp.lt.s32.totalorder %v237, 0
      %v300 = vsub.s32 0, %v237
      %v301 = vsel %vm299, %v300, %v237
      %v302 = vshrl.u32 %v301, 4
      %v303 = vand.u32 %v301, 15
      %v304 = vsub.s32 0, %v303
      %v305 = vsel %vm299, %v304, %v303
      %vm306 = vcmp.lt.s32.totalorder %v238, 0
      %v307 = vsub.s32 0, %v238
      %v308 = vsel %vm306, %v307, %v238
      %v309 = vshrl.u32 %v308, 4
      %v310 = vand.u32 %v308, 15
      %v311 = vsub.s32 0, %v310
      %v312 = vsel %vm306, %v311, %v310
      %vm313 = vcmp.lt.s32.totalorder %v239, 0
      %v314 = vsub.s32 0, %v239
      %v315 = vsel %vm313, %v314, %v239
      %v316 = vshrl.u32 %v315, 4
      %v317 = vand.u32 %v315, 15
      %v318 = vsub.s32 0, %v317
      %v319 = vsel %vm313, %v318, %v317
      %vm320 = vcmp.lt.s32.totalorder %v240, 0
      %v321 = vsub.s32 0, %v240
      %v322 = vsel %vm320, %v321, %v240
      %v323 = vshrl.u32 %v322, 4
      %v324 = vand.u32 %v322, 15
      %v325 = vsub.s32 0, %v324
      %v326 = vsel %vm320, %v325, %v324
      %vm327 = vcmp.lt.s32.totalorder %v241, 0
      %v328 = vsub.s32 0, %v241
      %v329 = vsel %vm327, %v328, %v241
      %v330 = vshrl.u32 %v329, 4
      %v331 = vand.u32 %v329, 15
      %v332 = vsub.s32 0, %v331
      %v333 = vsel %vm327, %v332, %v331
      %vm334 = vcmp.lt.s32.totalorder %v242, 0
      %v335 = vsub.s32 0, %v242
      %v336 = vsel %vm334, %v335, %v242
      %v337 = vshrl.u32 %v336, 4
      %v338 = vand.u32 %v336, 15
      %v339 = vsub.s32 0, %v338
      %v340 = vsel %vm334, %v339, %v338
      %vm341 = vcmp.lt.s32.totalorder %v243, 0
      %v342 = vsub.s32 0, %v243
      %v343 = vsel %vm341, %v342, %v243
      %v344 = vshrl.u32 %v343, 4
      %v345 = vand.u32 %v343, 15
      %v346 = vsub.s32 0, %v345
      %v347 = vsel %vm341, %v346, %v345
      %vm348 = vcmp.lt.s32.totalorder %v244, 0
      %v349 = vsub.s32 0, %v244
      %v350 = vsel %vm348, %v349, %v244
      %v351 = vshrl.u32 %v350, 4
      %v352 = vand.u32 %v350, 15
      %v353 = vsub.s32 0, %v352
      %v354 = vsel %vm348, %v353, %v352
      %vm355 = vcmp.lt.s32.totalorder %v245, 0
      %v356 = vsub.s32 0, %v245
      %v357 = vsel %vm355, %v356, %v245
      %v358 = vshrl.u32 %v357, 4
      %v359 = vand.u32 %v357, 15
      %v360 = vsub.s32 0, %v359
      %v361 = vsel %vm355, %v360, %v359
      %vm362 = vcmp.lt.s32.totalorder %v246, 0
      %v363 = vsub.s32 0, %v246
      %v364 = vsel %vm362, %v363, %v246
      %v365 = vshrl.u32 %v364, 4
      %v366 = vand.u32 %v364, 15
      %v367 = vsub.s32 0, %v366
      %v368 = vsel %vm362, %v367, %v366
      %vm369 = vcmp.lt.s32.totalorder %v247, 0
      %v370 = vsub.s32 0, %v247
      %v371 = vsel %vm369, %v370, %v247
      %v372 = vshrl.u32 %v371, 4
      %v373 = vand.u32 %v371, 15
      %v374 = vsub.s32 0, %v373
      %v375 = vsel %vm369, %v374, %v373
      %vm376 = vcmp.lt.s32.totalorder %v248, 0
      %v377 = vsub.s32 0, %v248
      %v378 = vsel %vm376, %v377, %v248
      %v379 = vshrl.u32 %v378, 4
      %v380 = vand.u32 %v378, 15
      %v381 = vsub.s32 0, %v380
      %v382 = vsel %vm376, %v381, %v380
      %vm383 = vcmp.lt.s32.totalorder %v249, 0
      %v384 = vsub.s32 0, %v249
      %v385 = vsel %vm383, %v384, %v249
      %v386 = vshrl.u32 %v385, 4
      %v387 = vand.u32 %v385, 15
      %v388 = vsub.s32 0, %v387
      %v389 = vsel %vm383, %v388, %v387
      %vm390 = vcmp.lt.s32.totalorder %v250, 0
      %v391 = vsub.s32 0, %v250
      %v392 = vsel %vm390, %v391, %v250
      %v393 = vshrl.u32 %v392, 4
      %v394 = vand.u32 %v392, 15
      %v395 = vsub.s32 0, %v394
      %v396 = vsel %vm390, %v395, %v394
      %vm397 = vcmp.lt.s32.totalorder %v251, 0
      %v398 = vsub.s32 0, %v251
      %v399 = vsel %vm397, %v398, %v251
      %v400 = vshrl.u32 %v399, 4
      %v401 = vand.u32 %v399, 15
      %v402 = vsub.s32 0, %v401
      %v403 = vsel %vm397, %v402, %v401
      %vm404 = vcmp.lt.s32.totalorder %v252, 0
      %v405 = vsub.s32 0, %v252
      %v406 = vsel %vm404, %v405, %v252
      %v407 = vshrl.u32 %v406, 4
      %v408 = vand.u32 %v406, 15
      %v409 = vsub.s32 0, %v408
      %v410 = vsel %vm404, %v409, %v408
      %vm411 = vcmp.lt.s32.totalorder %v253, 0
      %v412 = vsub.s32 0, %v253
      %v413 = vsel %vm411, %v412, %v253
      %v414 = vshrl.u32 %v413, 4
      %v415 = vand.u32 %v413, 15
      %v416 = vsub.s32 0, %v415
      %v417 = vsel %vm411, %v416, %v415
      %vm418 = vcmp.lt.s32.totalorder %v254, 0
      %v419 = vsub.s32 0, %v254
      %v420 = vsel %vm418, %v419, %v254
      %v421 = vshrl.u32 %v420, 4
      %v422 = vand.u32 %v420, 15
      %v423 = vsub.s32 0, %v422
      %v424 = vsel %vm418, %v423, %v422
      %vm425 = vcmp.lt.s32.totalorder %v255, 0
      %v426 = vsub.s32 0, %v255
      %v427 = vsel %vm425, %v426, %v255
      %v428 = vshrl.u32 %v427, 4
      %v429 = vand.u32 %v427, 15
      %v430 = vsub.s32 0, %v429
      %v431 = vsel %vm425, %v430, %v429
      %vm432 = vcmp.lt.s32.totalorder %v256, 0
      %v433 = vsub.s32 0, %v256
      %v434 = vsel %vm432, %v433, %v256
      %v435 = vshrl.u32 %v434, 4
      %v436 = vand.u32 %v434, 15
      %v437 = vsub.s32 0, %v436
      %v438 = vsel %vm432, %v437, %v436
      %vm439 = vcmp.lt.s32.totalorder %v257, 0
      %v440 = vsub.s32 0, %v257
      %v441 = vsel %vm439, %v440, %v257
      %v442 = vshrl.u32 %v441, 4
      %v443 = vand.u32 %v441, 15
      %v444 = vsub.s32 0, %v443
      %v445 = vsel %vm439, %v444, %v443
      %vm446 = vcmp.lt.s32.totalorder %v258, 0
      %v447 = vsub.s32 0, %v258
      %v448 = vsel %vm446, %v447, %v258
      %v449 = vshrl.u32 %v448, 4
      %v450 = vand.u32 %v448, 15
      %v451 = vsub.s32 0, %v450
      %v452 = vsel %vm446, %v451, %v450
      %vm453 = vcmp.lt.s32.totalorder %v259, 0
      %v454 = vsub.s32 0, %v259
      %v455 = vsel %vm453, %v454, %v259
      %v456 = vshrl.u32 %v455, 4
      %v457 = vand.u32 %v455, 15
      %v458 = vsub.s32 0, %v457
      %v459 = vsel %vm453, %v458, %v457
      %vm460 = vcmp.lt.s32.totalorder %v260, 0
      %v461 = vsub.s32 0, %v260
      %v462 = vsel %vm460, %v461, %v260
      %v463 = vshrl.u32 %v462, 4
      %v464 = vand.u32 %v462, 15
      %v465 = vsub.s32 0, %v464
      %v466 = vsel %vm460, %v465, %v464
      %vm467 = vcmp.lt.s32.totalorder %v261, 0
      %v468 = vsub.s32 0, %v261
      %v469 = vsel %vm467, %v468, %v261
      %v470 = vshrl.u32 %v469, 4
      %v471 = vand.u32 %v469, 15
      %v472 = vsub.s32 0, %v471
      %v473 = vsel %vm467, %v472, %v471
      %vm474 = vcmp.lt.s32.totalorder %v262, 0
      %v475 = vsub.s32 0, %v262
      %v476 = vsel %vm474, %v475, %v262
      %v477 = vshrl.u32 %v476, 4
      %v478 = vand.u32 %v476, 15
      %v479 = vsub.s32 0, %v478
      %v480 = vsel %vm474, %v479, %v478
      %vm481 = vcmp.lt.s32.totalorder %v263, 0
      %v482 = vsub.s32 0, %v263
      %v483 = vsel %vm481, %v482, %v263
      %v484 = vshrl.u32 %v483, 4
      %v485 = vand.u32 %v483, 15
      %v486 = vsub.s32 0, %v485
      %v487 = vsel %vm481, %v486, %v485
      %vm488 = vcmp.ne.s32.totalorder %v270, 0
      %vm489 = vcmp.ne.s32.totalorder %v277, 0
      %vm490 = vcmp.ne.s32.totalorder %v284, 0
      %vm491 = vcmp.ne.s32.totalorder %v291, 0
      %vm492 = vcmp.ne.s32.totalorder %v298, 0
      %vm493 = vcmp.ne.s32.totalorder %v305, 0
      %vm494 = vcmp.ne.s32.totalorder %v312, 0
      %vm495 = vcmp.ne.s32.totalorder %v319, 0
      %vm496 = vcmp.ne.s32.totalorder %v326, 0
      %vm497 = vcmp.ne.s32.totalorder %v333, 0
      %vm498 = vcmp.ne.s32.totalorder %v340, 0
      %vm499 = vcmp.ne.s32.totalorder %v347, 0
      %vm500 = vcmp.ne.s32.totalorder %v354, 0
      %vm501 = vcmp.ne.s32.totalorder %v361, 0
      %vm502 = vcmp.ne.s32.totalorder %v368, 0
      %vm503 = vcmp.ne.s32.totalorder %v375, 0
      %vm504 = vcmp.ne.s32.totalorder %v382, 0
      %vm505 = vcmp.ne.s32.totalorder %v389, 0
      %vm506 = vcmp.ne.s32.totalorder %v396, 0
      %vm507 = vcmp.ne.s32.totalorder %v403, 0
      %vm508 = vcmp.ne.s32.totalorder %v410, 0
      %vm509 = vcmp.ne.s32.totalorder %v417, 0
      %vm510 = vcmp.ne.s32.totalorder %v424, 0
      %vm511 = vcmp.ne.s32.totalorder %v431, 0
      %vm512 = vcmp.ne.s32.totalorder %v438, 0
      %vm513 = vcmp.ne.s32.totalorder %v445, 0
      %vm514 = vcmp.ne.s32.totalorder %v452, 0
      %vm515 = vcmp.ne.s32.totalorder %v459, 0
      %vm516 = vcmp.ne.s32.totalorder %v466, 0
      %vm517 = vcmp.ne.s32.totalorder %v473, 0
      %vm518 = vcmp.ne.s32.totalorder %v480, 0
      %vm519 = vcmp.ne.s32.totalorder %v487, 0
      %vm520 = vcmp.lt.s32.totalorder %v270, 0
      %vm521 = vcmp.lt.s32.totalorder %v277, 0
      %vm522 = vcmp.lt.s32.totalorder %v284, 0
      %vm523 = vcmp.lt.s32.totalorder %v291, 0
      %vm524 = vcmp.lt.s32.totalorder %v298, 0
      %vm525 = vcmp.lt.s32.totalorder %v305, 0
      %vm526 = vcmp.lt.s32.totalorder %v312, 0
      %vm527 = vcmp.lt.s32.totalorder %v319, 0
      %vm528 = vcmp.lt.s32.totalorder %v326, 0
      %vm529 = vcmp.lt.s32.totalorder %v333, 0
      %vm530 = vcmp.lt.s32.totalorder %v340, 0
      %vm531 = vcmp.lt.s32.totalorder %v347, 0
      %vm532 = vcmp.lt.s32.totalorder %v354, 0
      %vm533 = vcmp.lt.s32.totalorder %v361, 0
      %vm534 = vcmp.lt.s32.totalorder %v368, 0
      %vm535 = vcmp.lt.s32.totalorder %v375, 0
      %vm536 = vcmp.lt.s32.totalorder %v382, 0
      %vm537 = vcmp.lt.s32.totalorder %v389, 0
      %vm538 = vcmp.lt.s32.totalorder %v396, 0
      %vm539 = vcmp.lt.s32.totalorder %v403, 0
      %vm540 = vcmp.lt.s32.totalorder %v410, 0
      %vm541 = vcmp.lt.s32.totalorder %v417, 0
      %vm542 = vcmp.lt.s32.totalorder %v424, 0
      %vm543 = vcmp.lt.s32.totalorder %v431, 0
      %vm544 = vcmp.lt.s32.totalorder %v438, 0
      %vm545 = vcmp.lt.s32.totalorder %v445, 0
      %vm546 = vcmp.lt.s32.totalorder %v452, 0
      %vm547 = vcmp.lt.s32.totalorder %v459, 0
      %vm548 = vcmp.lt.s32.totalorder %v466, 0
      %vm549 = vcmp.lt.s32.totalorder %v473, 0
      %vm550 = vcmp.lt.s32.totalorder %v480, 0
      %vm551 = vcmp.lt.s32.totalorder %v487, 0
      %vm552 = vmand %vm520, %vm488
      %vm553 = vmand %vm521, %vm489
      %vm554 = vmand %vm522, %vm490
      %vm555 = vmand %vm523, %vm491
      %vm556 = vmand %vm524, %vm492
      %vm557 = vmand %vm525, %vm493
      %vm558 = vmand %vm526, %vm494
      %vm559 = vmand %vm527, %vm495
      %vm560 = vmand %vm528, %vm496
      %vm561 = vmand %vm529, %vm497
      %vm562 = vmand %vm530, %vm498
      %vm563 = vmand %vm531, %vm499
      %vm564 = vmand %vm532, %vm500
      %vm565 = vmand %vm533, %vm501
      %vm566 = vmand %vm534, %vm502
      %vm567 = vmand %vm535, %vm503
      %vm568 = vmand %vm536, %vm504
      %vm569 = vmand %vm537, %vm505
      %vm570 = vmand %vm538, %vm506
      %vm571 = vmand %vm539, %vm507
      %vm572 = vmand %vm540, %vm508
      %vm573 = vmand %vm541, %vm509
      %vm574 = vmand %vm542, %vm510
      %vm575 = vmand %vm543, %vm511
      %vm576 = vmand %vm544, %vm512
      %vm577 = vmand %vm545, %vm513
      %vm578 = vmand %vm546, %vm514
      %vm579 = vmand %vm547, %vm515
      %vm580 = vmand %vm548, %vm516
      %vm581 = vmand %vm549, %vm517
      %vm582 = vmand %vm550, %vm518
      %vm583 = vmand %vm551, %vm519
      %v584 = vadd.s32 %v270, 16
      %v585 = vadd.s32 %v277, 16
      %v586 = vadd.s32 %v284, 16
      %v587 = vadd.s32 %v291, 16
      %v588 = vadd.s32 %v298, 16
      %v589 = vadd.s32 %v305, 16
      %v590 = vadd.s32 %v312, 16
      %v591 = vadd.s32 %v319, 16
      %v592 = vadd.s32 %v326, 16
      %v593 = vadd.s32 %v333, 16
      %v594 = vadd.s32 %v340, 16
      %v595 = vadd.s32 %v347, 16
      %v596 = vadd.s32 %v354, 16
      %v597 = vadd.s32 %v361, 16
      %v598 = vadd.s32 %v368, 16
      %v599 = vadd.s32 %v375, 16
      %v600 = vadd.s32 %v382, 16
      %v601 = vadd.s32 %v389, 16
      %v602 = vadd.s32 %v396, 16
      %v603 = vadd.s32 %v403, 16
      %v604 = vadd.s32 %v410, 16
      %v605 = vadd.s32 %v417, 16
      %v606 = vadd.s32 %v424, 16
      %v607 = vadd.s32 %v431, 16
      %v608 = vadd.s32 %v438, 16
      %v609 = vadd.s32 %v445, 16
      %v610 = vadd.s32 %v452, 16
      %v611 = vadd.s32 %v459, 16
      %v612 = vadd.s32 %v466, 16
      %v613 = vadd.s32 %v473, 16
      %v614 = vadd.s32 %v480, 16
      %v615 = vadd.s32 %v487, 16
      %v616 = vsel %vm552, %v584, %v270
      %v617 = vsel %vm553, %v585, %v277
      %v618 = vsel %vm554, %v586, %v284
      %v619 = vsel %vm555, %v587, %v291
      %v620 = vsel %vm556, %v588, %v298
      %v621 = vsel %vm557, %v589, %v305
      %v622 = vsel %vm558, %v590, %v312
      %v623 = vsel %vm559, %v591, %v319
      %v624 = vsel %vm560, %v592, %v326
      %v625 = vsel %vm561, %v593, %v333
      %v626 = vsel %vm562, %v594, %v340
      %v627 = vsel %vm563, %v595, %v347
      %v628 = vsel %vm564, %v596, %v354
      %v629 = vsel %vm565, %v597, %v361
      %v630 = vsel %vm566, %v598, %v368
      %v631 = vsel %vm567, %v599, %v375
      %v632 = vsel %vm568, %v600, %v382
      %v633 = vsel %vm569, %v601, %v389
      %v634 = vsel %vm570, %v602, %v396
      %v635 = vsel %vm571, %v603, %v403
      %v636 = vsel %vm572, %v604, %v410
      %v637 = vsel %vm573, %v605, %v417
      %v638 = vsel %vm574, %v606, %v424
      %v639 = vsel %vm575, %v607, %v431
      %v640 = vsel %vm576, %v608, %v438
      %v641 = vsel %vm577, %v609, %v445
      %v642 = vsel %vm578, %v610, %v452
      %v643 = vsel %vm579, %v611, %v459
      %v644 = vsel %vm580, %v612, %v466
      %v645 = vsel %vm581, %v613, %v473
      %v646 = vsel %vm582, %v614, %v480
      %v647 = vsel %vm583, %v615, %v487
      %vm648 = vcmp.ge.s32.totalorder %v232, 16
      %vm649 = vcmp.ge.s32.totalorder %v233, 16
      %vm650 = vcmp.ge.s32.totalorder %v234, 16
      %vm651 = vcmp.ge.s32.totalorder %v235, 16
      %vm652 = vcmp.ge.s32.totalorder %v236, 16
      %vm653 = vcmp.ge.s32.totalorder %v237, 16
      %vm654 = vcmp.ge.s32.totalorder %v238, 16
      %vm655 = vcmp.ge.s32.totalorder %v239, 16
      %vm656 = vcmp.ge.s32.totalorder %v240, 16
      %vm657 = vcmp.ge.s32.totalorder %v241, 16
      %vm658 = vcmp.ge.s32.totalorder %v242, 16
      %vm659 = vcmp.ge.s32.totalorder %v243, 16
      %vm660 = vcmp.ge.s32.totalorder %v244, 16
      %vm661 = vcmp.ge.s32.totalorder %v245, 16
      %vm662 = vcmp.ge.s32.totalorder %v246, 16
      %vm663 = vcmp.ge.s32.totalorder %v247, 16
      %vm664 = vcmp.ge.s32.totalorder %v248, 16
      %vm665 = vcmp.ge.s32.totalorder %v249, 16
      %vm666 = vcmp.ge.s32.totalorder %v250, 16
      %vm667 = vcmp.ge.s32.totalorder %v251, 16
      %vm668 = vcmp.ge.s32.totalorder %v252, 16
      %vm669 = vcmp.ge.s32.totalorder %v253, 16
      %vm670 = vcmp.ge.s32.totalorder %v254, 16
      %vm671 = vcmp.ge.s32.totalorder %v255, 16
      %vm672 = vcmp.ge.s32.totalorder %v256, 16
      %vm673 = vcmp.ge.s32.totalorder %v257, 16
      %vm674 = vcmp.ge.s32.totalorder %v258, 16
      %vm675 = vcmp.ge.s32.totalorder %v259, 16
      %vm676 = vcmp.ge.s32.totalorder %v260, 16
      %vm677 = vcmp.ge.s32.totalorder %v261, 16
      %vm678 = vcmp.ge.s32.totalorder %v262, 16
      %vm679 = vcmp.ge.s32.totalorder %v263, 16
      %vm680 = vcmp.lt.s32.totalorder %v232, 240
      %vm681 = vcmp.lt.s32.totalorder %v233, 240
      %vm682 = vcmp.lt.s32.totalorder %v234, 240
      %vm683 = vcmp.lt.s32.totalorder %v235, 240
      %vm684 = vcmp.lt.s32.totalorder %v236, 240
      %vm685 = vcmp.lt.s32.totalorder %v237, 240
      %vm686 = vcmp.lt.s32.totalorder %v238, 240
      %vm687 = vcmp.lt.s32.totalorder %v239, 240
      %vm688 = vcmp.lt.s32.totalorder %v240, 240
      %vm689 = vcmp.lt.s32.totalorder %v241, 240
      %vm690 = vcmp.lt.s32.totalorder %v242, 240
      %vm691 = vcmp.lt.s32.totalorder %v243, 240
      %vm692 = vcmp.lt.s32.totalorder %v244, 240
      %vm693 = vcmp.lt.s32.totalorder %v245, 240
      %vm694 = vcmp.lt.s32.totalorder %v246, 240
      %vm695 = vcmp.lt.s32.totalorder %v247, 240
      %vm696 = vcmp.lt.s32.totalorder %v248, 240
      %vm697 = vcmp.lt.s32.totalorder %v249, 240
      %vm698 = vcmp.lt.s32.totalorder %v250, 240
      %vm699 = vcmp.lt.s32.totalorder %v251, 240
      %vm700 = vcmp.lt.s32.totalorder %v252, 240
      %vm701 = vcmp.lt.s32.totalorder %v253, 240
      %vm702 = vcmp.lt.s32.totalorder %v254, 240
      %vm703 = vcmp.lt.s32.totalorder %v255, 240
      %vm704 = vcmp.lt.s32.totalorder %v256, 240
      %vm705 = vcmp.lt.s32.totalorder %v257, 240
      %vm706 = vcmp.lt.s32.totalorder %v258, 240
      %vm707 = vcmp.lt.s32.totalorder %v259, 240
      %vm708 = vcmp.lt.s32.totalorder %v260, 240
      %vm709 = vcmp.lt.s32.totalorder %v261, 240
      %vm710 = vcmp.lt.s32.totalorder %v262, 240
      %vm711 = vcmp.lt.s32.totalorder %v263, 240
      %vm712 = vcmp.ge.s32.totalorder %v616, 1
      %vm713 = vcmp.ge.s32.totalorder %v617, 1
      %vm714 = vcmp.ge.s32.totalorder %v618, 1
      %vm715 = vcmp.ge.s32.totalorder %v619, 1
      %vm716 = vcmp.ge.s32.totalorder %v620, 1
      %vm717 = vcmp.ge.s32.totalorder %v621, 1
      %vm718 = vcmp.ge.s32.totalorder %v622, 1
      %vm719 = vcmp.ge.s32.totalorder %v623, 1
      %vm720 = vcmp.ge.s32.totalorder %v624, 1
      %vm721 = vcmp.ge.s32.totalorder %v625, 1
      %vm722 = vcmp.ge.s32.totalorder %v626, 1
      %vm723 = vcmp.ge.s32.totalorder %v627, 1
      %vm724 = vcmp.ge.s32.totalorder %v628, 1
      %vm725 = vcmp.ge.s32.totalorder %v629, 1
      %vm726 = vcmp.ge.s32.totalorder %v630, 1
      %vm727 = vcmp.ge.s32.totalorder %v631, 1
      %vm728 = vcmp.ge.s32.totalorder %v632, 1
      %vm729 = vcmp.ge.s32.totalorder %v633, 1
      %vm730 = vcmp.ge.s32.totalorder %v634, 1
      %vm731 = vcmp.ge.s32.totalorder %v635, 1
      %vm732 = vcmp.ge.s32.totalorder %v636, 1
      %vm733 = vcmp.ge.s32.totalorder %v637, 1
      %vm734 = vcmp.ge.s32.totalorder %v638, 1
      %vm735 = vcmp.ge.s32.totalorder %v639, 1
      %vm736 = vcmp.ge.s32.totalorder %v640, 1
      %vm737 = vcmp.ge.s32.totalorder %v641, 1
      %vm738 = vcmp.ge.s32.totalorder %v642, 1
      %vm739 = vcmp.ge.s32.totalorder %v643, 1
      %vm740 = vcmp.ge.s32.totalorder %v644, 1
      %vm741 = vcmp.ge.s32.totalorder %v645, 1
      %vm742 = vcmp.ge.s32.totalorder %v646, 1
      %vm743 = vcmp.ge.s32.totalorder %v647, 1
      %vm744 = vcmp.lt.s32.totalorder %v616, 15
      %vm745 = vcmp.lt.s32.totalorder %v617, 15
      %vm746 = vcmp.lt.s32.totalorder %v618, 15
      %vm747 = vcmp.lt.s32.totalorder %v619, 15
      %vm748 = vcmp.lt.s32.totalorder %v620, 15
      %vm749 = vcmp.lt.s32.totalorder %v621, 15
      %vm750 = vcmp.lt.s32.totalorder %v622, 15
      %vm751 = vcmp.lt.s32.totalorder %v623, 15
      %vm752 = vcmp.lt.s32.totalorder %v624, 15
      %vm753 = vcmp.lt.s32.totalorder %v625, 15
      %vm754 = vcmp.lt.s32.totalorder %v626, 15
      %vm755 = vcmp.lt.s32.totalorder %v627, 15
      %vm756 = vcmp.lt.s32.totalorder %v628, 15
      %vm757 = vcmp.lt.s32.totalorder %v629, 15
      %vm758 = vcmp.lt.s32.totalorder %v630, 15
      %vm759 = vcmp.lt.s32.totalorder %v631, 15
      %vm760 = vcmp.lt.s32.totalorder %v632, 15
      %vm761 = vcmp.lt.s32.totalorder %v633, 15
      %vm762 = vcmp.lt.s32.totalorder %v634, 15
      %vm763 = vcmp.lt.s32.totalorder %v635, 15
      %vm764 = vcmp.lt.s32.totalorder %v636, 15
      %vm765 = vcmp.lt.s32.totalorder %v637, 15
      %vm766 = vcmp.lt.s32.totalorder %v638, 15
      %vm767 = vcmp.lt.s32.totalorder %v639, 15
      %vm768 = vcmp.lt.s32.totalorder %v640, 15
      %vm769 = vcmp.lt.s32.totalorder %v641, 15
      %vm770 = vcmp.lt.s32.totalorder %v642, 15
      %vm771 = vcmp.lt.s32.totalorder %v643, 15
      %vm772 = vcmp.lt.s32.totalorder %v644, 15
      %vm773 = vcmp.lt.s32.totalorder %v645, 15
      %vm774 = vcmp.lt.s32.totalorder %v646, 15
      %vm775 = vcmp.lt.s32.totalorder %v647, 15
      %vm776 = vmand %vm648, %vm712
      %vm777 = vmand %vm649, %vm713
      %vm778 = vmand %vm650, %vm714
      %vm779 = vmand %vm651, %vm715
      %vm780 = vmand %vm652, %vm716
      %vm781 = vmand %vm653, %vm717
      %vm782 = vmand %vm654, %vm718
      %vm783 = vmand %vm655, %vm719
      %vm784 = vmand %vm656, %vm720
      %vm785 = vmand %vm657, %vm721
      %vm786 = vmand %vm658, %vm722
      %vm787 = vmand %vm659, %vm723
      %vm788 = vmand %vm660, %vm724
      %vm789 = vmand %vm661, %vm725
      %vm790 = vmand %vm662, %vm726
      %vm791 = vmand %vm663, %vm727
      %vm792 = vmand %vm664, %vm728
      %vm793 = vmand %vm665, %vm729
      %vm794 = vmand %vm666, %vm730
      %vm795 = vmand %vm667, %vm731
      %vm796 = vmand %vm668, %vm732
      %vm797 = vmand %vm669, %vm733
      %vm798 = vmand %vm670, %vm734
      %vm799 = vmand %vm671, %vm735
      %vm800 = vmand %vm672, %vm736
      %vm801 = vmand %vm673, %vm737
      %vm802 = vmand %vm674, %vm738
      %vm803 = vmand %vm675, %vm739
      %vm804 = vmand %vm676, %vm740
      %vm805 = vmand %vm677, %vm741
      %vm806 = vmand %vm678, %vm742
      %vm807 = vmand %vm679, %vm743
      %vm808 = vmand %vm648, %vm744
      %vm809 = vmand %vm649, %vm745
      %vm810 = vmand %vm650, %vm746
      %vm811 = vmand %vm651, %vm747
      %vm812 = vmand %vm652, %vm748
      %vm813 = vmand %vm653, %vm749
      %vm814 = vmand %vm654, %vm750
      %vm815 = vmand %vm655, %vm751
      %vm816 = vmand %vm656, %vm752
      %vm817 = vmand %vm657, %vm753
      %vm818 = vmand %vm658, %vm754
      %vm819 = vmand %vm659, %vm755
      %vm820 = vmand %vm660, %vm756
      %vm821 = vmand %vm661, %vm757
      %vm822 = vmand %vm662, %vm758
      %vm823 = vmand %vm663, %vm759
      %vm824 = vmand %vm664, %vm760
      %vm825 = vmand %vm665, %vm761
      %vm826 = vmand %vm666, %vm762
      %vm827 = vmand %vm667, %vm763
      %vm828 = vmand %vm668, %vm764
      %vm829 = vmand %vm669, %vm765
      %vm830 = vmand %vm670, %vm766
      %vm831 = vmand %vm671, %vm767
      %vm832 = vmand %vm672, %vm768
      %vm833 = vmand %vm673, %vm769
      %vm834 = vmand %vm674, %vm770
      %vm835 = vmand %vm675, %vm771
      %vm836 = vmand %vm676, %vm772
      %vm837 = vmand %vm677, %vm773
      %vm838 = vmand %vm678, %vm774
      %vm839 = vmand %vm679, %vm775
      %vm840 = vmand %vm680, %vm712
      %vm841 = vmand %vm681, %vm713
      %vm842 = vmand %vm682, %vm714
      %vm843 = vmand %vm683, %vm715
      %vm844 = vmand %vm684, %vm716
      %vm845 = vmand %vm685, %vm717
      %vm846 = vmand %vm686, %vm718
      %vm847 = vmand %vm687, %vm719
      %vm848 = vmand %vm688, %vm720
      %vm849 = vmand %vm689, %vm721
      %vm850 = vmand %vm690, %vm722
      %vm851 = vmand %vm691, %vm723
      %vm852 = vmand %vm692, %vm724
      %vm853 = vmand %vm693, %vm725
      %vm854 = vmand %vm694, %vm726
      %vm855 = vmand %vm695, %vm727
      %vm856 = vmand %vm696, %vm728
      %vm857 = vmand %vm697, %vm729
      %vm858 = vmand %vm698, %vm730
      %vm859 = vmand %vm699, %vm731
      %vm860 = vmand %vm700, %vm732
      %vm861 = vmand %vm701, %vm733
      %vm862 = vmand %vm702, %vm734
      %vm863 = vmand %vm703, %vm735
      %vm864 = vmand %vm704, %vm736
      %vm865 = vmand %vm705, %vm737
      %vm866 = vmand %vm706, %vm738
      %vm867 = vmand %vm707, %vm739
      %vm868 = vmand %vm708, %vm740
      %vm869 = vmand %vm709, %vm741
      %vm870 = vmand %vm710, %vm742
      %vm871 = vmand %vm711, %vm743
      %vm872 = vmand %vm680, %vm744
      %vm873 = vmand %vm681, %vm745
      %vm874 = vmand %vm682, %vm746
      %vm875 = vmand %vm683, %vm747
      %vm876 = vmand %vm684, %vm748
      %vm877 = vmand %vm685, %vm749
      %vm878 = vmand %vm686, %vm750
      %vm879 = vmand %vm687, %vm751
      %vm880 = vmand %vm688, %vm752
      %vm881 = vmand %vm689, %vm753
      %vm882 = vmand %vm690, %vm754
      %vm883 = vmand %vm691, %vm755
      %vm884 = vmand %vm692, %vm756
      %vm885 = vmand %vm693, %vm757
      %vm886 = vmand %vm694, %vm758
      %vm887 = vmand %vm695, %vm759
      %vm888 = vmand %vm696, %vm760
      %vm889 = vmand %vm697, %vm761
      %vm890 = vmand %vm698, %vm762
      %vm891 = vmand %vm699, %vm763
      %vm892 = vmand %vm700, %vm764
      %vm893 = vmand %vm701, %vm765
      %vm894 = vmand %vm702, %vm766
      %vm895 = vmand %vm703, %vm767
      %vm896 = vmand %vm704, %vm768
      %vm897 = vmand %vm705, %vm769
      %vm898 = vmand %vm706, %vm770
      %vm899 = vmand %vm707, %vm771
      %vm900 = vmand %vm708, %vm772
      %vm901 = vmand %vm709, %vm773
      %vm902 = vmand %vm710, %vm774
      %vm903 = vmand %vm711, %vm775
      %v904 = vld [vmem:[%s3] sm:$0xf]
      %v905 = vrot.slane %v199, 7
      %v906 = vrot.slane %v200, 7
      %v907 = vrot.slane %v201, 7
      %v908 = vrot.slane %v202, 7
      %v909 = vrot.slane %v203, 7
      %v910 = vrot.slane %v204, 7
      %v911 = vrot.slane %v205, 7
      %v912 = vrot.slane %v206, 7
      %v913 = vrot.slane %v207, 7
      %v914 = vrot.slane %v208, 7
      %v915 = vrot.slane %v209, 7
      %v916 = vrot.slane %v210, 7
      %v917 = vrot.slane %v211, 7
      %v918 = vrot.slane %v212, 7
      %v919 = vrot.slane %v213, 7
      %v920 = vrot.slane %v214, 7
      %v921 = vrot.slane %v215, 7
      %v922 = vrot.slane %v216, 7
      %v923 = vrot.slane %v217, 7
      %v924 = vrot.slane %v218, 7
      %v925 = vrot.slane %v219, 7
      %v926 = vrot.slane %v220, 7
      %v927 = vrot.slane %v221, 7
      %v928 = vrot.slane %v222, 7
      %v929 = vrot.slane %v223, 7
      %v930 = vrot.slane %v224, 7
      %v931 = vrot.slane %v225, 7
      %v932 = vrot.slane %v226, 7
      %v933 = vrot.slane %v227, 7
      %v934 = vrot.slane %v228, 7
      %v935 = vrot.slane %v229, 7
      %v936 = vrot.slane %v230, 7
      %vm937 = vcmp.lt.s32.totalorder %v232, 1
      %v938 = vsel %vm937, %v935, %v936
      %v939 = vsel %vm937, %v934, %v935
      %v940 = vsel %vm937, %v933, %v934
      %v941 = vsel %vm937, %v932, %v933
      %v942 = vsel %vm937, %v931, %v932
      %v943 = vsel %vm937, %v930, %v931
      %v944 = vsel %vm937, %v929, %v930
      %v945 = vsel %vm937, %v928, %v929
      %v946 = vsel %vm937, %v927, %v928
      %v947 = vsel %vm937, %v926, %v927
      %v948 = vsel %vm937, %v925, %v926
      %v949 = vsel %vm937, %v924, %v925
      %v950 = vsel %vm937, %v923, %v924
      %v951 = vsel %vm937, %v922, %v923
      %v952 = vsel %vm937, %v921, %v922
      %v953 = vsel %vm937, %v920, %v921
      %v954 = vsel %vm937, %v919, %v920
      %v955 = vsel %vm937, %v918, %v919
      %v956 = vsel %vm937, %v917, %v918
      %v957 = vsel %vm937, %v916, %v917
      %v958 = vsel %vm937, %v915, %v916
      %v959 = vsel %vm937, %v914, %v915
      %v960 = vsel %vm937, %v913, %v914
      %v961 = vsel %vm937, %v912, %v913
      %v962 = vsel %vm937, %v911, %v912
      %v963 = vsel %vm937, %v910, %v911
      %v964 = vsel %vm937, %v909, %v910
      %v965 = vsel %vm937, %v908, %v909
      %v966 = vsel %vm937, %v907, %v908
      %v967 = vsel %vm937, %v906, %v907
      %v968 = vsel %vm937, %v905, %v906
      %v969 = vsel %vm937, %v936, %v905
      %v970 = vsel %vm776, %v939, 0.0
      %v971 = vsel %vm777, %v938, 0.0
      %v972 = vsel %vm778, %v969, 0.0
      %v973 = vsel %vm779, %v968, 0.0
      %v974 = vsel %vm780, %v967, 0.0
      %v975 = vsel %vm781, %v966, 0.0
      %v976 = vsel %vm782, %v965, 0.0
      %v977 = vsel %vm783, %v964, 0.0
      %v978 = vsel %vm784, %v963, 0.0
      %v979 = vsel %vm785, %v962, 0.0
      %v980 = vsel %vm786, %v961, 0.0
      %v981 = vsel %vm787, %v960, 0.0
      %v982 = vsel %vm788, %v959, 0.0
      %v983 = vsel %vm789, %v958, 0.0
      %v984 = vsel %vm790, %v957, 0.0
      %v985 = vsel %vm791, %v956, 0.0
      %v986 = vsel %vm792, %v955, 0.0
      %v987 = vsel %vm793, %v954, 0.0
      %v988 = vsel %vm794, %v953, 0.0
      %v989 = vsel %vm795, %v952, 0.0
      %v990 = vsel %vm796, %v951, 0.0
      %v991 = vsel %vm797, %v950, 0.0
      %v992 = vsel %vm798, %v949, 0.0
      %v993 = vsel %vm799, %v948, 0.0
      %v994 = vsel %vm800, %v947, 0.0
      %v995 = vsel %vm801, %v946, 0.0
      %v996 = vsel %vm802, %v945, 0.0
      %v997 = vsel %vm803, %v944, 0.0
      %v998 = vsel %vm804, %v943, 0.0
      %v999 = vsel %vm805, %v942, 0.0
      %v1000 = vsel %vm806, %v941, 0.0
      %v1001 = vsel %vm807, %v940, 0.0
      %v1002 = vpack.c.bf16 %v971, %v970
      %v1003 = vpack.c.bf16 %v973, %v972
      %v1004 = vpack.c.bf16 %v975, %v974
      %v1005 = vpack.c.bf16 %v977, %v976
      %v1006 = vpack.c.bf16 %v979, %v978
      %v1007 = vpack.c.bf16 %v981, %v980
      %v1008 = vpack.c.bf16 %v983, %v982
      %v1009 = vpack.c.bf16 %v985, %v984
      %v1010 = vpack.c.bf16 %v987, %v986
      %v1011 = vpack.c.bf16 %v989, %v988
      %v1012 = vpack.c.bf16 %v991, %v990
      %v1013 = vpack.c.bf16 %v993, %v992
      %v1014 = vpack.c.bf16 %v995, %v994
      %v1015 = vpack.c.bf16 %v997, %v996
      %v1016 = vpack.c.bf16 %v999, %v998
      %v1017 = vpack.c.bf16 %v1001, %v1000
      %v1018 = vld [vmem:[%s1] sm:$0xf]
      %v1019 = vld [vmem:[%s1 + $0x4] sm:$0xf]
      %v1020 = vld [vmem:[%s1 + $0x8] sm:$0xf]
      %v1021 = vld [vmem:[%s1 + $0xc] sm:$0xf]
      %v1022 = vld [vmem:[%s1 + $0x10] sm:$0xf]
      %v1023 = vld [vmem:[%s1 + $0x14] sm:$0xf]
      %v1024 = vld [vmem:[%s1 + $0x18] sm:$0xf]
      %v1025 = vld [vmem:[%s1 + $0x1c] sm:$0xf]
      %v1026 = vld [vmem:[%s1 + $0x20] sm:$0xf]
      %v1027 = vld [vmem:[%s1 + $0x24] sm:$0xf]
      %v1028 = vld [vmem:[%s1 + $0x28] sm:$0xf]
      %v1029 = vld [vmem:[%s1 + $0x2c] sm:$0xf]
      %v1030 = vld [vmem:[%s1 + $0x30] sm:$0xf]
      %v1031 = vld [vmem:[%s1 + $0x34] sm:$0xf]
      %v1032 = vld [vmem:[%s1 + $0x38] sm:$0xf]
      %v1033 = vld [vmem:[%s1 + $0x3c] sm:$0xf]
      %v1034 = vsel %vm648, %v229, 0.0
      %v1035 = vsel %vm649, %v230, 0.0
      %v1036 = vsel %vm650, %v199, 0.0
      %v1037 = vsel %vm651, %v200, 0.0
      %v1038 = vsel %vm652, %v201, 0.0
      %v1039 = vsel %vm653, %v202, 0.0
      %v1040 = vsel %vm654, %v203, 0.0
      %v1041 = vsel %vm655, %v204, 0.0
      %v1042 = vsel %vm656, %v205, 0.0
      %v1043 = vsel %vm657, %v206, 0.0
      %v1044 = vsel %vm658, %v207, 0.0
      %v1045 = vsel %vm659, %v208, 0.0
      %v1046 = vsel %vm660, %v209, 0.0
      %v1047 = vsel %vm661, %v210, 0.0
      %v1048 = vsel %vm662, %v211, 0.0
      %v1049 = vsel %vm663, %v212, 0.0
      %v1050 = vsel %vm664, %v213, 0.0
      %v1051 = vsel %vm665, %v214, 0.0
      %v1052 = vsel %vm666, %v215, 0.0
      %v1053 = vsel %vm667, %v216, 0.0
      %v1054 = vsel %vm668, %v217, 0.0
      %v1055 = vsel %vm669, %v218, 0.0
      %v1056 = vsel %vm670, %v219, 0.0
      %v1057 = vsel %vm671, %v220, 0.0
      %v1058 = vsel %vm672, %v221, 0.0
      %v1059 = vsel %vm673, %v222, 0.0
      %v1060 = vsel %vm674, %v223, 0.0
      %v1061 = vsel %vm675, %v224, 0.0
      %v1062 = vsel %vm676, %v225, 0.0
      %v1063 = vsel %vm677, %v226, 0.0
      %v1064 = vsel %vm678, %v227, 0.0
      %v1065 = vsel %vm679, %v228, 0.0
      %v1066 = vpack.c.bf16 %v1035, %v1034
      %v1067 = vpack.c.bf16 %v1037, %v1036
      %v1068 = vpack.c.bf16 %v1039, %v1038
      %v1069 = vpack.c.bf16 %v1041, %v1040
      %v1070 = vpack.c.bf16 %v1043, %v1042
      %v1071 = vpack.c.bf16 %v1045, %v1044
      %v1072 = vpack.c.bf16 %v1047, %v1046
      %v1073 = vpack.c.bf16 %v1049, %v1048
      %v1074 = vpack.c.bf16 %v1051, %v1050
      %v1075 = vpack.c.bf16 %v1053, %v1052
      %v1076 = vpack.c.bf16 %v1055, %v1054
      %v1077 = vpack.c.bf16 %v1057, %v1056
      %v1078 = vpack.c.bf16 %v1059, %v1058
      %v1079 = vpack.c.bf16 %v1061, %v1060
      %v1080 = vpack.c.bf16 %v1063, %v1062
      %v1081 = vpack.c.bf16 %v1065, %v1064
      %s1082 = scalar_lea.vmem %s1, 64
      %v1083 = vld [vmem:[%s1082] sm:$0xf]
      %v1084 = vld [vmem:[%s1082 + $0x4] sm:$0xf]
      %v1085 = vld [vmem:[%s1082 + $0x8] sm:$0xf]
      %v1086 = vld [vmem:[%s1082 + $0xc] sm:$0xf]
      %v1087 = vld [vmem:[%s1082 + $0x10] sm:$0xf]
      %v1088 = vld [vmem:[%s1082 + $0x14] sm:$0xf]
      %v1089 = vld [vmem:[%s1082 + $0x18] sm:$0xf]
      %v1090 = vld [vmem:[%s1082 + $0x1c] sm:$0xf]
      %v1091 = vld [vmem:[%s1082 + $0x20] sm:$0xf]
      %v1092 = vld [vmem:[%s1082 + $0x24] sm:$0xf]
      %v1093 = vld [vmem:[%s1082 + $0x28] sm:$0xf]
      %v1094 = vld [vmem:[%s1082 + $0x2c] sm:$0xf]
      %v1095 = vld [vmem:[%s1082 + $0x30] sm:$0xf]
      %v1096 = vld [vmem:[%s1082 + $0x34] sm:$0xf]
      %v1097 = vld [vmem:[%s1082 + $0x38] sm:$0xf]
      %v1098 = vld [vmem:[%s1082 + $0x3c] sm:$0xf]
      %v1115 = vunpack.c.l.b16 %v1083
      %v1116 = vunpack.c.l.b16 %v1084
      %v1117 = vunpack.c.l.b16 %v1085
      %v1118 = vunpack.c.l.b16 %v1086
      %v1119 = vunpack.c.l.b16 %v1087
      %v1120 = vunpack.c.l.b16 %v1088
      %v1121 = vunpack.c.l.b16 %v1089
      %v1122 = vunpack.c.l.b16 %v1090
      %v1123 = vunpack.c.l.b16 %v1091
      %v1124 = vunpack.c.l.b16 %v1092
      %v1125 = vunpack.c.l.b16 %v1093
      %v1126 = vunpack.c.l.b16 %v1094
      %v1127 = vunpack.c.l.b16 %v1095
      %v1128 = vunpack.c.l.b16 %v1096
      %v1129 = vunpack.c.l.b16 %v1097
      %v1130 = vunpack.c.l.b16 %v1098
      %v1131 = vpack.c.b16 %v1116, %v1115
      %v1132 = vpack.c.b16 %v1118, %v1117
      %v1133 = vpack.c.b16 %v1120, %v1119
      %v1134 = vpack.c.b16 %v1122, %v1121
      %v1135 = vpack.c.b16 %v1124, %v1123
      %v1136 = vpack.c.b16 %v1126, %v1125
      %v1137 = vpack.c.b16 %v1128, %v1127
      %v1138 = vpack.c.b16 %v1130, %v1129
      %1147 = vmatprep.subr.bf16.mxu0 0
      %1148 = vmatpush1.bf16.msra.mxu0 %v1131
      %1149 = vmatprep.subr.bf16.mxu0 0
      %1150 = vmatpush1.bf16.msra.mxu0 %v1132
      %1151 = vmatprep.subr.bf16.mxu0 0
      %1152 = vmatpush1.bf16.msra.mxu0 %v1133
      %1153 = vmatprep.subr.bf16.mxu0 0
      %1154 = vmatpush1.bf16.msra.mxu0 %v1134
      %1155 = vmatprep.subr.bf16.mxu0 0
      %1156 = vmatpush1.bf16.msra.mxu0 %v1135
      %1157 = vmatprep.subr.bf16.mxu0 0
      %1158 = vmatpush1.bf16.msra.mxu0 %v1136
      %1159 = vmatprep.subr.bf16.mxu0 0
      %1160 = vmatpush1.bf16.msra.mxu0 %v1137
      %1161 = vmatprep.subr.bf16.mxu0 0
      %1162 = vmatpush1.bf16.msra.mxu0 %v1138
      %1163 = vmatprep.subr.bf16.mxu0 0
      %1164 = vmatpush1.bf16.msra.mxu0 0
      %1165 = vmatprep.subr.bf16.mxu0 0
      %1166 = vmatpush1.bf16.msra.mxu0 0
      %1167 = vmatprep.subr.bf16.mxu0 0
      %1168 = vmatpush1.bf16.msra.mxu0 0
      %1169 = vmatprep.subr.bf16.mxu0 0
      %1170 = vmatpush1.bf16.msra.mxu0 0
      %1171 = vmatprep.subr.bf16.mxu0 0
      %1172 = vmatpush1.bf16.msra.mxu0 0
      %1173 = vmatprep.subr.bf16.mxu0 0
      %1174 = vmatpush1.bf16.msra.mxu0 0
      %1175 = vmatprep.subr.bf16.mxu0 0
      %1176 = vmatpush1.bf16.msra.mxu0 0
      %1177 = vmatprep.subr.bf16.mxu0 0
      %1178 = vmatpush1.bf16.msra.mxu0 0
      %1179 = vmatprep.mubr.bf16.mxu0 0
      %1180 = vmatmul.mubr.bf16.gmra.mrb[0].mxu0 %v1066
      %v1181 = vpop.f32.mrb[0].mxu0
      %v1182 = vadd.f32 0.0, %v1181
      %v1183 = vpop.f32.mrb[0].mxu0
      %v1184 = vpop.f32.mrb[0].mxu0
      %v1185 = vadd.f32 0.0, %v1184
      %v1186 = vpop.f32.mrb[0].mxu0
      %1187 = vmatprep.mubr.bf16.mxu0 0
      %1188 = vmatmul.mubr.bf16.gmra.mrb[0].mxu0 %v1067
      %v1189 = vpop.f32.mrb[0].mxu0
      %v1190 = vadd.f32 0.0, %v1189
      %v1191 = vpop.f32.mrb[0].mxu0
      %v1192 = vpop.f32.mrb[0].mxu0
      %v1193 = vadd.f32 0.0, %v1192
      %v1194 = vpop.f32.mrb[0].mxu0
      %1195 = vmatprep.mubr.bf16.mxu0 0
      %1196 = vmatmul.mubr.bf16.gmra.mrb[0].mxu0 %v1068
      %v1197 = vpop.f32.mrb[0].mxu0
      %v1198 = vadd.f32 0.0, %v1197
      %v1199 = vpop.f32.mrb[0].mxu0
      %v1200 = vpop.f32.mrb[0].mxu0
      %v1201 = vadd.f32 0.0, %v1200
      %v1202 = vpop.f32.mrb[0].mxu0
      %1203 = vmatprep.mubr.bf16.mxu0 0
      %1204 = vmatmul.mubr.bf16.gmra.mrb[0].mxu0 %v1069
      %v1205 = vpop.f32.mrb[0].mxu0
      %v1206 = vadd.f32 0.0, %v1205
      %v1207 = vpop.f32.mrb[0].mxu0
      %v1208 = vpop.f32.mrb[0].mxu0
      %v1209 = vadd.f32 0.0, %v1208
      %v1210 = vpop.f32.mrb[0].mxu0
      %1211 = vmatprep.mubr.bf16.mxu0 0
      %1212 = vmatmul.mubr.bf16.gmra.mrb[0].mxu0 %v1070
      %v1213 = vpop.f32.mrb[0].mxu0
      %v1214 = vadd.f32 0.0, %v1213
      %v1215 = vpop.f32.mrb[0].mxu0
      %v1216 = vpop.f32.mrb[0].mxu0
      %v1217 = vadd.f32 0.0, %v1216
      %v1218 = vpop.f32.mrb[0].mxu0
      %1219 = vmatprep.mubr.bf16.mxu0 0
      %1220 = vmatmul.mubr.bf16.gmra.mrb[0].mxu0 %v1071
      %v1221 = vpop.f32.mrb[0].mxu0
      %v1222 = vadd.f32 0.0, %v1221
      %v1223 = vpop.f32.mrb[0].mxu0
      %v1224 = vpop.f32.mrb[0].mxu0
      %v1225 = vadd.f32 0.0, %v1224
      %v1226 = vpop.f32.mrb[0].mxu0
      %1227 = vmatprep.mubr.bf16.mxu0 0
      %1228 = vmatmul.mubr.bf16.gmra.mrb[0].mxu0 %v1072
      %v1229 = vpop.f32.mrb[0].mxu0
      %v1230 = vadd.f32 0.0, %v1229
      %v1231 = vpop.f32.mrb[0].mxu0
      %v1232 = vpop.f32.mrb[0].mxu0
      %v1233 = vadd.f32 0.0, %v1232
      %v1234 = vpop.f32.mrb[0].mxu0
      %1235 = vmatprep.mubr.bf16.mxu0 0
      %1236 = vmatmul.mubr.bf16.gmra.mrb[0].mxu0 %v1073
      %v1237 = vpop.f32.mrb[0].mxu0
      %v1238 = vadd.f32 0.0, %v1237
      %v1239 = vpop.f32.mrb[0].mxu0
      %v1240 = vpop.f32.mrb[0].mxu0
      %v1241 = vadd.f32 0.0, %v1240
      %v1242 = vpop.f32.mrb[0].mxu0
      %1243 = vmatprep.mubr.bf16.mxu0 0
      %1244 = vmatmul.mubr.bf16.gmra.mrb[0].mxu0 %v1074
      %v1245 = vpop.f32.mrb[0].mxu0
      %v1246 = vadd.f32 0.0, %v1245
      %v1247 = vpop.f32.mrb[0].mxu0
      %v1248 = vpop.f32.mrb[0].mxu0
      %v1249 = vadd.f32 0.0, %v1248
      %v1250 = vpop.f32.mrb[0].mxu0
      %1251 = vmatprep.mubr.bf16.mxu0 0
      %1252 = vmatmul.mubr.bf16.gmra.mrb[0].mxu0 %v1075
      %v1253 = vpop.f32.mrb[0].mxu0
      %v1254 = vadd.f32 0.0, %v1253
      %v1255 = vpop.f32.mrb[0].mxu0
      %v1256 = vpop.f32.mrb[0].mxu0
      %v1257 = vadd.f32 0.0, %v1256
      %v1258 = vpop.f32.mrb[0].mxu0
      %1259 = vmatprep.mubr.bf16.mxu0 0
      %1260 = vmatmul.mubr.bf16.gmra.mrb[0].mxu0 %v1076
      %v1261 = vpop.f32.mrb[0].mxu0
      %v1262 = vadd.f32 0.0, %v1261
      %v1263 = vpop.f32.mrb[0].mxu0
      %v1264 = vpop.f32.mrb[0].mxu0
      %v1265 = vadd.f32 0.0, %v1264
      %v1266 = vpop.f32.mrb[0].mxu0
      %1267 = vmatprep.mubr.bf16.mxu0 0
      %1268 = vmatmul.mubr.bf16.gmra.mrb[0].mxu0 %v1077
      %v1269 = vpop.f32.mrb[0].mxu0
      %v1270 = vadd.f32 0.0, %v1269
      %v1271 = vpop.f32.mrb[0].mxu0
      %v1272 = vpop.f32.mrb[0].mxu0
      %v1273 = vadd.f32 0.0, %v1272
      %v1274 = vpop.f32.mrb[0].mxu0
      %1275 = vmatprep.mubr.bf16.mxu0 0
      %1276 = vmatmul.mubr.bf16.gmra.mrb[0].mxu0 %v1078
      %v1277 = vpop.f32.mrb[0].mxu0
      %v1278 = vadd.f32 0.0, %v1277
      %v1279 = vpop.f32.mrb[0].mxu0
      %v1280 = vpop.f32.mrb[0].mxu0
      %v1281 = vadd.f32 0.0, %v1280
      %v1282 = vpop.f32.mrb[0].mxu0
      %1283 = vmatprep.mubr.bf16.mxu0 0
      %1284 = vmatmul.mubr.bf16.gmra.mrb[0].mxu0 %v1079
      %v1285 = vpop.f32.mrb[0].mxu0
      %v1286 = vadd.f32 0.0, %v1285
      %v1287 = vpop.f32.mrb[0].mxu0
      %v1288 = vpop.f32.mrb[0].mxu0
      %v1289 = vadd.f32 0.0, %v1288
      %v1290 = vpop.f32.mrb[0].mxu0
      %1291 = vmatprep.mubr.bf16.mxu0 0
      %1292 = vmatmul.mubr.bf16.gmra.mrb[0].mxu0 %v1080
      %v1293 = vpop.f32.mrb[0].mxu0
      %v1294 = vadd.f32 0.0, %v1293
      %v1295 = vpop.f32.mrb[0].mxu0
      %v1296 = vpop.f32.mrb[0].mxu0
      %v1297 = vadd.f32 0.0, %v1296
      %v1298 = vpop.f32.mrb[0].mxu0
      %1299 = vmatprep.mubr.bf16.mxu0 0
      %1300 = vmatmul.mubr.bf16.gmra.mrb[0].mxu0 %v1081
      %v1301 = vpop.f32.mrb[0].mxu0
      %v1302 = vadd.f32 0.0, %v1301
      %v1303 = vpop.f32.mrb[0].mxu0
      %v1304 = vpop.f32.mrb[0].mxu0
      %v1305 = vadd.f32 0.0, %v1304
      %v1306 = vpop.f32.mrb[0].mxu0
      %1307 = vdwg.mxu0
      %v1324 = vunpack.c.l.b16 %v1018
      %v1325 = vunpack.c.l.b16 %v1019
      %v1326 = vunpack.c.l.b16 %v1020
      %v1327 = vunpack.c.l.b16 %v1021
      %v1328 = vunpack.c.l.b16 %v1022
      %v1329 = vunpack.c.l.b16 %v1023
      %v1330 = vunpack.c.l.b16 %v1024
      %v1331 = vunpack.c.l.b16 %v1025
      %v1332 = vunpack.c.l.b16 %v1026
      %v1333 = vunpack.c.l.b16 %v1027
      %v1334 = vunpack.c.l.b16 %v1028
      %v1335 = vunpack.c.l.b16 %v1029
      %v1336 = vunpack.c.l.b16 %v1030
      %v1337 = vunpack.c.l.b16 %v1031
      %v1338 = vunpack.c.l.b16 %v1032
      %v1339 = vunpack.c.l.b16 %v1033
      %v1340 = vpack.c.b16 %v1325, %v1324
      %v1341 = vpack.c.b16 %v1327, %v1326
      %v1342 = vpack.c.b16 %v1329, %v1328
      %v1343 = vpack.c.b16 %v1331, %v1330
      %v1344 = vpack.c.b16 %v1333, %v1332
      %v1345 = vpack.c.b16 %v1335, %v1334
      %v1346 = vpack.c.b16 %v1337, %v1336
      %v1347 = vpack.c.b16 %v1339, %v1338
      %1356 = vmatprep.subr.bf16.mxu0 0
      %1357 = vmatpush1.bf16.msra.mxu0 %v1340
      %1358 = vmatprep.subr.bf16.mxu0 0
      %1359 = vmatpush1.bf16.msra.mxu0 %v1341
      %1360 = vmatprep.subr.bf16.mxu0 0
      %1361 = vmatpush1.bf16.msra.mxu0 %v1342
      %1362 = vmatprep.subr.bf16.mxu0 0
      %1363 = vmatpush1.bf16.msra.mxu0 %v1343
      %1364 = vmatprep.subr.bf16.mxu0 0
      %1365 = vmatpush1.bf16.msra.mxu0 %v1344
      %1366 = vmatprep.subr.bf16.mxu0 0
      %1367 = vmatpush1.bf16.msra.mxu0 %v1345
      %1368 = vmatprep.subr.bf16.mxu0 0
      %1369 = vmatpush1.bf16.msra.mxu0 %v1346
      %1370 = vmatprep.subr.bf16.mxu0 0
      %1371 = vmatpush1.bf16.msra.mxu0 %v1347
      %1372 = vmatprep.subr.bf16.mxu0 0
      %1373 = vmatpush1.bf16.msra.mxu0 0
      %1374 = vmatprep.subr.bf16.mxu0 0
      %1375 = vmatpush1.bf16.msra.mxu0 0
      %1376 = vmatprep.subr.bf16.mxu0 0
      %1377 = vmatpush1.bf16.msra.mxu0 0
      %1378 = vmatprep.subr.bf16.mxu0 0
      %1379 = vmatpush1.bf16.msra.mxu0 0
      %1380 = vmatprep.subr.bf16.mxu0 0
      %1381 = vmatpush1.bf16.msra.mxu0 0
      %1382 = vmatprep.subr.bf16.mxu0 0
      %1383 = vmatpush1.bf16.msra.mxu0 0
      %1384 = vmatprep.subr.bf16.mxu0 0
      %1385 = vmatpush1.bf16.msra.mxu0 0
      %1386 = vmatprep.subr.bf16.mxu0 0
      %1387 = vmatpush1.bf16.msra.mxu0 0
      %1388 = vmatprep.mubr.bf16.mxu0 0
      %1389 = vmatmul.mubr.bf16.gmra.mrb[0].mxu0 %v1002
      %v1390 = vpop.f32.mrb[0].mxu0
      %v1391 = vadd.f32 %v1182, %v1390
      %v1392 = vpop.f32.mrb[0].mxu0
      %v1393 = vpop.f32.mrb[0].mxu0
      %v1394 = vadd.f32 %v1185, %v1393
      %v1395 = vpop.f32.mrb[0].mxu0
      %1396 = vmatprep.mubr.bf16.mxu0 0
      %1397 = vmatmul.mubr.bf16.gmra.mrb[0].mxu0 %v1003
      %v1398 = vpop.f32.mrb[0].mxu0
      %v1399 = vadd.f32 %v1190, %v1398
      %v1400 = vpop.f32.mrb[0].mxu0
      %v1401 = vpop.f32.mrb[0].mxu0
      %v1402 = vadd.f32 %v1193, %v1401
      %v1403 = vpop.f32.mrb[0].mxu0
      %1404 = vmatprep.mubr.bf16.mxu0 0
      %1405 = vmatmul.mubr.bf16.gmra.mrb[0].mxu0 %v1004
      %v1406 = vpop.f32.mrb[0].mxu0
      %v1407 = vadd.f32 %v1198, %v1406
      %v1408 = vpop.f32.mrb[0].mxu0
      %v1409 = vpop.f32.mrb[0].mxu0
      %v1410 = vadd.f32 %v1201, %v1409
      %v1411 = vpop.f32.mrb[0].mxu0
      %1412 = vmatprep.mubr.bf16.mxu0 0
      %1413 = vmatmul.mubr.bf16.gmra.mrb[0].mxu0 %v1005
      %v1414 = vpop.f32.mrb[0].mxu0
      %v1415 = vadd.f32 %v1206, %v1414
      %v1416 = vpop.f32.mrb[0].mxu0
      %v1417 = vpop.f32.mrb[0].mxu0
      %v1418 = vadd.f32 %v1209, %v1417
      %v1419 = vpop.f32.mrb[0].mxu0
      %1420 = vmatprep.mubr.bf16.mxu0 0
      %1421 = vmatmul.mubr.bf16.gmra.mrb[0].mxu0 %v1006
      %v1422 = vpop.f32.mrb[0].mxu0
      %v1423 = vadd.f32 %v1214, %v1422
      %v1424 = vpop.f32.mrb[0].mxu0
      %v1425 = vpop.f32.mrb[0].mxu0
      %v1426 = vadd.f32 %v1217, %v1425
      %v1427 = vpop.f32.mrb[0].mxu0
      %1428 = vmatprep.mubr.bf16.mxu0 0
      %1429 = vmatmul.mubr.bf16.gmra.mrb[0].mxu0 %v1007
      %v1430 = vpop.f32.mrb[0].mxu0
      %v1431 = vadd.f32 %v1222, %v1430
      %v1432 = vpop.f32.mrb[0].mxu0
      %v1433 = vpop.f32.mrb[0].mxu0
      %v1434 = vadd.f32 %v1225, %v1433
      %v1435 = vpop.f32.mrb[0].mxu0
      %1436 = vmatprep.mubr.bf16.mxu0 0
      %1437 = vmatmul.mubr.bf16.gmra.mrb[0].mxu0 %v1008
      %v1438 = vpop.f32.mrb[0].mxu0
      %v1439 = vadd.f32 %v1230, %v1438
      %v1440 = vpop.f32.mrb[0].mxu0
      %v1441 = vpop.f32.mrb[0].mxu0
      %v1442 = vadd.f32 %v1233, %v1441
      %v1443 = vpop.f32.mrb[0].mxu0
      %1444 = vmatprep.mubr.bf16.mxu0 0
      %1445 = vmatmul.mubr.bf16.gmra.mrb[0].mxu0 %v1009
      %v1446 = vpop.f32.mrb[0].mxu0
      %v1447 = vadd.f32 %v1238, %v1446
      %v1448 = vpop.f32.mrb[0].mxu0
      %v1449 = vpop.f32.mrb[0].mxu0
      %v1450 = vadd.f32 %v1241, %v1449
      %v1451 = vpop.f32.mrb[0].mxu0
      %1452 = vmatprep.mubr.bf16.mxu0 0
      %1453 = vmatmul.mubr.bf16.gmra.mrb[0].mxu0 %v1010
      %v1454 = vpop.f32.mrb[0].mxu0
      %v1455 = vadd.f32 %v1246, %v1454
      %v1456 = vpop.f32.mrb[0].mxu0
      %v1457 = vpop.f32.mrb[0].mxu0
      %v1458 = vadd.f32 %v1249, %v1457
      %v1459 = vpop.f32.mrb[0].mxu0
      %1460 = vmatprep.mubr.bf16.mxu0 0
      %1461 = vmatmul.mubr.bf16.gmra.mrb[0].mxu0 %v1011
      %v1462 = vpop.f32.mrb[0].mxu0
      %v1463 = vadd.f32 %v1254, %v1462
      %v1464 = vpop.f32.mrb[0].mxu0
      %v1465 = vpop.f32.mrb[0].mxu0
      %v1466 = vadd.f32 %v1257, %v1465
      %v1467 = vpop.f32.mrb[0].mxu0
      %1468 = vmatprep.mubr.bf16.mxu0 0
      %1469 = vmatmul.mubr.bf16.gmra.mrb[0].mxu0 %v1012
      %v1470 = vpop.f32.mrb[0].mxu0
      %v1471 = vadd.f32 %v1262, %v1470
      %v1472 = vpop.f32.mrb[0].mxu0
      %v1473 = vpop.f32.mrb[0].mxu0
      %v1474 = vadd.f32 %v1265, %v1473
      %v1475 = vpop.f32.mrb[0].mxu0
      %1476 = vmatprep.mubr.bf16.mxu0 0
      %1477 = vmatmul.mubr.bf16.gmra.mrb[0].mxu0 %v1013
      %v1478 = vpop.f32.mrb[0].mxu0
      %v1479 = vadd.f32 %v1270, %v1478
      %v1480 = vpop.f32.mrb[0].mxu0
      %v1481 = vpop.f32.mrb[0].mxu0
      %v1482 = vadd.f32 %v1273, %v1481
      %v1483 = vpop.f32.mrb[0].mxu0
      %1484 = vmatprep.mubr.bf16.mxu0 0
      %1485 = vmatmul.mubr.bf16.gmra.mrb[0].mxu0 %v1014
      %v1486 = vpop.f32.mrb[0].mxu0
      %v1487 = vadd.f32 %v1278, %v1486
      %v1488 = vpop.f32.mrb[0].mxu0
      %v1489 = vpop.f32.mrb[0].mxu0
      %v1490 = vadd.f32 %v1281, %v1489
      %v1491 = vpop.f32.mrb[0].mxu0
      %1492 = vmatprep.mubr.bf16.mxu0 0
      %1493 = vmatmul.mubr.bf16.gmra.mrb[0].mxu0 %v1015
      %v1494 = vpop.f32.mrb[0].mxu0
      %v1495 = vadd.f32 %v1286, %v1494
      %v1496 = vpop.f32.mrb[0].mxu0
      %v1497 = vpop.f32.mrb[0].mxu0
      %v1498 = vadd.f32 %v1289, %v1497
      %v1499 = vpop.f32.mrb[0].mxu0
      %1500 = vmatprep.mubr.bf16.mxu0 0
      %1501 = vmatmul.mubr.bf16.gmra.mrb[0].mxu0 %v1016
      %v1502 = vpop.f32.mrb[0].mxu0
      %v1503 = vadd.f32 %v1294, %v1502
      %v1504 = vpop.f32.mrb[0].mxu0
      %v1505 = vpop.f32.mrb[0].mxu0
      %v1506 = vadd.f32 %v1297, %v1505
      %v1507 = vpop.f32.mrb[0].mxu0
      %1508 = vmatprep.mubr.bf16.mxu0 0
      %1509 = vmatmul.mubr.bf16.gmra.mrb[0].mxu0 %v1017
      %v1510 = vpop.f32.mrb[0].mxu0
      %v1511 = vadd.f32 %v1302, %v1510
      %v1512 = vpop.f32.mrb[0].mxu0
      %v1513 = vpop.f32.mrb[0].mxu0
      %v1514 = vadd.f32 %v1305, %v1513
      %v1515 = vpop.f32.mrb[0].mxu0
      %1516 = vdwg.mxu0
      %v1517 = vrot.slane %v199, 1
      %v1518 = vrot.slane %v200, 1
      %v1519 = vrot.slane %v201, 1
      %v1520 = vrot.slane %v202, 1
      %v1521 = vrot.slane %v203, 1
      %v1522 = vrot.slane %v204, 1
      %v1523 = vrot.slane %v205, 1
      %v1524 = vrot.slane %v206, 1
      %v1525 = vrot.slane %v207, 1
      %v1526 = vrot.slane %v208, 1
      %v1527 = vrot.slane %v209, 1
      %v1528 = vrot.slane %v210, 1
      %v1529 = vrot.slane %v211, 1
      %v1530 = vrot.slane %v212, 1
      %v1531 = vrot.slane %v213, 1
      %v1532 = vrot.slane %v214, 1
      %v1533 = vrot.slane %v215, 1
      %v1534 = vrot.slane %v216, 1
      %v1535 = vrot.slane %v217, 1
      %v1536 = vrot.slane %v218, 1
      %v1537 = vrot.slane %v219, 1
      %v1538 = vrot.slane %v220, 1
      %v1539 = vrot.slane %v221, 1
      %v1540 = vrot.slane %v222, 1
      %v1541 = vrot.slane %v223, 1
      %v1542 = vrot.slane %v224, 1
      %v1543 = vrot.slane %v225, 1
      %v1544 = vrot.slane %v226, 1
      %v1545 = vrot.slane %v227, 1
      %v1546 = vrot.slane %v228, 1
      %v1547 = vrot.slane %v229, 1
      %v1548 = vrot.slane %v230, 1
      %vm1549 = vcmp.lt.s32.totalorder %v232, 7
      %v1550 = vsel %vm1549, %v1547, %v1548
      %v1551 = vsel %vm1549, %v1546, %v1547
      %v1552 = vsel %vm1549, %v1545, %v1546
      %v1553 = vsel %vm1549, %v1544, %v1545
      %v1554 = vsel %vm1549, %v1543, %v1544
      %v1555 = vsel %vm1549, %v1542, %v1543
      %v1556 = vsel %vm1549, %v1541, %v1542
      %v1557 = vsel %vm1549, %v1540, %v1541
      %v1558 = vsel %vm1549, %v1539, %v1540
      %v1559 = vsel %vm1549, %v1538, %v1539
      %v1560 = vsel %vm1549, %v1537, %v1538
      %v1561 = vsel %vm1549, %v1536, %v1537
      %v1562 = vsel %vm1549, %v1535, %v1536
      %v1563 = vsel %vm1549, %v1534, %v1535
      %v1564 = vsel %vm1549, %v1533, %v1534
      %v1565 = vsel %vm1549, %v1532, %v1533
      %v1566 = vsel %vm1549, %v1531, %v1532
      %v1567 = vsel %vm1549, %v1530, %v1531
      %v1568 = vsel %vm1549, %v1529, %v1530
      %v1569 = vsel %vm1549, %v1528, %v1529
      %v1570 = vsel %vm1549, %v1527, %v1528
      %v1571 = vsel %vm1549, %v1526, %v1527
      %v1572 = vsel %vm1549, %v1525, %v1526
      %v1573 = vsel %vm1549, %v1524, %v1525
      %v1574 = vsel %vm1549, %v1523, %v1524
      %v1575 = vsel %vm1549, %v1522, %v1523
      %v1576 = vsel %vm1549, %v1521, %v1522
      %v1577 = vsel %vm1549, %v1520, %v1521
      %v1578 = vsel %vm1549, %v1519, %v1520
      %v1579 = vsel %vm1549, %v1518, %v1519
      %v1580 = vsel %vm1549, %v1517, %v1518
      %v1581 = vsel %vm1549, %v1548, %v1517
      %v1582 = vsel %vm808, %v1550, 0.0
      %v1583 = vsel %vm809, %v1581, 0.0
      %v1584 = vsel %vm810, %v1580, 0.0
      %v1585 = vsel %vm811, %v1579, 0.0
      %v1586 = vsel %vm812, %v1578, 0.0
      %v1587 = vsel %vm813, %v1577, 0.0
      %v1588 = vsel %vm814, %v1576, 0.0
      %v1589 = vsel %vm815, %v1575, 0.0
      %v1590 = vsel %vm816, %v1574, 0.0
      %v1591 = vsel %vm817, %v1573, 0.0
      %v1592 = vsel %vm818, %v1572, 0.0
      %v1593 = vsel %vm819, %v1571, 0.0
      %v1594 = vsel %vm820, %v1570, 0.0
      %v1595 = vsel %vm821, %v1569, 0.0
      %v1596 = vsel %vm822, %v1568, 0.0
      %v1597 = vsel %vm823, %v1567, 0.0
      %v1598 = vsel %vm824, %v1566, 0.0
      %v1599 = vsel %vm825, %v1565, 0.0
      %v1600 = vsel %vm826, %v1564, 0.0
      %v1601 = vsel %vm827, %v1563, 0.0
      %v1602 = vsel %vm828, %v1562, 0.0
      %v1603 = vsel %vm829, %v1561, 0.0
      %v1604 = vsel %vm830, %v1560, 0.0
      %v1605 = vsel %vm831, %v1559, 0.0
      %v1606 = vsel %vm832, %v1558, 0.0
      %v1607 = vsel %vm833, %v1557, 0.0
      %v1608 = vsel %vm834, %v1556, 0.0
      %v1609 = vsel %vm835, %v1555, 0.0
      %v1610 = vsel %vm836, %v1554, 0.0
      %v1611 = vsel %vm837, %v1553, 0.0
      %v1612 = vsel %vm838, %v1552, 0.0
      %v1613 = vsel %vm839, %v1551, 0.0
      %v1614 = vpack.c.bf16 %v1583, %v1582
      %v1615 = vpack.c.bf16 %v1585, %v1584
      %v1616 = vpack.c.bf16 %v1587, %v1586
      %v1617 = vpack.c.bf16 %v1589, %v1588
      %v1618 = vpack.c.bf16 %v1591, %v1590
      %v1619 = vpack.c.bf16 %v1593, %v1592
      %v1620 = vpack.c.bf16 %v1595, %v1594
      %v1621 = vpack.c.bf16 %v1597, %v1596
      %v1622 = vpack.c.bf16 %v1599, %v1598
      %v1623 = vpack.c.bf16 %v1601, %v1600
      %v1624 = vpack.c.bf16 %v1603, %v1602
      %v1625 = vpack.c.bf16 %v1605, %v1604
      %v1626 = vpack.c.bf16 %v1607, %v1606
      %v1627 = vpack.c.bf16 %v1609, %v1608
      %v1628 = vpack.c.bf16 %v1611, %v1610
      %v1629 = vpack.c.bf16 %v1613, %v1612
      %s1630 = scalar_lea.vmem %s1, 128
      %v1631 = vld [vmem:[%s1630] sm:$0xf]
      %v1632 = vld [vmem:[%s1630 + $0x4] sm:$0xf]
      %v1633 = vld [vmem:[%s1630 + $0x8] sm:$0xf]
      %v1634 = vld [vmem:[%s1630 + $0xc] sm:$0xf]
      %v1635 = vld [vmem:[%s1630 + $0x10] sm:$0xf]
      %v1636 = vld [vmem:[%s1630 + $0x14] sm:$0xf]
      %v1637 = vld [vmem:[%s1630 + $0x18] sm:$0xf]
      %v1638 = vld [vmem:[%s1630 + $0x1c] sm:$0xf]
      %v1639 = vld [vmem:[%s1630 + $0x20] sm:$0xf]
      %v1640 = vld [vmem:[%s1630 + $0x24] sm:$0xf]
      %v1641 = vld [vmem:[%s1630 + $0x28] sm:$0xf]
      %v1642 = vld [vmem:[%s1630 + $0x2c] sm:$0xf]
      %v1643 = vld [vmem:[%s1630 + $0x30] sm:$0xf]
      %v1644 = vld [vmem:[%s1630 + $0x34] sm:$0xf]
      %v1645 = vld [vmem:[%s1630 + $0x38] sm:$0xf]
      %v1646 = vld [vmem:[%s1630 + $0x3c] sm:$0xf]
      %v1663 = vunpack.c.l.b16 %v1631
      %v1664 = vunpack.c.l.b16 %v1632
      %v1665 = vunpack.c.l.b16 %v1633
      %v1666 = vunpack.c.l.b16 %v1634
      %v1667 = vunpack.c.l.b16 %v1635
      %v1668 = vunpack.c.l.b16 %v1636
      %v1669 = vunpack.c.l.b16 %v1637
      %v1670 = vunpack.c.l.b16 %v1638
      %v1671 = vunpack.c.l.b16 %v1639
      %v1672 = vunpack.c.l.b16 %v1640
      %v1673 = vunpack.c.l.b16 %v1641
      %v1674 = vunpack.c.l.b16 %v1642
      %v1675 = vunpack.c.l.b16 %v1643
      %v1676 = vunpack.c.l.b16 %v1644
      %v1677 = vunpack.c.l.b16 %v1645
      %v1678 = vunpack.c.l.b16 %v1646
      %v1679 = vpack.c.b16 %v1664, %v1663
      %v1680 = vpack.c.b16 %v1666, %v1665
      %v1681 = vpack.c.b16 %v1668, %v1667
      %v1682 = vpack.c.b16 %v1670, %v1669
      %v1683 = vpack.c.b16 %v1672, %v1671
      %v1684 = vpack.c.b16 %v1674, %v1673
      %v1685 = vpack.c.b16 %v1676, %v1675
      %v1686 = vpack.c.b16 %v1678, %v1677
      %1695 = vmatprep.subr.bf16.mxu0 0
      %1696 = vmatpush1.bf16.msra.mxu0 %v1679
      %1697 = vmatprep.subr.bf16.mxu0 0
      %1698 = vmatpush1.bf16.msra.mxu0 %v1680
      %1699 = vmatprep.subr.bf16.mxu0 0
      %1700 = vmatpush1.bf16.msra.mxu0 %v1681
      %1701 = vmatprep.subr.bf16.mxu0 0
      %1702 = vmatpush1.bf16.msra.mxu0 %v1682
      %1703 = vmatprep.subr.bf16.mxu0 0
      %1704 = vmatpush1.bf16.msra.mxu0 %v1683
      %1705 = vmatprep.subr.bf16.mxu0 0
      %1706 = vmatpush1.bf16.msra.mxu0 %v1684
      %1707 = vmatprep.subr.bf16.mxu0 0
      %1708 = vmatpush1.bf16.msra.mxu0 %v1685
      %1709 = vmatprep.subr.bf16.mxu0 0
      %1710 = vmatpush1.bf16.msra.mxu0 %v1686
      %1711 = vmatprep.subr.bf16.mxu0 0
      %1712 = vmatpush1.bf16.msra.mxu0 0
      %1713 = vmatprep.subr.bf16.mxu0 0
      %1714 = vmatpush1.bf16.msra.mxu0 0
      %1715 = vmatprep.subr.bf16.mxu0 0
      %1716 = vmatpush1.bf16.msra.mxu0 0
      %1717 = vmatprep.subr.bf16.mxu0 0
      %1718 = vmatpush1.bf16.msra.mxu0 0
      %1719 = vmatprep.subr.bf16.mxu0 0
      %1720 = vmatpush1.bf16.msra.mxu0 0
      %1721 = vmatprep.subr.bf16.mxu0 0
      %1722 = vmatpush1.bf16.msra.mxu0 0
      %1723 = vmatprep.subr.bf16.mxu0 0
      %1724 = vmatpush1.bf16.msra.mxu0 0
      %1725 = vmatprep.subr.bf16.mxu0 0
      %1726 = vmatpush1.bf16.msra.mxu0 0
      %1727 = vmatprep.mubr.bf16.mxu0 0
      %1728 = vmatmul.mubr.bf16.gmra.mrb[0].mxu0 %v1614
      %v1729 = vpop.f32.mrb[0].mxu0
      %v1730 = vadd.f32 0.0, %v1729
      %v1731 = vpop.f32.mrb[0].mxu0
      %v1732 = vpop.f32.mrb[0].mxu0
      %v1733 = vadd.f32 0.0, %v1732
      %v1734 = vpop.f32.mrb[0].mxu0
      %1735 = vmatprep.mubr.bf16.mxu0 0
      %1736 = vmatmul.mubr.bf16.gmra.mrb[0].mxu0 %v1615
      %v1737 = vpop.f32.mrb[0].mxu0
      %v1738 = vadd.f32 0.0, %v1737
      %v1739 = vpop.f32.mrb[0].mxu0
      %v1740 = vpop.f32.mrb[0].mxu0
      %v1741 = vadd.f32 0.0, %v1740
      %v1742 = vpop.f32.mrb[0].mxu0
      %1743 = vmatprep.mubr.bf16.mxu0 0
      %1744 = vmatmul.mubr.bf16.gmra.mrb[0].mxu0 %v1616
      %v1745 = vpop.f32.mrb[0].mxu0
      %v1746 = vadd.f32 0.0, %v1745
      %v1747 = vpop.f32.mrb[0].mxu0
      %v1748 = vpop.f32.mrb[0].mxu0
      %v1749 = vadd.f32 0.0, %v1748
      %v1750 = vpop.f32.mrb[0].mxu0
      %1751 = vmatprep.mubr.bf16.mxu0 0
      %1752 = vmatmul.mubr.bf16.gmra.mrb[0].mxu0 %v1617
      %v1753 = vpop.f32.mrb[0].mxu0
      %v1754 = vadd.f32 0.0, %v1753
      %v1755 = vpop.f32.mrb[0].mxu0
      %v1756 = vpop.f32.mrb[0].mxu0
      %v1757 = vadd.f32 0.0, %v1756
      %v1758 = vpop.f32.mrb[0].mxu0
      %1759 = vmatprep.mubr.bf16.mxu0 0
      %1760 = vmatmul.mubr.bf16.gmra.mrb[0].mxu0 %v1618
      %v1761 = vpop.f32.mrb[0].mxu0
      %v1762 = vadd.f32 0.0, %v1761
      %v1763 = vpop.f32.mrb[0].mxu0
      %v1764 = vpop.f32.mrb[0].mxu0
      %v1765 = vadd.f32 0.0, %v1764
      %v1766 = vpop.f32.mrb[0].mxu0
      %1767 = vmatprep.mubr.bf16.mxu0 0
      %1768 = vmatmul.mubr.bf16.gmra.mrb[0].mxu0 %v1619
      %v1769 = vpop.f32.mrb[0].mxu0
      %v1770 = vadd.f32 0.0, %v1769
      %v1771 = vpop.f32.mrb[0].mxu0
      %v1772 = vpop.f32.mrb[0].mxu0
      %v1773 = vadd.f32 0.0, %v1772
      %v1774 = vpop.f32.mrb[0].mxu0
      %1775 = vmatprep.mubr.bf16.mxu0 0
      %1776 = vmatmul.mubr.bf16.gmra.mrb[0].mxu0 %v1620
      %v1777 = vpop.f32.mrb[0].mxu0
      %v1778 = vadd.f32 0.0, %v1777
      %v1779 = vpop.f32.mrb[0].mxu0
      %v1780 = vpop.f32.mrb[0].mxu0
      %v1781 = vadd.f32 0.0, %v1780
      %v1782 = vpop.f32.mrb[0].mxu0
      %1783 = vmatprep.mubr.bf16.mxu0 0
      %1784 = vmatmul.mubr.bf16.gmra.mrb[0].mxu0 %v1621
      %v1785 = vpop.f32.mrb[0].mxu0
      %v1786 = vadd.f32 0.0, %v1785
      %v1787 = vpop.f32.mrb[0].mxu0
      %v1788 = vpop.f32.mrb[0].mxu0
      %v1789 = vadd.f32 0.0, %v1788
      %v1790 = vpop.f32.mrb[0].mxu0
      %1791 = vmatprep.mubr.bf16.mxu0 0
      %1792 = vmatmul.mubr.bf16.gmra.mrb[0].mxu0 %v1622
      %v1793 = vpop.f32.mrb[0].mxu0
      %v1794 = vadd.f32 0.0, %v1793
      %v1795 = vpop.f32.mrb[0].mxu0
      %v1796 = vpop.f32.mrb[0].mxu0
      %v1797 = vadd.f32 0.0, %v1796
      %v1798 = vpop.f32.mrb[0].mxu0
      %1799 = vmatprep.mubr.bf16.mxu0 0
      %1800 = vmatmul.mubr.bf16.gmra.mrb[0].mxu0 %v1623
      %v1801 = vpop.f32.mrb[0].mxu0
      %v1802 = vadd.f32 0.0, %v1801
      %v1803 = vpop.f32.mrb[0].mxu0
      %v1804 = vpop.f32.mrb[0].mxu0
      %v1805 = vadd.f32 0.0, %v1804
      %v1806 = vpop.f32.mrb[0].mxu0
      %1807 = vmatprep.mubr.bf16.mxu0 0
      %1808 = vmatmul.mubr.bf16.gmra.mrb[0].mxu0 %v1624
      %v1809 = vpop.f32.mrb[0].mxu0
      %v1810 = vadd.f32 0.0, %v1809
      %v1811 = vpop.f32.mrb[0].mxu0
      %v1812 = vpop.f32.mrb[0].mxu0
      %v1813 = vadd.f32 0.0, %v1812
      %v1814 = vpop.f32.mrb[0].mxu0
      %1815 = vmatprep.mubr.bf16.mxu0 0
      %1816 = vmatmul.mubr.bf16.gmra.mrb[0].mxu0 %v1625
      %v1817 = vpop.f32.mrb[0].mxu0
      %v1818 = vadd.f32 0.0, %v1817
      %v1819 = vpop.f32.mrb[0].mxu0
      %v1820 = vpop.f32.mrb[0].mxu0
      %v1821 = vadd.f32 0.0, %v1820
      %v1822 = vpop.f32.mrb[0].mxu0
      %1823 = vmatprep.mubr.bf16.mxu0 0
      %1824 = vmatmul.mubr.bf16.gmra.mrb[0].mxu0 %v1626
      %v1825 = vpop.f32.mrb[0].mxu0
      %v1826 = vadd.f32 0.0, %v1825
      %v1827 = vpop.f32.mrb[0].mxu0
      %v1828 = vpop.f32.mrb[0].mxu0
      %v1829 = vadd.f32 0.0, %v1828
      %v1830 = vpop.f32.mrb[0].mxu0
      %1831 = vmatprep.mubr.bf16.mxu0 0
      %1832 = vmatmul.mubr.bf16.gmra.mrb[0].mxu0 %v1627
      %v1833 = vpop.f32.mrb[0].mxu0
      %v1834 = vadd.f32 0.0, %v1833
      %v1835 = vpop.f32.mrb[0].mxu0
      %v1836 = vpop.f32.mrb[0].mxu0
      %v1837 = vadd.f32 0.0, %v1836
      %v1838 = vpop.f32.mrb[0].mxu0
      %1839 = vmatprep.mubr.bf16.mxu0 0
      %1840 = vmatmul.mubr.bf16.gmra.mrb[0].mxu0 %v1628
      %v1841 = vpop.f32.mrb[0].mxu0
      %v1842 = vadd.f32 0.0, %v1841
      %v1843 = vpop.f32.mrb[0].mxu0
      %v1844 = vpop.f32.mrb[0].mxu0
      %v1845 = vadd.f32 0.0, %v1844
      %v1846 = vpop.f32.mrb[0].mxu0
      %1847 = vmatprep.mubr.bf16.mxu0 0
      %1848 = vmatmul.mubr.bf16.gmra.mrb[0].mxu0 %v1629
      %v1849 = vpop.f32.mrb[0].mxu0
      %v1850 = vadd.f32 0.0, %v1849
      %v1851 = vpop.f32.mrb[0].mxu0
      %v1852 = vpop.f32.mrb[0].mxu0
      %v1853 = vadd.f32 0.0, %v1852
      %v1854 = vpop.f32.mrb[0].mxu0
      %1855 = vdwg.mxu0
      %v1856 = vadd.f32 %v1391, %v1730
      %v1857 = vadd.f32 %v1394, %v1733
      %v1858 = vadd.f32 %v1399, %v1738
      %v1859 = vadd.f32 %v1402, %v1741
      %v1860 = vadd.f32 %v1407, %v1746
      %v1861 = vadd.f32 %v1410, %v1749
      %v1862 = vadd.f32 %v1415, %v1754
      %v1863 = vadd.f32 %v1418, %v1757
      %v1864 = vadd.f32 %v1423, %v1762
      %v1865 = vadd.f32 %v1426, %v1765
      %v1866 = vadd.f32 %v1431, %v1770
      %v1867 = vadd.f32 %v1434, %v1773
      %v1868 = vadd.f32 %v1439, %v1778
      %v1869 = vadd.f32 %v1442, %v1781
      %v1870 = vadd.f32 %v1447, %v1786
      %v1871 = vadd.f32 %v1450, %v1789
      %v1872 = vadd.f32 %v1455, %v1794
      %v1873 = vadd.f32 %v1458, %v1797
      %v1874 = vadd.f32 %v1463, %v1802
      %v1875 = vadd.f32 %v1466, %v1805
      %v1876 = vadd.f32 %v1471, %v1810
      %v1877 = vadd.f32 %v1474, %v1813
      %v1878 = vadd.f32 %v1479, %v1818
      %v1879 = vadd.f32 %v1482, %v1821
      %v1880 = vadd.f32 %v1487, %v1826
      %v1881 = vadd.f32 %v1490, %v1829
      %v1882 = vadd.f32 %v1495, %v1834
      %v1883 = vadd.f32 %v1498, %v1837
      %v1884 = vadd.f32 %v1503, %v1842
      %v1885 = vadd.f32 %v1506, %v1845
      %v1886 = vadd.f32 %v1511, %v1850
      %v1887 = vadd.f32 %v1514, %v1853
      %v1888 = vsel %vm712, %v969, 0.0
      %v1889 = vsel %vm713, %v968, 0.0
      %v1890 = vsel %vm714, %v967, 0.0
      %v1891 = vsel %vm715, %v966, 0.0
      %v1892 = vsel %vm716, %v965, 0.0
      %v1893 = vsel %vm717, %v964, 0.0
      %v1894 = vsel %vm718, %v963, 0.0
      %v1895 = vsel %vm719, %v962, 0.0
      %v1896 = vsel %vm720, %v961, 0.0
      %v1897 = vsel %vm721, %v960, 0.0
      %v1898 = vsel %vm722, %v959, 0.0
      %v1899 = vsel %vm723, %v958, 0.0
      %v1900 = vsel %vm724, %v957, 0.0
      %v1901 = vsel %vm725, %v956, 0.0
      %v1902 = vsel %vm726, %v955, 0.0
      %v1903 = vsel %vm727, %v954, 0.0
      %v1904 = vsel %vm728, %v953, 0.0
      %v1905 = vsel %vm729, %v952, 0.0
      %v1906 = vsel %vm730, %v951, 0.0
      %v1907 = vsel %vm731, %v950, 0.0
      %v1908 = vsel %vm732, %v949, 0.0
      %v1909 = vsel %vm733, %v948, 0.0
      %v1910 = vsel %vm734, %v947, 0.0
      %v1911 = vsel %vm735, %v946, 0.0
      %v1912 = vsel %vm736, %v945, 0.0
      %v1913 = vsel %vm737, %v944, 0.0
      %v1914 = vsel %vm738, %v943, 0.0
      %v1915 = vsel %vm739, %v942, 0.0
      %v1916 = vsel %vm740, %v941, 0.0
      %v1917 = vsel %vm741, %v940, 0.0
      %v1918 = vsel %vm742, %v939, 0.0
      %v1919 = vsel %vm743, %v938, 0.0
      %v1920 = vpack.c.bf16 %v1889, %v1888
      %v1921 = vpack.c.bf16 %v1891, %v1890
      %v1922 = vpack.c.bf16 %v1893, %v1892
      %v1923 = vpack.c.bf16 %v1895, %v1894
      %v1924 = vpack.c.bf16 %v1897, %v1896
      %v1925 = vpack.c.bf16 %v1899, %v1898
      %v1926 = vpack.c.bf16 %v1901, %v1900
      %v1927 = vpack.c.bf16 %v1903, %v1902
      %v1928 = vpack.c.bf16 %v1905, %v1904
      %v1929 = vpack.c.bf16 %v1907, %v1906
      %v1930 = vpack.c.bf16 %v1909, %v1908
      %v1931 = vpack.c.bf16 %v1911, %v1910
      %v1932 = vpack.c.bf16 %v1913, %v1912
      %v1933 = vpack.c.bf16 %v1915, %v1914
      %v1934 = vpack.c.bf16 %v1917, %v1916
      %v1935 = vpack.c.bf16 %v1919, %v1918
      %s1936 = scalar_lea.vmem %s1, 192
      %v1937 = vld [vmem:[%s1936] sm:$0xf]
      %v1938 = vld [vmem:[%s1936 + $0x4] sm:$0xf]
      %v1939 = vld [vmem:[%s1936 + $0x8] sm:$0xf]
      %v1940 = vld [vmem:[%s1936 + $0xc] sm:$0xf]
      %v1941 = vld [vmem:[%s1936 + $0x10] sm:$0xf]
      %v1942 = vld [vmem:[%s1936 + $0x14] sm:$0xf]
      %v1943 = vld [vmem:[%s1936 + $0x18] sm:$0xf]
      %v1944 = vld [vmem:[%s1936 + $0x1c] sm:$0xf]
      %v1945 = vld [vmem:[%s1936 + $0x20] sm:$0xf]
      %v1946 = vld [vmem:[%s1936 + $0x24] sm:$0xf]
      %v1947 = vld [vmem:[%s1936 + $0x28] sm:$0xf]
      %v1948 = vld [vmem:[%s1936 + $0x2c] sm:$0xf]
      %v1949 = vld [vmem:[%s1936 + $0x30] sm:$0xf]
      %v1950 = vld [vmem:[%s1936 + $0x34] sm:$0xf]
      %v1951 = vld [vmem:[%s1936 + $0x38] sm:$0xf]
      %v1952 = vld [vmem:[%s1936 + $0x3c] sm:$0xf]
      %v1969 = vunpack.c.l.b16 %v1937
      %v1970 = vunpack.c.l.b16 %v1938
      %v1971 = vunpack.c.l.b16 %v1939
      %v1972 = vunpack.c.l.b16 %v1940
      %v1973 = vunpack.c.l.b16 %v1941
      %v1974 = vunpack.c.l.b16 %v1942
      %v1975 = vunpack.c.l.b16 %v1943
      %v1976 = vunpack.c.l.b16 %v1944
      %v1977 = vunpack.c.l.b16 %v1945
      %v1978 = vunpack.c.l.b16 %v1946
      %v1979 = vunpack.c.l.b16 %v1947
      %v1980 = vunpack.c.l.b16 %v1948
      %v1981 = vunpack.c.l.b16 %v1949
      %v1982 = vunpack.c.l.b16 %v1950
      %v1983 = vunpack.c.l.b16 %v1951
      %v1984 = vunpack.c.l.b16 %v1952
      %v1985 = vpack.c.b16 %v1970, %v1969
      %v1986 = vpack.c.b16 %v1972, %v1971
      %v1987 = vpack.c.b16 %v1974, %v1973
      %v1988 = vpack.c.b16 %v1976, %v1975
      %v1989 = vpack.c.b16 %v1978, %v1977
      %v1990 = vpack.c.b16 %v1980, %v1979
      %v1991 = vpack.c.b16 %v1982, %v1981
      %v1992 = vpack.c.b16 %v1984, %v1983
      %2001 = vmatprep.subr.bf16.mxu0 0
      %2002 = vmatpush1.bf16.msra.mxu0 %v1985
      %2003 = vmatprep.subr.bf16.mxu0 0
      %2004 = vmatpush1.bf16.msra.mxu0 %v1986
      %2005 = vmatprep.subr.bf16.mxu0 0
      %2006 = vmatpush1.bf16.msra.mxu0 %v1987
      %2007 = vmatprep.subr.bf16.mxu0 0
      %2008 = vmatpush1.bf16.msra.mxu0 %v1988
      %2009 = vmatprep.subr.bf16.mxu0 0
      %2010 = vmatpush1.bf16.msra.mxu0 %v1989
      %2011 = vmatprep.subr.bf16.mxu0 0
      %2012 = vmatpush1.bf16.msra.mxu0 %v1990
      %2013 = vmatprep.subr.bf16.mxu0 0
      %2014 = vmatpush1.bf16.msra.mxu0 %v1991
      %2015 = vmatprep.subr.bf16.mxu0 0
      %2016 = vmatpush1.bf16.msra.mxu0 %v1992
      %2017 = vmatprep.subr.bf16.mxu0 0
      %2018 = vmatpush1.bf16.msra.mxu0 0
      %2019 = vmatprep.subr.bf16.mxu0 0
      %2020 = vmatpush1.bf16.msra.mxu0 0
      %2021 = vmatprep.subr.bf16.mxu0 0
      %2022 = vmatpush1.bf16.msra.mxu0 0
      %2023 = vmatprep.subr.bf16.mxu0 0
      %2024 = vmatpush1.bf16.msra.mxu0 0
      %2025 = vmatprep.subr.bf16.mxu0 0
      %2026 = vmatpush1.bf16.msra.mxu0 0
      %2027 = vmatprep.subr.bf16.mxu0 0
      %2028 = vmatpush1.bf16.msra.mxu0 0
      %2029 = vmatprep.subr.bf16.mxu0 0
      %2030 = vmatpush1.bf16.msra.mxu0 0
      %2031 = vmatprep.subr.bf16.mxu0 0
      %2032 = vmatpush1.bf16.msra.mxu0 0
      %2033 = vmatprep.mubr.bf16.mxu0 0
      %2034 = vmatmul.mubr.bf16.gmra.mrb[0].mxu0 %v1920
      %v2035 = vpop.f32.mrb[0].mxu0
      %v2036 = vadd.f32 0.0, %v2035
      %v2037 = vpop.f32.mrb[0].mxu0
      %v2038 = vpop.f32.mrb[0].mxu0
      %v2039 = vadd.f32 0.0, %v2038
      %v2040 = vpop.f32.mrb[0].mxu0
      %2041 = vmatprep.mubr.bf16.mxu0 0
      %2042 = vmatmul.mubr.bf16.gmra.mrb[0].mxu0 %v1921
      %v2043 = vpop.f32.mrb[0].mxu0
      %v2044 = vadd.f32 0.0, %v2043
      %v2045 = vpop.f32.mrb[0].mxu0
      %v2046 = vpop.f32.mrb[0].mxu0
      %v2047 = vadd.f32 0.0, %v2046
      %v2048 = vpop.f32.mrb[0].mxu0
      %2049 = vmatprep.mubr.bf16.mxu0 0
      %2050 = vmatmul.mubr.bf16.gmra.mrb[0].mxu0 %v1922
      %v2051 = vpop.f32.mrb[0].mxu0
      %v2052 = vadd.f32 0.0, %v2051
      %v2053 = vpop.f32.mrb[0].mxu0
      %v2054 = vpop.f32.mrb[0].mxu0
      %v2055 = vadd.f32 0.0, %v2054
      %v2056 = vpop.f32.mrb[0].mxu0
      %2057 = vmatprep.mubr.bf16.mxu0 0
      %2058 = vmatmul.mubr.bf16.gmra.mrb[0].mxu0 %v1923
      %v2059 = vpop.f32.mrb[0].mxu0
      %v2060 = vadd.f32 0.0, %v2059
      %v2061 = vpop.f32.mrb[0].mxu0
      %v2062 = vpop.f32.mrb[0].mxu0
      %v2063 = vadd.f32 0.0, %v2062
      %v2064 = vpop.f32.mrb[0].mxu0
      %2065 = vmatprep.mubr.bf16.mxu0 0
      %2066 = vmatmul.mubr.bf16.gmra.mrb[0].mxu0 %v1924
      %v2067 = vpop.f32.mrb[0].mxu0
      %v2068 = vadd.f32 0.0, %v2067
      %v2069 = vpop.f32.mrb[0].mxu0
      %v2070 = vpop.f32.mrb[0].mxu0
      %v2071 = vadd.f32 0.0, %v2070
      %v2072 = vpop.f32.mrb[0].mxu0
      %2073 = vmatprep.mubr.bf16.mxu0 0
      %2074 = vmatmul.mubr.bf16.gmra.mrb[0].mxu0 %v1925
      %v2075 = vpop.f32.mrb[0].mxu0
      %v2076 = vadd.f32 0.0, %v2075
      %v2077 = vpop.f32.mrb[0].mxu0
      %v2078 = vpop.f32.mrb[0].mxu0
      %v2079 = vadd.f32 0.0, %v2078
      %v2080 = vpop.f32.mrb[0].mxu0
      %2081 = vmatprep.mubr.bf16.mxu0 0
      %2082 = vmatmul.mubr.bf16.gmra.mrb[0].mxu0 %v1926
      %v2083 = vpop.f32.mrb[0].mxu0
      %v2084 = vadd.f32 0.0, %v2083
      %v2085 = vpop.f32.mrb[0].mxu0
      %v2086 = vpop.f32.mrb[0].mxu0
      %v2087 = vadd.f32 0.0, %v2086
      %v2088 = vpop.f32.mrb[0].mxu0
      %2089 = vmatprep.mubr.bf16.mxu0 0
      %2090 = vmatmul.mubr.bf16.gmra.mrb[0].mxu0 %v1927
      %v2091 = vpop.f32.mrb[0].mxu0
      %v2092 = vadd.f32 0.0, %v2091
      %v2093 = vpop.f32.mrb[0].mxu0
      %v2094 = vpop.f32.mrb[0].mxu0
      %v2095 = vadd.f32 0.0, %v2094
      %v2096 = vpop.f32.mrb[0].mxu0
      %2097 = vmatprep.mubr.bf16.mxu0 0
      %2098 = vmatmul.mubr.bf16.gmra.mrb[0].mxu0 %v1928
      %v2099 = vpop.f32.mrb[0].mxu0
      %v2100 = vadd.f32 0.0, %v2099
      %v2101 = vpop.f32.mrb[0].mxu0
      %v2102 = vpop.f32.mrb[0].mxu0
      %v2103 = vadd.f32 0.0, %v2102
      %v2104 = vpop.f32.mrb[0].mxu0
      %2105 = vmatprep.mubr.bf16.mxu0 0
      %2106 = vmatmul.mubr.bf16.gmra.mrb[0].mxu0 %v1929
      %v2107 = vpop.f32.mrb[0].mxu0
      %v2108 = vadd.f32 0.0, %v2107
      %v2109 = vpop.f32.mrb[0].mxu0
      %v2110 = vpop.f32.mrb[0].mxu0
      %v2111 = vadd.f32 0.0, %v2110
      %v2112 = vpop.f32.mrb[0].mxu0
      %2113 = vmatprep.mubr.bf16.mxu0 0
      %2114 = vmatmul.mubr.bf16.gmra.mrb[0].mxu0 %v1930
      %v2115 = vpop.f32.mrb[0].mxu0
      %v2116 = vadd.f32 0.0, %v2115
      %v2117 = vpop.f32.mrb[0].mxu0
      %v2118 = vpop.f32.mrb[0].mxu0
      %v2119 = vadd.f32 0.0, %v2118
      %v2120 = vpop.f32.mrb[0].mxu0
      %2121 = vmatprep.mubr.bf16.mxu0 0
      %2122 = vmatmul.mubr.bf16.gmra.mrb[0].mxu0 %v1931
      %v2123 = vpop.f32.mrb[0].mxu0
      %v2124 = vadd.f32 0.0, %v2123
      %v2125 = vpop.f32.mrb[0].mxu0
      %v2126 = vpop.f32.mrb[0].mxu0
      %v2127 = vadd.f32 0.0, %v2126
      %v2128 = vpop.f32.mrb[0].mxu0
      %2129 = vmatprep.mubr.bf16.mxu0 0
      %2130 = vmatmul.mubr.bf16.gmra.mrb[0].mxu0 %v1932
      %v2131 = vpop.f32.mrb[0].mxu0
      %v2132 = vadd.f32 0.0, %v2131
      %v2133 = vpop.f32.mrb[0].mxu0
      %v2134 = vpop.f32.mrb[0].mxu0
      %v2135 = vadd.f32 0.0, %v2134
      %v2136 = vpop.f32.mrb[0].mxu0
      %2137 = vmatprep.mubr.bf16.mxu0 0
      %2138 = vmatmul.mubr.bf16.gmra.mrb[0].mxu0 %v1933
      %v2139 = vpop.f32.mrb[0].mxu0
      %v2140 = vadd.f32 0.0, %v2139
      %v2141 = vpop.f32.mrb[0].mxu0
      %v2142 = vpop.f32.mrb[0].mxu0
      %v2143 = vadd.f32 0.0, %v2142
      %v2144 = vpop.f32.mrb[0].mxu0
      %2145 = vmatprep.mubr.bf16.mxu0 0
      %2146 = vmatmul.mubr.bf16.gmra.mrb[0].mxu0 %v1934
      %v2147 = vpop.f32.mrb[0].mxu0
      %v2148 = vadd.f32 0.0, %v2147
      %v2149 = vpop.f32.mrb[0].mxu0
      %v2150 = vpop.f32.mrb[0].mxu0
      %v2151 = vadd.f32 0.0, %v2150
      %v2152 = vpop.f32.mrb[0].mxu0
      %2153 = vmatprep.mubr.bf16.mxu0 0
      %2154 = vmatmul.mubr.bf16.gmra.mrb[0].mxu0 %v1935
      %v2155 = vpop.f32.mrb[0].mxu0
      %v2156 = vadd.f32 0.0, %v2155
      %v2157 = vpop.f32.mrb[0].mxu0
      %v2158 = vpop.f32.mrb[0].mxu0
      %v2159 = vadd.f32 0.0, %v2158
      %v2160 = vpop.f32.mrb[0].mxu0
      %2161 = vdwg.mxu0
      %v2162 = vadd.f32 %v1856, %v2036
      %v2163 = vadd.f32 %v1857, %v2039
      %v2164 = vadd.f32 %v1858, %v2044
      %v2165 = vadd.f32 %v1859, %v2047
      %v2166 = vadd.f32 %v1860, %v2052
      %v2167 = vadd.f32 %v1861, %v2055
      %v2168 = vadd.f32 %v1862, %v2060
      %v2169 = vadd.f32 %v1863, %v2063
      %v2170 = vadd.f32 %v1864, %v2068
      %v2171 = vadd.f32 %v1865, %v2071
      %v2172 = vadd.f32 %v1866, %v2076
      %v2173 = vadd.f32 %v1867, %v2079
      %v2174 = vadd.f32 %v1868, %v2084
      %v2175 = vadd.f32 %v1869, %v2087
      %v2176 = vadd.f32 %v1870, %v2092
      %v2177 = vadd.f32 %v1871, %v2095
      %v2178 = vadd.f32 %v1872, %v2100
      %v2179 = vadd.f32 %v1873, %v2103
      %v2180 = vadd.f32 %v1874, %v2108
      %v2181 = vadd.f32 %v1875, %v2111
      %v2182 = vadd.f32 %v1876, %v2116
      %v2183 = vadd.f32 %v1877, %v2119
      %v2184 = vadd.f32 %v1878, %v2124
      %v2185 = vadd.f32 %v1879, %v2127
      %v2186 = vadd.f32 %v1880, %v2132
      %v2187 = vadd.f32 %v1881, %v2135
      %v2188 = vadd.f32 %v1882, %v2140
      %v2189 = vadd.f32 %v1883, %v2143
      %v2190 = vadd.f32 %v1884, %v2148
      %v2191 = vadd.f32 %v1885, %v2151
      %v2192 = vadd.f32 %v1886, %v2156
      %v2193 = vadd.f32 %v1887, %v2159
      %v2194 = vpack.c.bf16 %v200, %v199
      %v2195 = vpack.c.bf16 %v202, %v201
      %v2196 = vpack.c.bf16 %v204, %v203
      %v2197 = vpack.c.bf16 %v206, %v205
      %v2198 = vpack.c.bf16 %v208, %v207
      %v2199 = vpack.c.bf16 %v210, %v209
      %v2200 = vpack.c.bf16 %v212, %v211
      %v2201 = vpack.c.bf16 %v214, %v213
      %v2202 = vpack.c.bf16 %v216, %v215
      %v2203 = vpack.c.bf16 %v218, %v217
      %v2204 = vpack.c.bf16 %v220, %v219
      %v2205 = vpack.c.bf16 %v222, %v221
      %v2206 = vpack.c.bf16 %v224, %v223
      %v2207 = vpack.c.bf16 %v226, %v225
      %v2208 = vpack.c.bf16 %v228, %v227
      %v2209 = vpack.c.bf16 %v230, %v229
      %s2210 = scalar_lea.vmem %s1, 256
      %v2211 = vld [vmem:[%s2210] sm:$0xf]
      %v2212 = vld [vmem:[%s2210 + $0x4] sm:$0xf]
      %v2213 = vld [vmem:[%s2210 + $0x8] sm:$0xf]
      %v2214 = vld [vmem:[%s2210 + $0xc] sm:$0xf]
      %v2215 = vld [vmem:[%s2210 + $0x10] sm:$0xf]
      %v2216 = vld [vmem:[%s2210 + $0x14] sm:$0xf]
      %v2217 = vld [vmem:[%s2210 + $0x18] sm:$0xf]
      %v2218 = vld [vmem:[%s2210 + $0x1c] sm:$0xf]
      %v2219 = vld [vmem:[%s2210 + $0x20] sm:$0xf]
      %v2220 = vld [vmem:[%s2210 + $0x24] sm:$0xf]
      %v2221 = vld [vmem:[%s2210 + $0x28] sm:$0xf]
      %v2222 = vld [vmem:[%s2210 + $0x2c] sm:$0xf]
      %v2223 = vld [vmem:[%s2210 + $0x30] sm:$0xf]
      %v2224 = vld [vmem:[%s2210 + $0x34] sm:$0xf]
      %v2225 = vld [vmem:[%s2210 + $0x38] sm:$0xf]
      %v2226 = vld [vmem:[%s2210 + $0x3c] sm:$0xf]
      %v2243 = vunpack.c.l.b16 %v2211
      %v2244 = vunpack.c.l.b16 %v2212
      %v2245 = vunpack.c.l.b16 %v2213
      %v2246 = vunpack.c.l.b16 %v2214
      %v2247 = vunpack.c.l.b16 %v2215
      %v2248 = vunpack.c.l.b16 %v2216
      %v2249 = vunpack.c.l.b16 %v2217
      %v2250 = vunpack.c.l.b16 %v2218
      %v2251 = vunpack.c.l.b16 %v2219
      %v2252 = vunpack.c.l.b16 %v2220
      %v2253 = vunpack.c.l.b16 %v2221
      %v2254 = vunpack.c.l.b16 %v2222
      %v2255 = vunpack.c.l.b16 %v2223
      %v2256 = vunpack.c.l.b16 %v2224
      %v2257 = vunpack.c.l.b16 %v2225
      %v2258 = vunpack.c.l.b16 %v2226
      %v2259 = vpack.c.b16 %v2244, %v2243
      %v2260 = vpack.c.b16 %v2246, %v2245
      %v2261 = vpack.c.b16 %v2248, %v2247
      %v2262 = vpack.c.b16 %v2250, %v2249
      %v2263 = vpack.c.b16 %v2252, %v2251
      %v2264 = vpack.c.b16 %v2254, %v2253
      %v2265 = vpack.c.b16 %v2256, %v2255
      %v2266 = vpack.c.b16 %v2258, %v2257
      %2275 = vmatprep.subr.bf16.mxu0 0
      %2276 = vmatpush1.bf16.msra.mxu0 %v2259
      %2277 = vmatprep.subr.bf16.mxu0 0
      %2278 = vmatpush1.bf16.msra.mxu0 %v2260
      %2279 = vmatprep.subr.bf16.mxu0 0
      %2280 = vmatpush1.bf16.msra.mxu0 %v2261
      %2281 = vmatprep.subr.bf16.mxu0 0
      %2282 = vmatpush1.bf16.msra.mxu0 %v2262
      %2283 = vmatprep.subr.bf16.mxu0 0
      %2284 = vmatpush1.bf16.msra.mxu0 %v2263
      %2285 = vmatprep.subr.bf16.mxu0 0
      %2286 = vmatpush1.bf16.msra.mxu0 %v2264
      %2287 = vmatprep.subr.bf16.mxu0 0
      %2288 = vmatpush1.bf16.msra.mxu0 %v2265
      %2289 = vmatprep.subr.bf16.mxu0 0
      %2290 = vmatpush1.bf16.msra.mxu0 %v2266
      %2291 = vmatprep.subr.bf16.mxu0 0
      %2292 = vmatpush1.bf16.msra.mxu0 0
      %2293 = vmatprep.subr.bf16.mxu0 0
      %2294 = vmatpush1.bf16.msra.mxu0 0
      %2295 = vmatprep.subr.bf16.mxu0 0
      %2296 = vmatpush1.bf16.msra.mxu0 0
      %2297 = vmatprep.subr.bf16.mxu0 0
      %2298 = vmatpush1.bf16.msra.mxu0 0
      %2299 = vmatprep.subr.bf16.mxu0 0
      %2300 = vmatpush1.bf16.msra.mxu0 0
      %2301 = vmatprep.subr.bf16.mxu0 0
      %2302 = vmatpush1.bf16.msra.mxu0 0
      %2303 = vmatprep.subr.bf16.mxu0 0
      %2304 = vmatpush1.bf16.msra.mxu0 0
      %2305 = vmatprep.subr.bf16.mxu0 0
      %2306 = vmatpush1.bf16.msra.mxu0 0
      %2307 = vmatprep.mubr.bf16.mxu0 0
      %2308 = vmatmul.mubr.bf16.gmra.mrb[0].mxu0 %v2194
      %v2309 = vpop.f32.mrb[0].mxu0
      %v2310 = vadd.f32 0.0, %v2309
      %v2311 = vpop.f32.mrb[0].mxu0
      %v2312 = vpop.f32.mrb[0].mxu0
      %v2313 = vadd.f32 0.0, %v2312
      %v2314 = vpop.f32.mrb[0].mxu0
      %2315 = vmatprep.mubr.bf16.mxu0 0
      %2316 = vmatmul.mubr.bf16.gmra.mrb[0].mxu0 %v2195
      %v2317 = vpop.f32.mrb[0].mxu0
      %v2318 = vadd.f32 0.0, %v2317
      %v2319 = vpop.f32.mrb[0].mxu0
      %v2320 = vpop.f32.mrb[0].mxu0
      %v2321 = vadd.f32 0.0, %v2320
      %v2322 = vpop.f32.mrb[0].mxu0
      %2323 = vmatprep.mubr.bf16.mxu0 0
      %2324 = vmatmul.mubr.bf16.gmra.mrb[0].mxu0 %v2196
      %v2325 = vpop.f32.mrb[0].mxu0
      %v2326 = vadd.f32 0.0, %v2325
      %v2327 = vpop.f32.mrb[0].mxu0
      %v2328 = vpop.f32.mrb[0].mxu0
      %v2329 = vadd.f32 0.0, %v2328
      %v2330 = vpop.f32.mrb[0].mxu0
      %2331 = vmatprep.mubr.bf16.mxu0 0
      %2332 = vmatmul.mubr.bf16.gmra.mrb[0].mxu0 %v2197
      %v2333 = vpop.f32.mrb[0].mxu0
      %v2334 = vadd.f32 0.0, %v2333
      %v2335 = vpop.f32.mrb[0].mxu0
      %v2336 = vpop.f32.mrb[0].mxu0
      %v2337 = vadd.f32 0.0, %v2336
      %v2338 = vpop.f32.mrb[0].mxu0
      %2339 = vmatprep.mubr.bf16.mxu0 0
      %2340 = vmatmul.mubr.bf16.gmra.mrb[0].mxu0 %v2198
      %v2341 = vpop.f32.mrb[0].mxu0
      %v2342 = vadd.f32 0.0, %v2341
      %v2343 = vpop.f32.mrb[0].mxu0
      %v2344 = vpop.f32.mrb[0].mxu0
      %v2345 = vadd.f32 0.0, %v2344
      %v2346 = vpop.f32.mrb[0].mxu0
      %2347 = vmatprep.mubr.bf16.mxu0 0
      %2348 = vmatmul.mubr.bf16.gmra.mrb[0].mxu0 %v2199
      %v2349 = vpop.f32.mrb[0].mxu0
      %v2350 = vadd.f32 0.0, %v2349
      %v2351 = vpop.f32.mrb[0].mxu0
      %v2352 = vpop.f32.mrb[0].mxu0
      %v2353 = vadd.f32 0.0, %v2352
      %v2354 = vpop.f32.mrb[0].mxu0
      %2355 = vmatprep.mubr.bf16.mxu0 0
      %2356 = vmatmul.mubr.bf16.gmra.mrb[0].mxu0 %v2200
      %v2357 = vpop.f32.mrb[0].mxu0
      %v2358 = vadd.f32 0.0, %v2357
      %v2359 = vpop.f32.mrb[0].mxu0
      %v2360 = vpop.f32.mrb[0].mxu0
      %v2361 = vadd.f32 0.0, %v2360
      %v2362 = vpop.f32.mrb[0].mxu0
      %2363 = vmatprep.mubr.bf16.mxu0 0
      %2364 = vmatmul.mubr.bf16.gmra.mrb[0].mxu0 %v2201
      %v2365 = vpop.f32.mrb[0].mxu0
      %v2366 = vadd.f32 0.0, %v2365
      %v2367 = vpop.f32.mrb[0].mxu0
      %v2368 = vpop.f32.mrb[0].mxu0
      %v2369 = vadd.f32 0.0, %v2368
      %v2370 = vpop.f32.mrb[0].mxu0
      %2371 = vmatprep.mubr.bf16.mxu0 0
      %2372 = vmatmul.mubr.bf16.gmra.mrb[0].mxu0 %v2202
      %v2373 = vpop.f32.mrb[0].mxu0
      %v2374 = vadd.f32 0.0, %v2373
      %v2375 = vpop.f32.mrb[0].mxu0
      %v2376 = vpop.f32.mrb[0].mxu0
      %v2377 = vadd.f32 0.0, %v2376
      %v2378 = vpop.f32.mrb[0].mxu0
      %2379 = vmatprep.mubr.bf16.mxu0 0
      %2380 = vmatmul.mubr.bf16.gmra.mrb[0].mxu0 %v2203
      %v2381 = vpop.f32.mrb[0].mxu0
      %v2382 = vadd.f32 0.0, %v2381
      %v2383 = vpop.f32.mrb[0].mxu0
      %v2384 = vpop.f32.mrb[0].mxu0
      %v2385 = vadd.f32 0.0, %v2384
      %v2386 = vpop.f32.mrb[0].mxu0
      %2387 = vmatprep.mubr.bf16.mxu0 0
      %2388 = vmatmul.mubr.bf16.gmra.mrb[0].mxu0 %v2204
      %v2389 = vpop.f32.mrb[0].mxu0
      %v2390 = vadd.f32 0.0, %v2389
      %v2391 = vpop.f32.mrb[0].mxu0
      %v2392 = vpop.f32.mrb[0].mxu0
      %v2393 = vadd.f32 0.0, %v2392
      %v2394 = vpop.f32.mrb[0].mxu0
      %2395 = vmatprep.mubr.bf16.mxu0 0
      %2396 = vmatmul.mubr.bf16.gmra.mrb[0].mxu0 %v2205
      %v2397 = vpop.f32.mrb[0].mxu0
      %v2398 = vadd.f32 0.0, %v2397
      %v2399 = vpop.f32.mrb[0].mxu0
      %v2400 = vpop.f32.mrb[0].mxu0
      %v2401 = vadd.f32 0.0, %v2400
      %v2402 = vpop.f32.mrb[0].mxu0
      %2403 = vmatprep.mubr.bf16.mxu0 0
      %2404 = vmatmul.mubr.bf16.gmra.mrb[0].mxu0 %v2206
      %v2405 = vpop.f32.mrb[0].mxu0
      %v2406 = vadd.f32 0.0, %v2405
      %v2407 = vpop.f32.mrb[0].mxu0
      %v2408 = vpop.f32.mrb[0].mxu0
      %v2409 = vadd.f32 0.0, %v2408
      %v2410 = vpop.f32.mrb[0].mxu0
      %2411 = vmatprep.mubr.bf16.mxu0 0
      %2412 = vmatmul.mubr.bf16.gmra.mrb[0].mxu0 %v2207
      %v2413 = vpop.f32.mrb[0].mxu0
      %v2414 = vadd.f32 0.0, %v2413
      %v2415 = vpop.f32.mrb[0].mxu0
      %v2416 = vpop.f32.mrb[0].mxu0
      %v2417 = vadd.f32 0.0, %v2416
      %v2418 = vpop.f32.mrb[0].mxu0
      %2419 = vmatprep.mubr.bf16.mxu0 0
      %2420 = vmatmul.mubr.bf16.gmra.mrb[0].mxu0 %v2208
      %v2421 = vpop.f32.mrb[0].mxu0
      %v2422 = vadd.f32 0.0, %v2421
      %v2423 = vpop.f32.mrb[0].mxu0
      %v2424 = vpop.f32.mrb[0].mxu0
      %v2425 = vadd.f32 0.0, %v2424
      %v2426 = vpop.f32.mrb[0].mxu0
      %2427 = vmatprep.mubr.bf16.mxu0 0
      %2428 = vmatmul.mubr.bf16.gmra.mrb[0].mxu0 %v2209
      %v2429 = vpop.f32.mrb[0].mxu0
      %v2430 = vadd.f32 0.0, %v2429
      %v2431 = vpop.f32.mrb[0].mxu0
      %v2432 = vpop.f32.mrb[0].mxu0
      %v2433 = vadd.f32 0.0, %v2432
      %v2434 = vpop.f32.mrb[0].mxu0
      %2435 = vdwg.mxu0
      %v2436 = vadd.f32 %v2162, %v2310
      %v2437 = vadd.f32 %v2163, %v2313
      %v2438 = vadd.f32 %v2164, %v2318
      %v2439 = vadd.f32 %v2165, %v2321
      %v2440 = vadd.f32 %v2166, %v2326
      %v2441 = vadd.f32 %v2167, %v2329
      %v2442 = vadd.f32 %v2168, %v2334
      %v2443 = vadd.f32 %v2169, %v2337
      %v2444 = vadd.f32 %v2170, %v2342
      %v2445 = vadd.f32 %v2171, %v2345
      %v2446 = vadd.f32 %v2172, %v2350
      %v2447 = vadd.f32 %v2173, %v2353
      %v2448 = vadd.f32 %v2174, %v2358
      %v2449 = vadd.f32 %v2175, %v2361
      %v2450 = vadd.f32 %v2176, %v2366
      %v2451 = vadd.f32 %v2177, %v2369
      %v2452 = vadd.f32 %v2178, %v2374
      %v2453 = vadd.f32 %v2179, %v2377
      %v2454 = vadd.f32 %v2180, %v2382
      %v2455 = vadd.f32 %v2181, %v2385
      %v2456 = vadd.f32 %v2182, %v2390
      %v2457 = vadd.f32 %v2183, %v2393
      %v2458 = vadd.f32 %v2184, %v2398
      %v2459 = vadd.f32 %v2185, %v2401
      %v2460 = vadd.f32 %v2186, %v2406
      %v2461 = vadd.f32 %v2187, %v2409
      %v2462 = vadd.f32 %v2188, %v2414
      %v2463 = vadd.f32 %v2189, %v2417
      %v2464 = vadd.f32 %v2190, %v2422
      %v2465 = vadd.f32 %v2191, %v2425
      %v2466 = vadd.f32 %v2192, %v2430
      %v2467 = vadd.f32 %v2193, %v2433
      %v2468 = vsel %vm744, %v1580, 0.0
      %v2469 = vsel %vm745, %v1579, 0.0
      %v2470 = vsel %vm746, %v1578, 0.0
      %v2471 = vsel %vm747, %v1577, 0.0
      %v2472 = vsel %vm748, %v1576, 0.0
      %v2473 = vsel %vm749, %v1575, 0.0
      %v2474 = vsel %vm750, %v1574, 0.0
      %v2475 = vsel %vm751, %v1573, 0.0
      %v2476 = vsel %vm752, %v1572, 0.0
      %v2477 = vsel %vm753, %v1571, 0.0
      %v2478 = vsel %vm754, %v1570, 0.0
      %v2479 = vsel %vm755, %v1569, 0.0
      %v2480 = vsel %vm756, %v1568, 0.0
      %v2481 = vsel %vm757, %v1567, 0.0
      %v2482 = vsel %vm758, %v1566, 0.0
      %v2483 = vsel %vm759, %v1565, 0.0
      %v2484 = vsel %vm760, %v1564, 0.0
      %v2485 = vsel %vm761, %v1563, 0.0
      %v2486 = vsel %vm762, %v1562, 0.0
      %v2487 = vsel %vm763, %v1561, 0.0
      %v2488 = vsel %vm764, %v1560, 0.0
      %v2489 = vsel %vm765, %v1559, 0.0
      %v2490 = vsel %vm766, %v1558, 0.0
      %v2491 = vsel %vm767, %v1557, 0.0
      %v2492 = vsel %vm768, %v1556, 0.0
      %v2493 = vsel %vm769, %v1555, 0.0
      %v2494 = vsel %vm770, %v1554, 0.0
      %v2495 = vsel %vm771, %v1553, 0.0
      %v2496 = vsel %vm772, %v1552, 0.0
      %v2497 = vsel %vm773, %v1551, 0.0
      %v2498 = vsel %vm774, %v1550, 0.0
      %v2499 = vsel %vm775, %v1581, 0.0
      %v2500 = vpack.c.bf16 %v2469, %v2468
      %v2501 = vpack.c.bf16 %v2471, %v2470
      %v2502 = vpack.c.bf16 %v2473, %v2472
      %v2503 = vpack.c.bf16 %v2475, %v2474
      %v2504 = vpack.c.bf16 %v2477, %v2476
      %v2505 = vpack.c.bf16 %v2479, %v2478
      %v2506 = vpack.c.bf16 %v2481, %v2480
      %v2507 = vpack.c.bf16 %v2483, %v2482
      %v2508 = vpack.c.bf16 %v2485, %v2484
      %v2509 = vpack.c.bf16 %v2487, %v2486
      %v2510 = vpack.c.bf16 %v2489, %v2488
      %v2511 = vpack.c.bf16 %v2491, %v2490
      %v2512 = vpack.c.bf16 %v2493, %v2492
      %v2513 = vpack.c.bf16 %v2495, %v2494
      %v2514 = vpack.c.bf16 %v2497, %v2496
      %v2515 = vpack.c.bf16 %v2499, %v2498
      %s2516 = scalar_lea.vmem %s1, 320
      %v2517 = vld [vmem:[%s2516] sm:$0xf]
      %v2518 = vld [vmem:[%s2516 + $0x4] sm:$0xf]
      %v2519 = vld [vmem:[%s2516 + $0x8] sm:$0xf]
      %v2520 = vld [vmem:[%s2516 + $0xc] sm:$0xf]
      %v2521 = vld [vmem:[%s2516 + $0x10] sm:$0xf]
      %v2522 = vld [vmem:[%s2516 + $0x14] sm:$0xf]
      %v2523 = vld [vmem:[%s2516 + $0x18] sm:$0xf]
      %v2524 = vld [vmem:[%s2516 + $0x1c] sm:$0xf]
      %v2525 = vld [vmem:[%s2516 + $0x20] sm:$0xf]
      %v2526 = vld [vmem:[%s2516 + $0x24] sm:$0xf]
      %v2527 = vld [vmem:[%s2516 + $0x28] sm:$0xf]
      %v2528 = vld [vmem:[%s2516 + $0x2c] sm:$0xf]
      %v2529 = vld [vmem:[%s2516 + $0x30] sm:$0xf]
      %v2530 = vld [vmem:[%s2516 + $0x34] sm:$0xf]
      %v2531 = vld [vmem:[%s2516 + $0x38] sm:$0xf]
      %v2532 = vld [vmem:[%s2516 + $0x3c] sm:$0xf]
      %v2549 = vunpack.c.l.b16 %v2517
      %v2550 = vunpack.c.l.b16 %v2518
      %v2551 = vunpack.c.l.b16 %v2519
      %v2552 = vunpack.c.l.b16 %v2520
      %v2553 = vunpack.c.l.b16 %v2521
      %v2554 = vunpack.c.l.b16 %v2522
      %v2555 = vunpack.c.l.b16 %v2523
      %v2556 = vunpack.c.l.b16 %v2524
      %v2557 = vunpack.c.l.b16 %v2525
      %v2558 = vunpack.c.l.b16 %v2526
      %v2559 = vunpack.c.l.b16 %v2527
      %v2560 = vunpack.c.l.b16 %v2528
      %v2561 = vunpack.c.l.b16 %v2529
      %v2562 = vunpack.c.l.b16 %v2530
      %v2563 = vunpack.c.l.b16 %v2531
      %v2564 = vunpack.c.l.b16 %v2532
      %v2565 = vpack.c.b16 %v2550, %v2549
      %v2566 = vpack.c.b16 %v2552, %v2551
      %v2567 = vpack.c.b16 %v2554, %v2553
      %v2568 = vpack.c.b16 %v2556, %v2555
      %v2569 = vpack.c.b16 %v2558, %v2557
      %v2570 = vpack.c.b16 %v2560, %v2559
      %v2571 = vpack.c.b16 %v2562, %v2561
      %v2572 = vpack.c.b16 %v2564, %v2563
      %2581 = vmatprep.subr.bf16.mxu0 0
      %2582 = vmatpush1.bf16.msra.mxu0 %v2565
      %2583 = vmatprep.subr.bf16.mxu0 0
      %2584 = vmatpush1.bf16.msra.mxu0 %v2566
      %2585 = vmatprep.subr.bf16.mxu0 0
      %2586 = vmatpush1.bf16.msra.mxu0 %v2567
      %2587 = vmatprep.subr.bf16.mxu0 0
      %2588 = vmatpush1.bf16.msra.mxu0 %v2568
      %2589 = vmatprep.subr.bf16.mxu0 0
      %2590 = vmatpush1.bf16.msra.mxu0 %v2569
      %2591 = vmatprep.subr.bf16.mxu0 0
      %2592 = vmatpush1.bf16.msra.mxu0 %v2570
      %2593 = vmatprep.subr.bf16.mxu0 0
      %2594 = vmatpush1.bf16.msra.mxu0 %v2571
      %2595 = vmatprep.subr.bf16.mxu0 0
      %2596 = vmatpush1.bf16.msra.mxu0 %v2572
      %2597 = vmatprep.subr.bf16.mxu0 0
      %2598 = vmatpush1.bf16.msra.mxu0 0
      %2599 = vmatprep.subr.bf16.mxu0 0
      %2600 = vmatpush1.bf16.msra.mxu0 0
      %2601 = vmatprep.subr.bf16.mxu0 0
      %2602 = vmatpush1.bf16.msra.mxu0 0
      %2603 = vmatprep.subr.bf16.mxu0 0
      %2604 = vmatpush1.bf16.msra.mxu0 0
      %2605 = vmatprep.subr.bf16.mxu0 0
      %2606 = vmatpush1.bf16.msra.mxu0 0
      %2607 = vmatprep.subr.bf16.mxu0 0
      %2608 = vmatpush1.bf16.msra.mxu0 0
      %2609 = vmatprep.subr.bf16.mxu0 0
      %2610 = vmatpush1.bf16.msra.mxu0 0
      %2611 = vmatprep.subr.bf16.mxu0 0
      %2612 = vmatpush1.bf16.msra.mxu0 0
      %2613 = vmatprep.mubr.bf16.mxu0 0
      %2614 = vmatmul.mubr.bf16.gmra.mrb[0].mxu0 %v2500
      %v2615 = vpop.f32.mrb[0].mxu0
      %v2616 = vadd.f32 0.0, %v2615
      %v2617 = vpop.f32.mrb[0].mxu0
      %v2618 = vpop.f32.mrb[0].mxu0
      %v2619 = vadd.f32 0.0, %v2618
      %v2620 = vpop.f32.mrb[0].mxu0
      %2621 = vmatprep.mubr.bf16.mxu0 0
      %2622 = vmatmul.mubr.bf16.gmra.mrb[0].mxu0 %v2501
      %v2623 = vpop.f32.mrb[0].mxu0
      %v2624 = vadd.f32 0.0, %v2623
      %v2625 = vpop.f32.mrb[0].mxu0
      %v2626 = vpop.f32.mrb[0].mxu0
      %v2627 = vadd.f32 0.0, %v2626
      %v2628 = vpop.f32.mrb[0].mxu0
      %2629 = vmatprep.mubr.bf16.mxu0 0
      %2630 = vmatmul.mubr.bf16.gmra.mrb[0].mxu0 %v2502
      %v2631 = vpop.f32.mrb[0].mxu0
      %v2632 = vadd.f32 0.0, %v2631
      %v2633 = vpop.f32.mrb[0].mxu0
      %v2634 = vpop.f32.mrb[0].mxu0
      %v2635 = vadd.f32 0.0, %v2634
      %v2636 = vpop.f32.mrb[0].mxu0
      %2637 = vmatprep.mubr.bf16.mxu0 0
      %2638 = vmatmul.mubr.bf16.gmra.mrb[0].mxu0 %v2503
      %v2639 = vpop.f32.mrb[0].mxu0
      %v2640 = vadd.f32 0.0, %v2639
      %v2641 = vpop.f32.mrb[0].mxu0
      %v2642 = vpop.f32.mrb[0].mxu0
      %v2643 = vadd.f32 0.0, %v2642
      %v2644 = vpop.f32.mrb[0].mxu0
      %2645 = vmatprep.mubr.bf16.mxu0 0
      %2646 = vmatmul.mubr.bf16.gmra.mrb[0].mxu0 %v2504
      %v2647 = vpop.f32.mrb[0].mxu0
      %v2648 = vadd.f32 0.0, %v2647
      %v2649 = vpop.f32.mrb[0].mxu0
      %v2650 = vpop.f32.mrb[0].mxu0
      %v2651 = vadd.f32 0.0, %v2650
      %v2652 = vpop.f32.mrb[0].mxu0
      %2653 = vmatprep.mubr.bf16.mxu0 0
      %2654 = vmatmul.mubr.bf16.gmra.mrb[0].mxu0 %v2505
      %v2655 = vpop.f32.mrb[0].mxu0
      %v2656 = vadd.f32 0.0, %v2655
      %v2657 = vpop.f32.mrb[0].mxu0
      %v2658 = vpop.f32.mrb[0].mxu0
      %v2659 = vadd.f32 0.0, %v2658
      %v2660 = vpop.f32.mrb[0].mxu0
      %2661 = vmatprep.mubr.bf16.mxu0 0
      %2662 = vmatmul.mubr.bf16.gmra.mrb[0].mxu0 %v2506
      %v2663 = vpop.f32.mrb[0].mxu0
      %v2664 = vadd.f32 0.0, %v2663
      %v2665 = vpop.f32.mrb[0].mxu0
      %v2666 = vpop.f32.mrb[0].mxu0
      %v2667 = vadd.f32 0.0, %v2666
      %v2668 = vpop.f32.mrb[0].mxu0
      %2669 = vmatprep.mubr.bf16.mxu0 0
      %2670 = vmatmul.mubr.bf16.gmra.mrb[0].mxu0 %v2507
      %v2671 = vpop.f32.mrb[0].mxu0
      %v2672 = vadd.f32 0.0, %v2671
      %v2673 = vpop.f32.mrb[0].mxu0
      %v2674 = vpop.f32.mrb[0].mxu0
      %v2675 = vadd.f32 0.0, %v2674
      %v2676 = vpop.f32.mrb[0].mxu0
      %2677 = vmatprep.mubr.bf16.mxu0 0
      %2678 = vmatmul.mubr.bf16.gmra.mrb[0].mxu0 %v2508
      %v2679 = vpop.f32.mrb[0].mxu0
      %v2680 = vadd.f32 0.0, %v2679
      %v2681 = vpop.f32.mrb[0].mxu0
      %v2682 = vpop.f32.mrb[0].mxu0
      %v2683 = vadd.f32 0.0, %v2682
      %v2684 = vpop.f32.mrb[0].mxu0
      %2685 = vmatprep.mubr.bf16.mxu0 0
      %2686 = vmatmul.mubr.bf16.gmra.mrb[0].mxu0 %v2509
      %v2687 = vpop.f32.mrb[0].mxu0
      %v2688 = vadd.f32 0.0, %v2687
      %v2689 = vpop.f32.mrb[0].mxu0
      %v2690 = vpop.f32.mrb[0].mxu0
      %v2691 = vadd.f32 0.0, %v2690
      %v2692 = vpop.f32.mrb[0].mxu0
      %2693 = vmatprep.mubr.bf16.mxu0 0
      %2694 = vmatmul.mubr.bf16.gmra.mrb[0].mxu0 %v2510
      %v2695 = vpop.f32.mrb[0].mxu0
      %v2696 = vadd.f32 0.0, %v2695
      %v2697 = vpop.f32.mrb[0].mxu0
      %v2698 = vpop.f32.mrb[0].mxu0
      %v2699 = vadd.f32 0.0, %v2698
      %v2700 = vpop.f32.mrb[0].mxu0
      %2701 = vmatprep.mubr.bf16.mxu0 0
      %2702 = vmatmul.mubr.bf16.gmra.mrb[0].mxu0 %v2511
      %v2703 = vpop.f32.mrb[0].mxu0
      %v2704 = vadd.f32 0.0, %v2703
      %v2705 = vpop.f32.mrb[0].mxu0
      %v2706 = vpop.f32.mrb[0].mxu0
      %v2707 = vadd.f32 0.0, %v2706
      %v2708 = vpop.f32.mrb[0].mxu0
      %2709 = vmatprep.mubr.bf16.mxu0 0
      %2710 = vmatmul.mubr.bf16.gmra.mrb[0].mxu0 %v2512
      %v2711 = vpop.f32.mrb[0].mxu0
      %v2712 = vadd.f32 0.0, %v2711
      %v2713 = vpop.f32.mrb[0].mxu0
      %v2714 = vpop.f32.mrb[0].mxu0
      %v2715 = vadd.f32 0.0, %v2714
      %v2716 = vpop.f32.mrb[0].mxu0
      %2717 = vmatprep.mubr.bf16.mxu0 0
      %2718 = vmatmul.mubr.bf16.gmra.mrb[0].mxu0 %v2513
      %v2719 = vpop.f32.mrb[0].mxu0
      %v2720 = vadd.f32 0.0, %v2719
      %v2721 = vpop.f32.mrb[0].mxu0
      %v2722 = vpop.f32.mrb[0].mxu0
      %v2723 = vadd.f32 0.0, %v2722
      %v2724 = vpop.f32.mrb[0].mxu0
      %2725 = vmatprep.mubr.bf16.mxu0 0
      %2726 = vmatmul.mubr.bf16.gmra.mrb[0].mxu0 %v2514
      %v2727 = vpop.f32.mrb[0].mxu0
      %v2728 = vadd.f32 0.0, %v2727
      %v2729 = vpop.f32.mrb[0].mxu0
      %v2730 = vpop.f32.mrb[0].mxu0
      %v2731 = vadd.f32 0.0, %v2730
      %v2732 = vpop.f32.mrb[0].mxu0
      %2733 = vmatprep.mubr.bf16.mxu0 0
      %2734 = vmatmul.mubr.bf16.gmra.mrb[0].mxu0 %v2515
      %v2735 = vpop.f32.mrb[0].mxu0
      %v2736 = vadd.f32 0.0, %v2735
      %v2737 = vpop.f32.mrb[0].mxu0
      %v2738 = vpop.f32.mrb[0].mxu0
      %v2739 = vadd.f32 0.0, %v2738
      %v2740 = vpop.f32.mrb[0].mxu0
      %2741 = vdwg.mxu0
      %v2742 = vadd.f32 %v2436, %v2616
      %v2743 = vadd.f32 %v2437, %v2619
      %v2744 = vadd.f32 %v2438, %v2624
      %v2745 = vadd.f32 %v2439, %v2627
      %v2746 = vadd.f32 %v2440, %v2632
      %v2747 = vadd.f32 %v2441, %v2635
      %v2748 = vadd.f32 %v2442, %v2640
      %v2749 = vadd.f32 %v2443, %v2643
      %v2750 = vadd.f32 %v2444, %v2648
      %v2751 = vadd.f32 %v2445, %v2651
      %v2752 = vadd.f32 %v2446, %v2656
      %v2753 = vadd.f32 %v2447, %v2659
      %v2754 = vadd.f32 %v2448, %v2664
      %v2755 = vadd.f32 %v2449, %v2667
      %v2756 = vadd.f32 %v2450, %v2672
      %v2757 = vadd.f32 %v2451, %v2675
      %v2758 = vadd.f32 %v2452, %v2680
      %v2759 = vadd.f32 %v2453, %v2683
      %v2760 = vadd.f32 %v2454, %v2688
      %v2761 = vadd.f32 %v2455, %v2691
      %v2762 = vadd.f32 %v2456, %v2696
      %v2763 = vadd.f32 %v2457, %v2699
      %v2764 = vadd.f32 %v2458, %v2704
      %v2765 = vadd.f32 %v2459, %v2707
      %v2766 = vadd.f32 %v2460, %v2712
      %v2767 = vadd.f32 %v2461, %v2715
      %v2768 = vadd.f32 %v2462, %v2720
      %v2769 = vadd.f32 %v2463, %v2723
      %v2770 = vadd.f32 %v2464, %v2728
      %v2771 = vadd.f32 %v2465, %v2731
      %v2772 = vadd.f32 %v2466, %v2736
      %v2773 = vadd.f32 %v2467, %v2739
      %v2774 = vsel %vm840, %v967, 0.0
      %v2775 = vsel %vm841, %v966, 0.0
      %v2776 = vsel %vm842, %v965, 0.0
      %v2777 = vsel %vm843, %v964, 0.0
      %v2778 = vsel %vm844, %v963, 0.0
      %v2779 = vsel %vm845, %v962, 0.0
      %v2780 = vsel %vm846, %v961, 0.0
      %v2781 = vsel %vm847, %v960, 0.0
      %v2782 = vsel %vm848, %v959, 0.0
      %v2783 = vsel %vm849, %v958, 0.0
      %v2784 = vsel %vm850, %v957, 0.0
      %v2785 = vsel %vm851, %v956, 0.0
      %v2786 = vsel %vm852, %v955, 0.0
      %v2787 = vsel %vm853, %v954, 0.0
      %v2788 = vsel %vm854, %v953, 0.0
      %v2789 = vsel %vm855, %v952, 0.0
      %v2790 = vsel %vm856, %v951, 0.0
      %v2791 = vsel %vm857, %v950, 0.0
      %v2792 = vsel %vm858, %v949, 0.0
      %v2793 = vsel %vm859, %v948, 0.0
      %v2794 = vsel %vm860, %v947, 0.0
      %v2795 = vsel %vm861, %v946, 0.0
      %v2796 = vsel %vm862, %v945, 0.0
      %v2797 = vsel %vm863, %v944, 0.0
      %v2798 = vsel %vm864, %v943, 0.0
      %v2799 = vsel %vm865, %v942, 0.0
      %v2800 = vsel %vm866, %v941, 0.0
      %v2801 = vsel %vm867, %v940, 0.0
      %v2802 = vsel %vm868, %v939, 0.0
      %v2803 = vsel %vm869, %v938, 0.0
      %v2804 = vsel %vm870, %v969, 0.0
      %v2805 = vsel %vm871, %v968, 0.0
      %v2806 = vpack.c.bf16 %v2775, %v2774
      %v2807 = vpack.c.bf16 %v2777, %v2776
      %v2808 = vpack.c.bf16 %v2779, %v2778
      %v2809 = vpack.c.bf16 %v2781, %v2780
      %v2810 = vpack.c.bf16 %v2783, %v2782
      %v2811 = vpack.c.bf16 %v2785, %v2784
      %v2812 = vpack.c.bf16 %v2787, %v2786
      %v2813 = vpack.c.bf16 %v2789, %v2788
      %v2814 = vpack.c.bf16 %v2791, %v2790
      %v2815 = vpack.c.bf16 %v2793, %v2792
      %v2816 = vpack.c.bf16 %v2795, %v2794
      %v2817 = vpack.c.bf16 %v2797, %v2796
      %v2818 = vpack.c.bf16 %v2799, %v2798
      %v2819 = vpack.c.bf16 %v2801, %v2800
      %v2820 = vpack.c.bf16 %v2803, %v2802
      %v2821 = vpack.c.bf16 %v2805, %v2804
      %s2822 = scalar_lea.vmem %s1, 384
      %v2823 = vld [vmem:[%s2822] sm:$0xf]
      %v2824 = vld [vmem:[%s2822 + $0x4] sm:$0xf]
      %v2825 = vld [vmem:[%s2822 + $0x8] sm:$0xf]
      %v2826 = vld [vmem:[%s2822 + $0xc] sm:$0xf]
      %v2827 = vld [vmem:[%s2822 + $0x10] sm:$0xf]
      %v2828 = vld [vmem:[%s2822 + $0x14] sm:$0xf]
      %v2829 = vld [vmem:[%s2822 + $0x18] sm:$0xf]
      %v2830 = vld [vmem:[%s2822 + $0x1c] sm:$0xf]
      %v2831 = vld [vmem:[%s2822 + $0x20] sm:$0xf]
      %v2832 = vld [vmem:[%s2822 + $0x24] sm:$0xf]
      %v2833 = vld [vmem:[%s2822 + $0x28] sm:$0xf]
      %v2834 = vld [vmem:[%s2822 + $0x2c] sm:$0xf]
      %v2835 = vld [vmem:[%s2822 + $0x30] sm:$0xf]
      %v2836 = vld [vmem:[%s2822 + $0x34] sm:$0xf]
      %v2837 = vld [vmem:[%s2822 + $0x38] sm:$0xf]
      %v2838 = vld [vmem:[%s2822 + $0x3c] sm:$0xf]
      %v2855 = vunpack.c.l.b16 %v2823
      %v2856 = vunpack.c.l.b16 %v2824
      %v2857 = vunpack.c.l.b16 %v2825
      %v2858 = vunpack.c.l.b16 %v2826
      %v2859 = vunpack.c.l.b16 %v2827
      %v2860 = vunpack.c.l.b16 %v2828
      %v2861 = vunpack.c.l.b16 %v2829
      %v2862 = vunpack.c.l.b16 %v2830
      %v2863 = vunpack.c.l.b16 %v2831
      %v2864 = vunpack.c.l.b16 %v2832
      %v2865 = vunpack.c.l.b16 %v2833
      %v2866 = vunpack.c.l.b16 %v2834
      %v2867 = vunpack.c.l.b16 %v2835
      %v2868 = vunpack.c.l.b16 %v2836
      %v2869 = vunpack.c.l.b16 %v2837
      %v2870 = vunpack.c.l.b16 %v2838
      %v2871 = vpack.c.b16 %v2856, %v2855
      %v2872 = vpack.c.b16 %v2858, %v2857
      %v2873 = vpack.c.b16 %v2860, %v2859
      %v2874 = vpack.c.b16 %v2862, %v2861
      %v2875 = vpack.c.b16 %v2864, %v2863
      %v2876 = vpack.c.b16 %v2866, %v2865
      %v2877 = vpack.c.b16 %v2868, %v2867
      %v2878 = vpack.c.b16 %v2870, %v2869
      %2887 = vmatprep.subr.bf16.mxu0 0
      %2888 = vmatpush1.bf16.msra.mxu0 %v2871
      %2889 = vmatprep.subr.bf16.mxu0 0
      %2890 = vmatpush1.bf16.msra.mxu0 %v2872
      %2891 = vmatprep.subr.bf16.mxu0 0
      %2892 = vmatpush1.bf16.msra.mxu0 %v2873
      %2893 = vmatprep.subr.bf16.mxu0 0
      %2894 = vmatpush1.bf16.msra.mxu0 %v2874
      %2895 = vmatprep.subr.bf16.mxu0 0
      %2896 = vmatpush1.bf16.msra.mxu0 %v2875
      %2897 = vmatprep.subr.bf16.mxu0 0
      %2898 = vmatpush1.bf16.msra.mxu0 %v2876
      %2899 = vmatprep.subr.bf16.mxu0 0
      %2900 = vmatpush1.bf16.msra.mxu0 %v2877
      %2901 = vmatprep.subr.bf16.mxu0 0
      %2902 = vmatpush1.bf16.msra.mxu0 %v2878
      %2903 = vmatprep.subr.bf16.mxu0 0
      %2904 = vmatpush1.bf16.msra.mxu0 0
      %2905 = vmatprep.subr.bf16.mxu0 0
      %2906 = vmatpush1.bf16.msra.mxu0 0
      %2907 = vmatprep.subr.bf16.mxu0 0
      %2908 = vmatpush1.bf16.msra.mxu0 0
      %2909 = vmatprep.subr.bf16.mxu0 0
      %2910 = vmatpush1.bf16.msra.mxu0 0
      %2911 = vmatprep.subr.bf16.mxu0 0
      %2912 = vmatpush1.bf16.msra.mxu0 0
      %2913 = vmatprep.subr.bf16.mxu0 0
      %2914 = vmatpush1.bf16.msra.mxu0 0
      %2915 = vmatprep.subr.bf16.mxu0 0
      %2916 = vmatpush1.bf16.msra.mxu0 0
      %2917 = vmatprep.subr.bf16.mxu0 0
      %2918 = vmatpush1.bf16.msra.mxu0 0
      %2919 = vmatprep.mubr.bf16.mxu0 0
      %2920 = vmatmul.mubr.bf16.gmra.mrb[0].mxu0 %v2806
      %v2921 = vpop.f32.mrb[0].mxu0
      %v2922 = vadd.f32 0.0, %v2921
      %v2923 = vpop.f32.mrb[0].mxu0
      %v2924 = vpop.f32.mrb[0].mxu0
      %v2925 = vadd.f32 0.0, %v2924
      %v2926 = vpop.f32.mrb[0].mxu0
      %2927 = vmatprep.mubr.bf16.mxu0 0
      %2928 = vmatmul.mubr.bf16.gmra.mrb[0].mxu0 %v2807
      %v2929 = vpop.f32.mrb[0].mxu0
      %v2930 = vadd.f32 0.0, %v2929
      %v2931 = vpop.f32.mrb[0].mxu0
      %v2932 = vpop.f32.mrb[0].mxu0
      %v2933 = vadd.f32 0.0, %v2932
      %v2934 = vpop.f32.mrb[0].mxu0
      %2935 = vmatprep.mubr.bf16.mxu0 0
      %2936 = vmatmul.mubr.bf16.gmra.mrb[0].mxu0 %v2808
      %v2937 = vpop.f32.mrb[0].mxu0
      %v2938 = vadd.f32 0.0, %v2937
      %v2939 = vpop.f32.mrb[0].mxu0
      %v2940 = vpop.f32.mrb[0].mxu0
      %v2941 = vadd.f32 0.0, %v2940
      %v2942 = vpop.f32.mrb[0].mxu0
      %2943 = vmatprep.mubr.bf16.mxu0 0
      %2944 = vmatmul.mubr.bf16.gmra.mrb[0].mxu0 %v2809
      %v2945 = vpop.f32.mrb[0].mxu0
      %v2946 = vadd.f32 0.0, %v2945
      %v2947 = vpop.f32.mrb[0].mxu0
      %v2948 = vpop.f32.mrb[0].mxu0
      %v2949 = vadd.f32 0.0, %v2948
      %v2950 = vpop.f32.mrb[0].mxu0
      %2951 = vmatprep.mubr.bf16.mxu0 0
      %2952 = vmatmul.mubr.bf16.gmra.mrb[0].mxu0 %v2810
      %v2953 = vpop.f32.mrb[0].mxu0
      %v2954 = vadd.f32 0.0, %v2953
      %v2955 = vpop.f32.mrb[0].mxu0
      %v2956 = vpop.f32.mrb[0].mxu0
      %v2957 = vadd.f32 0.0, %v2956
      %v2958 = vpop.f32.mrb[0].mxu0
      %2959 = vmatprep.mubr.bf16.mxu0 0
      %2960 = vmatmul.mubr.bf16.gmra.mrb[0].mxu0 %v2811
      %v2961 = vpop.f32.mrb[0].mxu0
      %v2962 = vadd.f32 0.0, %v2961
      %v2963 = vpop.f32.mrb[0].mxu0
      %v2964 = vpop.f32.mrb[0].mxu0
      %v2965 = vadd.f32 0.0, %v2964
      %v2966 = vpop.f32.mrb[0].mxu0
      %2967 = vmatprep.mubr.bf16.mxu0 0
      %2968 = vmatmul.mubr.bf16.gmra.mrb[0].mxu0 %v2812
      %v2969 = vpop.f32.mrb[0].mxu0
      %v2970 = vadd.f32 0.0, %v2969
      %v2971 = vpop.f32.mrb[0].mxu0
      %v2972 = vpop.f32.mrb[0].mxu0
      %v2973 = vadd.f32 0.0, %v2972
      %v2974 = vpop.f32.mrb[0].mxu0
      %2975 = vmatprep.mubr.bf16.mxu0 0
      %2976 = vmatmul.mubr.bf16.gmra.mrb[0].mxu0 %v2813
      %v2977 = vpop.f32.mrb[0].mxu0
      %v2978 = vadd.f32 0.0, %v2977
      %v2979 = vpop.f32.mrb[0].mxu0
      %v2980 = vpop.f32.mrb[0].mxu0
      %v2981 = vadd.f32 0.0, %v2980
      %v2982 = vpop.f32.mrb[0].mxu0
      %2983 = vmatprep.mubr.bf16.mxu0 0
      %2984 = vmatmul.mubr.bf16.gmra.mrb[0].mxu0 %v2814
      %v2985 = vpop.f32.mrb[0].mxu0
      %v2986 = vadd.f32 0.0, %v2985
      %v2987 = vpop.f32.mrb[0].mxu0
      %v2988 = vpop.f32.mrb[0].mxu0
      %v2989 = vadd.f32 0.0, %v2988
      %v2990 = vpop.f32.mrb[0].mxu0
      %2991 = vmatprep.mubr.bf16.mxu0 0
      %2992 = vmatmul.mubr.bf16.gmra.mrb[0].mxu0 %v2815
      %v2993 = vpop.f32.mrb[0].mxu0
      %v2994 = vadd.f32 0.0, %v2993
      %v2995 = vpop.f32.mrb[0].mxu0
      %v2996 = vpop.f32.mrb[0].mxu0
      %v2997 = vadd.f32 0.0, %v2996
      %v2998 = vpop.f32.mrb[0].mxu0
      %2999 = vmatprep.mubr.bf16.mxu0 0
      %3000 = vmatmul.mubr.bf16.gmra.mrb[0].mxu0 %v2816
      %v3001 = vpop.f32.mrb[0].mxu0
      %v3002 = vadd.f32 0.0, %v3001
      %v3003 = vpop.f32.mrb[0].mxu0
      %v3004 = vpop.f32.mrb[0].mxu0
      %v3005 = vadd.f32 0.0, %v3004
      %v3006 = vpop.f32.mrb[0].mxu0
      %3007 = vmatprep.mubr.bf16.mxu0 0
      %3008 = vmatmul.mubr.bf16.gmra.mrb[0].mxu0 %v2817
      %v3009 = vpop.f32.mrb[0].mxu0
      %v3010 = vadd.f32 0.0, %v3009
      %v3011 = vpop.f32.mrb[0].mxu0
      %v3012 = vpop.f32.mrb[0].mxu0
      %v3013 = vadd.f32 0.0, %v3012
      %v3014 = vpop.f32.mrb[0].mxu0
      %3015 = vmatprep.mubr.bf16.mxu0 0
      %3016 = vmatmul.mubr.bf16.gmra.mrb[0].mxu0 %v2818
      %v3017 = vpop.f32.mrb[0].mxu0
      %v3018 = vadd.f32 0.0, %v3017
      %v3019 = vpop.f32.mrb[0].mxu0
      %v3020 = vpop.f32.mrb[0].mxu0
      %v3021 = vadd.f32 0.0, %v3020
      %v3022 = vpop.f32.mrb[0].mxu0
      %3023 = vmatprep.mubr.bf16.mxu0 0
      %3024 = vmatmul.mubr.bf16.gmra.mrb[0].mxu0 %v2819
      %v3025 = vpop.f32.mrb[0].mxu0
      %v3026 = vadd.f32 0.0, %v3025
      %v3027 = vpop.f32.mrb[0].mxu0
      %v3028 = vpop.f32.mrb[0].mxu0
      %v3029 = vadd.f32 0.0, %v3028
      %v3030 = vpop.f32.mrb[0].mxu0
      %3031 = vmatprep.mubr.bf16.mxu0 0
      %3032 = vmatmul.mubr.bf16.gmra.mrb[0].mxu0 %v2820
      %v3033 = vpop.f32.mrb[0].mxu0
      %v3034 = vadd.f32 0.0, %v3033
      %v3035 = vpop.f32.mrb[0].mxu0
      %v3036 = vpop.f32.mrb[0].mxu0
      %v3037 = vadd.f32 0.0, %v3036
      %v3038 = vpop.f32.mrb[0].mxu0
      %3039 = vmatprep.mubr.bf16.mxu0 0
      %3040 = vmatmul.mubr.bf16.gmra.mrb[0].mxu0 %v2821
      %v3041 = vpop.f32.mrb[0].mxu0
      %v3042 = vadd.f32 0.0, %v3041
      %v3043 = vpop.f32.mrb[0].mxu0
      %v3044 = vpop.f32.mrb[0].mxu0
      %v3045 = vadd.f32 0.0, %v3044
      %v3046 = vpop.f32.mrb[0].mxu0
      %3047 = vdwg.mxu0
      %v3048 = vadd.f32 %v2742, %v2922
      %v3049 = vadd.f32 %v2743, %v2925
      %v3050 = vadd.f32 %v2744, %v2930
      %v3051 = vadd.f32 %v2745, %v2933
      %v3052 = vadd.f32 %v2746, %v2938
      %v3053 = vadd.f32 %v2747, %v2941
      %v3054 = vadd.f32 %v2748, %v2946
      %v3055 = vadd.f32 %v2749, %v2949
      %v3056 = vadd.f32 %v2750, %v2954
      %v3057 = vadd.f32 %v2751, %v2957
      %v3058 = vadd.f32 %v2752, %v2962
      %v3059 = vadd.f32 %v2753, %v2965
      %v3060 = vadd.f32 %v2754, %v2970
      %v3061 = vadd.f32 %v2755, %v2973
      %v3062 = vadd.f32 %v2756, %v2978
      %v3063 = vadd.f32 %v2757, %v2981
      %v3064 = vadd.f32 %v2758, %v2986
      %v3065 = vadd.f32 %v2759, %v2989
      %v3066 = vadd.f32 %v2760, %v2994
      %v3067 = vadd.f32 %v2761, %v2997
      %v3068 = vadd.f32 %v2762, %v3002
      %v3069 = vadd.f32 %v2763, %v3005
      %v3070 = vadd.f32 %v2764, %v3010
      %v3071 = vadd.f32 %v2765, %v3013
      %v3072 = vadd.f32 %v2766, %v3018
      %v3073 = vadd.f32 %v2767, %v3021
      %v3074 = vadd.f32 %v2768, %v3026
      %v3075 = vadd.f32 %v2769, %v3029
      %v3076 = vadd.f32 %v2770, %v3034
      %v3077 = vadd.f32 %v2771, %v3037
      %v3078 = vadd.f32 %v2772, %v3042
      %v3079 = vadd.f32 %v2773, %v3045
      %v3080 = vsel %vm680, %v201, 0.0
      %v3081 = vsel %vm681, %v202, 0.0
      %v3082 = vsel %vm682, %v203, 0.0
      %v3083 = vsel %vm683, %v204, 0.0
      %v3084 = vsel %vm684, %v205, 0.0
      %v3085 = vsel %vm685, %v206, 0.0
      %v3086 = vsel %vm686, %v207, 0.0
      %v3087 = vsel %vm687, %v208, 0.0
      %v3088 = vsel %vm688, %v209, 0.0
      %v3089 = vsel %vm689, %v210, 0.0
      %v3090 = vsel %vm690, %v211, 0.0
      %v3091 = vsel %vm691, %v212, 0.0
      %v3092 = vsel %vm692, %v213, 0.0
      %v3093 = vsel %vm693, %v214, 0.0
      %v3094 = vsel %vm694, %v215, 0.0
      %v3095 = vsel %vm695, %v216, 0.0
      %v3096 = vsel %vm696, %v217, 0.0
      %v3097 = vsel %vm697, %v218, 0.0
      %v3098 = vsel %vm698, %v219, 0.0
      %v3099 = vsel %vm699, %v220, 0.0
      %v3100 = vsel %vm700, %v221, 0.0
      %v3101 = vsel %vm701, %v222, 0.0
      %v3102 = vsel %vm702, %v223, 0.0
      %v3103 = vsel %vm703, %v224, 0.0
      %v3104 = vsel %vm704, %v225, 0.0
      %v3105 = vsel %vm705, %v226, 0.0
      %v3106 = vsel %vm706, %v227, 0.0
      %v3107 = vsel %vm707, %v228, 0.0
      %v3108 = vsel %vm708, %v229, 0.0
      %v3109 = vsel %vm709, %v230, 0.0
      %v3110 = vsel %vm710, %v199, 0.0
      %v3111 = vsel %vm711, %v200, 0.0
      %v3112 = vpack.c.bf16 %v3081, %v3080
      %v3113 = vpack.c.bf16 %v3083, %v3082
      %v3114 = vpack.c.bf16 %v3085, %v3084
      %v3115 = vpack.c.bf16 %v3087, %v3086
      %v3116 = vpack.c.bf16 %v3089, %v3088
      %v3117 = vpack.c.bf16 %v3091, %v3090
      %v3118 = vpack.c.bf16 %v3093, %v3092
      %v3119 = vpack.c.bf16 %v3095, %v3094
      %v3120 = vpack.c.bf16 %v3097, %v3096
      %v3121 = vpack.c.bf16 %v3099, %v3098
      %v3122 = vpack.c.bf16 %v3101, %v3100
      %v3123 = vpack.c.bf16 %v3103, %v3102
      %v3124 = vpack.c.bf16 %v3105, %v3104
      %v3125 = vpack.c.bf16 %v3107, %v3106
      %v3126 = vpack.c.bf16 %v3109, %v3108
      %v3127 = vpack.c.bf16 %v3111, %v3110
      %s3128 = scalar_lea.vmem %s1, 448
      %v3129 = vld [vmem:[%s3128] sm:$0xf]
      %v3130 = vld [vmem:[%s3128 + $0x4] sm:$0xf]
      %v3131 = vld [vmem:[%s3128 + $0x8] sm:$0xf]
      %v3132 = vld [vmem:[%s3128 + $0xc] sm:$0xf]
      %v3133 = vld [vmem:[%s3128 + $0x10] sm:$0xf]
      %v3134 = vld [vmem:[%s3128 + $0x14] sm:$0xf]
      %v3135 = vld [vmem:[%s3128 + $0x18] sm:$0xf]
      %v3136 = vld [vmem:[%s3128 + $0x1c] sm:$0xf]
      %v3137 = vld [vmem:[%s3128 + $0x20] sm:$0xf]
      %v3138 = vld [vmem:[%s3128 + $0x24] sm:$0xf]
      %v3139 = vld [vmem:[%s3128 + $0x28] sm:$0xf]
      %v3140 = vld [vmem:[%s3128 + $0x2c] sm:$0xf]
      %v3141 = vld [vmem:[%s3128 + $0x30] sm:$0xf]
      %v3142 = vld [vmem:[%s3128 + $0x34] sm:$0xf]
      %v3143 = vld [vmem:[%s3128 + $0x38] sm:$0xf]
      %v3144 = vld [vmem:[%s3128 + $0x3c] sm:$0xf]
      %v3161 = vunpack.c.l.b16 %v3129
      %v3162 = vunpack.c.l.b16 %v3130
      %v3163 = vunpack.c.l.b16 %v3131
      %v3164 = vunpack.c.l.b16 %v3132
      %v3165 = vunpack.c.l.b16 %v3133
      %v3166 = vunpack.c.l.b16 %v3134
      %v3167 = vunpack.c.l.b16 %v3135
      %v3168 = vunpack.c.l.b16 %v3136
      %v3169 = vunpack.c.l.b16 %v3137
      %v3170 = vunpack.c.l.b16 %v3138
      %v3171 = vunpack.c.l.b16 %v3139
      %v3172 = vunpack.c.l.b16 %v3140
      %v3173 = vunpack.c.l.b16 %v3141
      %v3174 = vunpack.c.l.b16 %v3142
      %v3175 = vunpack.c.l.b16 %v3143
      %v3176 = vunpack.c.l.b16 %v3144
      %v3177 = vpack.c.b16 %v3162, %v3161
      %v3178 = vpack.c.b16 %v3164, %v3163
      %v3179 = vpack.c.b16 %v3166, %v3165
      %v3180 = vpack.c.b16 %v3168, %v3167
      %v3181 = vpack.c.b16 %v3170, %v3169
      %v3182 = vpack.c.b16 %v3172, %v3171
      %v3183 = vpack.c.b16 %v3174, %v3173
      %v3184 = vpack.c.b16 %v3176, %v3175
      %3193 = vmatprep.subr.bf16.mxu0 0
      %3194 = vmatpush1.bf16.msra.mxu0 %v3177
      %3195 = vmatprep.subr.bf16.mxu0 0
      %3196 = vmatpush1.bf16.msra.mxu0 %v3178
      %3197 = vmatprep.subr.bf16.mxu0 0
      %3198 = vmatpush1.bf16.msra.mxu0 %v3179
      %3199 = vmatprep.subr.bf16.mxu0 0
      %3200 = vmatpush1.bf16.msra.mxu0 %v3180
      %3201 = vmatprep.subr.bf16.mxu0 0
      %3202 = vmatpush1.bf16.msra.mxu0 %v3181
      %3203 = vmatprep.subr.bf16.mxu0 0
      %3204 = vmatpush1.bf16.msra.mxu0 %v3182
      %3205 = vmatprep.subr.bf16.mxu0 0
      %3206 = vmatpush1.bf16.msra.mxu0 %v3183
      %3207 = vmatprep.subr.bf16.mxu0 0
      %3208 = vmatpush1.bf16.msra.mxu0 %v3184
      %3209 = vmatprep.subr.bf16.mxu0 0
      %3210 = vmatpush1.bf16.msra.mxu0 0
      %3211 = vmatprep.subr.bf16.mxu0 0
      %3212 = vmatpush1.bf16.msra.mxu0 0
      %3213 = vmatprep.subr.bf16.mxu0 0
      %3214 = vmatpush1.bf16.msra.mxu0 0
      %3215 = vmatprep.subr.bf16.mxu0 0
      %3216 = vmatpush1.bf16.msra.mxu0 0
      %3217 = vmatprep.subr.bf16.mxu0 0
      %3218 = vmatpush1.bf16.msra.mxu0 0
      %3219 = vmatprep.subr.bf16.mxu0 0
      %3220 = vmatpush1.bf16.msra.mxu0 0
      %3221 = vmatprep.subr.bf16.mxu0 0
      %3222 = vmatpush1.bf16.msra.mxu0 0
      %3223 = vmatprep.subr.bf16.mxu0 0
      %3224 = vmatpush1.bf16.msra.mxu0 0
      %3225 = vmatprep.mubr.bf16.mxu0 0
      %3226 = vmatmul.mubr.bf16.gmra.mrb[0].mxu0 %v3112
      %v3227 = vpop.f32.mrb[0].mxu0
      %v3228 = vadd.f32 0.0, %v3227
      %v3229 = vpop.f32.mrb[0].mxu0
      %v3230 = vpop.f32.mrb[0].mxu0
      %v3231 = vadd.f32 0.0, %v3230
      %v3232 = vpop.f32.mrb[0].mxu0
      %3233 = vmatprep.mubr.bf16.mxu0 0
      %3234 = vmatmul.mubr.bf16.gmra.mrb[0].mxu0 %v3113
      %v3235 = vpop.f32.mrb[0].mxu0
      %v3236 = vadd.f32 0.0, %v3235
      %v3237 = vpop.f32.mrb[0].mxu0
      %v3238 = vpop.f32.mrb[0].mxu0
      %v3239 = vadd.f32 0.0, %v3238
      %v3240 = vpop.f32.mrb[0].mxu0
      %3241 = vmatprep.mubr.bf16.mxu0 0
      %3242 = vmatmul.mubr.bf16.gmra.mrb[0].mxu0 %v3114
      %v3243 = vpop.f32.mrb[0].mxu0
      %v3244 = vadd.f32 0.0, %v3243
      %v3245 = vpop.f32.mrb[0].mxu0
      %v3246 = vpop.f32.mrb[0].mxu0
      %v3247 = vadd.f32 0.0, %v3246
      %v3248 = vpop.f32.mrb[0].mxu0
      %3249 = vmatprep.mubr.bf16.mxu0 0
      %3250 = vmatmul.mubr.bf16.gmra.mrb[0].mxu0 %v3115
      %v3251 = vpop.f32.mrb[0].mxu0
      %v3252 = vadd.f32 0.0, %v3251
      %v3253 = vpop.f32.mrb[0].mxu0
      %v3254 = vpop.f32.mrb[0].mxu0
      %v3255 = vadd.f32 0.0, %v3254
      %v3256 = vpop.f32.mrb[0].mxu0
      %3257 = vmatprep.mubr.bf16.mxu0 0
      %3258 = vmatmul.mubr.bf16.gmra.mrb[0].mxu0 %v3116
      %v3259 = vpop.f32.mrb[0].mxu0
      %v3260 = vadd.f32 0.0, %v3259
      %v3261 = vpop.f32.mrb[0].mxu0
      %v3262 = vpop.f32.mrb[0].mxu0
      %v3263 = vadd.f32 0.0, %v3262
      %v3264 = vpop.f32.mrb[0].mxu0
      %3265 = vmatprep.mubr.bf16.mxu0 0
      %3266 = vmatmul.mubr.bf16.gmra.mrb[0].mxu0 %v3117
      %v3267 = vpop.f32.mrb[0].mxu0
      %v3268 = vadd.f32 0.0, %v3267
      %v3269 = vpop.f32.mrb[0].mxu0
      %v3270 = vpop.f32.mrb[0].mxu0
      %v3271 = vadd.f32 0.0, %v3270
      %v3272 = vpop.f32.mrb[0].mxu0
      %3273 = vmatprep.mubr.bf16.mxu0 0
      %3274 = vmatmul.mubr.bf16.gmra.mrb[0].mxu0 %v3118
      %v3275 = vpop.f32.mrb[0].mxu0
      %v3276 = vadd.f32 0.0, %v3275
      %v3277 = vpop.f32.mrb[0].mxu0
      %v3278 = vpop.f32.mrb[0].mxu0
      %v3279 = vadd.f32 0.0, %v3278
      %v3280 = vpop.f32.mrb[0].mxu0
      %3281 = vmatprep.mubr.bf16.mxu0 0
      %3282 = vmatmul.mubr.bf16.gmra.mrb[0].mxu0 %v3119
      %v3283 = vpop.f32.mrb[0].mxu0
      %v3284 = vadd.f32 0.0, %v3283
      %v3285 = vpop.f32.mrb[0].mxu0
      %v3286 = vpop.f32.mrb[0].mxu0
      %v3287 = vadd.f32 0.0, %v3286
      %v3288 = vpop.f32.mrb[0].mxu0
      %3289 = vmatprep.mubr.bf16.mxu0 0
      %3290 = vmatmul.mubr.bf16.gmra.mrb[0].mxu0 %v3120
      %v3291 = vpop.f32.mrb[0].mxu0
      %v3292 = vadd.f32 0.0, %v3291
      %v3293 = vpop.f32.mrb[0].mxu0
      %v3294 = vpop.f32.mrb[0].mxu0
      %v3295 = vadd.f32 0.0, %v3294
      %v3296 = vpop.f32.mrb[0].mxu0
      %3297 = vmatprep.mubr.bf16.mxu0 0
      %3298 = vmatmul.mubr.bf16.gmra.mrb[0].mxu0 %v3121
      %v3299 = vpop.f32.mrb[0].mxu0
      %v3300 = vadd.f32 0.0, %v3299
      %v3301 = vpop.f32.mrb[0].mxu0
      %v3302 = vpop.f32.mrb[0].mxu0
      %v3303 = vadd.f32 0.0, %v3302
      %v3304 = vpop.f32.mrb[0].mxu0
      %3305 = vmatprep.mubr.bf16.mxu0 0
      %3306 = vmatmul.mubr.bf16.gmra.mrb[0].mxu0 %v3122
      %v3307 = vpop.f32.mrb[0].mxu0
      %v3308 = vadd.f32 0.0, %v3307
      %v3309 = vpop.f32.mrb[0].mxu0
      %v3310 = vpop.f32.mrb[0].mxu0
      %v3311 = vadd.f32 0.0, %v3310
      %v3312 = vpop.f32.mrb[0].mxu0
      %3313 = vmatprep.mubr.bf16.mxu0 0
      %3314 = vmatmul.mubr.bf16.gmra.mrb[0].mxu0 %v3123
      %v3315 = vpop.f32.mrb[0].mxu0
      %v3316 = vadd.f32 0.0, %v3315
      %v3317 = vpop.f32.mrb[0].mxu0
      %v3318 = vpop.f32.mrb[0].mxu0
      %v3319 = vadd.f32 0.0, %v3318
      %v3320 = vpop.f32.mrb[0].mxu0
      %3321 = vmatprep.mubr.bf16.mxu0 0
      %3322 = vmatmul.mubr.bf16.gmra.mrb[0].mxu0 %v3124
      %v3323 = vpop.f32.mrb[0].mxu0
      %v3324 = vadd.f32 0.0, %v3323
      %v3325 = vpop.f32.mrb[0].mxu0
      %v3326 = vpop.f32.mrb[0].mxu0
      %v3327 = vadd.f32 0.0, %v3326
      %v3328 = vpop.f32.mrb[0].mxu0
      %3329 = vmatprep.mubr.bf16.mxu0 0
      %3330 = vmatmul.mubr.bf16.gmra.mrb[0].mxu0 %v3125
      %v3331 = vpop.f32.mrb[0].mxu0
      %v3332 = vadd.f32 0.0, %v3331
      %v3333 = vpop.f32.mrb[0].mxu0
      %v3334 = vpop.f32.mrb[0].mxu0
      %v3335 = vadd.f32 0.0, %v3334
      %v3336 = vpop.f32.mrb[0].mxu0
      %3337 = vmatprep.mubr.bf16.mxu0 0
      %3338 = vmatmul.mubr.bf16.gmra.mrb[0].mxu0 %v3126
      %v3339 = vpop.f32.mrb[0].mxu0
      %v3340 = vadd.f32 0.0, %v3339
      %v3341 = vpop.f32.mrb[0].mxu0
      %v3342 = vpop.f32.mrb[0].mxu0
      %v3343 = vadd.f32 0.0, %v3342
      %v3344 = vpop.f32.mrb[0].mxu0
      %3345 = vmatprep.mubr.bf16.mxu0 0
      %3346 = vmatmul.mubr.bf16.gmra.mrb[0].mxu0 %v3127
      %v3347 = vpop.f32.mrb[0].mxu0
      %v3348 = vadd.f32 0.0, %v3347
      %v3349 = vpop.f32.mrb[0].mxu0
      %v3350 = vpop.f32.mrb[0].mxu0
      %v3351 = vadd.f32 0.0, %v3350
      %v3352 = vpop.f32.mrb[0].mxu0
      %3353 = vdwg.mxu0
      %v3354 = vadd.f32 %v3048, %v3228
      %v3355 = vadd.f32 %v3049, %v3231
      %v3356 = vadd.f32 %v3050, %v3236
      %v3357 = vadd.f32 %v3051, %v3239
      %v3358 = vadd.f32 %v3052, %v3244
      %v3359 = vadd.f32 %v3053, %v3247
      %v3360 = vadd.f32 %v3054, %v3252
      %v3361 = vadd.f32 %v3055, %v3255
      %v3362 = vadd.f32 %v3056, %v3260
      %v3363 = vadd.f32 %v3057, %v3263
      %v3364 = vadd.f32 %v3058, %v3268
      %v3365 = vadd.f32 %v3059, %v3271
      %v3366 = vadd.f32 %v3060, %v3276
      %v3367 = vadd.f32 %v3061, %v3279
      %v3368 = vadd.f32 %v3062, %v3284
      %v3369 = vadd.f32 %v3063, %v3287
      %v3370 = vadd.f32 %v3064, %v3292
      %v3371 = vadd.f32 %v3065, %v3295
      %v3372 = vadd.f32 %v3066, %v3300
      %v3373 = vadd.f32 %v3067, %v3303
      %v3374 = vadd.f32 %v3068, %v3308
      %v3375 = vadd.f32 %v3069, %v3311
      %v3376 = vadd.f32 %v3070, %v3316
      %v3377 = vadd.f32 %v3071, %v3319
      %v3378 = vadd.f32 %v3072, %v3324
      %v3379 = vadd.f32 %v3073, %v3327
      %v3380 = vadd.f32 %v3074, %v3332
      %v3381 = vadd.f32 %v3075, %v3335
      %v3382 = vadd.f32 %v3076, %v3340
      %v3383 = vadd.f32 %v3077, %v3343
      %v3384 = vadd.f32 %v3078, %v3348
      %v3385 = vadd.f32 %v3079, %v3351
      %v3386 = vsel %vm872, %v1578, 0.0
      %v3387 = vsel %vm873, %v1577, 0.0
      %v3388 = vsel %vm874, %v1576, 0.0
      %v3389 = vsel %vm875, %v1575, 0.0
      %v3390 = vsel %vm876, %v1574, 0.0
      %v3391 = vsel %vm877, %v1573, 0.0
      %v3392 = vsel %vm878, %v1572, 0.0
      %v3393 = vsel %vm879, %v1571, 0.0
      %v3394 = vsel %vm880, %v1570, 0.0
      %v3395 = vsel %vm881, %v1569, 0.0
      %v3396 = vsel %vm882, %v1568, 0.0
      %v3397 = vsel %vm883, %v1567, 0.0
      %v3398 = vsel %vm884, %v1566, 0.0
      %v3399 = vsel %vm885, %v1565, 0.0
      %v3400 = vsel %vm886, %v1564, 0.0
      %v3401 = vsel %vm887, %v1563, 0.0
      %v3402 = vsel %vm888, %v1562, 0.0
      %v3403 = vsel %vm889, %v1561, 0.0
      %v3404 = vsel %vm890, %v1560, 0.0
      %v3405 = vsel %vm891, %v1559, 0.0
      %v3406 = vsel %vm892, %v1558, 0.0
      %v3407 = vsel %vm893, %v1557, 0.0
      %v3408 = vsel %vm894, %v1556, 0.0
      %v3409 = vsel %vm895, %v1555, 0.0
      %v3410 = vsel %vm896, %v1554, 0.0
      %v3411 = vsel %vm897, %v1553, 0.0
      %v3412 = vsel %vm898, %v1552, 0.0
      %v3413 = vsel %vm899, %v1551, 0.0
      %v3414 = vsel %vm900, %v1550, 0.0
      %v3415 = vsel %vm901, %v1581, 0.0
      %v3416 = vsel %vm902, %v1580, 0.0
      %v3417 = vsel %vm903, %v1579, 0.0
      %v3418 = vpack.c.bf16 %v3387, %v3386
      %v3419 = vpack.c.bf16 %v3389, %v3388
      %v3420 = vpack.c.bf16 %v3391, %v3390
      %v3421 = vpack.c.bf16 %v3393, %v3392
      %v3422 = vpack.c.bf16 %v3395, %v3394
      %v3423 = vpack.c.bf16 %v3397, %v3396
      %v3424 = vpack.c.bf16 %v3399, %v3398
      %v3425 = vpack.c.bf16 %v3401, %v3400
      %v3426 = vpack.c.bf16 %v3403, %v3402
      %v3427 = vpack.c.bf16 %v3405, %v3404
      %v3428 = vpack.c.bf16 %v3407, %v3406
      %v3429 = vpack.c.bf16 %v3409, %v3408
      %v3430 = vpack.c.bf16 %v3411, %v3410
      %v3431 = vpack.c.bf16 %v3413, %v3412
      %v3432 = vpack.c.bf16 %v3415, %v3414
      %v3433 = vpack.c.bf16 %v3417, %v3416
      %s3434 = scalar_lea.vmem %s1, 512
      %v3435 = vld [vmem:[%s3434] sm:$0xf]
      %v3436 = vld [vmem:[%s3434 + $0x4] sm:$0xf]
      %v3437 = vld [vmem:[%s3434 + $0x8] sm:$0xf]
      %v3438 = vld [vmem:[%s3434 + $0xc] sm:$0xf]
      %v3439 = vld [vmem:[%s3434 + $0x10] sm:$0xf]
      %v3440 = vld [vmem:[%s3434 + $0x14] sm:$0xf]
      %v3441 = vld [vmem:[%s3434 + $0x18] sm:$0xf]
      %v3442 = vld [vmem:[%s3434 + $0x1c] sm:$0xf]
      %v3443 = vld [vmem:[%s3434 + $0x20] sm:$0xf]
      %v3444 = vld [vmem:[%s3434 + $0x24] sm:$0xf]
      %v3445 = vld [vmem:[%s3434 + $0x28] sm:$0xf]
      %v3446 = vld [vmem:[%s3434 + $0x2c] sm:$0xf]
      %v3447 = vld [vmem:[%s3434 + $0x30] sm:$0xf]
      %v3448 = vld [vmem:[%s3434 + $0x34] sm:$0xf]
      %v3449 = vld [vmem:[%s3434 + $0x38] sm:$0xf]
      %v3450 = vld [vmem:[%s3434 + $0x3c] sm:$0xf]
      %v3467 = vunpack.c.l.b16 %v3435
      %v3468 = vunpack.c.l.b16 %v3436
      %v3469 = vunpack.c.l.b16 %v3437
      %v3470 = vunpack.c.l.b16 %v3438
      %v3471 = vunpack.c.l.b16 %v3439
      %v3472 = vunpack.c.l.b16 %v3440
      %v3473 = vunpack.c.l.b16 %v3441
      %v3474 = vunpack.c.l.b16 %v3442
      %v3475 = vunpack.c.l.b16 %v3443
      %v3476 = vunpack.c.l.b16 %v3444
      %v3477 = vunpack.c.l.b16 %v3445
      %v3478 = vunpack.c.l.b16 %v3446
      %v3479 = vunpack.c.l.b16 %v3447
      %v3480 = vunpack.c.l.b16 %v3448
      %v3481 = vunpack.c.l.b16 %v3449
      %v3482 = vunpack.c.l.b16 %v3450
      %v3483 = vpack.c.b16 %v3468, %v3467
      %v3484 = vpack.c.b16 %v3470, %v3469
      %v3485 = vpack.c.b16 %v3472, %v3471
      %v3486 = vpack.c.b16 %v3474, %v3473
      %v3487 = vpack.c.b16 %v3476, %v3475
      %v3488 = vpack.c.b16 %v3478, %v3477
      %v3489 = vpack.c.b16 %v3480, %v3479
      %v3490 = vpack.c.b16 %v3482, %v3481
      %3499 = vmatprep.subr.bf16.mxu0 0
      %3500 = vmatpush1.bf16.msra.mxu0 %v3483
      %3501 = vmatprep.subr.bf16.mxu0 0
      %3502 = vmatpush1.bf16.msra.mxu0 %v3484
      %3503 = vmatprep.subr.bf16.mxu0 0
      %3504 = vmatpush1.bf16.msra.mxu0 %v3485
      %3505 = vmatprep.subr.bf16.mxu0 0
      %3506 = vmatpush1.bf16.msra.mxu0 %v3486
      %3507 = vmatprep.subr.bf16.mxu0 0
      %3508 = vmatpush1.bf16.msra.mxu0 %v3487
      %3509 = vmatprep.subr.bf16.mxu0 0
      %3510 = vmatpush1.bf16.msra.mxu0 %v3488
      %3511 = vmatprep.subr.bf16.mxu0 0
      %3512 = vmatpush1.bf16.msra.mxu0 %v3489
      %3513 = vmatprep.subr.bf16.mxu0 0
      %3514 = vmatpush1.bf16.msra.mxu0 %v3490
      %3515 = vmatprep.subr.bf16.mxu0 0
      %3516 = vmatpush1.bf16.msra.mxu0 0
      %3517 = vmatprep.subr.bf16.mxu0 0
      %3518 = vmatpush1.bf16.msra.mxu0 0
      %3519 = vmatprep.subr.bf16.mxu0 0
      %3520 = vmatpush1.bf16.msra.mxu0 0
      %3521 = vmatprep.subr.bf16.mxu0 0
      %3522 = vmatpush1.bf16.msra.mxu0 0
      %3523 = vmatprep.subr.bf16.mxu0 0
      %3524 = vmatpush1.bf16.msra.mxu0 0
      %3525 = vmatprep.subr.bf16.mxu0 0
      %3526 = vmatpush1.bf16.msra.mxu0 0
      %3527 = vmatprep.subr.bf16.mxu0 0
      %3528 = vmatpush1.bf16.msra.mxu0 0
      %3529 = vmatprep.subr.bf16.mxu0 0
      %3530 = vmatpush1.bf16.msra.mxu0 0
      %3531 = vmatprep.mubr.bf16.mxu0 0
      %3532 = vmatmul.mubr.bf16.gmra.mrb[0].mxu0 %v3418
      %v3533 = vpop.f32.mrb[0].mxu0
      %v3534 = vadd.f32 0.0, %v3533
      %v3535 = vpop.f32.mrb[0].mxu0
      %v3536 = vpop.f32.mrb[0].mxu0
      %v3537 = vadd.f32 0.0, %v3536
      %v3538 = vpop.f32.mrb[0].mxu0
      %3539 = vmatprep.mubr.bf16.mxu0 0
      %3540 = vmatmul.mubr.bf16.gmra.mrb[0].mxu0 %v3419
      %v3541 = vpop.f32.mrb[0].mxu0
      %v3542 = vadd.f32 0.0, %v3541
      %v3543 = vpop.f32.mrb[0].mxu0
      %v3544 = vpop.f32.mrb[0].mxu0
      %v3545 = vadd.f32 0.0, %v3544
      %v3546 = vpop.f32.mrb[0].mxu0
      %3547 = vmatprep.mubr.bf16.mxu0 0
      %3548 = vmatmul.mubr.bf16.gmra.mrb[0].mxu0 %v3420
      %v3549 = vpop.f32.mrb[0].mxu0
      %v3550 = vadd.f32 0.0, %v3549
      %v3551 = vpop.f32.mrb[0].mxu0
      %v3552 = vpop.f32.mrb[0].mxu0
      %v3553 = vadd.f32 0.0, %v3552
      %v3554 = vpop.f32.mrb[0].mxu0
      %3555 = vmatprep.mubr.bf16.mxu0 0
      %3556 = vmatmul.mubr.bf16.gmra.mrb[0].mxu0 %v3421
      %v3557 = vpop.f32.mrb[0].mxu0
      %v3558 = vadd.f32 0.0, %v3557
      %v3559 = vpop.f32.mrb[0].mxu0
      %v3560 = vpop.f32.mrb[0].mxu0
      %v3561 = vadd.f32 0.0, %v3560
      %v3562 = vpop.f32.mrb[0].mxu0
      %3563 = vmatprep.mubr.bf16.mxu0 0
      %3564 = vmatmul.mubr.bf16.gmra.mrb[0].mxu0 %v3422
      %v3565 = vpop.f32.mrb[0].mxu0
      %v3566 = vadd.f32 0.0, %v3565
      %v3567 = vpop.f32.mrb[0].mxu0
      %v3568 = vpop.f32.mrb[0].mxu0
      %v3569 = vadd.f32 0.0, %v3568
      %v3570 = vpop.f32.mrb[0].mxu0
      %3571 = vmatprep.mubr.bf16.mxu0 0
      %3572 = vmatmul.mubr.bf16.gmra.mrb[0].mxu0 %v3423
      %v3573 = vpop.f32.mrb[0].mxu0
      %v3574 = vadd.f32 0.0, %v3573
      %v3575 = vpop.f32.mrb[0].mxu0
      %v3576 = vpop.f32.mrb[0].mxu0
      %v3577 = vadd.f32 0.0, %v3576
      %v3578 = vpop.f32.mrb[0].mxu0
      %3579 = vmatprep.mubr.bf16.mxu0 0
      %3580 = vmatmul.mubr.bf16.gmra.mrb[0].mxu0 %v3424
      %v3581 = vpop.f32.mrb[0].mxu0
      %v3582 = vadd.f32 0.0, %v3581
      %v3583 = vpop.f32.mrb[0].mxu0
      %v3584 = vpop.f32.mrb[0].mxu0
      %v3585 = vadd.f32 0.0, %v3584
      %v3586 = vpop.f32.mrb[0].mxu0
      %3587 = vmatprep.mubr.bf16.mxu0 0
      %3588 = vmatmul.mubr.bf16.gmra.mrb[0].mxu0 %v3425
      %v3589 = vpop.f32.mrb[0].mxu0
      %v3590 = vadd.f32 0.0, %v3589
      %v3591 = vpop.f32.mrb[0].mxu0
      %v3592 = vpop.f32.mrb[0].mxu0
      %v3593 = vadd.f32 0.0, %v3592
      %v3594 = vpop.f32.mrb[0].mxu0
      %3595 = vmatprep.mubr.bf16.mxu0 0
      %3596 = vmatmul.mubr.bf16.gmra.mrb[0].mxu0 %v3426
      %v3597 = vpop.f32.mrb[0].mxu0
      %v3598 = vadd.f32 0.0, %v3597
      %v3599 = vpop.f32.mrb[0].mxu0
      %v3600 = vpop.f32.mrb[0].mxu0
      %v3601 = vadd.f32 0.0, %v3600
      %v3602 = vpop.f32.mrb[0].mxu0
      %3603 = vmatprep.mubr.bf16.mxu0 0
      %3604 = vmatmul.mubr.bf16.gmra.mrb[0].mxu0 %v3427
      %v3605 = vpop.f32.mrb[0].mxu0
      %v3606 = vadd.f32 0.0, %v3605
      %v3607 = vpop.f32.mrb[0].mxu0
      %v3608 = vpop.f32.mrb[0].mxu0
      %v3609 = vadd.f32 0.0, %v3608
      %v3610 = vpop.f32.mrb[0].mxu0
      %3611 = vmatprep.mubr.bf16.mxu0 0
      %3612 = vmatmul.mubr.bf16.gmra.mrb[0].mxu0 %v3428
      %v3613 = vpop.f32.mrb[0].mxu0
      %v3614 = vadd.f32 0.0, %v3613
      %v3615 = vpop.f32.mrb[0].mxu0
      %v3616 = vpop.f32.mrb[0].mxu0
      %v3617 = vadd.f32 0.0, %v3616
      %v3618 = vpop.f32.mrb[0].mxu0
      %3619 = vmatprep.mubr.bf16.mxu0 0
      %3620 = vmatmul.mubr.bf16.gmra.mrb[0].mxu0 %v3429
      %v3621 = vpop.f32.mrb[0].mxu0
      %v3622 = vadd.f32 0.0, %v3621
      %v3623 = vpop.f32.mrb[0].mxu0
      %v3624 = vpop.f32.mrb[0].mxu0
      %v3625 = vadd.f32 0.0, %v3624
      %v3626 = vpop.f32.mrb[0].mxu0
      %3627 = vmatprep.mubr.bf16.mxu0 0
      %3628 = vmatmul.mubr.bf16.gmra.mrb[0].mxu0 %v3430
      %v3629 = vpop.f32.mrb[0].mxu0
      %v3630 = vadd.f32 0.0, %v3629
      %v3631 = vpop.f32.mrb[0].mxu0
      %v3632 = vpop.f32.mrb[0].mxu0
      %v3633 = vadd.f32 0.0, %v3632
      %v3634 = vpop.f32.mrb[0].mxu0
      %3635 = vmatprep.mubr.bf16.mxu0 0
      %3636 = vmatmul.mubr.bf16.gmra.mrb[0].mxu0 %v3431
      %v3637 = vpop.f32.mrb[0].mxu0
      %v3638 = vadd.f32 0.0, %v3637
      %v3639 = vpop.f32.mrb[0].mxu0
      %v3640 = vpop.f32.mrb[0].mxu0
      %v3641 = vadd.f32 0.0, %v3640
      %v3642 = vpop.f32.mrb[0].mxu0
      %3643 = vmatprep.mubr.bf16.mxu0 0
      %3644 = vmatmul.mubr.bf16.gmra.mrb[0].mxu0 %v3432
      %v3645 = vpop.f32.mrb[0].mxu0
      %v3646 = vadd.f32 0.0, %v3645
      %v3647 = vpop.f32.mrb[0].mxu0
      %v3648 = vpop.f32.mrb[0].mxu0
      %v3649 = vadd.f32 0.0, %v3648
      %v3650 = vpop.f32.mrb[0].mxu0
      %3651 = vmatprep.mubr.bf16.mxu0 0
      %3652 = vmatmul.mubr.bf16.gmra.mrb[0].mxu0 %v3433
      %v3653 = vpop.f32.mrb[0].mxu0
      %v3654 = vadd.f32 0.0, %v3653
      %v3655 = vpop.f32.mrb[0].mxu0
      %v3656 = vpop.f32.mrb[0].mxu0
      %v3657 = vadd.f32 0.0, %v3656
      %v3658 = vpop.f32.mrb[0].mxu0
      %3659 = vdwg.mxu0
      %v3660 = vadd.f32 %v3354, %v3534
      %v3661 = vadd.f32 %v3355, %v3537
      %v3662 = vadd.f32 %v3356, %v3542
      %v3663 = vadd.f32 %v3357, %v3545
      %v3664 = vadd.f32 %v3358, %v3550
      %v3665 = vadd.f32 %v3359, %v3553
      %v3666 = vadd.f32 %v3360, %v3558
      %v3667 = vadd.f32 %v3361, %v3561
      %v3668 = vadd.f32 %v3362, %v3566
      %v3669 = vadd.f32 %v3363, %v3569
      %v3670 = vadd.f32 %v3364, %v3574
      %v3671 = vadd.f32 %v3365, %v3577
      %v3672 = vadd.f32 %v3366, %v3582
      %v3673 = vadd.f32 %v3367, %v3585
      %v3674 = vadd.f32 %v3368, %v3590
      %v3675 = vadd.f32 %v3369, %v3593
      %v3676 = vadd.f32 %v3370, %v3598
      %v3677 = vadd.f32 %v3371, %v3601
      %v3678 = vadd.f32 %v3372, %v3606
      %v3679 = vadd.f32 %v3373, %v3609
      %v3680 = vadd.f32 %v3374, %v3614
      %v3681 = vadd.f32 %v3375, %v3617
      %v3682 = vadd.f32 %v3376, %v3622
      %v3683 = vadd.f32 %v3377, %v3625
      %v3684 = vadd.f32 %v3378, %v3630
      %v3685 = vadd.f32 %v3379, %v3633
      %v3686 = vadd.f32 %v3380, %v3638
      %v3687 = vadd.f32 %v3381, %v3641
      %v3688 = vadd.f32 %v3382, %v3646
      %v3689 = vadd.f32 %v3383, %v3649
      %v3690 = vadd.f32 %v3384, %v3654
      %v3691 = vadd.f32 %v3385, %v3657
      %v3692 = vlaneseq
      %v3693 = vshrl.u32 %v3692, 7
      %v3694 = vsub.s32 0, %v3693
      %v3695 = vrot.slane %v904, %v3694
      %v3696 = vmul.f32 %v3660, %v3695
      %v3697 = vmul.f32 %v3661, %v3695
      %v3698 = vmul.f32 %v3662, %v3695
      %v3699 = vmul.f32 %v3663, %v3695
      %v3700 = vmul.f32 %v3664, %v3695
      %v3701 = vmul.f32 %v3665, %v3695
      %v3702 = vmul.f32 %v3666, %v3695
      %v3703 = vmul.f32 %v3667, %v3695
      %v3704 = vmul.f32 %v3668, %v3695
      %v3705 = vmul.f32 %v3669, %v3695
      %v3706 = vmul.f32 %v3670, %v3695
      %v3707 = vmul.f32 %v3671, %v3695
      %v3708 = vmul.f32 %v3672, %v3695
      %v3709 = vmul.f32 %v3673, %v3695
      %v3710 = vmul.f32 %v3674, %v3695
      %v3711 = vmul.f32 %v3675, %v3695
      %v3712 = vmul.f32 %v3676, %v3695
      %v3713 = vmul.f32 %v3677, %v3695
      %v3714 = vmul.f32 %v3678, %v3695
      %v3715 = vmul.f32 %v3679, %v3695
      %v3716 = vmul.f32 %v3680, %v3695
      %v3717 = vmul.f32 %v3681, %v3695
      %v3718 = vmul.f32 %v3682, %v3695
      %v3719 = vmul.f32 %v3683, %v3695
      %v3720 = vmul.f32 %v3684, %v3695
      %v3721 = vmul.f32 %v3685, %v3695
      %v3722 = vmul.f32 %v3686, %v3695
      %v3723 = vmul.f32 %v3687, %v3695
      %v3724 = vmul.f32 %v3688, %v3695
      %v3725 = vmul.f32 %v3689, %v3695
      %v3726 = vmul.f32 %v3690, %v3695
      %v3727 = vmul.f32 %v3691, %v3695
      %v3728 = vlaneseq
      %v3729 = vshrl.u32 %v3728, 7
      %v3730 = vsub.s32 1, %v3729
      %v3731 = vrot.slane %v904, %v3730
      %v3732 = vadd.f32 %v3696, %v3731
      %v3733 = vadd.f32 %v3697, %v3731
      %v3734 = vadd.f32 %v3698, %v3731
      %v3735 = vadd.f32 %v3699, %v3731
      %v3736 = vadd.f32 %v3700, %v3731
      %v3737 = vadd.f32 %v3701, %v3731
      %v3738 = vadd.f32 %v3702, %v3731
      %v3739 = vadd.f32 %v3703, %v3731
      %v3740 = vadd.f32 %v3704, %v3731
      %v3741 = vadd.f32 %v3705, %v3731
      %v3742 = vadd.f32 %v3706, %v3731
      %v3743 = vadd.f32 %v3707, %v3731
      %v3744 = vadd.f32 %v3708, %v3731
      %v3745 = vadd.f32 %v3709, %v3731
      %v3746 = vadd.f32 %v3710, %v3731
      %v3747 = vadd.f32 %v3711, %v3731
      %v3748 = vadd.f32 %v3712, %v3731
      %v3749 = vadd.f32 %v3713, %v3731
      %v3750 = vadd.f32 %v3714, %v3731
      %v3751 = vadd.f32 %v3715, %v3731
      %v3752 = vadd.f32 %v3716, %v3731
      %v3753 = vadd.f32 %v3717, %v3731
      %v3754 = vadd.f32 %v3718, %v3731
      %v3755 = vadd.f32 %v3719, %v3731
      %v3756 = vadd.f32 %v3720, %v3731
      %v3757 = vadd.f32 %v3721, %v3731
      %v3758 = vadd.f32 %v3722, %v3731
      %v3759 = vadd.f32 %v3723, %v3731
      %v3760 = vadd.f32 %v3724, %v3731
      %v3761 = vadd.f32 %v3725, %v3731
      %v3762 = vadd.f32 %v3726, %v3731
      %v3763 = vadd.f32 %v3727, %v3731
      %v3764 = vmax.f32 %v3732, 0.0
      %v3765 = vmax.f32 %v3733, 0.0
      %v3766 = vmax.f32 %v3734, 0.0
      %v3767 = vmax.f32 %v3735, 0.0
      %v3768 = vmax.f32 %v3736, 0.0
      %v3769 = vmax.f32 %v3737, 0.0
      %v3770 = vmax.f32 %v3738, 0.0
      %v3771 = vmax.f32 %v3739, 0.0
      %v3772 = vmax.f32 %v3740, 0.0
      %v3773 = vmax.f32 %v3741, 0.0
      %v3774 = vmax.f32 %v3742, 0.0
      %v3775 = vmax.f32 %v3743, 0.0
      %v3776 = vmax.f32 %v3744, 0.0
      %v3777 = vmax.f32 %v3745, 0.0
      %v3778 = vmax.f32 %v3746, 0.0
      %v3779 = vmax.f32 %v3747, 0.0
      %v3780 = vmax.f32 %v3748, 0.0
      %v3781 = vmax.f32 %v3749, 0.0
      %v3782 = vmax.f32 %v3750, 0.0
      %v3783 = vmax.f32 %v3751, 0.0
      %v3784 = vmax.f32 %v3752, 0.0
      %v3785 = vmax.f32 %v3753, 0.0
      %v3786 = vmax.f32 %v3754, 0.0
      %v3787 = vmax.f32 %v3755, 0.0
      %v3788 = vmax.f32 %v3756, 0.0
      %v3789 = vmax.f32 %v3757, 0.0
      %v3790 = vmax.f32 %v3758, 0.0
      %v3791 = vmax.f32 %v3759, 0.0
      %v3792 = vmax.f32 %v3760, 0.0
      %v3793 = vmax.f32 %v3761, 0.0
      %v3794 = vmax.f32 %v3762, 0.0
      %v3795 = vmax.f32 %v3763, 0.0
      %v3796 = vrot.slane %v3764, 7
      %v3797 = vrot.slane %v3765, 7
      %v3798 = vrot.slane %v3766, 7
      %v3799 = vrot.slane %v3767, 7
      %v3800 = vrot.slane %v3768, 7
      %v3801 = vrot.slane %v3769, 7
      %v3802 = vrot.slane %v3770, 7
      %v3803 = vrot.slane %v3771, 7
      %v3804 = vrot.slane %v3772, 7
      %v3805 = vrot.slane %v3773, 7
      %v3806 = vrot.slane %v3774, 7
      %v3807 = vrot.slane %v3775, 7
      %v3808 = vrot.slane %v3776, 7
      %v3809 = vrot.slane %v3777, 7
      %v3810 = vrot.slane %v3778, 7
      %v3811 = vrot.slane %v3779, 7
      %v3812 = vrot.slane %v3780, 7
      %v3813 = vrot.slane %v3781, 7
      %v3814 = vrot.slane %v3782, 7
      %v3815 = vrot.slane %v3783, 7
      %v3816 = vrot.slane %v3784, 7
      %v3817 = vrot.slane %v3785, 7
      %v3818 = vrot.slane %v3786, 7
      %v3819 = vrot.slane %v3787, 7
      %v3820 = vrot.slane %v3788, 7
      %v3821 = vrot.slane %v3789, 7
      %v3822 = vrot.slane %v3790, 7
      %v3823 = vrot.slane %v3791, 7
      %v3824 = vrot.slane %v3792, 7
      %v3825 = vrot.slane %v3793, 7
      %v3826 = vrot.slane %v3794, 7
      %v3827 = vrot.slane %v3795, 7
      %v3828 = vsel %vm937, %v3826, %v3827
      %v3829 = vsel %vm937, %v3825, %v3826
      %v3830 = vsel %vm937, %v3824, %v3825
      %v3831 = vsel %vm937, %v3823, %v3824
      %v3832 = vsel %vm937, %v3822, %v3823
      %v3833 = vsel %vm937, %v3821, %v3822
      %v3834 = vsel %vm937, %v3820, %v3821
      %v3835 = vsel %vm937, %v3819, %v3820
      %v3836 = vsel %vm937, %v3818, %v3819
      %v3837 = vsel %vm937, %v3817, %v3818
      %v3838 = vsel %vm937, %v3816, %v3817
      %v3839 = vsel %vm937, %v3815, %v3816
      %v3840 = vsel %vm937, %v3814, %v3815
      %v3841 = vsel %vm937, %v3813, %v3814
      %v3842 = vsel %vm937, %v3812, %v3813
      %v3843 = vsel %vm937, %v3811, %v3812
      %v3844 = vsel %vm937, %v3810, %v3811
      %v3845 = vsel %vm937, %v3809, %v3810
      %v3846 = vsel %vm937, %v3808, %v3809
      %v3847 = vsel %vm937, %v3807, %v3808
      %v3848 = vsel %vm937, %v3806, %v3807
      %v3849 = vsel %vm937, %v3805, %v3806
      %v3850 = vsel %vm937, %v3804, %v3805
      %v3851 = vsel %vm937, %v3803, %v3804
      %v3852 = vsel %vm937, %v3802, %v3803
      %v3853 = vsel %vm937, %v3801, %v3802
      %v3854 = vsel %vm937, %v3800, %v3801
      %v3855 = vsel %vm937, %v3799, %v3800
      %v3856 = vsel %vm937, %v3798, %v3799
      %v3857 = vsel %vm937, %v3797, %v3798
      %v3858 = vsel %vm937, %v3796, %v3797
      %v3859 = vsel %vm937, %v3827, %v3796
      %v3860 = vsel %vm776, %v3829, 0.0
      %v3861 = vsel %vm777, %v3828, 0.0
      %v3862 = vsel %vm778, %v3859, 0.0
      %v3863 = vsel %vm779, %v3858, 0.0
      %v3864 = vsel %vm780, %v3857, 0.0
      %v3865 = vsel %vm781, %v3856, 0.0
      %v3866 = vsel %vm782, %v3855, 0.0
      %v3867 = vsel %vm783, %v3854, 0.0
      %v3868 = vsel %vm784, %v3853, 0.0
      %v3869 = vsel %vm785, %v3852, 0.0
      %v3870 = vsel %vm786, %v3851, 0.0
      %v3871 = vsel %vm787, %v3850, 0.0
      %v3872 = vsel %vm788, %v3849, 0.0
      %v3873 = vsel %vm789, %v3848, 0.0
      %v3874 = vsel %vm790, %v3847, 0.0
      %v3875 = vsel %vm791, %v3846, 0.0
      %v3876 = vsel %vm792, %v3845, 0.0
      %v3877 = vsel %vm793, %v3844, 0.0
      %v3878 = vsel %vm794, %v3843, 0.0
      %v3879 = vsel %vm795, %v3842, 0.0
      %v3880 = vsel %vm796, %v3841, 0.0
      %v3881 = vsel %vm797, %v3840, 0.0
      %v3882 = vsel %vm798, %v3839, 0.0
      %v3883 = vsel %vm799, %v3838, 0.0
      %v3884 = vsel %vm800, %v3837, 0.0
      %v3885 = vsel %vm801, %v3836, 0.0
      %v3886 = vsel %vm802, %v3835, 0.0
      %v3887 = vsel %vm803, %v3834, 0.0
      %v3888 = vsel %vm804, %v3833, 0.0
      %v3889 = vsel %vm805, %v3832, 0.0
      %v3890 = vsel %vm806, %v3831, 0.0
      %v3891 = vsel %vm807, %v3830, 0.0
      %v3892 = vpack.c.bf16 %v3861, %v3860
      %v3893 = vpack.c.bf16 %v3863, %v3862
      %v3894 = vpack.c.bf16 %v3865, %v3864
      %v3895 = vpack.c.bf16 %v3867, %v3866
      %v3896 = vpack.c.bf16 %v3869, %v3868
      %v3897 = vpack.c.bf16 %v3871, %v3870
      %v3898 = vpack.c.bf16 %v3873, %v3872
      %v3899 = vpack.c.bf16 %v3875, %v3874
      %v3900 = vpack.c.bf16 %v3877, %v3876
      %v3901 = vpack.c.bf16 %v3879, %v3878
      %v3902 = vpack.c.bf16 %v3881, %v3880
      %v3903 = vpack.c.bf16 %v3883, %v3882
      %v3904 = vpack.c.bf16 %v3885, %v3884
      %v3905 = vpack.c.bf16 %v3887, %v3886
      %v3906 = vpack.c.bf16 %v3889, %v3888
      %v3907 = vpack.c.bf16 %v3891, %v3890
      %v3908 = vld [vmem:[%s2] sm:$0xf]
      %v3909 = vld [vmem:[%s2 + $0x4] sm:$0xf]
      %v3910 = vld [vmem:[%s2 + $0x8] sm:$0xf]
      %v3911 = vld [vmem:[%s2 + $0xc] sm:$0xf]
      %v3912 = vld [vmem:[%s2 + $0x10] sm:$0xf]
      %v3913 = vld [vmem:[%s2 + $0x14] sm:$0xf]
      %v3914 = vld [vmem:[%s2 + $0x18] sm:$0xf]
      %v3915 = vld [vmem:[%s2 + $0x1c] sm:$0xf]
      %v3916 = vld [vmem:[%s2 + $0x20] sm:$0xf]
      %v3917 = vld [vmem:[%s2 + $0x24] sm:$0xf]
      %v3918 = vld [vmem:[%s2 + $0x28] sm:$0xf]
      %v3919 = vld [vmem:[%s2 + $0x2c] sm:$0xf]
      %v3920 = vld [vmem:[%s2 + $0x30] sm:$0xf]
      %v3921 = vld [vmem:[%s2 + $0x34] sm:$0xf]
      %v3922 = vld [vmem:[%s2 + $0x38] sm:$0xf]
      %v3923 = vld [vmem:[%s2 + $0x3c] sm:$0xf]
      %v3924 = vsel %vm648, %v3794, 0.0
      %v3925 = vsel %vm649, %v3795, 0.0
      %v3926 = vsel %vm650, %v3764, 0.0
      %v3927 = vsel %vm651, %v3765, 0.0
      %v3928 = vsel %vm652, %v3766, 0.0
      %v3929 = vsel %vm653, %v3767, 0.0
      %v3930 = vsel %vm654, %v3768, 0.0
      %v3931 = vsel %vm655, %v3769, 0.0
      %v3932 = vsel %vm656, %v3770, 0.0
      %v3933 = vsel %vm657, %v3771, 0.0
      %v3934 = vsel %vm658, %v3772, 0.0
      %v3935 = vsel %vm659, %v3773, 0.0
      %v3936 = vsel %vm660, %v3774, 0.0
      %v3937 = vsel %vm661, %v3775, 0.0
      %v3938 = vsel %vm662, %v3776, 0.0
      %v3939 = vsel %vm663, %v3777, 0.0
      %v3940 = vsel %vm664, %v3778, 0.0
      %v3941 = vsel %vm665, %v3779, 0.0
      %v3942 = vsel %vm666, %v3780, 0.0
      %v3943 = vsel %vm667, %v3781, 0.0
      %v3944 = vsel %vm668, %v3782, 0.0
      %v3945 = vsel %vm669, %v3783, 0.0
      %v3946 = vsel %vm670, %v3784, 0.0
      %v3947 = vsel %vm671, %v3785, 0.0
      %v3948 = vsel %vm672, %v3786, 0.0
      %v3949 = vsel %vm673, %v3787, 0.0
      %v3950 = vsel %vm674, %v3788, 0.0
      %v3951 = vsel %vm675, %v3789, 0.0
      %v3952 = vsel %vm676, %v3790, 0.0
      %v3953 = vsel %vm677, %v3791, 0.0
      %v3954 = vsel %vm678, %v3792, 0.0
      %v3955 = vsel %vm679, %v3793, 0.0
      %v3956 = vpack.c.bf16 %v3925, %v3924
      %v3957 = vpack.c.bf16 %v3927, %v3926
      %v3958 = vpack.c.bf16 %v3929, %v3928
      %v3959 = vpack.c.bf16 %v3931, %v3930
      %v3960 = vpack.c.bf16 %v3933, %v3932
      %v3961 = vpack.c.bf16 %v3935, %v3934
      %v3962 = vpack.c.bf16 %v3937, %v3936
      %v3963 = vpack.c.bf16 %v3939, %v3938
      %v3964 = vpack.c.bf16 %v3941, %v3940
      %v3965 = vpack.c.bf16 %v3943, %v3942
      %v3966 = vpack.c.bf16 %v3945, %v3944
      %v3967 = vpack.c.bf16 %v3947, %v3946
      %v3968 = vpack.c.bf16 %v3949, %v3948
      %v3969 = vpack.c.bf16 %v3951, %v3950
      %v3970 = vpack.c.bf16 %v3953, %v3952
      %v3971 = vpack.c.bf16 %v3955, %v3954
      %s3972 = scalar_lea.vmem %s2, 64
      %v3973 = vld [vmem:[%s3972] sm:$0xf]
      %v3974 = vld [vmem:[%s3972 + $0x4] sm:$0xf]
      %v3975 = vld [vmem:[%s3972 + $0x8] sm:$0xf]
      %v3976 = vld [vmem:[%s3972 + $0xc] sm:$0xf]
      %v3977 = vld [vmem:[%s3972 + $0x10] sm:$0xf]
      %v3978 = vld [vmem:[%s3972 + $0x14] sm:$0xf]
      %v3979 = vld [vmem:[%s3972 + $0x18] sm:$0xf]
      %v3980 = vld [vmem:[%s3972 + $0x1c] sm:$0xf]
      %v3981 = vld [vmem:[%s3972 + $0x20] sm:$0xf]
      %v3982 = vld [vmem:[%s3972 + $0x24] sm:$0xf]
      %v3983 = vld [vmem:[%s3972 + $0x28] sm:$0xf]
      %v3984 = vld [vmem:[%s3972 + $0x2c] sm:$0xf]
      %v3985 = vld [vmem:[%s3972 + $0x30] sm:$0xf]
      %v3986 = vld [vmem:[%s3972 + $0x34] sm:$0xf]
      %v3987 = vld [vmem:[%s3972 + $0x38] sm:$0xf]
      %v3988 = vld [vmem:[%s3972 + $0x3c] sm:$0xf]
      %v4005 = vunpack.c.l.b16 %v3973
      %v4006 = vunpack.c.l.b16 %v3974
      %v4007 = vunpack.c.l.b16 %v3975
      %v4008 = vunpack.c.l.b16 %v3976
      %v4009 = vunpack.c.l.b16 %v3977
      %v4010 = vunpack.c.l.b16 %v3978
      %v4011 = vunpack.c.l.b16 %v3979
      %v4012 = vunpack.c.l.b16 %v3980
      %v4013 = vunpack.c.l.b16 %v3981
      %v4014 = vunpack.c.l.b16 %v3982
      %v4015 = vunpack.c.l.b16 %v3983
      %v4016 = vunpack.c.l.b16 %v3984
      %v4017 = vunpack.c.l.b16 %v3985
      %v4018 = vunpack.c.l.b16 %v3986
      %v4019 = vunpack.c.l.b16 %v3987
      %v4020 = vunpack.c.l.b16 %v3988
      %v4021 = vpack.c.b16 %v4006, %v4005
      %v4022 = vpack.c.b16 %v4008, %v4007
      %v4023 = vpack.c.b16 %v4010, %v4009
      %v4024 = vpack.c.b16 %v4012, %v4011
      %v4025 = vpack.c.b16 %v4014, %v4013
      %v4026 = vpack.c.b16 %v4016, %v4015
      %v4027 = vpack.c.b16 %v4018, %v4017
      %v4028 = vpack.c.b16 %v4020, %v4019
      %4037 = vmatprep.subr.bf16.mxu0 0
      %4038 = vmatpush1.bf16.msra.mxu0 %v4021
      %4039 = vmatprep.subr.bf16.mxu0 0
      %4040 = vmatpush1.bf16.msra.mxu0 %v4022
      %4041 = vmatprep.subr.bf16.mxu0 0
      %4042 = vmatpush1.bf16.msra.mxu0 %v4023
      %4043 = vmatprep.subr.bf16.mxu0 0
      %4044 = vmatpush1.bf16.msra.mxu0 %v4024
      %4045 = vmatprep.subr.bf16.mxu0 0
      %4046 = vmatpush1.bf16.msra.mxu0 %v4025
      %4047 = vmatprep.subr.bf16.mxu0 0
      %4048 = vmatpush1.bf16.msra.mxu0 %v4026
      %4049 = vmatprep.subr.bf16.mxu0 0
      %4050 = vmatpush1.bf16.msra.mxu0 %v4027
      %4051 = vmatprep.subr.bf16.mxu0 0
      %4052 = vmatpush1.bf16.msra.mxu0 %v4028
      %4053 = vmatprep.subr.bf16.mxu0 0
      %4054 = vmatpush1.bf16.msra.mxu0 0
      %4055 = vmatprep.subr.bf16.mxu0 0
      %4056 = vmatpush1.bf16.msra.mxu0 0
      %4057 = vmatprep.subr.bf16.mxu0 0
      %4058 = vmatpush1.bf16.msra.mxu0 0
      %4059 = vmatprep.subr.bf16.mxu0 0
      %4060 = vmatpush1.bf16.msra.mxu0 0
      %4061 = vmatprep.subr.bf16.mxu0 0
      %4062 = vmatpush1.bf16.msra.mxu0 0
      %4063 = vmatprep.subr.bf16.mxu0 0
      %4064 = vmatpush1.bf16.msra.mxu0 0
      %4065 = vmatprep.subr.bf16.mxu0 0
      %4066 = vmatpush1.bf16.msra.mxu0 0
      %4067 = vmatprep.subr.bf16.mxu0 0
      %4068 = vmatpush1.bf16.msra.mxu0 0
      %4069 = vmatprep.mubr.bf16.mxu0 0
      %4070 = vmatmul.mubr.bf16.gmra.mrb[0].mxu0 %v3956
      %v4071 = vpop.f32.mrb[0].mxu0
      %v4072 = vadd.f32 0.0, %v4071
      %v4073 = vpop.f32.mrb[0].mxu0
      %v4074 = vpop.f32.mrb[0].mxu0
      %v4075 = vadd.f32 0.0, %v4074
      %v4076 = vpop.f32.mrb[0].mxu0
      %4077 = vmatprep.mubr.bf16.mxu0 0
      %4078 = vmatmul.mubr.bf16.gmra.mrb[0].mxu0 %v3957
      %v4079 = vpop.f32.mrb[0].mxu0
      %v4080 = vadd.f32 0.0, %v4079
      %v4081 = vpop.f32.mrb[0].mxu0
      %v4082 = vpop.f32.mrb[0].mxu0
      %v4083 = vadd.f32 0.0, %v4082
      %v4084 = vpop.f32.mrb[0].mxu0
      %4085 = vmatprep.mubr.bf16.mxu0 0
      %4086 = vmatmul.mubr.bf16.gmra.mrb[0].mxu0 %v3958
      %v4087 = vpop.f32.mrb[0].mxu0
      %v4088 = vadd.f32 0.0, %v4087
      %v4089 = vpop.f32.mrb[0].mxu0
      %v4090 = vpop.f32.mrb[0].mxu0
      %v4091 = vadd.f32 0.0, %v4090
      %v4092 = vpop.f32.mrb[0].mxu0
      %4093 = vmatprep.mubr.bf16.mxu0 0
      %4094 = vmatmul.mubr.bf16.gmra.mrb[0].mxu0 %v3959
      %v4095 = vpop.f32.mrb[0].mxu0
      %v4096 = vadd.f32 0.0, %v4095
      %v4097 = vpop.f32.mrb[0].mxu0
      %v4098 = vpop.f32.mrb[0].mxu0
      %v4099 = vadd.f32 0.0, %v4098
      %v4100 = vpop.f32.mrb[0].mxu0
      %4101 = vmatprep.mubr.bf16.mxu0 0
      %4102 = vmatmul.mubr.bf16.gmra.mrb[0].mxu0 %v3960
      %v4103 = vpop.f32.mrb[0].mxu0
      %v4104 = vadd.f32 0.0, %v4103
      %v4105 = vpop.f32.mrb[0].mxu0
      %v4106 = vpop.f32.mrb[0].mxu0
      %v4107 = vadd.f32 0.0, %v4106
      %v4108 = vpop.f32.mrb[0].mxu0
      %4109 = vmatprep.mubr.bf16.mxu0 0
      %4110 = vmatmul.mubr.bf16.gmra.mrb[0].mxu0 %v3961
      %v4111 = vpop.f32.mrb[0].mxu0
      %v4112 = vadd.f32 0.0, %v4111
      %v4113 = vpop.f32.mrb[0].mxu0
      %v4114 = vpop.f32.mrb[0].mxu0
      %v4115 = vadd.f32 0.0, %v4114
      %v4116 = vpop.f32.mrb[0].mxu0
      %4117 = vmatprep.mubr.bf16.mxu0 0
      %4118 = vmatmul.mubr.bf16.gmra.mrb[0].mxu0 %v3962
      %v4119 = vpop.f32.mrb[0].mxu0
      %v4120 = vadd.f32 0.0, %v4119
      %v4121 = vpop.f32.mrb[0].mxu0
      %v4122 = vpop.f32.mrb[0].mxu0
      %v4123 = vadd.f32 0.0, %v4122
      %v4124 = vpop.f32.mrb[0].mxu0
      %4125 = vmatprep.mubr.bf16.mxu0 0
      %4126 = vmatmul.mubr.bf16.gmra.mrb[0].mxu0 %v3963
      %v4127 = vpop.f32.mrb[0].mxu0
      %v4128 = vadd.f32 0.0, %v4127
      %v4129 = vpop.f32.mrb[0].mxu0
      %v4130 = vpop.f32.mrb[0].mxu0
      %v4131 = vadd.f32 0.0, %v4130
      %v4132 = vpop.f32.mrb[0].mxu0
      %4133 = vmatprep.mubr.bf16.mxu0 0
      %4134 = vmatmul.mubr.bf16.gmra.mrb[0].mxu0 %v3964
      %v4135 = vpop.f32.mrb[0].mxu0
      %v4136 = vadd.f32 0.0, %v4135
      %v4137 = vpop.f32.mrb[0].mxu0
      %v4138 = vpop.f32.mrb[0].mxu0
      %v4139 = vadd.f32 0.0, %v4138
      %v4140 = vpop.f32.mrb[0].mxu0
      %4141 = vmatprep.mubr.bf16.mxu0 0
      %4142 = vmatmul.mubr.bf16.gmra.mrb[0].mxu0 %v3965
      %v4143 = vpop.f32.mrb[0].mxu0
      %v4144 = vadd.f32 0.0, %v4143
      %v4145 = vpop.f32.mrb[0].mxu0
      %v4146 = vpop.f32.mrb[0].mxu0
      %v4147 = vadd.f32 0.0, %v4146
      %v4148 = vpop.f32.mrb[0].mxu0
      %4149 = vmatprep.mubr.bf16.mxu0 0
      %4150 = vmatmul.mubr.bf16.gmra.mrb[0].mxu0 %v3966
      %v4151 = vpop.f32.mrb[0].mxu0
      %v4152 = vadd.f32 0.0, %v4151
      %v4153 = vpop.f32.mrb[0].mxu0
      %v4154 = vpop.f32.mrb[0].mxu0
      %v4155 = vadd.f32 0.0, %v4154
      %v4156 = vpop.f32.mrb[0].mxu0
      %4157 = vmatprep.mubr.bf16.mxu0 0
      %4158 = vmatmul.mubr.bf16.gmra.mrb[0].mxu0 %v3967
      %v4159 = vpop.f32.mrb[0].mxu0
      %v4160 = vadd.f32 0.0, %v4159
      %v4161 = vpop.f32.mrb[0].mxu0
      %v4162 = vpop.f32.mrb[0].mxu0
      %v4163 = vadd.f32 0.0, %v4162
      %v4164 = vpop.f32.mrb[0].mxu0
      %4165 = vmatprep.mubr.bf16.mxu0 0
      %4166 = vmatmul.mubr.bf16.gmra.mrb[0].mxu0 %v3968
      %v4167 = vpop.f32.mrb[0].mxu0
      %v4168 = vadd.f32 0.0, %v4167
      %v4169 = vpop.f32.mrb[0].mxu0
      %v4170 = vpop.f32.mrb[0].mxu0
      %v4171 = vadd.f32 0.0, %v4170
      %v4172 = vpop.f32.mrb[0].mxu0
      %4173 = vmatprep.mubr.bf16.mxu0 0
      %4174 = vmatmul.mubr.bf16.gmra.mrb[0].mxu0 %v3969
      %v4175 = vpop.f32.mrb[0].mxu0
      %v4176 = vadd.f32 0.0, %v4175
      %v4177 = vpop.f32.mrb[0].mxu0
      %v4178 = vpop.f32.mrb[0].mxu0
      %v4179 = vadd.f32 0.0, %v4178
      %v4180 = vpop.f32.mrb[0].mxu0
      %4181 = vmatprep.mubr.bf16.mxu0 0
      %4182 = vmatmul.mubr.bf16.gmra.mrb[0].mxu0 %v3970
      %v4183 = vpop.f32.mrb[0].mxu0
      %v4184 = vadd.f32 0.0, %v4183
      %v4185 = vpop.f32.mrb[0].mxu0
      %v4186 = vpop.f32.mrb[0].mxu0
      %v4187 = vadd.f32 0.0, %v4186
      %v4188 = vpop.f32.mrb[0].mxu0
      %4189 = vmatprep.mubr.bf16.mxu0 0
      %4190 = vmatmul.mubr.bf16.gmra.mrb[0].mxu0 %v3971
      %v4191 = vpop.f32.mrb[0].mxu0
      %v4192 = vadd.f32 0.0, %v4191
      %v4193 = vpop.f32.mrb[0].mxu0
      %v4194 = vpop.f32.mrb[0].mxu0
      %v4195 = vadd.f32 0.0, %v4194
      %v4196 = vpop.f32.mrb[0].mxu0
      %4197 = vdwg.mxu0
      %v4214 = vunpack.c.l.b16 %v3908
      %v4215 = vunpack.c.l.b16 %v3909
      %v4216 = vunpack.c.l.b16 %v3910
      %v4217 = vunpack.c.l.b16 %v3911
      %v4218 = vunpack.c.l.b16 %v3912
      %v4219 = vunpack.c.l.b16 %v3913
      %v4220 = vunpack.c.l.b16 %v3914
      %v4221 = vunpack.c.l.b16 %v3915
      %v4222 = vunpack.c.l.b16 %v3916
      %v4223 = vunpack.c.l.b16 %v3917
      %v4224 = vunpack.c.l.b16 %v3918
      %v4225 = vunpack.c.l.b16 %v3919
      %v4226 = vunpack.c.l.b16 %v3920
      %v4227 = vunpack.c.l.b16 %v3921
      %v4228 = vunpack.c.l.b16 %v3922
      %v4229 = vunpack.c.l.b16 %v3923
      %v4230 = vpack.c.b16 %v4215, %v4214
      %v4231 = vpack.c.b16 %v4217, %v4216
      %v4232 = vpack.c.b16 %v4219, %v4218
      %v4233 = vpack.c.b16 %v4221, %v4220
      %v4234 = vpack.c.b16 %v4223, %v4222
      %v4235 = vpack.c.b16 %v4225, %v4224
      %v4236 = vpack.c.b16 %v4227, %v4226
      %v4237 = vpack.c.b16 %v4229, %v4228
      %4246 = vmatprep.subr.bf16.mxu0 0
      %4247 = vmatpush1.bf16.msra.mxu0 %v4230
      %4248 = vmatprep.subr.bf16.mxu0 0
      %4249 = vmatpush1.bf16.msra.mxu0 %v4231
      %4250 = vmatprep.subr.bf16.mxu0 0
      %4251 = vmatpush1.bf16.msra.mxu0 %v4232
      %4252 = vmatprep.subr.bf16.mxu0 0
      %4253 = vmatpush1.bf16.msra.mxu0 %v4233
      %4254 = vmatprep.subr.bf16.mxu0 0
      %4255 = vmatpush1.bf16.msra.mxu0 %v4234
      %4256 = vmatprep.subr.bf16.mxu0 0
      %4257 = vmatpush1.bf16.msra.mxu0 %v4235
      %4258 = vmatprep.subr.bf16.mxu0 0
      %4259 = vmatpush1.bf16.msra.mxu0 %v4236
      %4260 = vmatprep.subr.bf16.mxu0 0
      %4261 = vmatpush1.bf16.msra.mxu0 %v4237
      %4262 = vmatprep.subr.bf16.mxu0 0
      %4263 = vmatpush1.bf16.msra.mxu0 0
      %4264 = vmatprep.subr.bf16.mxu0 0
      %4265 = vmatpush1.bf16.msra.mxu0 0
      %4266 = vmatprep.subr.bf16.mxu0 0
      %4267 = vmatpush1.bf16.msra.mxu0 0
      %4268 = vmatprep.subr.bf16.mxu0 0
      %4269 = vmatpush1.bf16.msra.mxu0 0
      %4270 = vmatprep.subr.bf16.mxu0 0
      %4271 = vmatpush1.bf16.msra.mxu0 0
      %4272 = vmatprep.subr.bf16.mxu0 0
      %4273 = vmatpush1.bf16.msra.mxu0 0
      %4274 = vmatprep.subr.bf16.mxu0 0
      %4275 = vmatpush1.bf16.msra.mxu0 0
      %4276 = vmatprep.subr.bf16.mxu0 0
      %4277 = vmatpush1.bf16.msra.mxu0 0
      %4278 = vmatprep.mubr.bf16.mxu0 0
      %4279 = vmatmul.mubr.bf16.gmra.mrb[0].mxu0 %v3892
      %v4280 = vpop.f32.mrb[0].mxu0
      %v4281 = vadd.f32 %v4072, %v4280
      %v4282 = vpop.f32.mrb[0].mxu0
      %v4283 = vpop.f32.mrb[0].mxu0
      %v4284 = vadd.f32 %v4075, %v4283
      %v4285 = vpop.f32.mrb[0].mxu0
      %4286 = vmatprep.mubr.bf16.mxu0 0
      %4287 = vmatmul.mubr.bf16.gmra.mrb[0].mxu0 %v3893
      %v4288 = vpop.f32.mrb[0].mxu0
      %v4289 = vadd.f32 %v4080, %v4288
      %v4290 = vpop.f32.mrb[0].mxu0
      %v4291 = vpop.f32.mrb[0].mxu0
      %v4292 = vadd.f32 %v4083, %v4291
      %v4293 = vpop.f32.mrb[0].mxu0
      %4294 = vmatprep.mubr.bf16.mxu0 0
      %4295 = vmatmul.mubr.bf16.gmra.mrb[0].mxu0 %v3894
      %v4296 = vpop.f32.mrb[0].mxu0
      %v4297 = vadd.f32 %v4088, %v4296
      %v4298 = vpop.f32.mrb[0].mxu0
      %v4299 = vpop.f32.mrb[0].mxu0
      %v4300 = vadd.f32 %v4091, %v4299
      %v4301 = vpop.f32.mrb[0].mxu0
      %4302 = vmatprep.mubr.bf16.mxu0 0
      %4303 = vmatmul.mubr.bf16.gmra.mrb[0].mxu0 %v3895
      %v4304 = vpop.f32.mrb[0].mxu0
      %v4305 = vadd.f32 %v4096, %v4304
      %v4306 = vpop.f32.mrb[0].mxu0
      %v4307 = vpop.f32.mrb[0].mxu0
      %v4308 = vadd.f32 %v4099, %v4307
      %v4309 = vpop.f32.mrb[0].mxu0
      %4310 = vmatprep.mubr.bf16.mxu0 0
      %4311 = vmatmul.mubr.bf16.gmra.mrb[0].mxu0 %v3896
      %v4312 = vpop.f32.mrb[0].mxu0
      %v4313 = vadd.f32 %v4104, %v4312
      %v4314 = vpop.f32.mrb[0].mxu0
      %v4315 = vpop.f32.mrb[0].mxu0
      %v4316 = vadd.f32 %v4107, %v4315
      %v4317 = vpop.f32.mrb[0].mxu0
      %4318 = vmatprep.mubr.bf16.mxu0 0
      %4319 = vmatmul.mubr.bf16.gmra.mrb[0].mxu0 %v3897
      %v4320 = vpop.f32.mrb[0].mxu0
      %v4321 = vadd.f32 %v4112, %v4320
      %v4322 = vpop.f32.mrb[0].mxu0
      %v4323 = vpop.f32.mrb[0].mxu0
      %v4324 = vadd.f32 %v4115, %v4323
      %v4325 = vpop.f32.mrb[0].mxu0
      %4326 = vmatprep.mubr.bf16.mxu0 0
      %4327 = vmatmul.mubr.bf16.gmra.mrb[0].mxu0 %v3898
      %v4328 = vpop.f32.mrb[0].mxu0
      %v4329 = vadd.f32 %v4120, %v4328
      %v4330 = vpop.f32.mrb[0].mxu0
      %v4331 = vpop.f32.mrb[0].mxu0
      %v4332 = vadd.f32 %v4123, %v4331
      %v4333 = vpop.f32.mrb[0].mxu0
      %4334 = vmatprep.mubr.bf16.mxu0 0
      %4335 = vmatmul.mubr.bf16.gmra.mrb[0].mxu0 %v3899
      %v4336 = vpop.f32.mrb[0].mxu0
      %v4337 = vadd.f32 %v4128, %v4336
      %v4338 = vpop.f32.mrb[0].mxu0
      %v4339 = vpop.f32.mrb[0].mxu0
      %v4340 = vadd.f32 %v4131, %v4339
      %v4341 = vpop.f32.mrb[0].mxu0
      %4342 = vmatprep.mubr.bf16.mxu0 0
      %4343 = vmatmul.mubr.bf16.gmra.mrb[0].mxu0 %v3900
      %v4344 = vpop.f32.mrb[0].mxu0
      %v4345 = vadd.f32 %v4136, %v4344
      %v4346 = vpop.f32.mrb[0].mxu0
      %v4347 = vpop.f32.mrb[0].mxu0
      %v4348 = vadd.f32 %v4139, %v4347
      %v4349 = vpop.f32.mrb[0].mxu0
      %4350 = vmatprep.mubr.bf16.mxu0 0
      %4351 = vmatmul.mubr.bf16.gmra.mrb[0].mxu0 %v3901
      %v4352 = vpop.f32.mrb[0].mxu0
      %v4353 = vadd.f32 %v4144, %v4352
      %v4354 = vpop.f32.mrb[0].mxu0
      %v4355 = vpop.f32.mrb[0].mxu0
      %v4356 = vadd.f32 %v4147, %v4355
      %v4357 = vpop.f32.mrb[0].mxu0
      %4358 = vmatprep.mubr.bf16.mxu0 0
      %4359 = vmatmul.mubr.bf16.gmra.mrb[0].mxu0 %v3902
      %v4360 = vpop.f32.mrb[0].mxu0
      %v4361 = vadd.f32 %v4152, %v4360
      %v4362 = vpop.f32.mrb[0].mxu0
      %v4363 = vpop.f32.mrb[0].mxu0
      %v4364 = vadd.f32 %v4155, %v4363
      %v4365 = vpop.f32.mrb[0].mxu0
      %4366 = vmatprep.mubr.bf16.mxu0 0
      %4367 = vmatmul.mubr.bf16.gmra.mrb[0].mxu0 %v3903
      %v4368 = vpop.f32.mrb[0].mxu0
      %v4369 = vadd.f32 %v4160, %v4368
      %v4370 = vpop.f32.mrb[0].mxu0
      %v4371 = vpop.f32.mrb[0].mxu0
      %v4372 = vadd.f32 %v4163, %v4371
      %v4373 = vpop.f32.mrb[0].mxu0
      %4374 = vmatprep.mubr.bf16.mxu0 0
      %4375 = vmatmul.mubr.bf16.gmra.mrb[0].mxu0 %v3904
      %v4376 = vpop.f32.mrb[0].mxu0
      %v4377 = vadd.f32 %v4168, %v4376
      %v4378 = vpop.f32.mrb[0].mxu0
      %v4379 = vpop.f32.mrb[0].mxu0
      %v4380 = vadd.f32 %v4171, %v4379
      %v4381 = vpop.f32.mrb[0].mxu0
      %4382 = vmatprep.mubr.bf16.mxu0 0
      %4383 = vmatmul.mubr.bf16.gmra.mrb[0].mxu0 %v3905
      %v4384 = vpop.f32.mrb[0].mxu0
      %v4385 = vadd.f32 %v4176, %v4384
      %v4386 = vpop.f32.mrb[0].mxu0
      %v4387 = vpop.f32.mrb[0].mxu0
      %v4388 = vadd.f32 %v4179, %v4387
      %v4389 = vpop.f32.mrb[0].mxu0
      %4390 = vmatprep.mubr.bf16.mxu0 0
      %4391 = vmatmul.mubr.bf16.gmra.mrb[0].mxu0 %v3906
      %v4392 = vpop.f32.mrb[0].mxu0
      %v4393 = vadd.f32 %v4184, %v4392
      %v4394 = vpop.f32.mrb[0].mxu0
      %v4395 = vpop.f32.mrb[0].mxu0
      %v4396 = vadd.f32 %v4187, %v4395
      %v4397 = vpop.f32.mrb[0].mxu0
      %4398 = vmatprep.mubr.bf16.mxu0 0
      %4399 = vmatmul.mubr.bf16.gmra.mrb[0].mxu0 %v3907
      %v4400 = vpop.f32.mrb[0].mxu0
      %v4401 = vadd.f32 %v4192, %v4400
      %v4402 = vpop.f32.mrb[0].mxu0
      %v4403 = vpop.f32.mrb[0].mxu0
      %v4404 = vadd.f32 %v4195, %v4403
      %v4405 = vpop.f32.mrb[0].mxu0
      %4406 = vdwg.mxu0
      %v4407 = vrot.slane %v3764, 1
      %v4408 = vrot.slane %v3765, 1
      %v4409 = vrot.slane %v3766, 1
      %v4410 = vrot.slane %v3767, 1
      %v4411 = vrot.slane %v3768, 1
      %v4412 = vrot.slane %v3769, 1
      %v4413 = vrot.slane %v3770, 1
      %v4414 = vrot.slane %v3771, 1
      %v4415 = vrot.slane %v3772, 1
      %v4416 = vrot.slane %v3773, 1
      %v4417 = vrot.slane %v3774, 1
      %v4418 = vrot.slane %v3775, 1
      %v4419 = vrot.slane %v3776, 1
      %v4420 = vrot.slane %v3777, 1
      %v4421 = vrot.slane %v3778, 1
      %v4422 = vrot.slane %v3779, 1
      %v4423 = vrot.slane %v3780, 1
      %v4424 = vrot.slane %v3781, 1
      %v4425 = vrot.slane %v3782, 1
      %v4426 = vrot.slane %v3783, 1
      %v4427 = vrot.slane %v3784, 1
      %v4428 = vrot.slane %v3785, 1
      %v4429 = vrot.slane %v3786, 1
      %v4430 = vrot.slane %v3787, 1
      %v4431 = vrot.slane %v3788, 1
      %v4432 = vrot.slane %v3789, 1
      %v4433 = vrot.slane %v3790, 1
      %v4434 = vrot.slane %v3791, 1
      %v4435 = vrot.slane %v3792, 1
      %v4436 = vrot.slane %v3793, 1
      %v4437 = vrot.slane %v3794, 1
      %v4438 = vrot.slane %v3795, 1
      %v4439 = vsel %vm1549, %v4437, %v4438
      %v4440 = vsel %vm1549, %v4436, %v4437
      %v4441 = vsel %vm1549, %v4435, %v4436
      %v4442 = vsel %vm1549, %v4434, %v4435
      %v4443 = vsel %vm1549, %v4433, %v4434
      %v4444 = vsel %vm1549, %v4432, %v4433
      %v4445 = vsel %vm1549, %v4431, %v4432
      %v4446 = vsel %vm1549, %v4430, %v4431
      %v4447 = vsel %vm1549, %v4429, %v4430
      %v4448 = vsel %vm1549, %v4428, %v4429
      %v4449 = vsel %vm1549, %v4427, %v4428
      %v4450 = vsel %vm1549, %v4426, %v4427
      %v4451 = vsel %vm1549, %v4425, %v4426
      %v4452 = vsel %vm1549, %v4424, %v4425
      %v4453 = vsel %vm1549, %v4423, %v4424
      %v4454 = vsel %vm1549, %v4422, %v4423
      %v4455 = vsel %vm1549, %v4421, %v4422
      %v4456 = vsel %vm1549, %v4420, %v4421
      %v4457 = vsel %vm1549, %v4419, %v4420
      %v4458 = vsel %vm1549, %v4418, %v4419
      %v4459 = vsel %vm1549, %v4417, %v4418
      %v4460 = vsel %vm1549, %v4416, %v4417
      %v4461 = vsel %vm1549, %v4415, %v4416
      %v4462 = vsel %vm1549, %v4414, %v4415
      %v4463 = vsel %vm1549, %v4413, %v4414
      %v4464 = vsel %vm1549, %v4412, %v4413
      %v4465 = vsel %vm1549, %v4411, %v4412
      %v4466 = vsel %vm1549, %v4410, %v4411
      %v4467 = vsel %vm1549, %v4409, %v4410
      %v4468 = vsel %vm1549, %v4408, %v4409
      %v4469 = vsel %vm1549, %v4407, %v4408
      %v4470 = vsel %vm1549, %v4438, %v4407
      %v4471 = vsel %vm808, %v4439, 0.0
      %v4472 = vsel %vm809, %v4470, 0.0
      %v4473 = vsel %vm810, %v4469, 0.0
      %v4474 = vsel %vm811, %v4468, 0.0
      %v4475 = vsel %vm812, %v4467, 0.0
      %v4476 = vsel %vm813, %v4466, 0.0
      %v4477 = vsel %vm814, %v4465, 0.0
      %v4478 = vsel %vm815, %v4464, 0.0
      %v4479 = vsel %vm816, %v4463, 0.0
      %v4480 = vsel %vm817, %v4462, 0.0
      %v4481 = vsel %vm818, %v4461, 0.0
      %v4482 = vsel %vm819, %v4460, 0.0
      %v4483 = vsel %vm820, %v4459, 0.0
      %v4484 = vsel %vm821, %v4458, 0.0
      %v4485 = vsel %vm822, %v4457, 0.0
      %v4486 = vsel %vm823, %v4456, 0.0
      %v4487 = vsel %vm824, %v4455, 0.0
      %v4488 = vsel %vm825, %v4454, 0.0
      %v4489 = vsel %vm826, %v4453, 0.0
      %v4490 = vsel %vm827, %v4452, 0.0
      %v4491 = vsel %vm828, %v4451, 0.0
      %v4492 = vsel %vm829, %v4450, 0.0
      %v4493 = vsel %vm830, %v4449, 0.0
      %v4494 = vsel %vm831, %v4448, 0.0
      %v4495 = vsel %vm832, %v4447, 0.0
      %v4496 = vsel %vm833, %v4446, 0.0
      %v4497 = vsel %vm834, %v4445, 0.0
      %v4498 = vsel %vm835, %v4444, 0.0
      %v4499 = vsel %vm836, %v4443, 0.0
      %v4500 = vsel %vm837, %v4442, 0.0
      %v4501 = vsel %vm838, %v4441, 0.0
      %v4502 = vsel %vm839, %v4440, 0.0
      %v4503 = vpack.c.bf16 %v4472, %v4471
      %v4504 = vpack.c.bf16 %v4474, %v4473
      %v4505 = vpack.c.bf16 %v4476, %v4475
      %v4506 = vpack.c.bf16 %v4478, %v4477
      %v4507 = vpack.c.bf16 %v4480, %v4479
      %v4508 = vpack.c.bf16 %v4482, %v4481
      %v4509 = vpack.c.bf16 %v4484, %v4483
      %v4510 = vpack.c.bf16 %v4486, %v4485
      %v4511 = vpack.c.bf16 %v4488, %v4487
      %v4512 = vpack.c.bf16 %v4490, %v4489
      %v4513 = vpack.c.bf16 %v4492, %v4491
      %v4514 = vpack.c.bf16 %v4494, %v4493
      %v4515 = vpack.c.bf16 %v4496, %v4495
      %v4516 = vpack.c.bf16 %v4498, %v4497
      %v4517 = vpack.c.bf16 %v4500, %v4499
      %v4518 = vpack.c.bf16 %v4502, %v4501
      %s4519 = scalar_lea.vmem %s2, 128
      %v4520 = vld [vmem:[%s4519] sm:$0xf]
      %v4521 = vld [vmem:[%s4519 + $0x4] sm:$0xf]
      %v4522 = vld [vmem:[%s4519 + $0x8] sm:$0xf]
      %v4523 = vld [vmem:[%s4519 + $0xc] sm:$0xf]
      %v4524 = vld [vmem:[%s4519 + $0x10] sm:$0xf]
      %v4525 = vld [vmem:[%s4519 + $0x14] sm:$0xf]
      %v4526 = vld [vmem:[%s4519 + $0x18] sm:$0xf]
      %v4527 = vld [vmem:[%s4519 + $0x1c] sm:$0xf]
      %v4528 = vld [vmem:[%s4519 + $0x20] sm:$0xf]
      %v4529 = vld [vmem:[%s4519 + $0x24] sm:$0xf]
      %v4530 = vld [vmem:[%s4519 + $0x28] sm:$0xf]
      %v4531 = vld [vmem:[%s4519 + $0x2c] sm:$0xf]
      %v4532 = vld [vmem:[%s4519 + $0x30] sm:$0xf]
      %v4533 = vld [vmem:[%s4519 + $0x34] sm:$0xf]
      %v4534 = vld [vmem:[%s4519 + $0x38] sm:$0xf]
      %v4535 = vld [vmem:[%s4519 + $0x3c] sm:$0xf]
      %v4552 = vunpack.c.l.b16 %v4520
      %v4553 = vunpack.c.l.b16 %v4521
      %v4554 = vunpack.c.l.b16 %v4522
      %v4555 = vunpack.c.l.b16 %v4523
      %v4556 = vunpack.c.l.b16 %v4524
      %v4557 = vunpack.c.l.b16 %v4525
      %v4558 = vunpack.c.l.b16 %v4526
      %v4559 = vunpack.c.l.b16 %v4527
      %v4560 = vunpack.c.l.b16 %v4528
      %v4561 = vunpack.c.l.b16 %v4529
      %v4562 = vunpack.c.l.b16 %v4530
      %v4563 = vunpack.c.l.b16 %v4531
      %v4564 = vunpack.c.l.b16 %v4532
      %v4565 = vunpack.c.l.b16 %v4533
      %v4566 = vunpack.c.l.b16 %v4534
      %v4567 = vunpack.c.l.b16 %v4535
      %v4568 = vpack.c.b16 %v4553, %v4552
      %v4569 = vpack.c.b16 %v4555, %v4554
      %v4570 = vpack.c.b16 %v4557, %v4556
      %v4571 = vpack.c.b16 %v4559, %v4558
      %v4572 = vpack.c.b16 %v4561, %v4560
      %v4573 = vpack.c.b16 %v4563, %v4562
      %v4574 = vpack.c.b16 %v4565, %v4564
      %v4575 = vpack.c.b16 %v4567, %v4566
      %4584 = vmatprep.subr.bf16.mxu0 0
      %4585 = vmatpush1.bf16.msra.mxu0 %v4568
      %4586 = vmatprep.subr.bf16.mxu0 0
      %4587 = vmatpush1.bf16.msra.mxu0 %v4569
      %4588 = vmatprep.subr.bf16.mxu0 0
      %4589 = vmatpush1.bf16.msra.mxu0 %v4570
      %4590 = vmatprep.subr.bf16.mxu0 0
      %4591 = vmatpush1.bf16.msra.mxu0 %v4571
      %4592 = vmatprep.subr.bf16.mxu0 0
      %4593 = vmatpush1.bf16.msra.mxu0 %v4572
      %4594 = vmatprep.subr.bf16.mxu0 0
      %4595 = vmatpush1.bf16.msra.mxu0 %v4573
      %4596 = vmatprep.subr.bf16.mxu0 0
      %4597 = vmatpush1.bf16.msra.mxu0 %v4574
      %4598 = vmatprep.subr.bf16.mxu0 0
      %4599 = vmatpush1.bf16.msra.mxu0 %v4575
      %4600 = vmatprep.subr.bf16.mxu0 0
      %4601 = vmatpush1.bf16.msra.mxu0 0
      %4602 = vmatprep.subr.bf16.mxu0 0
      %4603 = vmatpush1.bf16.msra.mxu0 0
      %4604 = vmatprep.subr.bf16.mxu0 0
      %4605 = vmatpush1.bf16.msra.mxu0 0
      %4606 = vmatprep.subr.bf16.mxu0 0
      %4607 = vmatpush1.bf16.msra.mxu0 0
      %4608 = vmatprep.subr.bf16.mxu0 0
      %4609 = vmatpush1.bf16.msra.mxu0 0
      %4610 = vmatprep.subr.bf16.mxu0 0
      %4611 = vmatpush1.bf16.msra.mxu0 0
      %4612 = vmatprep.subr.bf16.mxu0 0
      %4613 = vmatpush1.bf16.msra.mxu0 0
      %4614 = vmatprep.subr.bf16.mxu0 0
      %4615 = vmatpush1.bf16.msra.mxu0 0
      %4616 = vmatprep.mubr.bf16.mxu0 0
      %4617 = vmatmul.mubr.bf16.gmra.mrb[0].mxu0 %v4503
      %v4618 = vpop.f32.mrb[0].mxu0
      %v4619 = vadd.f32 0.0, %v4618
      %v4620 = vpop.f32.mrb[0].mxu0
      %v4621 = vpop.f32.mrb[0].mxu0
      %v4622 = vadd.f32 0.0, %v4621
      %v4623 = vpop.f32.mrb[0].mxu0
      %4624 = vmatprep.mubr.bf16.mxu0 0
      %4625 = vmatmul.mubr.bf16.gmra.mrb[0].mxu0 %v4504
      %v4626 = vpop.f32.mrb[0].mxu0
      %v4627 = vadd.f32 0.0, %v4626
      %v4628 = vpop.f32.mrb[0].mxu0
      %v4629 = vpop.f32.mrb[0].mxu0
      %v4630 = vadd.f32 0.0, %v4629
      %v4631 = vpop.f32.mrb[0].mxu0
      %4632 = vmatprep.mubr.bf16.mxu0 0
      %4633 = vmatmul.mubr.bf16.gmra.mrb[0].mxu0 %v4505
      %v4634 = vpop.f32.mrb[0].mxu0
      %v4635 = vadd.f32 0.0, %v4634
      %v4636 = vpop.f32.mrb[0].mxu0
      %v4637 = vpop.f32.mrb[0].mxu0
      %v4638 = vadd.f32 0.0, %v4637
      %v4639 = vpop.f32.mrb[0].mxu0
      %4640 = vmatprep.mubr.bf16.mxu0 0
      %4641 = vmatmul.mubr.bf16.gmra.mrb[0].mxu0 %v4506
      %v4642 = vpop.f32.mrb[0].mxu0
      %v4643 = vadd.f32 0.0, %v4642
      %v4644 = vpop.f32.mrb[0].mxu0
      %v4645 = vpop.f32.mrb[0].mxu0
      %v4646 = vadd.f32 0.0, %v4645
      %v4647 = vpop.f32.mrb[0].mxu0
      %4648 = vmatprep.mubr.bf16.mxu0 0
      %4649 = vmatmul.mubr.bf16.gmra.mrb[0].mxu0 %v4507
      %v4650 = vpop.f32.mrb[0].mxu0
      %v4651 = vadd.f32 0.0, %v4650
      %v4652 = vpop.f32.mrb[0].mxu0
      %v4653 = vpop.f32.mrb[0].mxu0
      %v4654 = vadd.f32 0.0, %v4653
      %v4655 = vpop.f32.mrb[0].mxu0
      %4656 = vmatprep.mubr.bf16.mxu0 0
      %4657 = vmatmul.mubr.bf16.gmra.mrb[0].mxu0 %v4508
      %v4658 = vpop.f32.mrb[0].mxu0
      %v4659 = vadd.f32 0.0, %v4658
      %v4660 = vpop.f32.mrb[0].mxu0
      %v4661 = vpop.f32.mrb[0].mxu0
      %v4662 = vadd.f32 0.0, %v4661
      %v4663 = vpop.f32.mrb[0].mxu0
      %4664 = vmatprep.mubr.bf16.mxu0 0
      %4665 = vmatmul.mubr.bf16.gmra.mrb[0].mxu0 %v4509
      %v4666 = vpop.f32.mrb[0].mxu0
      %v4667 = vadd.f32 0.0, %v4666
      %v4668 = vpop.f32.mrb[0].mxu0
      %v4669 = vpop.f32.mrb[0].mxu0
      %v4670 = vadd.f32 0.0, %v4669
      %v4671 = vpop.f32.mrb[0].mxu0
      %4672 = vmatprep.mubr.bf16.mxu0 0
      %4673 = vmatmul.mubr.bf16.gmra.mrb[0].mxu0 %v4510
      %v4674 = vpop.f32.mrb[0].mxu0
      %v4675 = vadd.f32 0.0, %v4674
      %v4676 = vpop.f32.mrb[0].mxu0
      %v4677 = vpop.f32.mrb[0].mxu0
      %v4678 = vadd.f32 0.0, %v4677
      %v4679 = vpop.f32.mrb[0].mxu0
      %4680 = vmatprep.mubr.bf16.mxu0 0
      %4681 = vmatmul.mubr.bf16.gmra.mrb[0].mxu0 %v4511
      %v4682 = vpop.f32.mrb[0].mxu0
      %v4683 = vadd.f32 0.0, %v4682
      %v4684 = vpop.f32.mrb[0].mxu0
      %v4685 = vpop.f32.mrb[0].mxu0
      %v4686 = vadd.f32 0.0, %v4685
      %v4687 = vpop.f32.mrb[0].mxu0
      %4688 = vmatprep.mubr.bf16.mxu0 0
      %4689 = vmatmul.mubr.bf16.gmra.mrb[0].mxu0 %v4512
      %v4690 = vpop.f32.mrb[0].mxu0
      %v4691 = vadd.f32 0.0, %v4690
      %v4692 = vpop.f32.mrb[0].mxu0
      %v4693 = vpop.f32.mrb[0].mxu0
      %v4694 = vadd.f32 0.0, %v4693
      %v4695 = vpop.f32.mrb[0].mxu0
      %4696 = vmatprep.mubr.bf16.mxu0 0
      %4697 = vmatmul.mubr.bf16.gmra.mrb[0].mxu0 %v4513
      %v4698 = vpop.f32.mrb[0].mxu0
      %v4699 = vadd.f32 0.0, %v4698
      %v4700 = vpop.f32.mrb[0].mxu0
      %v4701 = vpop.f32.mrb[0].mxu0
      %v4702 = vadd.f32 0.0, %v4701
      %v4703 = vpop.f32.mrb[0].mxu0
      %4704 = vmatprep.mubr.bf16.mxu0 0
      %4705 = vmatmul.mubr.bf16.gmra.mrb[0].mxu0 %v4514
      %v4706 = vpop.f32.mrb[0].mxu0
      %v4707 = vadd.f32 0.0, %v4706
      %v4708 = vpop.f32.mrb[0].mxu0
      %v4709 = vpop.f32.mrb[0].mxu0
      %v4710 = vadd.f32 0.0, %v4709
      %v4711 = vpop.f32.mrb[0].mxu0
      %4712 = vmatprep.mubr.bf16.mxu0 0
      %4713 = vmatmul.mubr.bf16.gmra.mrb[0].mxu0 %v4515
      %v4714 = vpop.f32.mrb[0].mxu0
      %v4715 = vadd.f32 0.0, %v4714
      %v4716 = vpop.f32.mrb[0].mxu0
      %v4717 = vpop.f32.mrb[0].mxu0
      %v4718 = vadd.f32 0.0, %v4717
      %v4719 = vpop.f32.mrb[0].mxu0
      %4720 = vmatprep.mubr.bf16.mxu0 0
      %4721 = vmatmul.mubr.bf16.gmra.mrb[0].mxu0 %v4516
      %v4722 = vpop.f32.mrb[0].mxu0
      %v4723 = vadd.f32 0.0, %v4722
      %v4724 = vpop.f32.mrb[0].mxu0
      %v4725 = vpop.f32.mrb[0].mxu0
      %v4726 = vadd.f32 0.0, %v4725
      %v4727 = vpop.f32.mrb[0].mxu0
      %4728 = vmatprep.mubr.bf16.mxu0 0
      %4729 = vmatmul.mubr.bf16.gmra.mrb[0].mxu0 %v4517
      %v4730 = vpop.f32.mrb[0].mxu0
      %v4731 = vadd.f32 0.0, %v4730
      %v4732 = vpop.f32.mrb[0].mxu0
      %v4733 = vpop.f32.mrb[0].mxu0
      %v4734 = vadd.f32 0.0, %v4733
      %v4735 = vpop.f32.mrb[0].mxu0
      %4736 = vmatprep.mubr.bf16.mxu0 0
      %4737 = vmatmul.mubr.bf16.gmra.mrb[0].mxu0 %v4518
      %v4738 = vpop.f32.mrb[0].mxu0
      %v4739 = vadd.f32 0.0, %v4738
      %v4740 = vpop.f32.mrb[0].mxu0
      %v4741 = vpop.f32.mrb[0].mxu0
      %v4742 = vadd.f32 0.0, %v4741
      %v4743 = vpop.f32.mrb[0].mxu0
      %4744 = vdwg.mxu0
      %v4745 = vadd.f32 %v4281, %v4619
      %v4746 = vadd.f32 %v4284, %v4622
      %v4747 = vadd.f32 %v4289, %v4627
      %v4748 = vadd.f32 %v4292, %v4630
      %v4749 = vadd.f32 %v4297, %v4635
      %v4750 = vadd.f32 %v4300, %v4638
      %v4751 = vadd.f32 %v4305, %v4643
      %v4752 = vadd.f32 %v4308, %v4646
      %v4753 = vadd.f32 %v4313, %v4651
      %v4754 = vadd.f32 %v4316, %v4654
      %v4755 = vadd.f32 %v4321, %v4659
      %v4756 = vadd.f32 %v4324, %v4662
      %v4757 = vadd.f32 %v4329, %v4667
      %v4758 = vadd.f32 %v4332, %v4670
      %v4759 = vadd.f32 %v4337, %v4675
      %v4760 = vadd.f32 %v4340, %v4678
      %v4761 = vadd.f32 %v4345, %v4683
      %v4762 = vadd.f32 %v4348, %v4686
      %v4763 = vadd.f32 %v4353, %v4691
      %v4764 = vadd.f32 %v4356, %v4694
      %v4765 = vadd.f32 %v4361, %v4699
      %v4766 = vadd.f32 %v4364, %v4702
      %v4767 = vadd.f32 %v4369, %v4707
      %v4768 = vadd.f32 %v4372, %v4710
      %v4769 = vadd.f32 %v4377, %v4715
      %v4770 = vadd.f32 %v4380, %v4718
      %v4771 = vadd.f32 %v4385, %v4723
      %v4772 = vadd.f32 %v4388, %v4726
      %v4773 = vadd.f32 %v4393, %v4731
      %v4774 = vadd.f32 %v4396, %v4734
      %v4775 = vadd.f32 %v4401, %v4739
      %v4776 = vadd.f32 %v4404, %v4742
      %v4777 = vsel %vm712, %v3859, 0.0
      %v4778 = vsel %vm713, %v3858, 0.0
      %v4779 = vsel %vm714, %v3857, 0.0
      %v4780 = vsel %vm715, %v3856, 0.0
      %v4781 = vsel %vm716, %v3855, 0.0
      %v4782 = vsel %vm717, %v3854, 0.0
      %v4783 = vsel %vm718, %v3853, 0.0
      %v4784 = vsel %vm719, %v3852, 0.0
      %v4785 = vsel %vm720, %v3851, 0.0
      %v4786 = vsel %vm721, %v3850, 0.0
      %v4787 = vsel %vm722, %v3849, 0.0
      %v4788 = vsel %vm723, %v3848, 0.0
      %v4789 = vsel %vm724, %v3847, 0.0
      %v4790 = vsel %vm725, %v3846, 0.0
      %v4791 = vsel %vm726, %v3845, 0.0
      %v4792 = vsel %vm727, %v3844, 0.0
      %v4793 = vsel %vm728, %v3843, 0.0
      %v4794 = vsel %vm729, %v3842, 0.0
      %v4795 = vsel %vm730, %v3841, 0.0
      %v4796 = vsel %vm731, %v3840, 0.0
      %v4797 = vsel %vm732, %v3839, 0.0
      %v4798 = vsel %vm733, %v3838, 0.0
      %v4799 = vsel %vm734, %v3837, 0.0
      %v4800 = vsel %vm735, %v3836, 0.0
      %v4801 = vsel %vm736, %v3835, 0.0
      %v4802 = vsel %vm737, %v3834, 0.0
      %v4803 = vsel %vm738, %v3833, 0.0
      %v4804 = vsel %vm739, %v3832, 0.0
      %v4805 = vsel %vm740, %v3831, 0.0
      %v4806 = vsel %vm741, %v3830, 0.0
      %v4807 = vsel %vm742, %v3829, 0.0
      %v4808 = vsel %vm743, %v3828, 0.0
      %v4809 = vpack.c.bf16 %v4778, %v4777
      %v4810 = vpack.c.bf16 %v4780, %v4779
      %v4811 = vpack.c.bf16 %v4782, %v4781
      %v4812 = vpack.c.bf16 %v4784, %v4783
      %v4813 = vpack.c.bf16 %v4786, %v4785
      %v4814 = vpack.c.bf16 %v4788, %v4787
      %v4815 = vpack.c.bf16 %v4790, %v4789
      %v4816 = vpack.c.bf16 %v4792, %v4791
      %v4817 = vpack.c.bf16 %v4794, %v4793
      %v4818 = vpack.c.bf16 %v4796, %v4795
      %v4819 = vpack.c.bf16 %v4798, %v4797
      %v4820 = vpack.c.bf16 %v4800, %v4799
      %v4821 = vpack.c.bf16 %v4802, %v4801
      %v4822 = vpack.c.bf16 %v4804, %v4803
      %v4823 = vpack.c.bf16 %v4806, %v4805
      %v4824 = vpack.c.bf16 %v4808, %v4807
      %s4825 = scalar_lea.vmem %s2, 192
      %v4826 = vld [vmem:[%s4825] sm:$0xf]
      %v4827 = vld [vmem:[%s4825 + $0x4] sm:$0xf]
      %v4828 = vld [vmem:[%s4825 + $0x8] sm:$0xf]
      %v4829 = vld [vmem:[%s4825 + $0xc] sm:$0xf]
      %v4830 = vld [vmem:[%s4825 + $0x10] sm:$0xf]
      %v4831 = vld [vmem:[%s4825 + $0x14] sm:$0xf]
      %v4832 = vld [vmem:[%s4825 + $0x18] sm:$0xf]
      %v4833 = vld [vmem:[%s4825 + $0x1c] sm:$0xf]
      %v4834 = vld [vmem:[%s4825 + $0x20] sm:$0xf]
      %v4835 = vld [vmem:[%s4825 + $0x24] sm:$0xf]
      %v4836 = vld [vmem:[%s4825 + $0x28] sm:$0xf]
      %v4837 = vld [vmem:[%s4825 + $0x2c] sm:$0xf]
      %v4838 = vld [vmem:[%s4825 + $0x30] sm:$0xf]
      %v4839 = vld [vmem:[%s4825 + $0x34] sm:$0xf]
      %v4840 = vld [vmem:[%s4825 + $0x38] sm:$0xf]
      %v4841 = vld [vmem:[%s4825 + $0x3c] sm:$0xf]
      %v4858 = vunpack.c.l.b16 %v4826
      %v4859 = vunpack.c.l.b16 %v4827
      %v4860 = vunpack.c.l.b16 %v4828
      %v4861 = vunpack.c.l.b16 %v4829
      %v4862 = vunpack.c.l.b16 %v4830
      %v4863 = vunpack.c.l.b16 %v4831
      %v4864 = vunpack.c.l.b16 %v4832
      %v4865 = vunpack.c.l.b16 %v4833
      %v4866 = vunpack.c.l.b16 %v4834
      %v4867 = vunpack.c.l.b16 %v4835
      %v4868 = vunpack.c.l.b16 %v4836
      %v4869 = vunpack.c.l.b16 %v4837
      %v4870 = vunpack.c.l.b16 %v4838
      %v4871 = vunpack.c.l.b16 %v4839
      %v4872 = vunpack.c.l.b16 %v4840
      %v4873 = vunpack.c.l.b16 %v4841
      %v4874 = vpack.c.b16 %v4859, %v4858
      %v4875 = vpack.c.b16 %v4861, %v4860
      %v4876 = vpack.c.b16 %v4863, %v4862
      %v4877 = vpack.c.b16 %v4865, %v4864
      %v4878 = vpack.c.b16 %v4867, %v4866
      %v4879 = vpack.c.b16 %v4869, %v4868
      %v4880 = vpack.c.b16 %v4871, %v4870
      %v4881 = vpack.c.b16 %v4873, %v4872
      %4890 = vmatprep.subr.bf16.mxu0 0
      %4891 = vmatpush1.bf16.msra.mxu0 %v4874
      %4892 = vmatprep.subr.bf16.mxu0 0
      %4893 = vmatpush1.bf16.msra.mxu0 %v4875
      %4894 = vmatprep.subr.bf16.mxu0 0
      %4895 = vmatpush1.bf16.msra.mxu0 %v4876
      %4896 = vmatprep.subr.bf16.mxu0 0
      %4897 = vmatpush1.bf16.msra.mxu0 %v4877
      %4898 = vmatprep.subr.bf16.mxu0 0
      %4899 = vmatpush1.bf16.msra.mxu0 %v4878
      %4900 = vmatprep.subr.bf16.mxu0 0
      %4901 = vmatpush1.bf16.msra.mxu0 %v4879
      %4902 = vmatprep.subr.bf16.mxu0 0
      %4903 = vmatpush1.bf16.msra.mxu0 %v4880
      %4904 = vmatprep.subr.bf16.mxu0 0
      %4905 = vmatpush1.bf16.msra.mxu0 %v4881
      %4906 = vmatprep.subr.bf16.mxu0 0
      %4907 = vmatpush1.bf16.msra.mxu0 0
      %4908 = vmatprep.subr.bf16.mxu0 0
      %4909 = vmatpush1.bf16.msra.mxu0 0
      %4910 = vmatprep.subr.bf16.mxu0 0
      %4911 = vmatpush1.bf16.msra.mxu0 0
      %4912 = vmatprep.subr.bf16.mxu0 0
      %4913 = vmatpush1.bf16.msra.mxu0 0
      %4914 = vmatprep.subr.bf16.mxu0 0
      %4915 = vmatpush1.bf16.msra.mxu0 0
      %4916 = vmatprep.subr.bf16.mxu0 0
      %4917 = vmatpush1.bf16.msra.mxu0 0
      %4918 = vmatprep.subr.bf16.mxu0 0
      %4919 = vmatpush1.bf16.msra.mxu0 0
      %4920 = vmatprep.subr.bf16.mxu0 0
      %4921 = vmatpush1.bf16.msra.mxu0 0
      %4922 = vmatprep.mubr.bf16.mxu0 0
      %4923 = vmatmul.mubr.bf16.gmra.mrb[0].mxu0 %v4809
      %v4924 = vpop.f32.mrb[0].mxu0
      %v4925 = vadd.f32 0.0, %v4924
      %v4926 = vpop.f32.mrb[0].mxu0
      %v4927 = vpop.f32.mrb[0].mxu0
      %v4928 = vadd.f32 0.0, %v4927
      %v4929 = vpop.f32.mrb[0].mxu0
      %4930 = vmatprep.mubr.bf16.mxu0 0
      %4931 = vmatmul.mubr.bf16.gmra.mrb[0].mxu0 %v4810
      %v4932 = vpop.f32.mrb[0].mxu0
      %v4933 = vadd.f32 0.0, %v4932
      %v4934 = vpop.f32.mrb[0].mxu0
      %v4935 = vpop.f32.mrb[0].mxu0
      %v4936 = vadd.f32 0.0, %v4935
      %v4937 = vpop.f32.mrb[0].mxu0
      %4938 = vmatprep.mubr.bf16.mxu0 0
      %4939 = vmatmul.mubr.bf16.gmra.mrb[0].mxu0 %v4811
      %v4940 = vpop.f32.mrb[0].mxu0
      %v4941 = vadd.f32 0.0, %v4940
      %v4942 = vpop.f32.mrb[0].mxu0
      %v4943 = vpop.f32.mrb[0].mxu0
      %v4944 = vadd.f32 0.0, %v4943
      %v4945 = vpop.f32.mrb[0].mxu0
      %4946 = vmatprep.mubr.bf16.mxu0 0
      %4947 = vmatmul.mubr.bf16.gmra.mrb[0].mxu0 %v4812
      %v4948 = vpop.f32.mrb[0].mxu0
      %v4949 = vadd.f32 0.0, %v4948
      %v4950 = vpop.f32.mrb[0].mxu0
      %v4951 = vpop.f32.mrb[0].mxu0
      %v4952 = vadd.f32 0.0, %v4951
      %v4953 = vpop.f32.mrb[0].mxu0
      %4954 = vmatprep.mubr.bf16.mxu0 0
      %4955 = vmatmul.mubr.bf16.gmra.mrb[0].mxu0 %v4813
      %v4956 = vpop.f32.mrb[0].mxu0
      %v4957 = vadd.f32 0.0, %v4956
      %v4958 = vpop.f32.mrb[0].mxu0
      %v4959 = vpop.f32.mrb[0].mxu0
      %v4960 = vadd.f32 0.0, %v4959
      %v4961 = vpop.f32.mrb[0].mxu0
      %4962 = vmatprep.mubr.bf16.mxu0 0
      %4963 = vmatmul.mubr.bf16.gmra.mrb[0].mxu0 %v4814
      %v4964 = vpop.f32.mrb[0].mxu0
      %v4965 = vadd.f32 0.0, %v4964
      %v4966 = vpop.f32.mrb[0].mxu0
      %v4967 = vpop.f32.mrb[0].mxu0
      %v4968 = vadd.f32 0.0, %v4967
      %v4969 = vpop.f32.mrb[0].mxu0
      %4970 = vmatprep.mubr.bf16.mxu0 0
      %4971 = vmatmul.mubr.bf16.gmra.mrb[0].mxu0 %v4815
      %v4972 = vpop.f32.mrb[0].mxu0
      %v4973 = vadd.f32 0.0, %v4972
      %v4974 = vpop.f32.mrb[0].mxu0
      %v4975 = vpop.f32.mrb[0].mxu0
      %v4976 = vadd.f32 0.0, %v4975
      %v4977 = vpop.f32.mrb[0].mxu0
      %4978 = vmatprep.mubr.bf16.mxu0 0
      %4979 = vmatmul.mubr.bf16.gmra.mrb[0].mxu0 %v4816
      %v4980 = vpop.f32.mrb[0].mxu0
      %v4981 = vadd.f32 0.0, %v4980
      %v4982 = vpop.f32.mrb[0].mxu0
      %v4983 = vpop.f32.mrb[0].mxu0
      %v4984 = vadd.f32 0.0, %v4983
      %v4985 = vpop.f32.mrb[0].mxu0
      %4986 = vmatprep.mubr.bf16.mxu0 0
      %4987 = vmatmul.mubr.bf16.gmra.mrb[0].mxu0 %v4817
      %v4988 = vpop.f32.mrb[0].mxu0
      %v4989 = vadd.f32 0.0, %v4988
      %v4990 = vpop.f32.mrb[0].mxu0
      %v4991 = vpop.f32.mrb[0].mxu0
      %v4992 = vadd.f32 0.0, %v4991
      %v4993 = vpop.f32.mrb[0].mxu0
      %4994 = vmatprep.mubr.bf16.mxu0 0
      %4995 = vmatmul.mubr.bf16.gmra.mrb[0].mxu0 %v4818
      %v4996 = vpop.f32.mrb[0].mxu0
      %v4997 = vadd.f32 0.0, %v4996
      %v4998 = vpop.f32.mrb[0].mxu0
      %v4999 = vpop.f32.mrb[0].mxu0
      %v5000 = vadd.f32 0.0, %v4999
      %v5001 = vpop.f32.mrb[0].mxu0
      %5002 = vmatprep.mubr.bf16.mxu0 0
      %5003 = vmatmul.mubr.bf16.gmra.mrb[0].mxu0 %v4819
      %v5004 = vpop.f32.mrb[0].mxu0
      %v5005 = vadd.f32 0.0, %v5004
      %v5006 = vpop.f32.mrb[0].mxu0
      %v5007 = vpop.f32.mrb[0].mxu0
      %v5008 = vadd.f32 0.0, %v5007
      %v5009 = vpop.f32.mrb[0].mxu0
      %5010 = vmatprep.mubr.bf16.mxu0 0
      %5011 = vmatmul.mubr.bf16.gmra.mrb[0].mxu0 %v4820
      %v5012 = vpop.f32.mrb[0].mxu0
      %v5013 = vadd.f32 0.0, %v5012
      %v5014 = vpop.f32.mrb[0].mxu0
      %v5015 = vpop.f32.mrb[0].mxu0
      %v5016 = vadd.f32 0.0, %v5015
      %v5017 = vpop.f32.mrb[0].mxu0
      %5018 = vmatprep.mubr.bf16.mxu0 0
      %5019 = vmatmul.mubr.bf16.gmra.mrb[0].mxu0 %v4821
      %v5020 = vpop.f32.mrb[0].mxu0
      %v5021 = vadd.f32 0.0, %v5020
      %v5022 = vpop.f32.mrb[0].mxu0
      %v5023 = vpop.f32.mrb[0].mxu0
      %v5024 = vadd.f32 0.0, %v5023
      %v5025 = vpop.f32.mrb[0].mxu0
      %5026 = vmatprep.mubr.bf16.mxu0 0
      %5027 = vmatmul.mubr.bf16.gmra.mrb[0].mxu0 %v4822
      %v5028 = vpop.f32.mrb[0].mxu0
      %v5029 = vadd.f32 0.0, %v5028
      %v5030 = vpop.f32.mrb[0].mxu0
      %v5031 = vpop.f32.mrb[0].mxu0
      %v5032 = vadd.f32 0.0, %v5031
      %v5033 = vpop.f32.mrb[0].mxu0
      %5034 = vmatprep.mubr.bf16.mxu0 0
      %5035 = vmatmul.mubr.bf16.gmra.mrb[0].mxu0 %v4823
      %v5036 = vpop.f32.mrb[0].mxu0
      %v5037 = vadd.f32 0.0, %v5036
      %v5038 = vpop.f32.mrb[0].mxu0
      %v5039 = vpop.f32.mrb[0].mxu0
      %v5040 = vadd.f32 0.0, %v5039
      %v5041 = vpop.f32.mrb[0].mxu0
      %5042 = vmatprep.mubr.bf16.mxu0 0
      %5043 = vmatmul.mubr.bf16.gmra.mrb[0].mxu0 %v4824
      %v5044 = vpop.f32.mrb[0].mxu0
      %v5045 = vadd.f32 0.0, %v5044
      %v5046 = vpop.f32.mrb[0].mxu0
      %v5047 = vpop.f32.mrb[0].mxu0
      %v5048 = vadd.f32 0.0, %v5047
      %v5049 = vpop.f32.mrb[0].mxu0
      %5050 = vdwg.mxu0
      %v5051 = vadd.f32 %v4745, %v4925
      %v5052 = vadd.f32 %v4746, %v4928
      %v5053 = vadd.f32 %v4747, %v4933
      %v5054 = vadd.f32 %v4748, %v4936
      %v5055 = vadd.f32 %v4749, %v4941
      %v5056 = vadd.f32 %v4750, %v4944
      %v5057 = vadd.f32 %v4751, %v4949
      %v5058 = vadd.f32 %v4752, %v4952
      %v5059 = vadd.f32 %v4753, %v4957
      %v5060 = vadd.f32 %v4754, %v4960
      %v5061 = vadd.f32 %v4755, %v4965
      %v5062 = vadd.f32 %v4756, %v4968
      %v5063 = vadd.f32 %v4757, %v4973
      %v5064 = vadd.f32 %v4758, %v4976
      %v5065 = vadd.f32 %v4759, %v4981
      %v5066 = vadd.f32 %v4760, %v4984
      %v5067 = vadd.f32 %v4761, %v4989
      %v5068 = vadd.f32 %v4762, %v4992
      %v5069 = vadd.f32 %v4763, %v4997
      %v5070 = vadd.f32 %v4764, %v5000
      %v5071 = vadd.f32 %v4765, %v5005
      %v5072 = vadd.f32 %v4766, %v5008
      %v5073 = vadd.f32 %v4767, %v5013
      %v5074 = vadd.f32 %v4768, %v5016
      %v5075 = vadd.f32 %v4769, %v5021
      %v5076 = vadd.f32 %v4770, %v5024
      %v5077 = vadd.f32 %v4771, %v5029
      %v5078 = vadd.f32 %v4772, %v5032
      %v5079 = vadd.f32 %v4773, %v5037
      %v5080 = vadd.f32 %v4774, %v5040
      %v5081 = vadd.f32 %v4775, %v5045
      %v5082 = vadd.f32 %v4776, %v5048
      %v5083 = vpack.c.bf16 %v3765, %v3764
      %v5084 = vpack.c.bf16 %v3767, %v3766
      %v5085 = vpack.c.bf16 %v3769, %v3768
      %v5086 = vpack.c.bf16 %v3771, %v3770
      %v5087 = vpack.c.bf16 %v3773, %v3772
      %v5088 = vpack.c.bf16 %v3775, %v3774
      %v5089 = vpack.c.bf16 %v3777, %v3776
      %v5090 = vpack.c.bf16 %v3779, %v3778
      %v5091 = vpack.c.bf16 %v3781, %v3780
      %v5092 = vpack.c.bf16 %v3783, %v3782
      %v5093 = vpack.c.bf16 %v3785, %v3784
      %v5094 = vpack.c.bf16 %v3787, %v3786
      %v5095 = vpack.c.bf16 %v3789, %v3788
      %v5096 = vpack.c.bf16 %v3791, %v3790
      %v5097 = vpack.c.bf16 %v3793, %v3792
      %v5098 = vpack.c.bf16 %v3795, %v3794
      %s5099 = scalar_lea.vmem %s2, 256
      %v5100 = vld [vmem:[%s5099] sm:$0xf]
      %v5101 = vld [vmem:[%s5099 + $0x4] sm:$0xf]
      %v5102 = vld [vmem:[%s5099 + $0x8] sm:$0xf]
      %v5103 = vld [vmem:[%s5099 + $0xc] sm:$0xf]
      %v5104 = vld [vmem:[%s5099 + $0x10] sm:$0xf]
      %v5105 = vld [vmem:[%s5099 + $0x14] sm:$0xf]
      %v5106 = vld [vmem:[%s5099 + $0x18] sm:$0xf]
      %v5107 = vld [vmem:[%s5099 + $0x1c] sm:$0xf]
      %v5108 = vld [vmem:[%s5099 + $0x20] sm:$0xf]
      %v5109 = vld [vmem:[%s5099 + $0x24] sm:$0xf]
      %v5110 = vld [vmem:[%s5099 + $0x28] sm:$0xf]
      %v5111 = vld [vmem:[%s5099 + $0x2c] sm:$0xf]
      %v5112 = vld [vmem:[%s5099 + $0x30] sm:$0xf]
      %v5113 = vld [vmem:[%s5099 + $0x34] sm:$0xf]
      %v5114 = vld [vmem:[%s5099 + $0x38] sm:$0xf]
      %v5115 = vld [vmem:[%s5099 + $0x3c] sm:$0xf]
      %v5132 = vunpack.c.l.b16 %v5100
      %v5133 = vunpack.c.l.b16 %v5101
      %v5134 = vunpack.c.l.b16 %v5102
      %v5135 = vunpack.c.l.b16 %v5103
      %v5136 = vunpack.c.l.b16 %v5104
      %v5137 = vunpack.c.l.b16 %v5105
      %v5138 = vunpack.c.l.b16 %v5106
      %v5139 = vunpack.c.l.b16 %v5107
      %v5140 = vunpack.c.l.b16 %v5108
      %v5141 = vunpack.c.l.b16 %v5109
      %v5142 = vunpack.c.l.b16 %v5110
      %v5143 = vunpack.c.l.b16 %v5111
      %v5144 = vunpack.c.l.b16 %v5112
      %v5145 = vunpack.c.l.b16 %v5113
      %v5146 = vunpack.c.l.b16 %v5114
      %v5147 = vunpack.c.l.b16 %v5115
      %v5148 = vpack.c.b16 %v5133, %v5132
      %v5149 = vpack.c.b16 %v5135, %v5134
      %v5150 = vpack.c.b16 %v5137, %v5136
      %v5151 = vpack.c.b16 %v5139, %v5138
      %v5152 = vpack.c.b16 %v5141, %v5140
      %v5153 = vpack.c.b16 %v5143, %v5142
      %v5154 = vpack.c.b16 %v5145, %v5144
      %v5155 = vpack.c.b16 %v5147, %v5146
      %5164 = vmatprep.subr.bf16.mxu0 0
      %5165 = vmatpush1.bf16.msra.mxu0 %v5148
      %5166 = vmatprep.subr.bf16.mxu0 0
      %5167 = vmatpush1.bf16.msra.mxu0 %v5149
      %5168 = vmatprep.subr.bf16.mxu0 0
      %5169 = vmatpush1.bf16.msra.mxu0 %v5150
      %5170 = vmatprep.subr.bf16.mxu0 0
      %5171 = vmatpush1.bf16.msra.mxu0 %v5151
      %5172 = vmatprep.subr.bf16.mxu0 0
      %5173 = vmatpush1.bf16.msra.mxu0 %v5152
      %5174 = vmatprep.subr.bf16.mxu0 0
      %5175 = vmatpush1.bf16.msra.mxu0 %v5153
      %5176 = vmatprep.subr.bf16.mxu0 0
      %5177 = vmatpush1.bf16.msra.mxu0 %v5154
      %5178 = vmatprep.subr.bf16.mxu0 0
      %5179 = vmatpush1.bf16.msra.mxu0 %v5155
      %5180 = vmatprep.subr.bf16.mxu0 0
      %5181 = vmatpush1.bf16.msra.mxu0 0
      %5182 = vmatprep.subr.bf16.mxu0 0
      %5183 = vmatpush1.bf16.msra.mxu0 0
      %5184 = vmatprep.subr.bf16.mxu0 0
      %5185 = vmatpush1.bf16.msra.mxu0 0
      %5186 = vmatprep.subr.bf16.mxu0 0
      %5187 = vmatpush1.bf16.msra.mxu0 0
      %5188 = vmatprep.subr.bf16.mxu0 0
      %5189 = vmatpush1.bf16.msra.mxu0 0
      %5190 = vmatprep.subr.bf16.mxu0 0
      %5191 = vmatpush1.bf16.msra.mxu0 0
      %5192 = vmatprep.subr.bf16.mxu0 0
      %5193 = vmatpush1.bf16.msra.mxu0 0
      %5194 = vmatprep.subr.bf16.mxu0 0
      %5195 = vmatpush1.bf16.msra.mxu0 0
      %5196 = vmatprep.mubr.bf16.mxu0 0
      %5197 = vmatmul.mubr.bf16.gmra.mrb[0].mxu0 %v5083
      %v5198 = vpop.f32.mrb[0].mxu0
      %v5199 = vadd.f32 0.0, %v5198
      %v5200 = vpop.f32.mrb[0].mxu0
      %v5201 = vpop.f32.mrb[0].mxu0
      %v5202 = vadd.f32 0.0, %v5201
      %v5203 = vpop.f32.mrb[0].mxu0
      %5204 = vmatprep.mubr.bf16.mxu0 0
      %5205 = vmatmul.mubr.bf16.gmra.mrb[0].mxu0 %v5084
      %v5206 = vpop.f32.mrb[0].mxu0
      %v5207 = vadd.f32 0.0, %v5206
      %v5208 = vpop.f32.mrb[0].mxu0
      %v5209 = vpop.f32.mrb[0].mxu0
      %v5210 = vadd.f32 0.0, %v5209
      %v5211 = vpop.f32.mrb[0].mxu0
      %5212 = vmatprep.mubr.bf16.mxu0 0
      %5213 = vmatmul.mubr.bf16.gmra.mrb[0].mxu0 %v5085
      %v5214 = vpop.f32.mrb[0].mxu0
      %v5215 = vadd.f32 0.0, %v5214
      %v5216 = vpop.f32.mrb[0].mxu0
      %v5217 = vpop.f32.mrb[0].mxu0
      %v5218 = vadd.f32 0.0, %v5217
      %v5219 = vpop.f32.mrb[0].mxu0
      %5220 = vmatprep.mubr.bf16.mxu0 0
      %5221 = vmatmul.mubr.bf16.gmra.mrb[0].mxu0 %v5086
      %v5222 = vpop.f32.mrb[0].mxu0
      %v5223 = vadd.f32 0.0, %v5222
      %v5224 = vpop.f32.mrb[0].mxu0
      %v5225 = vpop.f32.mrb[0].mxu0
      %v5226 = vadd.f32 0.0, %v5225
      %v5227 = vpop.f32.mrb[0].mxu0
      %5228 = vmatprep.mubr.bf16.mxu0 0
      %5229 = vmatmul.mubr.bf16.gmra.mrb[0].mxu0 %v5087
      %v5230 = vpop.f32.mrb[0].mxu0
      %v5231 = vadd.f32 0.0, %v5230
      %v5232 = vpop.f32.mrb[0].mxu0
      %v5233 = vpop.f32.mrb[0].mxu0
      %v5234 = vadd.f32 0.0, %v5233
      %v5235 = vpop.f32.mrb[0].mxu0
      %5236 = vmatprep.mubr.bf16.mxu0 0
      %5237 = vmatmul.mubr.bf16.gmra.mrb[0].mxu0 %v5088
      %v5238 = vpop.f32.mrb[0].mxu0
      %v5239 = vadd.f32 0.0, %v5238
      %v5240 = vpop.f32.mrb[0].mxu0
      %v5241 = vpop.f32.mrb[0].mxu0
      %v5242 = vadd.f32 0.0, %v5241
      %v5243 = vpop.f32.mrb[0].mxu0
      %5244 = vmatprep.mubr.bf16.mxu0 0
      %5245 = vmatmul.mubr.bf16.gmra.mrb[0].mxu0 %v5089
      %v5246 = vpop.f32.mrb[0].mxu0
      %v5247 = vadd.f32 0.0, %v5246
      %v5248 = vpop.f32.mrb[0].mxu0
      %v5249 = vpop.f32.mrb[0].mxu0
      %v5250 = vadd.f32 0.0, %v5249
      %v5251 = vpop.f32.mrb[0].mxu0
      %5252 = vmatprep.mubr.bf16.mxu0 0
      %5253 = vmatmul.mubr.bf16.gmra.mrb[0].mxu0 %v5090
      %v5254 = vpop.f32.mrb[0].mxu0
      %v5255 = vadd.f32 0.0, %v5254
      %v5256 = vpop.f32.mrb[0].mxu0
      %v5257 = vpop.f32.mrb[0].mxu0
      %v5258 = vadd.f32 0.0, %v5257
      %v5259 = vpop.f32.mrb[0].mxu0
      %5260 = vmatprep.mubr.bf16.mxu0 0
      %5261 = vmatmul.mubr.bf16.gmra.mrb[0].mxu0 %v5091
      %v5262 = vpop.f32.mrb[0].mxu0
      %v5263 = vadd.f32 0.0, %v5262
      %v5264 = vpop.f32.mrb[0].mxu0
      %v5265 = vpop.f32.mrb[0].mxu0
      %v5266 = vadd.f32 0.0, %v5265
      %v5267 = vpop.f32.mrb[0].mxu0
      %5268 = vmatprep.mubr.bf16.mxu0 0
      %5269 = vmatmul.mubr.bf16.gmra.mrb[0].mxu0 %v5092
      %v5270 = vpop.f32.mrb[0].mxu0
      %v5271 = vadd.f32 0.0, %v5270
      %v5272 = vpop.f32.mrb[0].mxu0
      %v5273 = vpop.f32.mrb[0].mxu0
      %v5274 = vadd.f32 0.0, %v5273
      %v5275 = vpop.f32.mrb[0].mxu0
      %5276 = vmatprep.mubr.bf16.mxu0 0
      %5277 = vmatmul.mubr.bf16.gmra.mrb[0].mxu0 %v5093
      %v5278 = vpop.f32.mrb[0].mxu0
      %v5279 = vadd.f32 0.0, %v5278
      %v5280 = vpop.f32.mrb[0].mxu0
      %v5281 = vpop.f32.mrb[0].mxu0
      %v5282 = vadd.f32 0.0, %v5281
      %v5283 = vpop.f32.mrb[0].mxu0
      %5284 = vmatprep.mubr.bf16.mxu0 0
      %5285 = vmatmul.mubr.bf16.gmra.mrb[0].mxu0 %v5094
      %v5286 = vpop.f32.mrb[0].mxu0
      %v5287 = vadd.f32 0.0, %v5286
      %v5288 = vpop.f32.mrb[0].mxu0
      %v5289 = vpop.f32.mrb[0].mxu0
      %v5290 = vadd.f32 0.0, %v5289
      %v5291 = vpop.f32.mrb[0].mxu0
      %5292 = vmatprep.mubr.bf16.mxu0 0
      %5293 = vmatmul.mubr.bf16.gmra.mrb[0].mxu0 %v5095
      %v5294 = vpop.f32.mrb[0].mxu0
      %v5295 = vadd.f32 0.0, %v5294
      %v5296 = vpop.f32.mrb[0].mxu0
      %v5297 = vpop.f32.mrb[0].mxu0
      %v5298 = vadd.f32 0.0, %v5297
      %v5299 = vpop.f32.mrb[0].mxu0
      %5300 = vmatprep.mubr.bf16.mxu0 0
      %5301 = vmatmul.mubr.bf16.gmra.mrb[0].mxu0 %v5096
      %v5302 = vpop.f32.mrb[0].mxu0
      %v5303 = vadd.f32 0.0, %v5302
      %v5304 = vpop.f32.mrb[0].mxu0
      %v5305 = vpop.f32.mrb[0].mxu0
      %v5306 = vadd.f32 0.0, %v5305
      %v5307 = vpop.f32.mrb[0].mxu0
      %5308 = vmatprep.mubr.bf16.mxu0 0
      %5309 = vmatmul.mubr.bf16.gmra.mrb[0].mxu0 %v5097
      %v5310 = vpop.f32.mrb[0].mxu0
      %v5311 = vadd.f32 0.0, %v5310
      %v5312 = vpop.f32.mrb[0].mxu0
      %v5313 = vpop.f32.mrb[0].mxu0
      %v5314 = vadd.f32 0.0, %v5313
      %v5315 = vpop.f32.mrb[0].mxu0
      %5316 = vmatprep.mubr.bf16.mxu0 0
      %5317 = vmatmul.mubr.bf16.gmra.mrb[0].mxu0 %v5098
      %v5318 = vpop.f32.mrb[0].mxu0
      %v5319 = vadd.f32 0.0, %v5318
      %v5320 = vpop.f32.mrb[0].mxu0
      %v5321 = vpop.f32.mrb[0].mxu0
      %v5322 = vadd.f32 0.0, %v5321
      %v5323 = vpop.f32.mrb[0].mxu0
      %5324 = vdwg.mxu0
      %v5325 = vadd.f32 %v5051, %v5199
      %v5326 = vadd.f32 %v5052, %v5202
      %v5327 = vadd.f32 %v5053, %v5207
      %v5328 = vadd.f32 %v5054, %v5210
      %v5329 = vadd.f32 %v5055, %v5215
      %v5330 = vadd.f32 %v5056, %v5218
      %v5331 = vadd.f32 %v5057, %v5223
      %v5332 = vadd.f32 %v5058, %v5226
      %v5333 = vadd.f32 %v5059, %v5231
      %v5334 = vadd.f32 %v5060, %v5234
      %v5335 = vadd.f32 %v5061, %v5239
      %v5336 = vadd.f32 %v5062, %v5242
      %v5337 = vadd.f32 %v5063, %v5247
      %v5338 = vadd.f32 %v5064, %v5250
      %v5339 = vadd.f32 %v5065, %v5255
      %v5340 = vadd.f32 %v5066, %v5258
      %v5341 = vadd.f32 %v5067, %v5263
      %v5342 = vadd.f32 %v5068, %v5266
      %v5343 = vadd.f32 %v5069, %v5271
      %v5344 = vadd.f32 %v5070, %v5274
      %v5345 = vadd.f32 %v5071, %v5279
      %v5346 = vadd.f32 %v5072, %v5282
      %v5347 = vadd.f32 %v5073, %v5287
      %v5348 = vadd.f32 %v5074, %v5290
      %v5349 = vadd.f32 %v5075, %v5295
      %v5350 = vadd.f32 %v5076, %v5298
      %v5351 = vadd.f32 %v5077, %v5303
      %v5352 = vadd.f32 %v5078, %v5306
      %v5353 = vadd.f32 %v5079, %v5311
      %v5354 = vadd.f32 %v5080, %v5314
      %v5355 = vadd.f32 %v5081, %v5319
      %v5356 = vadd.f32 %v5082, %v5322
      %v5357 = vsel %vm744, %v4469, 0.0
      %v5358 = vsel %vm745, %v4468, 0.0
      %v5359 = vsel %vm746, %v4467, 0.0
      %v5360 = vsel %vm747, %v4466, 0.0
      %v5361 = vsel %vm748, %v4465, 0.0
      %v5362 = vsel %vm749, %v4464, 0.0
      %v5363 = vsel %vm750, %v4463, 0.0
      %v5364 = vsel %vm751, %v4462, 0.0
      %v5365 = vsel %vm752, %v4461, 0.0
      %v5366 = vsel %vm753, %v4460, 0.0
      %v5367 = vsel %vm754, %v4459, 0.0
      %v5368 = vsel %vm755, %v4458, 0.0
      %v5369 = vsel %vm756, %v4457, 0.0
      %v5370 = vsel %vm757, %v4456, 0.0
      %v5371 = vsel %vm758, %v4455, 0.0
      %v5372 = vsel %vm759, %v4454, 0.0
      %v5373 = vsel %vm760, %v4453, 0.0
      %v5374 = vsel %vm761, %v4452, 0.0
      %v5375 = vsel %vm762, %v4451, 0.0
      %v5376 = vsel %vm763, %v4450, 0.0
      %v5377 = vsel %vm764, %v4449, 0.0
      %v5378 = vsel %vm765, %v4448, 0.0
      %v5379 = vsel %vm766, %v4447, 0.0
      %v5380 = vsel %vm767, %v4446, 0.0
      %v5381 = vsel %vm768, %v4445, 0.0
      %v5382 = vsel %vm769, %v4444, 0.0
      %v5383 = vsel %vm770, %v4443, 0.0
      %v5384 = vsel %vm771, %v4442, 0.0
      %v5385 = vsel %vm772, %v4441, 0.0
      %v5386 = vsel %vm773, %v4440, 0.0
      %v5387 = vsel %vm774, %v4439, 0.0
      %v5388 = vsel %vm775, %v4470, 0.0
      %v5389 = vpack.c.bf16 %v5358, %v5357
      %v5390 = vpack.c.bf16 %v5360, %v5359
      %v5391 = vpack.c.bf16 %v5362, %v5361
      %v5392 = vpack.c.bf16 %v5364, %v5363
      %v5393 = vpack.c.bf16 %v5366, %v5365
      %v5394 = vpack.c.bf16 %v5368, %v5367
      %v5395 = vpack.c.bf16 %v5370, %v5369
      %v5396 = vpack.c.bf16 %v5372, %v5371
      %v5397 = vpack.c.bf16 %v5374, %v5373
      %v5398 = vpack.c.bf16 %v5376, %v5375
      %v5399 = vpack.c.bf16 %v5378, %v5377
      %v5400 = vpack.c.bf16 %v5380, %v5379
      %v5401 = vpack.c.bf16 %v5382, %v5381
      %v5402 = vpack.c.bf16 %v5384, %v5383
      %v5403 = vpack.c.bf16 %v5386, %v5385
      %v5404 = vpack.c.bf16 %v5388, %v5387
      %s5405 = scalar_lea.vmem %s2, 320
      %v5406 = vld [vmem:[%s5405] sm:$0xf]
      %v5407 = vld [vmem:[%s5405 + $0x4] sm:$0xf]
      %v5408 = vld [vmem:[%s5405 + $0x8] sm:$0xf]
      %v5409 = vld [vmem:[%s5405 + $0xc] sm:$0xf]
      %v5410 = vld [vmem:[%s5405 + $0x10] sm:$0xf]
      %v5411 = vld [vmem:[%s5405 + $0x14] sm:$0xf]
      %v5412 = vld [vmem:[%s5405 + $0x18] sm:$0xf]
      %v5413 = vld [vmem:[%s5405 + $0x1c] sm:$0xf]
      %v5414 = vld [vmem:[%s5405 + $0x20] sm:$0xf]
      %v5415 = vld [vmem:[%s5405 + $0x24] sm:$0xf]
      %v5416 = vld [vmem:[%s5405 + $0x28] sm:$0xf]
      %v5417 = vld [vmem:[%s5405 + $0x2c] sm:$0xf]
      %v5418 = vld [vmem:[%s5405 + $0x30] sm:$0xf]
      %v5419 = vld [vmem:[%s5405 + $0x34] sm:$0xf]
      %v5420 = vld [vmem:[%s5405 + $0x38] sm:$0xf]
      %v5421 = vld [vmem:[%s5405 + $0x3c] sm:$0xf]
      %v5438 = vunpack.c.l.b16 %v5406
      %v5439 = vunpack.c.l.b16 %v5407
      %v5440 = vunpack.c.l.b16 %v5408
      %v5441 = vunpack.c.l.b16 %v5409
      %v5442 = vunpack.c.l.b16 %v5410
      %v5443 = vunpack.c.l.b16 %v5411
      %v5444 = vunpack.c.l.b16 %v5412
      %v5445 = vunpack.c.l.b16 %v5413
      %v5446 = vunpack.c.l.b16 %v5414
      %v5447 = vunpack.c.l.b16 %v5415
      %v5448 = vunpack.c.l.b16 %v5416
      %v5449 = vunpack.c.l.b16 %v5417
      %v5450 = vunpack.c.l.b16 %v5418
      %v5451 = vunpack.c.l.b16 %v5419
      %v5452 = vunpack.c.l.b16 %v5420
      %v5453 = vunpack.c.l.b16 %v5421
      %v5454 = vpack.c.b16 %v5439, %v5438
      %v5455 = vpack.c.b16 %v5441, %v5440
      %v5456 = vpack.c.b16 %v5443, %v5442
      %v5457 = vpack.c.b16 %v5445, %v5444
      %v5458 = vpack.c.b16 %v5447, %v5446
      %v5459 = vpack.c.b16 %v5449, %v5448
      %v5460 = vpack.c.b16 %v5451, %v5450
      %v5461 = vpack.c.b16 %v5453, %v5452
      %5470 = vmatprep.subr.bf16.mxu0 0
      %5471 = vmatpush1.bf16.msra.mxu0 %v5454
      %5472 = vmatprep.subr.bf16.mxu0 0
      %5473 = vmatpush1.bf16.msra.mxu0 %v5455
      %5474 = vmatprep.subr.bf16.mxu0 0
      %5475 = vmatpush1.bf16.msra.mxu0 %v5456
      %5476 = vmatprep.subr.bf16.mxu0 0
      %5477 = vmatpush1.bf16.msra.mxu0 %v5457
      %5478 = vmatprep.subr.bf16.mxu0 0
      %5479 = vmatpush1.bf16.msra.mxu0 %v5458
      %5480 = vmatprep.subr.bf16.mxu0 0
      %5481 = vmatpush1.bf16.msra.mxu0 %v5459
      %5482 = vmatprep.subr.bf16.mxu0 0
      %5483 = vmatpush1.bf16.msra.mxu0 %v5460
      %5484 = vmatprep.subr.bf16.mxu0 0
      %5485 = vmatpush1.bf16.msra.mxu0 %v5461
      %5486 = vmatprep.subr.bf16.mxu0 0
      %5487 = vmatpush1.bf16.msra.mxu0 0
      %5488 = vmatprep.subr.bf16.mxu0 0
      %5489 = vmatpush1.bf16.msra.mxu0 0
      %5490 = vmatprep.subr.bf16.mxu0 0
      %5491 = vmatpush1.bf16.msra.mxu0 0
      %5492 = vmatprep.subr.bf16.mxu0 0
      %5493 = vmatpush1.bf16.msra.mxu0 0
      %5494 = vmatprep.subr.bf16.mxu0 0
      %5495 = vmatpush1.bf16.msra.mxu0 0
      %5496 = vmatprep.subr.bf16.mxu0 0
      %5497 = vmatpush1.bf16.msra.mxu0 0
      %5498 = vmatprep.subr.bf16.mxu0 0
      %5499 = vmatpush1.bf16.msra.mxu0 0
      %5500 = vmatprep.subr.bf16.mxu0 0
      %5501 = vmatpush1.bf16.msra.mxu0 0
      %5502 = vmatprep.mubr.bf16.mxu0 0
      %5503 = vmatmul.mubr.bf16.gmra.mrb[0].mxu0 %v5389
      %v5504 = vpop.f32.mrb[0].mxu0
      %v5505 = vadd.f32 0.0, %v5504
      %v5506 = vpop.f32.mrb[0].mxu0
      %v5507 = vpop.f32.mrb[0].mxu0
      %v5508 = vadd.f32 0.0, %v5507
      %v5509 = vpop.f32.mrb[0].mxu0
      %5510 = vmatprep.mubr.bf16.mxu0 0
      %5511 = vmatmul.mubr.bf16.gmra.mrb[0].mxu0 %v5390
      %v5512 = vpop.f32.mrb[0].mxu0
      %v5513 = vadd.f32 0.0, %v5512
      %v5514 = vpop.f32.mrb[0].mxu0
      %v5515 = vpop.f32.mrb[0].mxu0
      %v5516 = vadd.f32 0.0, %v5515
      %v5517 = vpop.f32.mrb[0].mxu0
      %5518 = vmatprep.mubr.bf16.mxu0 0
      %5519 = vmatmul.mubr.bf16.gmra.mrb[0].mxu0 %v5391
      %v5520 = vpop.f32.mrb[0].mxu0
      %v5521 = vadd.f32 0.0, %v5520
      %v5522 = vpop.f32.mrb[0].mxu0
      %v5523 = vpop.f32.mrb[0].mxu0
      %v5524 = vadd.f32 0.0, %v5523
      %v5525 = vpop.f32.mrb[0].mxu0
      %5526 = vmatprep.mubr.bf16.mxu0 0
      %5527 = vmatmul.mubr.bf16.gmra.mrb[0].mxu0 %v5392
      %v5528 = vpop.f32.mrb[0].mxu0
      %v5529 = vadd.f32 0.0, %v5528
      %v5530 = vpop.f32.mrb[0].mxu0
      %v5531 = vpop.f32.mrb[0].mxu0
      %v5532 = vadd.f32 0.0, %v5531
      %v5533 = vpop.f32.mrb[0].mxu0
      %5534 = vmatprep.mubr.bf16.mxu0 0
      %5535 = vmatmul.mubr.bf16.gmra.mrb[0].mxu0 %v5393
      %v5536 = vpop.f32.mrb[0].mxu0
      %v5537 = vadd.f32 0.0, %v5536
      %v5538 = vpop.f32.mrb[0].mxu0
      %v5539 = vpop.f32.mrb[0].mxu0
      %v5540 = vadd.f32 0.0, %v5539
      %v5541 = vpop.f32.mrb[0].mxu0
      %5542 = vmatprep.mubr.bf16.mxu0 0
      %5543 = vmatmul.mubr.bf16.gmra.mrb[0].mxu0 %v5394
      %v5544 = vpop.f32.mrb[0].mxu0
      %v5545 = vadd.f32 0.0, %v5544
      %v5546 = vpop.f32.mrb[0].mxu0
      %v5547 = vpop.f32.mrb[0].mxu0
      %v5548 = vadd.f32 0.0, %v5547
      %v5549 = vpop.f32.mrb[0].mxu0
      %5550 = vmatprep.mubr.bf16.mxu0 0
      %5551 = vmatmul.mubr.bf16.gmra.mrb[0].mxu0 %v5395
      %v5552 = vpop.f32.mrb[0].mxu0
      %v5553 = vadd.f32 0.0, %v5552
      %v5554 = vpop.f32.mrb[0].mxu0
      %v5555 = vpop.f32.mrb[0].mxu0
      %v5556 = vadd.f32 0.0, %v5555
      %v5557 = vpop.f32.mrb[0].mxu0
      %5558 = vmatprep.mubr.bf16.mxu0 0
      %5559 = vmatmul.mubr.bf16.gmra.mrb[0].mxu0 %v5396
      %v5560 = vpop.f32.mrb[0].mxu0
      %v5561 = vadd.f32 0.0, %v5560
      %v5562 = vpop.f32.mrb[0].mxu0
      %v5563 = vpop.f32.mrb[0].mxu0
      %v5564 = vadd.f32 0.0, %v5563
      %v5565 = vpop.f32.mrb[0].mxu0
      %5566 = vmatprep.mubr.bf16.mxu0 0
      %5567 = vmatmul.mubr.bf16.gmra.mrb[0].mxu0 %v5397
      %v5568 = vpop.f32.mrb[0].mxu0
      %v5569 = vadd.f32 0.0, %v5568
      %v5570 = vpop.f32.mrb[0].mxu0
      %v5571 = vpop.f32.mrb[0].mxu0
      %v5572 = vadd.f32 0.0, %v5571
      %v5573 = vpop.f32.mrb[0].mxu0
      %5574 = vmatprep.mubr.bf16.mxu0 0
      %5575 = vmatmul.mubr.bf16.gmra.mrb[0].mxu0 %v5398
      %v5576 = vpop.f32.mrb[0].mxu0
      %v5577 = vadd.f32 0.0, %v5576
      %v5578 = vpop.f32.mrb[0].mxu0
      %v5579 = vpop.f32.mrb[0].mxu0
      %v5580 = vadd.f32 0.0, %v5579
      %v5581 = vpop.f32.mrb[0].mxu0
      %5582 = vmatprep.mubr.bf16.mxu0 0
      %5583 = vmatmul.mubr.bf16.gmra.mrb[0].mxu0 %v5399
      %v5584 = vpop.f32.mrb[0].mxu0
      %v5585 = vadd.f32 0.0, %v5584
      %v5586 = vpop.f32.mrb[0].mxu0
      %v5587 = vpop.f32.mrb[0].mxu0
      %v5588 = vadd.f32 0.0, %v5587
      %v5589 = vpop.f32.mrb[0].mxu0
      %5590 = vmatprep.mubr.bf16.mxu0 0
      %5591 = vmatmul.mubr.bf16.gmra.mrb[0].mxu0 %v5400
      %v5592 = vpop.f32.mrb[0].mxu0
      %v5593 = vadd.f32 0.0, %v5592
      %v5594 = vpop.f32.mrb[0].mxu0
      %v5595 = vpop.f32.mrb[0].mxu0
      %v5596 = vadd.f32 0.0, %v5595
      %v5597 = vpop.f32.mrb[0].mxu0
      %5598 = vmatprep.mubr.bf16.mxu0 0
      %5599 = vmatmul.mubr.bf16.gmra.mrb[0].mxu0 %v5401
      %v5600 = vpop.f32.mrb[0].mxu0
      %v5601 = vadd.f32 0.0, %v5600
      %v5602 = vpop.f32.mrb[0].mxu0
      %v5603 = vpop.f32.mrb[0].mxu0
      %v5604 = vadd.f32 0.0, %v5603
      %v5605 = vpop.f32.mrb[0].mxu0
      %5606 = vmatprep.mubr.bf16.mxu0 0
      %5607 = vmatmul.mubr.bf16.gmra.mrb[0].mxu0 %v5402
      %v5608 = vpop.f32.mrb[0].mxu0
      %v5609 = vadd.f32 0.0, %v5608
      %v5610 = vpop.f32.mrb[0].mxu0
      %v5611 = vpop.f32.mrb[0].mxu0
      %v5612 = vadd.f32 0.0, %v5611
      %v5613 = vpop.f32.mrb[0].mxu0
      %5614 = vmatprep.mubr.bf16.mxu0 0
      %5615 = vmatmul.mubr.bf16.gmra.mrb[0].mxu0 %v5403
      %v5616 = vpop.f32.mrb[0].mxu0
      %v5617 = vadd.f32 0.0, %v5616
      %v5618 = vpop.f32.mrb[0].mxu0
      %v5619 = vpop.f32.mrb[0].mxu0
      %v5620 = vadd.f32 0.0, %v5619
      %v5621 = vpop.f32.mrb[0].mxu0
      %5622 = vmatprep.mubr.bf16.mxu0 0
      %5623 = vmatmul.mubr.bf16.gmra.mrb[0].mxu0 %v5404
      %v5624 = vpop.f32.mrb[0].mxu0
      %v5625 = vadd.f32 0.0, %v5624
      %v5626 = vpop.f32.mrb[0].mxu0
      %v5627 = vpop.f32.mrb[0].mxu0
      %v5628 = vadd.f32 0.0, %v5627
      %v5629 = vpop.f32.mrb[0].mxu0
      %5630 = vdwg.mxu0
      %v5631 = vadd.f32 %v5325, %v5505
      %v5632 = vadd.f32 %v5326, %v5508
      %v5633 = vadd.f32 %v5327, %v5513
      %v5634 = vadd.f32 %v5328, %v5516
      %v5635 = vadd.f32 %v5329, %v5521
      %v5636 = vadd.f32 %v5330, %v5524
      %v5637 = vadd.f32 %v5331, %v5529
      %v5638 = vadd.f32 %v5332, %v5532
      %v5639 = vadd.f32 %v5333, %v5537
      %v5640 = vadd.f32 %v5334, %v5540
      %v5641 = vadd.f32 %v5335, %v5545
      %v5642 = vadd.f32 %v5336, %v5548
      %v5643 = vadd.f32 %v5337, %v5553
      %v5644 = vadd.f32 %v5338, %v5556
      %v5645 = vadd.f32 %v5339, %v5561
      %v5646 = vadd.f32 %v5340, %v5564
      %v5647 = vadd.f32 %v5341, %v5569
      %v5648 = vadd.f32 %v5342, %v5572
      %v5649 = vadd.f32 %v5343, %v5577
      %v5650 = vadd.f32 %v5344, %v5580
      %v5651 = vadd.f32 %v5345, %v5585
      %v5652 = vadd.f32 %v5346, %v5588
      %v5653 = vadd.f32 %v5347, %v5593
      %v5654 = vadd.f32 %v5348, %v5596
      %v5655 = vadd.f32 %v5349, %v5601
      %v5656 = vadd.f32 %v5350, %v5604
      %v5657 = vadd.f32 %v5351, %v5609
      %v5658 = vadd.f32 %v5352, %v5612
      %v5659 = vadd.f32 %v5353, %v5617
      %v5660 = vadd.f32 %v5354, %v5620
      %v5661 = vadd.f32 %v5355, %v5625
      %v5662 = vadd.f32 %v5356, %v5628
      %v5663 = vsel %vm840, %v3857, 0.0
      %v5664 = vsel %vm841, %v3856, 0.0
      %v5665 = vsel %vm842, %v3855, 0.0
      %v5666 = vsel %vm843, %v3854, 0.0
      %v5667 = vsel %vm844, %v3853, 0.0
      %v5668 = vsel %vm845, %v3852, 0.0
      %v5669 = vsel %vm846, %v3851, 0.0
      %v5670 = vsel %vm847, %v3850, 0.0
      %v5671 = vsel %vm848, %v3849, 0.0
      %v5672 = vsel %vm849, %v3848, 0.0
      %v5673 = vsel %vm850, %v3847, 0.0
      %v5674 = vsel %vm851, %v3846, 0.0
      %v5675 = vsel %vm852, %v3845, 0.0
      %v5676 = vsel %vm853, %v3844, 0.0
      %v5677 = vsel %vm854, %v3843, 0.0
      %v5678 = vsel %vm855, %v3842, 0.0
      %v5679 = vsel %vm856, %v3841, 0.0
      %v5680 = vsel %vm857, %v3840, 0.0
      %v5681 = vsel %vm858, %v3839, 0.0
      %v5682 = vsel %vm859, %v3838, 0.0
      %v5683 = vsel %vm860, %v3837, 0.0
      %v5684 = vsel %vm861, %v3836, 0.0
      %v5685 = vsel %vm862, %v3835, 0.0
      %v5686 = vsel %vm863, %v3834, 0.0
      %v5687 = vsel %vm864, %v3833, 0.0
      %v5688 = vsel %vm865, %v3832, 0.0
      %v5689 = vsel %vm866, %v3831, 0.0
      %v5690 = vsel %vm867, %v3830, 0.0
      %v5691 = vsel %vm868, %v3829, 0.0
      %v5692 = vsel %vm869, %v3828, 0.0
      %v5693 = vsel %vm870, %v3859, 0.0
      %v5694 = vsel %vm871, %v3858, 0.0
      %v5695 = vpack.c.bf16 %v5664, %v5663
      %v5696 = vpack.c.bf16 %v5666, %v5665
      %v5697 = vpack.c.bf16 %v5668, %v5667
      %v5698 = vpack.c.bf16 %v5670, %v5669
      %v5699 = vpack.c.bf16 %v5672, %v5671
      %v5700 = vpack.c.bf16 %v5674, %v5673
      %v5701 = vpack.c.bf16 %v5676, %v5675
      %v5702 = vpack.c.bf16 %v5678, %v5677
      %v5703 = vpack.c.bf16 %v5680, %v5679
      %v5704 = vpack.c.bf16 %v5682, %v5681
      %v5705 = vpack.c.bf16 %v5684, %v5683
      %v5706 = vpack.c.bf16 %v5686, %v5685
      %v5707 = vpack.c.bf16 %v5688, %v5687
      %v5708 = vpack.c.bf16 %v5690, %v5689
      %v5709 = vpack.c.bf16 %v5692, %v5691
      %v5710 = vpack.c.bf16 %v5694, %v5693
      %s5711 = scalar_lea.vmem %s2, 384
      %v5712 = vld [vmem:[%s5711] sm:$0xf]
      %v5713 = vld [vmem:[%s5711 + $0x4] sm:$0xf]
      %v5714 = vld [vmem:[%s5711 + $0x8] sm:$0xf]
      %v5715 = vld [vmem:[%s5711 + $0xc] sm:$0xf]
      %v5716 = vld [vmem:[%s5711 + $0x10] sm:$0xf]
      %v5717 = vld [vmem:[%s5711 + $0x14] sm:$0xf]
      %v5718 = vld [vmem:[%s5711 + $0x18] sm:$0xf]
      %v5719 = vld [vmem:[%s5711 + $0x1c] sm:$0xf]
      %v5720 = vld [vmem:[%s5711 + $0x20] sm:$0xf]
      %v5721 = vld [vmem:[%s5711 + $0x24] sm:$0xf]
      %v5722 = vld [vmem:[%s5711 + $0x28] sm:$0xf]
      %v5723 = vld [vmem:[%s5711 + $0x2c] sm:$0xf]
      %v5724 = vld [vmem:[%s5711 + $0x30] sm:$0xf]
      %v5725 = vld [vmem:[%s5711 + $0x34] sm:$0xf]
      %v5726 = vld [vmem:[%s5711 + $0x38] sm:$0xf]
      %v5727 = vld [vmem:[%s5711 + $0x3c] sm:$0xf]
      %v5744 = vunpack.c.l.b16 %v5712
      %v5745 = vunpack.c.l.b16 %v5713
      %v5746 = vunpack.c.l.b16 %v5714
      %v5747 = vunpack.c.l.b16 %v5715
      %v5748 = vunpack.c.l.b16 %v5716
      %v5749 = vunpack.c.l.b16 %v5717
      %v5750 = vunpack.c.l.b16 %v5718
      %v5751 = vunpack.c.l.b16 %v5719
      %v5752 = vunpack.c.l.b16 %v5720
      %v5753 = vunpack.c.l.b16 %v5721
      %v5754 = vunpack.c.l.b16 %v5722
      %v5755 = vunpack.c.l.b16 %v5723
      %v5756 = vunpack.c.l.b16 %v5724
      %v5757 = vunpack.c.l.b16 %v5725
      %v5758 = vunpack.c.l.b16 %v5726
      %v5759 = vunpack.c.l.b16 %v5727
      %v5760 = vpack.c.b16 %v5745, %v5744
      %v5761 = vpack.c.b16 %v5747, %v5746
      %v5762 = vpack.c.b16 %v5749, %v5748
      %v5763 = vpack.c.b16 %v5751, %v5750
      %v5764 = vpack.c.b16 %v5753, %v5752
      %v5765 = vpack.c.b16 %v5755, %v5754
      %v5766 = vpack.c.b16 %v5757, %v5756
      %v5767 = vpack.c.b16 %v5759, %v5758
      %5776 = vmatprep.subr.bf16.mxu0 0
      %5777 = vmatpush1.bf16.msra.mxu0 %v5760
      %5778 = vmatprep.subr.bf16.mxu0 0
      %5779 = vmatpush1.bf16.msra.mxu0 %v5761
      %5780 = vmatprep.subr.bf16.mxu0 0
      %5781 = vmatpush1.bf16.msra.mxu0 %v5762
      %5782 = vmatprep.subr.bf16.mxu0 0
      %5783 = vmatpush1.bf16.msra.mxu0 %v5763
      %5784 = vmatprep.subr.bf16.mxu0 0
      %5785 = vmatpush1.bf16.msra.mxu0 %v5764
      %5786 = vmatprep.subr.bf16.mxu0 0
      %5787 = vmatpush1.bf16.msra.mxu0 %v5765
      %5788 = vmatprep.subr.bf16.mxu0 0
      %5789 = vmatpush1.bf16.msra.mxu0 %v5766
      %5790 = vmatprep.subr.bf16.mxu0 0
      %5791 = vmatpush1.bf16.msra.mxu0 %v5767
      %5792 = vmatprep.subr.bf16.mxu0 0
      %5793 = vmatpush1.bf16.msra.mxu0 0
      %5794 = vmatprep.subr.bf16.mxu0 0
      %5795 = vmatpush1.bf16.msra.mxu0 0
      %5796 = vmatprep.subr.bf16.mxu0 0
      %5797 = vmatpush1.bf16.msra.mxu0 0
      %5798 = vmatprep.subr.bf16.mxu0 0
      %5799 = vmatpush1.bf16.msra.mxu0 0
      %5800 = vmatprep.subr.bf16.mxu0 0
      %5801 = vmatpush1.bf16.msra.mxu0 0
      %5802 = vmatprep.subr.bf16.mxu0 0
      %5803 = vmatpush1.bf16.msra.mxu0 0
      %5804 = vmatprep.subr.bf16.mxu0 0
      %5805 = vmatpush1.bf16.msra.mxu0 0
      %5806 = vmatprep.subr.bf16.mxu0 0
      %5807 = vmatpush1.bf16.msra.mxu0 0
      %5808 = vmatprep.mubr.bf16.mxu0 0
      %5809 = vmatmul.mubr.bf16.gmra.mrb[0].mxu0 %v5695
      %v5810 = vpop.f32.mrb[0].mxu0
      %v5811 = vadd.f32 0.0, %v5810
      %v5812 = vpop.f32.mrb[0].mxu0
      %v5813 = vpop.f32.mrb[0].mxu0
      %v5814 = vadd.f32 0.0, %v5813
      %v5815 = vpop.f32.mrb[0].mxu0
      %5816 = vmatprep.mubr.bf16.mxu0 0
      %5817 = vmatmul.mubr.bf16.gmra.mrb[0].mxu0 %v5696
      %v5818 = vpop.f32.mrb[0].mxu0
      %v5819 = vadd.f32 0.0, %v5818
      %v5820 = vpop.f32.mrb[0].mxu0
      %v5821 = vpop.f32.mrb[0].mxu0
      %v5822 = vadd.f32 0.0, %v5821
      %v5823 = vpop.f32.mrb[0].mxu0
      %5824 = vmatprep.mubr.bf16.mxu0 0
      %5825 = vmatmul.mubr.bf16.gmra.mrb[0].mxu0 %v5697
      %v5826 = vpop.f32.mrb[0].mxu0
      %v5827 = vadd.f32 0.0, %v5826
      %v5828 = vpop.f32.mrb[0].mxu0
      %v5829 = vpop.f32.mrb[0].mxu0
      %v5830 = vadd.f32 0.0, %v5829
      %v5831 = vpop.f32.mrb[0].mxu0
      %5832 = vmatprep.mubr.bf16.mxu0 0
      %5833 = vmatmul.mubr.bf16.gmra.mrb[0].mxu0 %v5698
      %v5834 = vpop.f32.mrb[0].mxu0
      %v5835 = vadd.f32 0.0, %v5834
      %v5836 = vpop.f32.mrb[0].mxu0
      %v5837 = vpop.f32.mrb[0].mxu0
      %v5838 = vadd.f32 0.0, %v5837
      %v5839 = vpop.f32.mrb[0].mxu0
      %5840 = vmatprep.mubr.bf16.mxu0 0
      %5841 = vmatmul.mubr.bf16.gmra.mrb[0].mxu0 %v5699
      %v5842 = vpop.f32.mrb[0].mxu0
      %v5843 = vadd.f32 0.0, %v5842
      %v5844 = vpop.f32.mrb[0].mxu0
      %v5845 = vpop.f32.mrb[0].mxu0
      %v5846 = vadd.f32 0.0, %v5845
      %v5847 = vpop.f32.mrb[0].mxu0
      %5848 = vmatprep.mubr.bf16.mxu0 0
      %5849 = vmatmul.mubr.bf16.gmra.mrb[0].mxu0 %v5700
      %v5850 = vpop.f32.mrb[0].mxu0
      %v5851 = vadd.f32 0.0, %v5850
      %v5852 = vpop.f32.mrb[0].mxu0
      %v5853 = vpop.f32.mrb[0].mxu0
      %v5854 = vadd.f32 0.0, %v5853
      %v5855 = vpop.f32.mrb[0].mxu0
      %5856 = vmatprep.mubr.bf16.mxu0 0
      %5857 = vmatmul.mubr.bf16.gmra.mrb[0].mxu0 %v5701
      %v5858 = vpop.f32.mrb[0].mxu0
      %v5859 = vadd.f32 0.0, %v5858
      %v5860 = vpop.f32.mrb[0].mxu0
      %v5861 = vpop.f32.mrb[0].mxu0
      %v5862 = vadd.f32 0.0, %v5861
      %v5863 = vpop.f32.mrb[0].mxu0
      %5864 = vmatprep.mubr.bf16.mxu0 0
      %5865 = vmatmul.mubr.bf16.gmra.mrb[0].mxu0 %v5702
      %v5866 = vpop.f32.mrb[0].mxu0
      %v5867 = vadd.f32 0.0, %v5866
      %v5868 = vpop.f32.mrb[0].mxu0
      %v5869 = vpop.f32.mrb[0].mxu0
      %v5870 = vadd.f32 0.0, %v5869
      %v5871 = vpop.f32.mrb[0].mxu0
      %5872 = vmatprep.mubr.bf16.mxu0 0
      %5873 = vmatmul.mubr.bf16.gmra.mrb[0].mxu0 %v5703
      %v5874 = vpop.f32.mrb[0].mxu0
      %v5875 = vadd.f32 0.0, %v5874
      %v5876 = vpop.f32.mrb[0].mxu0
      %v5877 = vpop.f32.mrb[0].mxu0
      %v5878 = vadd.f32 0.0, %v5877
      %v5879 = vpop.f32.mrb[0].mxu0
      %5880 = vmatprep.mubr.bf16.mxu0 0
      %5881 = vmatmul.mubr.bf16.gmra.mrb[0].mxu0 %v5704
      %v5882 = vpop.f32.mrb[0].mxu0
      %v5883 = vadd.f32 0.0, %v5882
      %v5884 = vpop.f32.mrb[0].mxu0
      %v5885 = vpop.f32.mrb[0].mxu0
      %v5886 = vadd.f32 0.0, %v5885
      %v5887 = vpop.f32.mrb[0].mxu0
      %5888 = vmatprep.mubr.bf16.mxu0 0
      %5889 = vmatmul.mubr.bf16.gmra.mrb[0].mxu0 %v5705
      %v5890 = vpop.f32.mrb[0].mxu0
      %v5891 = vadd.f32 0.0, %v5890
      %v5892 = vpop.f32.mrb[0].mxu0
      %v5893 = vpop.f32.mrb[0].mxu0
      %v5894 = vadd.f32 0.0, %v5893
      %v5895 = vpop.f32.mrb[0].mxu0
      %5896 = vmatprep.mubr.bf16.mxu0 0
      %5897 = vmatmul.mubr.bf16.gmra.mrb[0].mxu0 %v5706
      %v5898 = vpop.f32.mrb[0].mxu0
      %v5899 = vadd.f32 0.0, %v5898
      %v5900 = vpop.f32.mrb[0].mxu0
      %v5901 = vpop.f32.mrb[0].mxu0
      %v5902 = vadd.f32 0.0, %v5901
      %v5903 = vpop.f32.mrb[0].mxu0
      %5904 = vmatprep.mubr.bf16.mxu0 0
      %5905 = vmatmul.mubr.bf16.gmra.mrb[0].mxu0 %v5707
      %v5906 = vpop.f32.mrb[0].mxu0
      %v5907 = vadd.f32 0.0, %v5906
      %v5908 = vpop.f32.mrb[0].mxu0
      %v5909 = vpop.f32.mrb[0].mxu0
      %v5910 = vadd.f32 0.0, %v5909
      %v5911 = vpop.f32.mrb[0].mxu0
      %5912 = vmatprep.mubr.bf16.mxu0 0
      %5913 = vmatmul.mubr.bf16.gmra.mrb[0].mxu0 %v5708
      %v5914 = vpop.f32.mrb[0].mxu0
      %v5915 = vadd.f32 0.0, %v5914
      %v5916 = vpop.f32.mrb[0].mxu0
      %v5917 = vpop.f32.mrb[0].mxu0
      %v5918 = vadd.f32 0.0, %v5917
      %v5919 = vpop.f32.mrb[0].mxu0
      %5920 = vmatprep.mubr.bf16.mxu0 0
      %5921 = vmatmul.mubr.bf16.gmra.mrb[0].mxu0 %v5709
      %v5922 = vpop.f32.mrb[0].mxu0
      %v5923 = vadd.f32 0.0, %v5922
      %v5924 = vpop.f32.mrb[0].mxu0
      %v5925 = vpop.f32.mrb[0].mxu0
      %v5926 = vadd.f32 0.0, %v5925
      %v5927 = vpop.f32.mrb[0].mxu0
      %5928 = vmatprep.mubr.bf16.mxu0 0
      %5929 = vmatmul.mubr.bf16.gmra.mrb[0].mxu0 %v5710
      %v5930 = vpop.f32.mrb[0].mxu0
      %v5931 = vadd.f32 0.0, %v5930
      %v5932 = vpop.f32.mrb[0].mxu0
      %v5933 = vpop.f32.mrb[0].mxu0
      %v5934 = vadd.f32 0.0, %v5933
      %v5935 = vpop.f32.mrb[0].mxu0
      %5936 = vdwg.mxu0
      %v5937 = vadd.f32 %v5631, %v5811
      %v5938 = vadd.f32 %v5632, %v5814
      %v5939 = vadd.f32 %v5633, %v5819
      %v5940 = vadd.f32 %v5634, %v5822
      %v5941 = vadd.f32 %v5635, %v5827
      %v5942 = vadd.f32 %v5636, %v5830
      %v5943 = vadd.f32 %v5637, %v5835
      %v5944 = vadd.f32 %v5638, %v5838
      %v5945 = vadd.f32 %v5639, %v5843
      %v5946 = vadd.f32 %v5640, %v5846
      %v5947 = vadd.f32 %v5641, %v5851
      %v5948 = vadd.f32 %v5642, %v5854
      %v5949 = vadd.f32 %v5643, %v5859
      %v5950 = vadd.f32 %v5644, %v5862
      %v5951 = vadd.f32 %v5645, %v5867
      %v5952 = vadd.f32 %v5646, %v5870
      %v5953 = vadd.f32 %v5647, %v5875
      %v5954 = vadd.f32 %v5648, %v5878
      %v5955 = vadd.f32 %v5649, %v5883
      %v5956 = vadd.f32 %v5650, %v5886
      %v5957 = vadd.f32 %v5651, %v5891
      %v5958 = vadd.f32 %v5652, %v5894
      %v5959 = vadd.f32 %v5653, %v5899
      %v5960 = vadd.f32 %v5654, %v5902
      %v5961 = vadd.f32 %v5655, %v5907
      %v5962 = vadd.f32 %v5656, %v5910
      %v5963 = vadd.f32 %v5657, %v5915
      %v5964 = vadd.f32 %v5658, %v5918
      %v5965 = vadd.f32 %v5659, %v5923
      %v5966 = vadd.f32 %v5660, %v5926
      %v5967 = vadd.f32 %v5661, %v5931
      %v5968 = vadd.f32 %v5662, %v5934
      %v5969 = vsel %vm680, %v3766, 0.0
      %v5970 = vsel %vm681, %v3767, 0.0
      %v5971 = vsel %vm682, %v3768, 0.0
      %v5972 = vsel %vm683, %v3769, 0.0
      %v5973 = vsel %vm684, %v3770, 0.0
      %v5974 = vsel %vm685, %v3771, 0.0
      %v5975 = vsel %vm686, %v3772, 0.0
      %v5976 = vsel %vm687, %v3773, 0.0
      %v5977 = vsel %vm688, %v3774, 0.0
      %v5978 = vsel %vm689, %v3775, 0.0
      %v5979 = vsel %vm690, %v3776, 0.0
      %v5980 = vsel %vm691, %v3777, 0.0
      %v5981 = vsel %vm692, %v3778, 0.0
      %v5982 = vsel %vm693, %v3779, 0.0
      %v5983 = vsel %vm694, %v3780, 0.0
      %v5984 = vsel %vm695, %v3781, 0.0
      %v5985 = vsel %vm696, %v3782, 0.0
      %v5986 = vsel %vm697, %v3783, 0.0
      %v5987 = vsel %vm698, %v3784, 0.0
      %v5988 = vsel %vm699, %v3785, 0.0
      %v5989 = vsel %vm700, %v3786, 0.0
      %v5990 = vsel %vm701, %v3787, 0.0
      %v5991 = vsel %vm702, %v3788, 0.0
      %v5992 = vsel %vm703, %v3789, 0.0
      %v5993 = vsel %vm704, %v3790, 0.0
      %v5994 = vsel %vm705, %v3791, 0.0
      %v5995 = vsel %vm706, %v3792, 0.0
      %v5996 = vsel %vm707, %v3793, 0.0
      %v5997 = vsel %vm708, %v3794, 0.0
      %v5998 = vsel %vm709, %v3795, 0.0
      %v5999 = vsel %vm710, %v3764, 0.0
      %v6000 = vsel %vm711, %v3765, 0.0
      %v6001 = vpack.c.bf16 %v5970, %v5969
      %v6002 = vpack.c.bf16 %v5972, %v5971
      %v6003 = vpack.c.bf16 %v5974, %v5973
      %v6004 = vpack.c.bf16 %v5976, %v5975
      %v6005 = vpack.c.bf16 %v5978, %v5977
      %v6006 = vpack.c.bf16 %v5980, %v5979
      %v6007 = vpack.c.bf16 %v5982, %v5981
      %v6008 = vpack.c.bf16 %v5984, %v5983
      %v6009 = vpack.c.bf16 %v5986, %v5985
      %v6010 = vpack.c.bf16 %v5988, %v5987
      %v6011 = vpack.c.bf16 %v5990, %v5989
      %v6012 = vpack.c.bf16 %v5992, %v5991
      %v6013 = vpack.c.bf16 %v5994, %v5993
      %v6014 = vpack.c.bf16 %v5996, %v5995
      %v6015 = vpack.c.bf16 %v5998, %v5997
      %v6016 = vpack.c.bf16 %v6000, %v5999
      %s6017 = scalar_lea.vmem %s2, 448
      %v6018 = vld [vmem:[%s6017] sm:$0xf]
      %v6019 = vld [vmem:[%s6017 + $0x4] sm:$0xf]
      %v6020 = vld [vmem:[%s6017 + $0x8] sm:$0xf]
      %v6021 = vld [vmem:[%s6017 + $0xc] sm:$0xf]
      %v6022 = vld [vmem:[%s6017 + $0x10] sm:$0xf]
      %v6023 = vld [vmem:[%s6017 + $0x14] sm:$0xf]
      %v6024 = vld [vmem:[%s6017 + $0x18] sm:$0xf]
      %v6025 = vld [vmem:[%s6017 + $0x1c] sm:$0xf]
      %v6026 = vld [vmem:[%s6017 + $0x20] sm:$0xf]
      %v6027 = vld [vmem:[%s6017 + $0x24] sm:$0xf]
      %v6028 = vld [vmem:[%s6017 + $0x28] sm:$0xf]
      %v6029 = vld [vmem:[%s6017 + $0x2c] sm:$0xf]
      %v6030 = vld [vmem:[%s6017 + $0x30] sm:$0xf]
      %v6031 = vld [vmem:[%s6017 + $0x34] sm:$0xf]
      %v6032 = vld [vmem:[%s6017 + $0x38] sm:$0xf]
      %v6033 = vld [vmem:[%s6017 + $0x3c] sm:$0xf]
      %v6050 = vunpack.c.l.b16 %v6018
      %v6051 = vunpack.c.l.b16 %v6019
      %v6052 = vunpack.c.l.b16 %v6020
      %v6053 = vunpack.c.l.b16 %v6021
      %v6054 = vunpack.c.l.b16 %v6022
      %v6055 = vunpack.c.l.b16 %v6023
      %v6056 = vunpack.c.l.b16 %v6024
      %v6057 = vunpack.c.l.b16 %v6025
      %v6058 = vunpack.c.l.b16 %v6026
      %v6059 = vunpack.c.l.b16 %v6027
      %v6060 = vunpack.c.l.b16 %v6028
      %v6061 = vunpack.c.l.b16 %v6029
      %v6062 = vunpack.c.l.b16 %v6030
      %v6063 = vunpack.c.l.b16 %v6031
      %v6064 = vunpack.c.l.b16 %v6032
      %v6065 = vunpack.c.l.b16 %v6033
      %v6066 = vpack.c.b16 %v6051, %v6050
      %v6067 = vpack.c.b16 %v6053, %v6052
      %v6068 = vpack.c.b16 %v6055, %v6054
      %v6069 = vpack.c.b16 %v6057, %v6056
      %v6070 = vpack.c.b16 %v6059, %v6058
      %v6071 = vpack.c.b16 %v6061, %v6060
      %v6072 = vpack.c.b16 %v6063, %v6062
      %v6073 = vpack.c.b16 %v6065, %v6064
      %6082 = vmatprep.subr.bf16.mxu0 0
      %6083 = vmatpush1.bf16.msra.mxu0 %v6066
      %6084 = vmatprep.subr.bf16.mxu0 0
      %6085 = vmatpush1.bf16.msra.mxu0 %v6067
      %6086 = vmatprep.subr.bf16.mxu0 0
      %6087 = vmatpush1.bf16.msra.mxu0 %v6068
      %6088 = vmatprep.subr.bf16.mxu0 0
      %6089 = vmatpush1.bf16.msra.mxu0 %v6069
      %6090 = vmatprep.subr.bf16.mxu0 0
      %6091 = vmatpush1.bf16.msra.mxu0 %v6070
      %6092 = vmatprep.subr.bf16.mxu0 0
      %6093 = vmatpush1.bf16.msra.mxu0 %v6071
      %6094 = vmatprep.subr.bf16.mxu0 0
      %6095 = vmatpush1.bf16.msra.mxu0 %v6072
      %6096 = vmatprep.subr.bf16.mxu0 0
      %6097 = vmatpush1.bf16.msra.mxu0 %v6073
      %6098 = vmatprep.subr.bf16.mxu0 0
      %6099 = vmatpush1.bf16.msra.mxu0 0
      %6100 = vmatprep.subr.bf16.mxu0 0
      %6101 = vmatpush1.bf16.msra.mxu0 0
      %6102 = vmatprep.subr.bf16.mxu0 0
      %6103 = vmatpush1.bf16.msra.mxu0 0
      %6104 = vmatprep.subr.bf16.mxu0 0
      %6105 = vmatpush1.bf16.msra.mxu0 0
      %6106 = vmatprep.subr.bf16.mxu0 0
      %6107 = vmatpush1.bf16.msra.mxu0 0
      %6108 = vmatprep.subr.bf16.mxu0 0
      %6109 = vmatpush1.bf16.msra.mxu0 0
      %6110 = vmatprep.subr.bf16.mxu0 0
      %6111 = vmatpush1.bf16.msra.mxu0 0
      %6112 = vmatprep.subr.bf16.mxu0 0
      %6113 = vmatpush1.bf16.msra.mxu0 0
      %6114 = vmatprep.mubr.bf16.mxu0 0
      %6115 = vmatmul.mubr.bf16.gmra.mrb[0].mxu0 %v6001
      %v6116 = vpop.f32.mrb[0].mxu0
      %v6117 = vadd.f32 0.0, %v6116
      %v6118 = vpop.f32.mrb[0].mxu0
      %v6119 = vpop.f32.mrb[0].mxu0
      %v6120 = vadd.f32 0.0, %v6119
      %v6121 = vpop.f32.mrb[0].mxu0
      %6122 = vmatprep.mubr.bf16.mxu0 0
      %6123 = vmatmul.mubr.bf16.gmra.mrb[0].mxu0 %v6002
      %v6124 = vpop.f32.mrb[0].mxu0
      %v6125 = vadd.f32 0.0, %v6124
      %v6126 = vpop.f32.mrb[0].mxu0
      %v6127 = vpop.f32.mrb[0].mxu0
      %v6128 = vadd.f32 0.0, %v6127
      %v6129 = vpop.f32.mrb[0].mxu0
      %6130 = vmatprep.mubr.bf16.mxu0 0
      %6131 = vmatmul.mubr.bf16.gmra.mrb[0].mxu0 %v6003
      %v6132 = vpop.f32.mrb[0].mxu0
      %v6133 = vadd.f32 0.0, %v6132
      %v6134 = vpop.f32.mrb[0].mxu0
      %v6135 = vpop.f32.mrb[0].mxu0
      %v6136 = vadd.f32 0.0, %v6135
      %v6137 = vpop.f32.mrb[0].mxu0
      %6138 = vmatprep.mubr.bf16.mxu0 0
      %6139 = vmatmul.mubr.bf16.gmra.mrb[0].mxu0 %v6004
      %v6140 = vpop.f32.mrb[0].mxu0
      %v6141 = vadd.f32 0.0, %v6140
      %v6142 = vpop.f32.mrb[0].mxu0
      %v6143 = vpop.f32.mrb[0].mxu0
      %v6144 = vadd.f32 0.0, %v6143
      %v6145 = vpop.f32.mrb[0].mxu0
      %6146 = vmatprep.mubr.bf16.mxu0 0
      %6147 = vmatmul.mubr.bf16.gmra.mrb[0].mxu0 %v6005
      %v6148 = vpop.f32.mrb[0].mxu0
      %v6149 = vadd.f32 0.0, %v6148
      %v6150 = vpop.f32.mrb[0].mxu0
      %v6151 = vpop.f32.mrb[0].mxu0
      %v6152 = vadd.f32 0.0, %v6151
      %v6153 = vpop.f32.mrb[0].mxu0
      %6154 = vmatprep.mubr.bf16.mxu0 0
      %6155 = vmatmul.mubr.bf16.gmra.mrb[0].mxu0 %v6006
      %v6156 = vpop.f32.mrb[0].mxu0
      %v6157 = vadd.f32 0.0, %v6156
      %v6158 = vpop.f32.mrb[0].mxu0
      %v6159 = vpop.f32.mrb[0].mxu0
      %v6160 = vadd.f32 0.0, %v6159
      %v6161 = vpop.f32.mrb[0].mxu0
      %6162 = vmatprep.mubr.bf16.mxu0 0
      %6163 = vmatmul.mubr.bf16.gmra.mrb[0].mxu0 %v6007
      %v6164 = vpop.f32.mrb[0].mxu0
      %v6165 = vadd.f32 0.0, %v6164
      %v6166 = vpop.f32.mrb[0].mxu0
      %v6167 = vpop.f32.mrb[0].mxu0
      %v6168 = vadd.f32 0.0, %v6167
      %v6169 = vpop.f32.mrb[0].mxu0
      %6170 = vmatprep.mubr.bf16.mxu0 0
      %6171 = vmatmul.mubr.bf16.gmra.mrb[0].mxu0 %v6008
      %v6172 = vpop.f32.mrb[0].mxu0
      %v6173 = vadd.f32 0.0, %v6172
      %v6174 = vpop.f32.mrb[0].mxu0
      %v6175 = vpop.f32.mrb[0].mxu0
      %v6176 = vadd.f32 0.0, %v6175
      %v6177 = vpop.f32.mrb[0].mxu0
      %6178 = vmatprep.mubr.bf16.mxu0 0
      %6179 = vmatmul.mubr.bf16.gmra.mrb[0].mxu0 %v6009
      %v6180 = vpop.f32.mrb[0].mxu0
      %v6181 = vadd.f32 0.0, %v6180
      %v6182 = vpop.f32.mrb[0].mxu0
      %v6183 = vpop.f32.mrb[0].mxu0
      %v6184 = vadd.f32 0.0, %v6183
      %v6185 = vpop.f32.mrb[0].mxu0
      %6186 = vmatprep.mubr.bf16.mxu0 0
      %6187 = vmatmul.mubr.bf16.gmra.mrb[0].mxu0 %v6010
      %v6188 = vpop.f32.mrb[0].mxu0
      %v6189 = vadd.f32 0.0, %v6188
      %v6190 = vpop.f32.mrb[0].mxu0
      %v6191 = vpop.f32.mrb[0].mxu0
      %v6192 = vadd.f32 0.0, %v6191
      %v6193 = vpop.f32.mrb[0].mxu0
      %6194 = vmatprep.mubr.bf16.mxu0 0
      %6195 = vmatmul.mubr.bf16.gmra.mrb[0].mxu0 %v6011
      %v6196 = vpop.f32.mrb[0].mxu0
      %v6197 = vadd.f32 0.0, %v6196
      %v6198 = vpop.f32.mrb[0].mxu0
      %v6199 = vpop.f32.mrb[0].mxu0
      %v6200 = vadd.f32 0.0, %v6199
      %v6201 = vpop.f32.mrb[0].mxu0
      %6202 = vmatprep.mubr.bf16.mxu0 0
      %6203 = vmatmul.mubr.bf16.gmra.mrb[0].mxu0 %v6012
      %v6204 = vpop.f32.mrb[0].mxu0
      %v6205 = vadd.f32 0.0, %v6204
      %v6206 = vpop.f32.mrb[0].mxu0
      %v6207 = vpop.f32.mrb[0].mxu0
      %v6208 = vadd.f32 0.0, %v6207
      %v6209 = vpop.f32.mrb[0].mxu0
      %6210 = vmatprep.mubr.bf16.mxu0 0
      %6211 = vmatmul.mubr.bf16.gmra.mrb[0].mxu0 %v6013
      %v6212 = vpop.f32.mrb[0].mxu0
      %v6213 = vadd.f32 0.0, %v6212
      %v6214 = vpop.f32.mrb[0].mxu0
      %v6215 = vpop.f32.mrb[0].mxu0
      %v6216 = vadd.f32 0.0, %v6215
      %v6217 = vpop.f32.mrb[0].mxu0
      %6218 = vmatprep.mubr.bf16.mxu0 0
      %6219 = vmatmul.mubr.bf16.gmra.mrb[0].mxu0 %v6014
      %v6220 = vpop.f32.mrb[0].mxu0
      %v6221 = vadd.f32 0.0, %v6220
      %v6222 = vpop.f32.mrb[0].mxu0
      %v6223 = vpop.f32.mrb[0].mxu0
      %v6224 = vadd.f32 0.0, %v6223
      %v6225 = vpop.f32.mrb[0].mxu0
      %6226 = vmatprep.mubr.bf16.mxu0 0
      %6227 = vmatmul.mubr.bf16.gmra.mrb[0].mxu0 %v6015
      %v6228 = vpop.f32.mrb[0].mxu0
      %v6229 = vadd.f32 0.0, %v6228
      %v6230 = vpop.f32.mrb[0].mxu0
      %v6231 = vpop.f32.mrb[0].mxu0
      %v6232 = vadd.f32 0.0, %v6231
      %v6233 = vpop.f32.mrb[0].mxu0
      %6234 = vmatprep.mubr.bf16.mxu0 0
      %6235 = vmatmul.mubr.bf16.gmra.mrb[0].mxu0 %v6016
      %v6236 = vpop.f32.mrb[0].mxu0
      %v6237 = vadd.f32 0.0, %v6236
      %v6238 = vpop.f32.mrb[0].mxu0
      %v6239 = vpop.f32.mrb[0].mxu0
      %v6240 = vadd.f32 0.0, %v6239
      %v6241 = vpop.f32.mrb[0].mxu0
      %6242 = vdwg.mxu0
      %v6243 = vadd.f32 %v5937, %v6117
      %v6244 = vadd.f32 %v5938, %v6120
      %v6245 = vadd.f32 %v5939, %v6125
      %v6246 = vadd.f32 %v5940, %v6128
      %v6247 = vadd.f32 %v5941, %v6133
      %v6248 = vadd.f32 %v5942, %v6136
      %v6249 = vadd.f32 %v5943, %v6141
      %v6250 = vadd.f32 %v5944, %v6144
      %v6251 = vadd.f32 %v5945, %v6149
      %v6252 = vadd.f32 %v5946, %v6152
      %v6253 = vadd.f32 %v5947, %v6157
      %v6254 = vadd.f32 %v5948, %v6160
      %v6255 = vadd.f32 %v5949, %v6165
      %v6256 = vadd.f32 %v5950, %v6168
      %v6257 = vadd.f32 %v5951, %v6173
      %v6258 = vadd.f32 %v5952, %v6176
      %v6259 = vadd.f32 %v5953, %v6181
      %v6260 = vadd.f32 %v5954, %v6184
      %v6261 = vadd.f32 %v5955, %v6189
      %v6262 = vadd.f32 %v5956, %v6192
      %v6263 = vadd.f32 %v5957, %v6197
      %v6264 = vadd.f32 %v5958, %v6200
      %v6265 = vadd.f32 %v5959, %v6205
      %v6266 = vadd.f32 %v5960, %v6208
      %v6267 = vadd.f32 %v5961, %v6213
      %v6268 = vadd.f32 %v5962, %v6216
      %v6269 = vadd.f32 %v5963, %v6221
      %v6270 = vadd.f32 %v5964, %v6224
      %v6271 = vadd.f32 %v5965, %v6229
      %v6272 = vadd.f32 %v5966, %v6232
      %v6273 = vadd.f32 %v5967, %v6237
      %v6274 = vadd.f32 %v5968, %v6240
      %v6275 = vsel %vm872, %v4467, 0.0
      %v6276 = vsel %vm873, %v4466, 0.0
      %v6277 = vsel %vm874, %v4465, 0.0
      %v6278 = vsel %vm875, %v4464, 0.0
      %v6279 = vsel %vm876, %v4463, 0.0
      %v6280 = vsel %vm877, %v4462, 0.0
      %v6281 = vsel %vm878, %v4461, 0.0
      %v6282 = vsel %vm879, %v4460, 0.0
      %v6283 = vsel %vm880, %v4459, 0.0
      %v6284 = vsel %vm881, %v4458, 0.0
      %v6285 = vsel %vm882, %v4457, 0.0
      %v6286 = vsel %vm883, %v4456, 0.0
      %v6287 = vsel %vm884, %v4455, 0.0
      %v6288 = vsel %vm885, %v4454, 0.0
      %v6289 = vsel %vm886, %v4453, 0.0
      %v6290 = vsel %vm887, %v4452, 0.0
      %v6291 = vsel %vm888, %v4451, 0.0
      %v6292 = vsel %vm889, %v4450, 0.0
      %v6293 = vsel %vm890, %v4449, 0.0
      %v6294 = vsel %vm891, %v4448, 0.0
      %v6295 = vsel %vm892, %v4447, 0.0
      %v6296 = vsel %vm893, %v4446, 0.0
      %v6297 = vsel %vm894, %v4445, 0.0
      %v6298 = vsel %vm895, %v4444, 0.0
      %v6299 = vsel %vm896, %v4443, 0.0
      %v6300 = vsel %vm897, %v4442, 0.0
      %v6301 = vsel %vm898, %v4441, 0.0
      %v6302 = vsel %vm899, %v4440, 0.0
      %v6303 = vsel %vm900, %v4439, 0.0
      %v6304 = vsel %vm901, %v4470, 0.0
      %v6305 = vsel %vm902, %v4469, 0.0
      %v6306 = vsel %vm903, %v4468, 0.0
      %v6307 = vpack.c.bf16 %v6276, %v6275
      %v6308 = vpack.c.bf16 %v6278, %v6277
      %v6309 = vpack.c.bf16 %v6280, %v6279
      %v6310 = vpack.c.bf16 %v6282, %v6281
      %v6311 = vpack.c.bf16 %v6284, %v6283
      %v6312 = vpack.c.bf16 %v6286, %v6285
      %v6313 = vpack.c.bf16 %v6288, %v6287
      %v6314 = vpack.c.bf16 %v6290, %v6289
      %v6315 = vpack.c.bf16 %v6292, %v6291
      %v6316 = vpack.c.bf16 %v6294, %v6293
      %v6317 = vpack.c.bf16 %v6296, %v6295
      %v6318 = vpack.c.bf16 %v6298, %v6297
      %v6319 = vpack.c.bf16 %v6300, %v6299
      %v6320 = vpack.c.bf16 %v6302, %v6301
      %v6321 = vpack.c.bf16 %v6304, %v6303
      %v6322 = vpack.c.bf16 %v6306, %v6305
      %s6323 = scalar_lea.vmem %s2, 512
      %v6324 = vld [vmem:[%s6323] sm:$0xf]
      %v6325 = vld [vmem:[%s6323 + $0x4] sm:$0xf]
      %v6326 = vld [vmem:[%s6323 + $0x8] sm:$0xf]
      %v6327 = vld [vmem:[%s6323 + $0xc] sm:$0xf]
      %v6328 = vld [vmem:[%s6323 + $0x10] sm:$0xf]
      %v6329 = vld [vmem:[%s6323 + $0x14] sm:$0xf]
      %v6330 = vld [vmem:[%s6323 + $0x18] sm:$0xf]
      %v6331 = vld [vmem:[%s6323 + $0x1c] sm:$0xf]
      %v6332 = vld [vmem:[%s6323 + $0x20] sm:$0xf]
      %v6333 = vld [vmem:[%s6323 + $0x24] sm:$0xf]
      %v6334 = vld [vmem:[%s6323 + $0x28] sm:$0xf]
      %v6335 = vld [vmem:[%s6323 + $0x2c] sm:$0xf]
      %v6336 = vld [vmem:[%s6323 + $0x30] sm:$0xf]
      %v6337 = vld [vmem:[%s6323 + $0x34] sm:$0xf]
      %v6338 = vld [vmem:[%s6323 + $0x38] sm:$0xf]
      %v6339 = vld [vmem:[%s6323 + $0x3c] sm:$0xf]
      %v6356 = vunpack.c.l.b16 %v6324
      %v6357 = vunpack.c.l.b16 %v6325
      %v6358 = vunpack.c.l.b16 %v6326
      %v6359 = vunpack.c.l.b16 %v6327
      %v6360 = vunpack.c.l.b16 %v6328
      %v6361 = vunpack.c.l.b16 %v6329
      %v6362 = vunpack.c.l.b16 %v6330
      %v6363 = vunpack.c.l.b16 %v6331
      %v6364 = vunpack.c.l.b16 %v6332
      %v6365 = vunpack.c.l.b16 %v6333
      %v6366 = vunpack.c.l.b16 %v6334
      %v6367 = vunpack.c.l.b16 %v6335
      %v6368 = vunpack.c.l.b16 %v6336
      %v6369 = vunpack.c.l.b16 %v6337
      %v6370 = vunpack.c.l.b16 %v6338
      %v6371 = vunpack.c.l.b16 %v6339
      %v6372 = vpack.c.b16 %v6357, %v6356
      %v6373 = vpack.c.b16 %v6359, %v6358
      %v6374 = vpack.c.b16 %v6361, %v6360
      %v6375 = vpack.c.b16 %v6363, %v6362
      %v6376 = vpack.c.b16 %v6365, %v6364
      %v6377 = vpack.c.b16 %v6367, %v6366
      %v6378 = vpack.c.b16 %v6369, %v6368
      %v6379 = vpack.c.b16 %v6371, %v6370
      %6388 = vmatprep.subr.bf16.mxu0 0
      %6389 = vmatpush1.bf16.msra.mxu0 %v6372
      %6390 = vmatprep.subr.bf16.mxu0 0
      %6391 = vmatpush1.bf16.msra.mxu0 %v6373
      %6392 = vmatprep.subr.bf16.mxu0 0
      %6393 = vmatpush1.bf16.msra.mxu0 %v6374
      %6394 = vmatprep.subr.bf16.mxu0 0
      %6395 = vmatpush1.bf16.msra.mxu0 %v6375
      %6396 = vmatprep.subr.bf16.mxu0 0
      %6397 = vmatpush1.bf16.msra.mxu0 %v6376
      %6398 = vmatprep.subr.bf16.mxu0 0
      %6399 = vmatpush1.bf16.msra.mxu0 %v6377
      %6400 = vmatprep.subr.bf16.mxu0 0
      %6401 = vmatpush1.bf16.msra.mxu0 %v6378
      %6402 = vmatprep.subr.bf16.mxu0 0
      %6403 = vmatpush1.bf16.msra.mxu0 %v6379
      %6404 = vmatprep.subr.bf16.mxu0 0
      %6405 = vmatpush1.bf16.msra.mxu0 0
      %6406 = vmatprep.subr.bf16.mxu0 0
      %6407 = vmatpush1.bf16.msra.mxu0 0
      %6408 = vmatprep.subr.bf16.mxu0 0
      %6409 = vmatpush1.bf16.msra.mxu0 0
      %6410 = vmatprep.subr.bf16.mxu0 0
      %6411 = vmatpush1.bf16.msra.mxu0 0
      %6412 = vmatprep.subr.bf16.mxu0 0
      %6413 = vmatpush1.bf16.msra.mxu0 0
      %6414 = vmatprep.subr.bf16.mxu0 0
      %6415 = vmatpush1.bf16.msra.mxu0 0
      %6416 = vmatprep.subr.bf16.mxu0 0
      %6417 = vmatpush1.bf16.msra.mxu0 0
      %6418 = vmatprep.subr.bf16.mxu0 0
      %6419 = vmatpush1.bf16.msra.mxu0 0
      %6420 = vmatprep.mubr.bf16.mxu0 0
      %6421 = vmatmul.mubr.bf16.gmra.mrb[0].mxu0 %v6307
      %v6422 = vpop.f32.mrb[0].mxu0
      %v6423 = vadd.f32 0.0, %v6422
      %v6424 = vpop.f32.mrb[0].mxu0
      %v6425 = vpop.f32.mrb[0].mxu0
      %v6426 = vadd.f32 0.0, %v6425
      %v6427 = vpop.f32.mrb[0].mxu0
      %6428 = vmatprep.mubr.bf16.mxu0 0
      %6429 = vmatmul.mubr.bf16.gmra.mrb[0].mxu0 %v6308
      %v6430 = vpop.f32.mrb[0].mxu0
      %v6431 = vadd.f32 0.0, %v6430
      %v6432 = vpop.f32.mrb[0].mxu0
      %v6433 = vpop.f32.mrb[0].mxu0
      %v6434 = vadd.f32 0.0, %v6433
      %v6435 = vpop.f32.mrb[0].mxu0
      %6436 = vmatprep.mubr.bf16.mxu0 0
      %6437 = vmatmul.mubr.bf16.gmra.mrb[0].mxu0 %v6309
      %v6438 = vpop.f32.mrb[0].mxu0
      %v6439 = vadd.f32 0.0, %v6438
      %v6440 = vpop.f32.mrb[0].mxu0
      %v6441 = vpop.f32.mrb[0].mxu0
      %v6442 = vadd.f32 0.0, %v6441
      %v6443 = vpop.f32.mrb[0].mxu0
      %6444 = vmatprep.mubr.bf16.mxu0 0
      %6445 = vmatmul.mubr.bf16.gmra.mrb[0].mxu0 %v6310
      %v6446 = vpop.f32.mrb[0].mxu0
      %v6447 = vadd.f32 0.0, %v6446
      %v6448 = vpop.f32.mrb[0].mxu0
      %v6449 = vpop.f32.mrb[0].mxu0
      %v6450 = vadd.f32 0.0, %v6449
      %v6451 = vpop.f32.mrb[0].mxu0
      %6452 = vmatprep.mubr.bf16.mxu0 0
      %6453 = vmatmul.mubr.bf16.gmra.mrb[0].mxu0 %v6311
      %v6454 = vpop.f32.mrb[0].mxu0
      %v6455 = vadd.f32 0.0, %v6454
      %v6456 = vpop.f32.mrb[0].mxu0
      %v6457 = vpop.f32.mrb[0].mxu0
      %v6458 = vadd.f32 0.0, %v6457
      %v6459 = vpop.f32.mrb[0].mxu0
      %6460 = vmatprep.mubr.bf16.mxu0 0
      %6461 = vmatmul.mubr.bf16.gmra.mrb[0].mxu0 %v6312
      %v6462 = vpop.f32.mrb[0].mxu0
      %v6463 = vadd.f32 0.0, %v6462
      %v6464 = vpop.f32.mrb[0].mxu0
      %v6465 = vpop.f32.mrb[0].mxu0
      %v6466 = vadd.f32 0.0, %v6465
      %v6467 = vpop.f32.mrb[0].mxu0
      %6468 = vmatprep.mubr.bf16.mxu0 0
      %6469 = vmatmul.mubr.bf16.gmra.mrb[0].mxu0 %v6313
      %v6470 = vpop.f32.mrb[0].mxu0
      %v6471 = vadd.f32 0.0, %v6470
      %v6472 = vpop.f32.mrb[0].mxu0
      %v6473 = vpop.f32.mrb[0].mxu0
      %v6474 = vadd.f32 0.0, %v6473
      %v6475 = vpop.f32.mrb[0].mxu0
      %6476 = vmatprep.mubr.bf16.mxu0 0
      %6477 = vmatmul.mubr.bf16.gmra.mrb[0].mxu0 %v6314
      %v6478 = vpop.f32.mrb[0].mxu0
      %v6479 = vadd.f32 0.0, %v6478
      %v6480 = vpop.f32.mrb[0].mxu0
      %v6481 = vpop.f32.mrb[0].mxu0
      %v6482 = vadd.f32 0.0, %v6481
      %v6483 = vpop.f32.mrb[0].mxu0
      %6484 = vmatprep.mubr.bf16.mxu0 0
      %6485 = vmatmul.mubr.bf16.gmra.mrb[0].mxu0 %v6315
      %v6486 = vpop.f32.mrb[0].mxu0
      %v6487 = vadd.f32 0.0, %v6486
      %v6488 = vpop.f32.mrb[0].mxu0
      %v6489 = vpop.f32.mrb[0].mxu0
      %v6490 = vadd.f32 0.0, %v6489
      %v6491 = vpop.f32.mrb[0].mxu0
      %6492 = vmatprep.mubr.bf16.mxu0 0
      %6493 = vmatmul.mubr.bf16.gmra.mrb[0].mxu0 %v6316
      %v6494 = vpop.f32.mrb[0].mxu0
      %v6495 = vadd.f32 0.0, %v6494
      %v6496 = vpop.f32.mrb[0].mxu0
      %v6497 = vpop.f32.mrb[0].mxu0
      %v6498 = vadd.f32 0.0, %v6497
      %v6499 = vpop.f32.mrb[0].mxu0
      %6500 = vmatprep.mubr.bf16.mxu0 0
      %6501 = vmatmul.mubr.bf16.gmra.mrb[0].mxu0 %v6317
      %v6502 = vpop.f32.mrb[0].mxu0
      %v6503 = vadd.f32 0.0, %v6502
      %v6504 = vpop.f32.mrb[0].mxu0
      %v6505 = vpop.f32.mrb[0].mxu0
      %v6506 = vadd.f32 0.0, %v6505
      %v6507 = vpop.f32.mrb[0].mxu0
      %6508 = vmatprep.mubr.bf16.mxu0 0
      %6509 = vmatmul.mubr.bf16.gmra.mrb[0].mxu0 %v6318
      %v6510 = vpop.f32.mrb[0].mxu0
      %v6511 = vadd.f32 0.0, %v6510
      %v6512 = vpop.f32.mrb[0].mxu0
      %v6513 = vpop.f32.mrb[0].mxu0
      %v6514 = vadd.f32 0.0, %v6513
      %v6515 = vpop.f32.mrb[0].mxu0
      %6516 = vmatprep.mubr.bf16.mxu0 0
      %6517 = vmatmul.mubr.bf16.gmra.mrb[0].mxu0 %v6319
      %v6518 = vpop.f32.mrb[0].mxu0
      %v6519 = vadd.f32 0.0, %v6518
      %v6520 = vpop.f32.mrb[0].mxu0
      %v6521 = vpop.f32.mrb[0].mxu0
      %v6522 = vadd.f32 0.0, %v6521
      %v6523 = vpop.f32.mrb[0].mxu0
      %6524 = vmatprep.mubr.bf16.mxu0 0
      %6525 = vmatmul.mubr.bf16.gmra.mrb[0].mxu0 %v6320
      %v6526 = vpop.f32.mrb[0].mxu0
      %v6527 = vadd.f32 0.0, %v6526
      %v6528 = vpop.f32.mrb[0].mxu0
      %v6529 = vpop.f32.mrb[0].mxu0
      %v6530 = vadd.f32 0.0, %v6529
      %v6531 = vpop.f32.mrb[0].mxu0
      %6532 = vmatprep.mubr.bf16.mxu0 0
      %6533 = vmatmul.mubr.bf16.gmra.mrb[0].mxu0 %v6321
      %v6534 = vpop.f32.mrb[0].mxu0
      %v6535 = vadd.f32 0.0, %v6534
      %v6536 = vpop.f32.mrb[0].mxu0
      %v6537 = vpop.f32.mrb[0].mxu0
      %v6538 = vadd.f32 0.0, %v6537
      %v6539 = vpop.f32.mrb[0].mxu0
      %6540 = vmatprep.mubr.bf16.mxu0 0
      %6541 = vmatmul.mubr.bf16.gmra.mrb[0].mxu0 %v6322
      %v6542 = vpop.f32.mrb[0].mxu0
      %v6543 = vadd.f32 0.0, %v6542
      %v6544 = vpop.f32.mrb[0].mxu0
      %v6545 = vpop.f32.mrb[0].mxu0
      %v6546 = vadd.f32 0.0, %v6545
      %v6547 = vpop.f32.mrb[0].mxu0
      %6548 = vdwg.mxu0
      %v6549 = vadd.f32 %v6243, %v6423
      %v6550 = vadd.f32 %v6244, %v6426
      %v6551 = vadd.f32 %v6245, %v6431
      %v6552 = vadd.f32 %v6246, %v6434
      %v6553 = vadd.f32 %v6247, %v6439
      %v6554 = vadd.f32 %v6248, %v6442
      %v6555 = vadd.f32 %v6249, %v6447
      %v6556 = vadd.f32 %v6250, %v6450
      %v6557 = vadd.f32 %v6251, %v6455
      %v6558 = vadd.f32 %v6252, %v6458
      %v6559 = vadd.f32 %v6253, %v6463
      %v6560 = vadd.f32 %v6254, %v6466
      %v6561 = vadd.f32 %v6255, %v6471
      %v6562 = vadd.f32 %v6256, %v6474
      %v6563 = vadd.f32 %v6257, %v6479
      %v6564 = vadd.f32 %v6258, %v6482
      %v6565 = vadd.f32 %v6259, %v6487
      %v6566 = vadd.f32 %v6260, %v6490
      %v6567 = vadd.f32 %v6261, %v6495
      %v6568 = vadd.f32 %v6262, %v6498
      %v6569 = vadd.f32 %v6263, %v6503
      %v6570 = vadd.f32 %v6264, %v6506
      %v6571 = vadd.f32 %v6265, %v6511
      %v6572 = vadd.f32 %v6266, %v6514
      %v6573 = vadd.f32 %v6267, %v6519
      %v6574 = vadd.f32 %v6268, %v6522
      %v6575 = vadd.f32 %v6269, %v6527
      %v6576 = vadd.f32 %v6270, %v6530
      %v6577 = vadd.f32 %v6271, %v6535
      %v6578 = vadd.f32 %v6272, %v6538
      %v6579 = vadd.f32 %v6273, %v6543
      %v6580 = vadd.f32 %v6274, %v6546
      %v6581 = vlaneseq
      %v6582 = vshrl.u32 %v6581, 7
      %v6583 = vsub.s32 2, %v6582
      %v6584 = vrot.slane %v904, %v6583
      %v6585 = vmul.f32 %v6549, %v6584
      %v6586 = vmul.f32 %v6550, %v6584
      %v6587 = vmul.f32 %v6551, %v6584
      %v6588 = vmul.f32 %v6552, %v6584
      %v6589 = vmul.f32 %v6553, %v6584
      %v6590 = vmul.f32 %v6554, %v6584
      %v6591 = vmul.f32 %v6555, %v6584
      %v6592 = vmul.f32 %v6556, %v6584
      %v6593 = vmul.f32 %v6557, %v6584
      %v6594 = vmul.f32 %v6558, %v6584
      %v6595 = vmul.f32 %v6559, %v6584
      %v6596 = vmul.f32 %v6560, %v6584
      %v6597 = vmul.f32 %v6561, %v6584
      %v6598 = vmul.f32 %v6562, %v6584
      %v6599 = vmul.f32 %v6563, %v6584
      %v6600 = vmul.f32 %v6564, %v6584
      %v6601 = vmul.f32 %v6565, %v6584
      %v6602 = vmul.f32 %v6566, %v6584
      %v6603 = vmul.f32 %v6567, %v6584
      %v6604 = vmul.f32 %v6568, %v6584
      %v6605 = vmul.f32 %v6569, %v6584
      %v6606 = vmul.f32 %v6570, %v6584
      %v6607 = vmul.f32 %v6571, %v6584
      %v6608 = vmul.f32 %v6572, %v6584
      %v6609 = vmul.f32 %v6573, %v6584
      %v6610 = vmul.f32 %v6574, %v6584
      %v6611 = vmul.f32 %v6575, %v6584
      %v6612 = vmul.f32 %v6576, %v6584
      %v6613 = vmul.f32 %v6577, %v6584
      %v6614 = vmul.f32 %v6578, %v6584
      %v6615 = vmul.f32 %v6579, %v6584
      %v6616 = vmul.f32 %v6580, %v6584
      %v6617 = vlaneseq
      %v6618 = vshrl.u32 %v6617, 7
      %v6619 = vsub.s32 3, %v6618
      %v6620 = vrot.slane %v904, %v6619
      %v6621 = vadd.f32 %v6585, %v6620
      %v6622 = vadd.f32 %v6586, %v6620
      %v6623 = vadd.f32 %v6587, %v6620
      %v6624 = vadd.f32 %v6588, %v6620
      %v6625 = vadd.f32 %v6589, %v6620
      %v6626 = vadd.f32 %v6590, %v6620
      %v6627 = vadd.f32 %v6591, %v6620
      %v6628 = vadd.f32 %v6592, %v6620
      %v6629 = vadd.f32 %v6593, %v6620
      %v6630 = vadd.f32 %v6594, %v6620
      %v6631 = vadd.f32 %v6595, %v6620
      %v6632 = vadd.f32 %v6596, %v6620
      %v6633 = vadd.f32 %v6597, %v6620
      %v6634 = vadd.f32 %v6598, %v6620
      %v6635 = vadd.f32 %v6599, %v6620
      %v6636 = vadd.f32 %v6600, %v6620
      %v6637 = vadd.f32 %v6601, %v6620
      %v6638 = vadd.f32 %v6602, %v6620
      %v6639 = vadd.f32 %v6603, %v6620
      %v6640 = vadd.f32 %v6604, %v6620
      %v6641 = vadd.f32 %v6605, %v6620
      %v6642 = vadd.f32 %v6606, %v6620
      %v6643 = vadd.f32 %v6607, %v6620
      %v6644 = vadd.f32 %v6608, %v6620
      %v6645 = vadd.f32 %v6609, %v6620
      %v6646 = vadd.f32 %v6610, %v6620
      %v6647 = vadd.f32 %v6611, %v6620
      %v6648 = vadd.f32 %v6612, %v6620
      %v6649 = vadd.f32 %v6613, %v6620
      %v6650 = vadd.f32 %v6614, %v6620
      %v6651 = vadd.f32 %v6615, %v6620
      %v6652 = vadd.f32 %v6616, %v6620
      %v6653 = vadd.f32 %v6621, %v199
      %v6654 = vadd.f32 %v6622, %v200
      %v6655 = vadd.f32 %v6623, %v201
      %v6656 = vadd.f32 %v6624, %v202
      %v6657 = vadd.f32 %v6625, %v203
      %v6658 = vadd.f32 %v6626, %v204
      %v6659 = vadd.f32 %v6627, %v205
      %v6660 = vadd.f32 %v6628, %v206
      %v6661 = vadd.f32 %v6629, %v207
      %v6662 = vadd.f32 %v6630, %v208
      %v6663 = vadd.f32 %v6631, %v209
      %v6664 = vadd.f32 %v6632, %v210
      %v6665 = vadd.f32 %v6633, %v211
      %v6666 = vadd.f32 %v6634, %v212
      %v6667 = vadd.f32 %v6635, %v213
      %v6668 = vadd.f32 %v6636, %v214
      %v6669 = vadd.f32 %v6637, %v215
      %v6670 = vadd.f32 %v6638, %v216
      %v6671 = vadd.f32 %v6639, %v217
      %v6672 = vadd.f32 %v6640, %v218
      %v6673 = vadd.f32 %v6641, %v219
      %v6674 = vadd.f32 %v6642, %v220
      %v6675 = vadd.f32 %v6643, %v221
      %v6676 = vadd.f32 %v6644, %v222
      %v6677 = vadd.f32 %v6645, %v223
      %v6678 = vadd.f32 %v6646, %v224
      %v6679 = vadd.f32 %v6647, %v225
      %v6680 = vadd.f32 %v6648, %v226
      %v6681 = vadd.f32 %v6649, %v227
      %v6682 = vadd.f32 %v6650, %v228
      %v6683 = vadd.f32 %v6651, %v229
      %v6684 = vadd.f32 %v6652, %v230
      %v6685 = vmax.f32 %v6653, 0.0
      %v6686 = vmax.f32 %v6654, 0.0
      %v6687 = vmax.f32 %v6655, 0.0
      %v6688 = vmax.f32 %v6656, 0.0
      %v6689 = vmax.f32 %v6657, 0.0
      %v6690 = vmax.f32 %v6658, 0.0
      %v6691 = vmax.f32 %v6659, 0.0
      %v6692 = vmax.f32 %v6660, 0.0
      %v6693 = vmax.f32 %v6661, 0.0
      %v6694 = vmax.f32 %v6662, 0.0
      %v6695 = vmax.f32 %v6663, 0.0
      %v6696 = vmax.f32 %v6664, 0.0
      %v6697 = vmax.f32 %v6665, 0.0
      %v6698 = vmax.f32 %v6666, 0.0
      %v6699 = vmax.f32 %v6667, 0.0
      %v6700 = vmax.f32 %v6668, 0.0
      %v6701 = vmax.f32 %v6669, 0.0
      %v6702 = vmax.f32 %v6670, 0.0
      %v6703 = vmax.f32 %v6671, 0.0
      %v6704 = vmax.f32 %v6672, 0.0
      %v6705 = vmax.f32 %v6673, 0.0
      %v6706 = vmax.f32 %v6674, 0.0
      %v6707 = vmax.f32 %v6675, 0.0
      %v6708 = vmax.f32 %v6676, 0.0
      %v6709 = vmax.f32 %v6677, 0.0
      %v6710 = vmax.f32 %v6678, 0.0
      %v6711 = vmax.f32 %v6679, 0.0
      %v6712 = vmax.f32 %v6680, 0.0
      %v6713 = vmax.f32 %v6681, 0.0
      %v6714 = vmax.f32 %v6682, 0.0
      %v6715 = vmax.f32 %v6683, 0.0
      %v6716 = vmax.f32 %v6684, 0.0
      %6717 = vst [vmem:[%s197] sm:$0xff] %v6685
      %6718 = vst [vmem:[%s197 + $0x8] sm:$0xff] %v6686
      %6719 = vst [vmem:[%s197 + $0x10] sm:$0xff] %v6687
      %6720 = vst [vmem:[%s197 + $0x18] sm:$0xff] %v6688
      %6721 = vst [vmem:[%s197 + $0x20] sm:$0xff] %v6689
      %6722 = vst [vmem:[%s197 + $0x28] sm:$0xff] %v6690
      %6723 = vst [vmem:[%s197 + $0x30] sm:$0xff] %v6691
      %6724 = vst [vmem:[%s197 + $0x38] sm:$0xff] %v6692
      %6725 = vst [vmem:[%s197 + $0x40] sm:$0xff] %v6693
      %6726 = vst [vmem:[%s197 + $0x48] sm:$0xff] %v6694
      %6727 = vst [vmem:[%s197 + $0x50] sm:$0xff] %v6695
      %6728 = vst [vmem:[%s197 + $0x58] sm:$0xff] %v6696
      %6729 = vst [vmem:[%s197 + $0x60] sm:$0xff] %v6697
      %6730 = vst [vmem:[%s197 + $0x68] sm:$0xff] %v6698
      %6731 = vst [vmem:[%s197 + $0x70] sm:$0xff] %v6699
      %6732 = vst [vmem:[%s197 + $0x78] sm:$0xff] %v6700
      %6733 = vst [vmem:[%s197 + $0x80] sm:$0xff] %v6701
      %6734 = vst [vmem:[%s197 + $0x88] sm:$0xff] %v6702
      %6735 = vst [vmem:[%s197 + $0x90] sm:$0xff] %v6703
      %6736 = vst [vmem:[%s197 + $0x98] sm:$0xff] %v6704
      %6737 = vst [vmem:[%s197 + $0xa0] sm:$0xff] %v6705
      %6738 = vst [vmem:[%s197 + $0xa8] sm:$0xff] %v6706
      %6739 = vst [vmem:[%s197 + $0xb0] sm:$0xff] %v6707
      %6740 = vst [vmem:[%s197 + $0xb8] sm:$0xff] %v6708
      %6741 = vst [vmem:[%s197 + $0xc0] sm:$0xff] %v6709
      %6742 = vst [vmem:[%s197 + $0xc8] sm:$0xff] %v6710
      %6743 = vst [vmem:[%s197 + $0xd0] sm:$0xff] %v6711
      %6744 = vst [vmem:[%s197 + $0xd8] sm:$0xff] %v6712
      %6745 = vst [vmem:[%s197 + $0xe0] sm:$0xff] %v6713
      %6746 = vst [vmem:[%s197 + $0xe8] sm:$0xff] %v6714
      %6747 = vst [vmem:[%s197 + $0xf0] sm:$0xff] %v6715
      %6748 = vst [vmem:[%s197 + $0xf8] sm:$0xff] %v6716
      %p6749 = scmp.lt.s32.totalorder %s15, 1
      %s6750 = scalar_select %p6749, %s15, 1
      %s6751 = smul.addr %s6750, 32
      %s6752 = smul.addr %s6751, 8
      %s6753 = scalar_lea.vmem %s4, %s6752
      // Predicated region
      $region37: #{basic_block_forward.1} parent=35 // pred_check
        %p6754 = pneg %p122
      $region38: #{basic_block_forward.1} parent=35 // pred_check_branch
        %6756 = sbr.rel (%p6754) target = $region40
      $region39: #{basic_block_forward.1} parent=35 // pred_region
        _
      $region40: #{basic_block_forward.1} parent=35 // pred_fallthru
        _
    $region36: #{basic_block_forward.1} parent=5 // pred_fallthru
      _
    %p6757 = scmp.le.s32.totalorder 2, %s10
    // Predicated region
    $region41: #{basic_block_forward.1} parent=5 // pred_check
      %p6758 = pneg %p6757
    $region42: #{basic_block_forward.1} parent=5 // pred_check_branch
      %6760 = sbr.rel (%p6758) target = $region44
    $region43: #{basic_block_forward.1} parent=5 // pred_region
      %s6761 = ssub.s32 %s10, 2
      // Predicated region
      $region45: #{basic_block_forward.1} parent=43 // pred_check
        %p6762 = pneg %p128
      $region46: #{basic_block_forward.1} parent=43 // pred_check_branch
        %6764 = sbr.rel (%p6762) target = $region48
      $region47: #{basic_block_forward.1} parent=43 // pred_region
        %p6765 = scmp.lt.s32.totalorder %s16, 1
        %s6766 = scalar_select %p6765, %s16, 1
        %s6767 = smul.addr %s6766, 32
        %s6768 = smul.addr %s6767, 8
        %s6769 = scalar_lea.vmem %s4, %s6768
      $region48: #{basic_block_forward.1} parent=43 // pred_fallthru
        _
    $region44: #{basic_block_forward.1} parent=5 // pred_fallthru
      _
  $region6: #{basic_block_forward.1} parent=0 // loop_footer
    %s14 = sadd.s32 1, %s10
  $region7: #{basic_block_forward.1} parent=0 // loop_footer_branch
    %9 = sbr.rel target = $region3
  $region8: #{basic_block_forward.1} parent=0 // loop_exit
    _

</llo_original>
